<compile_context>
chip_gen: v5e
topology: v5e:2x2
jax: 0.10.0
libtpu: 0.0.40
codegen_flags: <defaults>
</compile_context>

<pallas_src>
import jax
import jax.numpy as jnp
from jax import lax
from jax.experimental import pallas as pl
from jax.experimental.pallas import tpu as pltpu

BN_EPS = 1e-5                       # torch.nn.BatchNorm1d default eps
COS_EPS = 1e-8                      # torch.nn.CosineSimilarity default eps
ROW_TILE_TARGET = 512               # rows per grid step (multiple of 16 for bf16 packing)
VMEM_LIMIT_BYTES = 40 * 1024 * 1024  # headroom-safe on v7x (64 MiB), plenty on v5e/v6e


def _cparams(n_axes):
    return pltpu.CompilerParams(
        dimension_semantics=("parallel",) * n_axes,
        vmem_limit_bytes=VMEM_LIMIT_BYTES,
    )


def _pick_row_tile(n, target=ROW_TILE_TARGET):
    """Largest multiple-of-16 divisor of n not exceeding `target` (n must be %16==0)."""
    best = 16
    t = 16
    while t <= min(n, target):
        if n % t == 0:
            best = t
        t += 16
    return best


# ----------------------------------------------------------------------------------
# In-kernel helpers
# ----------------------------------------------------------------------------------
def _bn_affine(x, s):
    """x: (rows, D) f32; s: (8, D) packed stats (row0 mean, row1 invstd, row2 g, row3 b)."""
    return (x - s[0:1]) * s[1:2] * s[2:3] + s[3:4]


def _write_moments(mom_ref, y):
    """Column sum / sum-of-squares of y (f32) -> (2, D) block. XLU reduction (MXU-free)."""
    mom_ref[0:1, :] = jnp.sum(y, axis=0, keepdims=True)
    mom_ref[1:2, :] = jnp.sum(y * y, axis=0, keepdims=True)


# ----------------------------------------------------------------------------------
# Kernels
# ----------------------------------------------------------------------------------
def _k_input_proj(x_ref, w_ref, y_ref, mom_ref):
    """Projector Linear #1, reading the NCHW map directly.

    x_ref: (C, S) f32 = one batch element's feature map, one branch.
    Cast to bf16 first so the in-VMEM transpose is a packed bf16 transpose.
    """
    xb = x_ref[...].astype(jnp.bfloat16)                    # (C, S) bf16
    y = jnp.dot(xb.T, w_ref[...], preferred_element_type=jnp.float32)   # (S, D) f32 acc
    y_ref[...] = y.astype(y_ref.dtype)                      # bf16 activation out
    _write_moments(mom_ref, y)                              # stats from the f32 values


def _k_bn_relu_linear(x_ref, s_ref, w_ref, y_ref, mom_ref):
    """BN(affine) -> ReLU -> Linear(bias=False); emits bf16 output tile + f32 moments."""
    s = s_ref[...]
    a = jnp.maximum(_bn_affine(x_ref[...].astype(jnp.float32), s), 0.0)
    y = jnp.dot(a.astype(jnp.bfloat16), w_ref[...], preferred_element_type=jnp.float32)
    y_ref[...] = y.astype(y_ref.dtype)
    _write_moments(mom_ref, y)


def _k_bn_relu_moments(x_ref, s_ref, mom_ref):
    """Moments of relu(bn(x)) only (feeds the projector's final affine-free BN)."""
    s = s_ref[...]
    a = jnp.maximum(_bn_affine(x_ref[...].astype(jnp.float32), s), 0.0)
    _write_moments(mom_ref, a)


def _k_bn_bn_linear(x_ref, s_ref, w_ref, y_ref, mom_ref):
    """BN2(affine) -> ReLU -> BN3(affine-free) -> Linear(bias=False); predictor layer 1.

    s rows: 0 mean2, 1 inv2, 2 gamma2, 3 beta2, 4 mean3, 5 inv3.
    """
    s = s_ref[...]
    a = jnp.maximum(_bn_affine(x_ref[...].astype(jnp.float32), s), 0.0)
    pz = (a - s[4:5]) * s[5:6]
    y = jnp.dot(pz.astype(jnp.bfloat16), w_ref[...], preferred_element_type=jnp.float32)
    y_ref[...] = y.astype(y_ref.dtype)
    _write_moments(mom_ref, y)


def _k_pred_cosine(y3_ref, sq_ref, wq2_ref, y2b_ref, sc_ref, part_ref):
    """Predictor layer 2 (+bias), re-derive pz2 from the target branch, per-tile cosine sum.

    sq rows: 0 meanq, 1 invq, 2 gammaq, 3 betaq.
    sc rows: 0 mean2_t, 1 inv2_t, 2 gamma2, 3 beta2, 4 mean3_t, 5 inv3_t, 6 bq2 (bias).
    """
    sq = sq_ref[...]
    sc = sc_ref[...]
    # p1 = Linear(relu(BNq(y3))) + bias
    h = jnp.maximum(_bn_affine(y3_ref[...].astype(jnp.float32), sq), 0.0)
    p1 = jnp.dot(h.astype(jnp.bfloat16), wq2_ref[...],
                 preferred_element_type=jnp.float32) + sc[6:7]
    # pz2 = BN3_affine_free(relu(BN2(y2_target)))  (recomputed: no extra HBM round trip)
    a2 = jnp.maximum(_bn_affine(y2b_ref[...].astype(jnp.float32), sc), 0.0)
    pz2 = (a2 - sc[4:5]) * sc[5:6]
    # cosine (torch semantics): w12 / sqrt(max(w11*w22, eps^2)) via EUP rsqrt
    w12 = jnp.sum(p1 * pz2, axis=-1, keepdims=True)
    w11 = jnp.sum(p1 * p1, axis=-1, keepdims=True)
    w22 = jnp.sum(pz2 * pz2, axis=-1, keepdims=True)
    cos = w12 * lax.rsqrt(jnp.maximum(w11 * w22, COS_EPS * COS_EPS))
    # pre-reduce to a per-tile scalar; write a lane-dense (8,128) block (no masked vst)
    part_ref[...] = jnp.broadcast_to(jnp.sum(cos), (8, 128)).astype(jnp.float32)


# ----------------------------------------------------------------------------------
# pallas_call runners
# ----------------------------------------------------------------------------------
def _input_proj(x, w):
    """x: (2, B, C, S) f32 NCHW maps (branch-stacked); w: (C, D) bf16.

    Returns y1 (2, B*S, D) bf16 and per-(branch, batch) moments (2, B, 2, D) f32.
    """
    _, B, C, S = x.shape
    D = w.shape[1]
    N = B * S
    return pl.pallas_call(
        _k_input_proj,
        grid=(2, B),
        in_specs=[
            pl.BlockSpec((None, None, C, S), lambda br, b: (br, b, 0, 0)),
            pl.BlockSpec((C, D), lambda br, b: (0, 0)),          # VMEM-resident weight
        ],
        out_specs=(
            pl.BlockSpec((None, S, D), lambda br, b: (br, b, 0)),
            pl.BlockSpec((None, None, 2, D), lambda br, b: (br, b, 0, 0)),
        ),
        out_shape=(
            jax.ShapeDtypeStruct((2, N, D), jnp.bfloat16),
            jax.ShapeDtypeStruct((2, B, 2, D), jnp.float32),
        ),
        compiler_params=_cparams(2),
    )(x, w)


def _bn_relu_linear(x, stats, w, tile):
    """x: (2, N, Din) bf16; stats: (2, 8, Din) f32; w: (Din, Dout) bf16."""
    _, N, Din = x.shape
    Dout = w.shape[1]
    T = N // tile
    return pl.pallas_call(
        _k_bn_relu_linear,
        grid=(2, T),
        in_specs=[
            pl.BlockSpec((None, tile, Din), lambda br, i: (br, i, 0)),
            pl.BlockSpec((None, 8, Din), lambda br, i: (br, 0, 0)),
            pl.BlockSpec((Din, Dout), lambda br, i: (0, 0)),
        ],
        out_specs=(
            pl.BlockSpec((None, tile, Dout), lambda br, i: (br, i, 0)),
            pl.BlockSpec((None, None, 2, Dout), lambda br, i: (br, i, 0, 0)),
        ),
        out_shape=(
            jax.ShapeDtypeStruct((2, N, Dout), jnp.bfloat16),
            jax.ShapeDtypeStruct((2, T, 2, Dout), jnp.float32),
        ),
        compiler_params=_cparams(2),
    )(x, stats, w)


def _bn_relu_moments(x, stats, tile):
    _, N, D = x.shape
    T = N // tile
    return pl.pallas_call(
        _k_bn_relu_moments,
        grid=(2, T),
        in_specs=[
            pl.BlockSpec((None, tile, D), lambda br, i: (br, i, 0)),
            pl.BlockSpec((None, 8, D), lambda br, i: (br, 0, 0)),
        ],
        out_specs=pl.BlockSpec((None, None, 2, D), lambda br, i: (br, i, 0, 0)),
        out_shape=jax.ShapeDtypeStruct((2, T, 2, D), jnp.float32),
        compiler_params=_cparams(2),
    )(x, stats)


def _bn_bn_linear(y2, stats, w, tile):
    """Anchor branch only (branch 0 of y2). stats: (8, Din); w: (Din, Dout) bf16."""
    _, N, Din = y2.shape
    Dout = w.shape[1]
    T = N // tile
    return pl.pallas_call(
        _k_bn_bn_linear,
        grid=(T,),
        in_specs=[
            pl.BlockSpec((None, tile, Din), lambda i: (0, i, 0)),
            pl.BlockSpec((8, Din), lambda i: (0, 0)),
            pl.BlockSpec((Din, Dout), lambda i: (0, 0)),
        ],
        out_specs=(
            pl.BlockSpec((tile, Dout), lambda i: (i, 0)),
            pl.BlockSpec((None, 2, Dout), lambda i: (i, 0, 0)),
        ),
        out_shape=(
            jax.ShapeDtypeStruct((N, Dout), jnp.bfloat16),
            jax.ShapeDtypeStruct((T, 2, Dout), jnp.float32),
        ),
        compiler_params=_cparams(1),
    )(y2, stats, w)


def _pred_cosine(y3, sq, wq2, y2, sc, tile):
    """y3: (N, P) bf16 anchor; y2: (2, N, C) bf16 (target branch used); returns (T, 8, 128)."""
    N, P = y3.shape
    C = wq2.shape[1]
    T = N // tile
    return pl.pallas_call(
        _k_pred_cosine,
        grid=(T,),
        in_specs=[
            pl.BlockSpec((tile, P), lambda i: (i, 0)),
            pl.BlockSpec((8, P), lambda i: (0, 0)),
            pl.BlockSpec((P, C), lambda i: (0, 0)),
            pl.BlockSpec((None, tile, C), lambda i: (1, i, 0)),   # target branch of y2
            pl.BlockSpec((8, C), lambda i: (0, 0)),
        ],
        out_specs=pl.BlockSpec((None, 8, 128), lambda i: (i, 0, 0)),
        out_shape=jax.ShapeDtypeStruct((T, 8, 128), jnp.float32),
        compiler_params=_cparams(1),
    )(y3, sq, wq2, y2, sc)


# ----------------------------------------------------------------------------------
# Host-side (tiny) helpers: stat combine & packing
# ----------------------------------------------------------------------------------
def _combine_bn_stats(mom, n_rows):
    """mom: (..., n_tiles, 2, D) per-tile moments -> (mean, invstd) over the full batch."""
    s = jnp.sum(mom[..., 0, :], axis=-2)
    q = jnp.sum(mom[..., 1, :], axis=-2)
    mean = s / n_rows
    var = jnp.maximum(q / n_rows - mean * mean, 0.0)   # biased var (torch BN fwd)
    return mean, lax.rsqrt(var + BN_EPS)


def _pack_branch_stats(mean, invstd, gamma, beta):
    """mean/invstd: (2, D); gamma/beta: (1, D) -> packed (2, 8, D)."""
    g = jnp.broadcast_to(gamma, mean.shape)
    b = jnp.broadcast_to(beta, mean.shape)
    z = jnp.zeros_like(mean)
    return jnp.stack([mean, invstd, g, b, z, z, z, z], axis=1)


def _pack_rows(*rows):
    """Pack up to 8 row vectors ((D,) or (1, D)) into a single (8, D) f32 stat block."""
    d = rows[0].shape[-1]
    rs = [r.reshape(1, d).astype(jnp.float32) for r in rows]
    rs += [jnp.zeros((1, d), jnp.float32)] * (8 - len(rs))
    return jnp.concatenate(rs, axis=0)


# ----------------------------------------------------------------------------------
# Parameters (PyTorch Linear weight (out, in) stored here transposed as (in, out))
# ----------------------------------------------------------------------------------
def init_params(key, prev_dim, contra_dim, pred_dim):
    assert contra_dim == prev_dim, "projector's final Linear is replaced by Identity"
    ks = jax.random.split(key, 4)
    scale = lambda fan_in: 1.0 / jnp.sqrt(jnp.float32(fan_in))
    return dict(
        wp1=jax.random.normal(ks[0], (prev_dim, prev_dim), jnp.float32) * scale(prev_dim),
        g1=jnp.ones((1, prev_dim), jnp.float32),
        b1=jnp.zeros((1, prev_dim), jnp.float32),
        wp2=jax.random.normal(ks[1], (prev_dim, prev_dim), jnp.float32) * scale(prev_dim),
        g2=jnp.ones((1, prev_dim), jnp.float32),
        b2=jnp.zeros((1, prev_dim), jnp.float32),
        wq1=jax.random.normal(ks[2], (contra_dim, pred_dim), jnp.float32) * scale(contra_dim),
        gq=jnp.ones((1, pred_dim), jnp.float32),
        bq=jnp.zeros((1, pred_dim), jnp.float32),
        wq2=jax.random.normal(ks[3], (pred_dim, contra_dim), jnp.float32) * scale(pred_dim),
        bq2=jnp.zeros((1, contra_dim), jnp.float32),
    )


# ----------------------------------------------------------------------------------
# Top-level forward loss (ConvMIM.forward_contrastive_mim_loss)
# ----------------------------------------------------------------------------------
@jax.jit
def convmim_forward_loss(anchor_map, target_map, params):
    # anchor_map / target_map: encoder outputs, NCHW (B, C, H, W)
    B, C, H, W = anchor_map.shape
    HW = H * W
    N = B * HW
    assert HW % 16 == 0, "H*W must be a multiple of 16 (bf16 row tiling); see TODO(synk)"

    # Stack the two branches once: (2, B, C, HW). z2.detach() is a forward no-op.
    x = jnp.stack([anchor_map.reshape(B, C, HW),
                   lax.stop_gradient(target_map).reshape(B, C, HW)], axis=0)

    # bf16 MXU operands (weights cast once); BN/cosine math stays f32.
    wp1 = params["wp1"].astype(jnp.bfloat16)
    wp2 = params["wp2"].astype(jnp.bfloat16)
    wq1 = params["wq1"].astype(jnp.bfloat16)
    wq2 = params["wq2"].astype(jnp.bfloat16)
    g1, b1 = params["g1"], params["b1"]
    g2, b2 = params["g2"], params["b2"]
    gq, bq = params["gq"], params["bq"]
    bq2 = params["bq2"]

    tile = _pick_row_tile(N)

    # ---- projector Linear #1 (both branches fused), NCHW read directly ----
    y1, mom1 = _input_proj(x, wp1)                       # y1 (2,N,D) bf16
    mean1, inv1 = _combine_bn_stats(mom1, N)             # (2, D) each (per-branch stats)
    s1 = _pack_branch_stats(mean1, inv1, g1, b1)         # (2, 8, D)

    # ---- BN1 -> ReLU -> Linear #2 (both branches fused) ----
    y2, mom2 = _bn_relu_linear(y1, s1, wp2, tile)        # y2 (2,N,D) bf16
    mean2, inv2 = _combine_bn_stats(mom2, N)
    s2 = _pack_branch_stats(mean2, inv2, g2, b2)

    # ---- stats for the projector's final affine-free BN over relu(BN2(y2)) ----
    mom3 = _bn_relu_moments(y2, s2, tile)
    mean3, inv3 = _combine_bn_stats(mom3, N)

    # ---- predictor Linear #1 (anchor branch): BN2 -> ReLU -> BN3 -> Linear ----
    s_pred = _pack_rows(mean2[0], inv2[0], g2, b2, mean3[0], inv3[0])   # (8, D)
    y3, momq = _bn_bn_linear(y2, s_pred, wq1, tile)      # y3 (N, P) bf16
    meanq, invq = _combine_bn_stats(momq, N)             # (P,) each

    # ---- predictor Linear #2 (+bias), recompute pz2 for target, per-tile cosine sums ----
    sq = _pack_rows(meanq, invq, gq, bq)                                # (8, P)
    sc = _pack_rows(mean2[1], inv2[1], g2, b2, mean3[1], inv3[1], bq2)  # (8, C)
    parts = _pred_cosine(y3, sq, wq2, y2, sc, tile)      # (T, 8, 128) partial sums
    return 1.0 - jnp.sum(parts[:, 0, 0]) / N


if __name__ == "__main__":
    key = jax.random.PRNGKey(0)
    # Small, lane-aligned shapes consistent with the module (prev_dim == contra_dim since
    # encoder.fc is Identity; pred_dim is the predictor's hidden dim).
    B, C, H, W = 2, 256, 16, 16
    contra_dim, pred_dim = 256, 128

    k1, k2, k3 = jax.random.split(key, 3)
    anchor_map = jax.random.normal(k1, (B, C, H, W), jnp.float32)
    target_map = jax.random.normal(k2, (B, C, H, W), jnp.float32)
    params = init_params(k3, prev_dim=C, contra_dim=contra_dim, pred_dim=pred_dim)

    loss = convmim_forward_loss(anchor_map, target_map, params)
    jax.block_until_ready(loss)
    assert bool(jnp.isfinite(loss)), "loss is not finite"
    print("KERNEL_OK")
</pallas_src>

<mosaic_0001>
module attributes {stable_mosaic.version = 11 : i64} {
  func.func @_k_input_proj(%arg0: i32, %arg1: i32, %arg2: memref<1x1x256x256xf32, #tpu.memory_space<vmem>>, %arg3: memref<256x256xbf16, #tpu.memory_space<vmem>>, %arg4: memref<1x256x256xbf16, #tpu.memory_space<vmem>>, %arg5: memref<1x1x2x256xf32, #tpu.memory_space<vmem>>) attributes {dimension_semantics = [#tpu.dimension_semantics<parallel>, #tpu.dimension_semantics<parallel>], iteration_bounds = array<i64: 2, 2>, scalar_prefetch = 0 : i64, scratch_operands = 0 : i64, tpu.core_type = #tpu.core_type<tc>, window_params = [{transform_indices = @transform_0, window_bounds = array<i64: 1, 1, 256, 256>}, {pipeline_mode = #tpu.pipeline_mode<synchronous>, transform_indices = @transform_1, window_bounds = array<i64: 256, 256>}, {transform_indices = @transform_2, window_bounds = array<i64: 1, 256, 256>}, {transform_indices = @transform_3, window_bounds = array<i64: 1, 1, 2, 256>}]} {
    %c0 = arith.constant 0 : index
    %c0_0 = arith.constant 0 : index
    %c0_1 = arith.constant 0 : index
    %c0_2 = arith.constant 0 : index
    %0 = vector.load %arg2[%c0, %c0_0, %c0_1, %c0_2] : memref<1x1x256x256xf32, #tpu.memory_space<vmem>>, vector<1x1x256x256xf32>
    %1 = vector.shape_cast %0 : vector<1x1x256x256xf32> to vector<256x256xf32>
    %2 = arith.truncf %1 : vector<256x256xf32> to vector<256x256xbf16>
    %3 = tpu.transpose %2, [1, 0] : vector<256x256xbf16> -> vector<256x256xbf16>
    %c0_3 = arith.constant 0 : index
    %c0_4 = arith.constant 0 : index
    %4 = vector.load %arg3[%c0_3, %c0_4] : memref<256x256xbf16, #tpu.memory_space<vmem>>, vector<256x256xbf16>
    %cst = arith.constant dense<0.000000e+00> : vector<256x256xf32>
    %5 = tpu.matmul %3, %4, %cst {dimension_numbers = #tpu.dot_dimension_numbers<[1], [0], [0], [1], [0, 0, 1, 1], [], []>} : vector<256x256xbf16>, vector<256x256xbf16>, vector<256x256xf32> -> vector<256x256xf32>
    %6 = arith.truncf %5 : vector<256x256xf32> to vector<256x256xbf16>
    %c0_5 = arith.constant 0 : index
    %c0_6 = arith.constant 0 : index
    %c0_7 = arith.constant 0 : index
    %7 = vector.load %arg4[%c0_5, %c0_6, %c0_7] : memref<1x256x256xbf16, #tpu.memory_space<vmem>>, vector<1x256x256xbf16>
    %8 = vector.shape_cast %7 : vector<1x256x256xbf16> to vector<256x256xbf16>
    %9 = vector.shape_cast %6 : vector<256x256xbf16> to vector<1x256x256xbf16>
    tpu.vector_store %arg4[%c0_5, %c0_6, %c0_7], %9 {strides = array<i32>} : memref<1x256x256xbf16, #tpu.memory_space<vmem>>, vector<1x256x256xbf16>,
    %cst_8 = arith.constant dense<0.000000e+00> : vector<256xf32>
    %10 = vector.multi_reduction <add>, %5, %cst_8 [0] : vector<256x256xf32> to vector<256xf32>
    %11 = vector.shape_cast %10 : vector<256xf32> to vector<1x256xf32>
    %c0_9 = arith.constant 0 : index
    %c0_10 = arith.constant 0 : index
    %c0_11 = arith.constant 0 : index
    %c0_12 = arith.constant 0 : index
    %12 = vector.load %arg5[%c0_9, %c0_10, %c0_11, %c0_12] : memref<1x1x2x256xf32, #tpu.memory_space<vmem>>, vector<1x1x1x256xf32>
    %13 = vector.shape_cast %12 : vector<1x1x1x256xf32> to vector<1x256xf32>
    %14 = vector.shape_cast %11 : vector<1x256xf32> to vector<1x1x1x256xf32>
    tpu.vector_store %arg5[%c0_9, %c0_10, %c0_11, %c0_12], %14 {strides = array<i32>} : memref<1x1x2x256xf32, #tpu.memory_space<vmem>>, vector<1x1x1x256xf32>,
    %15 = arith.mulf %5, %5 : vector<256x256xf32>
    %cst_13 = arith.constant dense<0.000000e+00> : vector<256xf32>
    %16 = vector.multi_reduction <add>, %15, %cst_13 [0] : vector<256x256xf32> to vector<256xf32>
    %17 = vector.shape_cast %16 : vector<256xf32> to vector<1x256xf32>
    %c0_14 = arith.constant 0 : index
    %c0_15 = arith.constant 0 : index
    %c1 = arith.constant 1 : index
    %c0_16 = arith.constant 0 : index
    %18 = vector.load %arg5[%c0_14, %c0_15, %c1, %c0_16] : memref<1x1x2x256xf32, #tpu.memory_space<vmem>>, vector<1x1x1x256xf32>
    %19 = vector.shape_cast %18 : vector<1x1x1x256xf32> to vector<1x256xf32>
    %20 = vector.shape_cast %17 : vector<1x256xf32> to vector<1x1x1x256xf32>
    tpu.vector_store %arg5[%c0_14, %c0_15, %c1, %c0_16], %20 {strides = array<i32>} : memref<1x1x2x256xf32, #tpu.memory_space<vmem>>, vector<1x1x1x256xf32>,
    return
  }
  func.func @transform_0(%arg0: i32, %arg1: i32) -> (i32, i32, i32, i32) {
    %c0_i32 = arith.constant 0 : i32
    %c0_i32_0 = arith.constant 0 : i32
    %c0_i32_1 = arith.constant 0 : i32
    return %arg0, %arg1, %c0_i32, %c0_i32_0 : i32, i32, i32, i32
  }
  func.func @transform_1(%arg0: i32, %arg1: i32) -> (i32, i32) {
    %c0_i32 = arith.constant 0 : i32
    %c0_i32_0 = arith.constant 0 : i32
    %c0_i32_1 = arith.constant 0 : i32
    return %c0_i32, %c0_i32_0 : i32, i32
  }
  func.func @transform_2(%arg0: i32, %arg1: i32) -> (i32, i32, i32) {
    %c0_i32 = arith.constant 0 : i32
    %c0_i32_0 = arith.constant 0 : i32
    return %arg0, %arg1, %c0_i32 : i32, i32, i32
  }
  func.func @transform_3(%arg0: i32, %arg1: i32) -> (i32, i32, i32, i32) {
    %c0_i32 = arith.constant 0 : i32
    %c0_i32_0 = arith.constant 0 : i32
    %c0_i32_1 = arith.constant 0 : i32
    return %arg0, %arg1, %c0_i32, %c0_i32_0 : i32, i32, i32, i32
  }
}

module attributes {stable_mosaic.version = 11 : i64} {
  func.func @_k_bn_relu_linear(%arg0: i32, %arg1: i32, %arg2: memref<1x512x256xbf16, #tpu.memory_space<vmem>>, %arg3: memref<1x8x256xf32, #tpu.memory_space<vmem>>, %arg4: memref<256x256xbf16, #tpu.memory_space<vmem>>, %arg5: memref<1x512x256xbf16, #tpu.memory_space<vmem>>, %arg6: memref<1x1x2x256xf32, #tpu.memory_space<vmem>>) attributes {dimension_semantics = [#tpu.dimension_semantics<parallel>, #tpu.dimension_semantics<parallel>], iteration_bounds = array<i64: 2, 1>, scalar_prefetch = 0 : i64, scratch_operands = 0 : i64, tpu.core_type = #tpu.core_type<tc>, window_params = [{transform_indices = @transform_0, window_bounds = array<i64: 1, 512, 256>}, {transform_indices = @transform_1, window_bounds = array<i64: 1, 8, 256>}, {pipeline_mode = #tpu.pipeline_mode<synchronous>, transform_indices = @transform_2, window_bounds = array<i64: 256, 256>}, {transform_indices = @transform_3, window_bounds = array<i64: 1, 512, 256>}, {transform_indices = @transform_4, window_bounds = array<i64: 1, 1, 2, 256>}]} {
    %c0 = arith.constant 0 : index
    %c0_0 = arith.constant 0 : index
    %c0_1 = arith.constant 0 : index
    %0 = vector.load %arg3[%c0, %c0_0, %c0_1] : memref<1x8x256xf32, #tpu.memory_space<vmem>>, vector<1x8x256xf32>
    %1 = vector.shape_cast %0 : vector<1x8x256xf32> to vector<8x256xf32>
    %c0_2 = arith.constant 0 : index
    %c0_3 = arith.constant 0 : index
    %c0_4 = arith.constant 0 : index
    %2 = vector.load %arg2[%c0_2, %c0_3, %c0_4] : memref<1x512x256xbf16, #tpu.memory_space<vmem>>, vector<1x512x256xbf16>
    %3 = vector.shape_cast %2 : vector<1x512x256xbf16> to vector<512x256xbf16>
    %4 = arith.extf %3 : vector<512x256xbf16> to vector<512x256xf32>
    %5 = vector.extract_strided_slice %1 {offsets = [0, 0], sizes = [1, 256], strides = [1, 1]} : vector<8x256xf32> to vector<1x256xf32>
    %6 = vector.broadcast %5 : vector<1x256xf32> to vector<512x256xf32>
    %7 = arith.subf %4, %6 : vector<512x256xf32>
    %8 = vector.extract_strided_slice %1 {offsets = [1, 0], sizes = [1, 256], strides = [1, 1]} : vector<8x256xf32> to vector<1x256xf32>
    %9 = vector.broadcast %8 : vector<1x256xf32> to vector<512x256xf32>
    %10 = arith.mulf %7, %9 : vector<512x256xf32>
    %11 = vector.extract_strided_slice %1 {offsets = [2, 0], sizes = [1, 256], strides = [1, 1]} : vector<8x256xf32> to vector<1x256xf32>
    %12 = vector.broadcast %11 : vector<1x256xf32> to vector<512x256xf32>
    %13 = arith.mulf %10, %12 : vector<512x256xf32>
    %14 = vector.extract_strided_slice %1 {offsets = [3, 0], sizes = [1, 256], strides = [1, 1]} : vector<8x256xf32> to vector<1x256xf32>
    %15 = vector.broadcast %14 : vector<1x256xf32> to vector<512x256xf32>
    %16 = arith.addf %13, %15 : vector<512x256xf32>
    %cst = arith.constant 0.000000e+00 : f32
    %17 = vector.broadcast %cst : f32 to vector<512x256xf32>
    %18 = arith.maximumf %16, %17 : vector<512x256xf32>
    %19 = arith.truncf %18 : vector<512x256xf32> to vector<512x256xbf16>
    %c0_5 = arith.constant 0 : index
    %c0_6 = arith.constant 0 : index
    %20 = vector.load %arg4[%c0_5, %c0_6] : memref<256x256xbf16, #tpu.memory_space<vmem>>, vector<256x256xbf16>
    %cst_7 = arith.constant dense<0.000000e+00> : vector<512x256xf32>
    %21 = tpu.matmul %19, %20, %cst_7 {dimension_numbers = #tpu.dot_dimension_numbers<[1], [0], [0], [1], [0, 0, 1, 1], [], []>} : vector<512x256xbf16>, vector<256x256xbf16>, vector<512x256xf32> -> vector<512x256xf32>
    %22 = arith.truncf %21 : vector<512x256xf32> to vector<512x256xbf16>
    %c0_8 = arith.constant 0 : index
    %c0_9 = arith.constant 0 : index
    %c0_10 = arith.constant 0 : index
    %23 = vector.load %arg5[%c0_8, %c0_9, %c0_10] : memref<1x512x256xbf16, #tpu.memory_space<vmem>>, vector<1x512x256xbf16>
    %24 = vector.shape_cast %23 : vector<1x512x256xbf16> to vector<512x256xbf16>
    %25 = vector.shape_cast %22 : vector<512x256xbf16> to vector<1x512x256xbf16>
    tpu.vector_store %arg5[%c0_8, %c0_9, %c0_10], %25 {strides = array<i32>} : memref<1x512x256xbf16, #tpu.memory_space<vmem>>, vector<1x512x256xbf16>,
    %cst_11 = arith.constant dense<0.000000e+00> : vector<256xf32>
    %26 = vector.multi_reduction <add>, %21, %cst_11 [0] : vector<512x256xf32> to vector<256xf32>
    %27 = vector.shape_cast %26 : vector<256xf32> to vector<1x256xf32>
    %c0_12 = arith.constant 0 : index
    %c0_13 = arith.constant 0 : index
    %c0_14 = arith.constant 0 : index
    %c0_15 = arith.constant 0 : index
    %28 = vector.load %arg6[%c0_12, %c0_13, %c0_14, %c0_15] : memref<1x1x2x256xf32, #tpu.memory_space<vmem>>, vector<1x1x1x256xf32>
    %29 = vector.shape_cast %28 : vector<1x1x1x256xf32> to vector<1x256xf32>
    %30 = vector.shape_cast %27 : vector<1x256xf32> to vector<1x1x1x256xf32>
    tpu.vector_store %arg6[%c0_12, %c0_13, %c0_14, %c0_15], %30 {strides = array<i32>} : memref<1x1x2x256xf32, #tpu.memory_space<vmem>>, vector<1x1x1x256xf32>,
    %31 = arith.mulf %21, %21 : vector<512x256xf32>
    %cst_16 = arith.constant dense<0.000000e+00> : vector<256xf32>
    %32 = vector.multi_reduction <add>, %31, %cst_16 [0] : vector<512x256xf32> to vector<256xf32>
    %33 = vector.shape_cast %32 : vector<256xf32> to vector<1x256xf32>
    %c0_17 = arith.constant 0 : index
    %c0_18 = arith.constant 0 : index
    %c1 = arith.constant 1 : index
    %c0_19 = arith.constant 0 : index
    %34 = vector.load %arg6[%c0_17, %c0_18, %c1, %c0_19] : memref<1x1x2x256xf32, #tpu.memory_space<vmem>>, vector<1x1x1x256xf32>
    %35 = vector.shape_cast %34 : vector<1x1x1x256xf32> to vector<1x256xf32>
    %36 = vector.shape_cast %33 : vector<1x256xf32> to vector<1x1x1x256xf32>
    tpu.vector_store %arg6[%c0_17, %c0_18, %c1, %c0_19], %36 {strides = array<i32>} : memref<1x1x2x256xf32, #tpu.memory_space<vmem>>, vector<1x1x1x256xf32>,
    return
  }
  func.func @transform_0(%arg0: i32, %arg1: i32) -> (i32, i32, i32) {
    %c0_i32 = arith.constant 0 : i32
    %c0_i32_0 = arith.constant 0 : i32
    return %arg0, %arg1, %c0_i32 : i32, i32, i32
  }
  func.func @transform_1(%arg0: i32, %arg1: i32) -> (i32, i32, i32) {
    %c0_i32 = arith.constant 0 : i32
    %c0_i32_0 = arith.constant 0 : i32
    %c0_i32_1 = arith.constant 0 : i32
    return %arg0, %c0_i32, %c0_i32_0 : i32, i32, i32
  }
  func.func @transform_2(%arg0: i32, %arg1: i32) -> (i32, i32) {
    %c0_i32 = arith.constant 0 : i32
    %c0_i32_0 = arith.constant 0 : i32
    %c0_i32_1 = arith.constant 0 : i32
    return %c0_i32, %c0_i32_0 : i32, i32
  }
  func.func @transform_3(%arg0: i32, %arg1: i32) -> (i32, i32, i32) {
    %c0_i32 = arith.constant 0 : i32
    %c0_i32_0 = arith.constant 0 : i32
    return %arg0, %arg1, %c0_i32 : i32, i32, i32
  }
  func.func @transform_4(%arg0: i32, %arg1: i32) -> (i32, i32, i32, i32) {
    %c0_i32 = arith.constant 0 : i32
    %c0_i32_0 = arith.constant 0 : i32
    %c0_i32_1 = arith.constant 0 : i32
    return %arg0, %arg1, %c0_i32, %c0_i32_0 : i32, i32, i32, i32
  }
}

module attributes {stable_mosaic.version = 11 : i64} {
  func.func @_k_bn_relu_moments(%arg0: i32, %arg1: i32, %arg2: memref<1x512x256xbf16, #tpu.memory_space<vmem>>, %arg3: memref<1x8x256xf32, #tpu.memory_space<vmem>>, %arg4: memref<1x1x2x256xf32, #tpu.memory_space<vmem>>) attributes {dimension_semantics = [#tpu.dimension_semantics<parallel>, #tpu.dimension_semantics<parallel>], iteration_bounds = array<i64: 2, 1>, scalar_prefetch = 0 : i64, scratch_operands = 0 : i64, tpu.core_type = #tpu.core_type<tc>, window_params = [{transform_indices = @transform_0, window_bounds = array<i64: 1, 512, 256>}, {transform_indices = @transform_1, window_bounds = array<i64: 1, 8, 256>}, {transform_indices = @transform_2, window_bounds = array<i64: 1, 1, 2, 256>}]} {
    %c0 = arith.constant 0 : index
    %c0_0 = arith.constant 0 : index
    %c0_1 = arith.constant 0 : index
    %0 = vector.load %arg3[%c0, %c0_0, %c0_1] : memref<1x8x256xf32, #tpu.memory_space<vmem>>, vector<1x8x256xf32>
    %1 = vector.shape_cast %0 : vector<1x8x256xf32> to vector<8x256xf32>
    %c0_2 = arith.constant 0 : index
    %c0_3 = arith.constant 0 : index
    %c0_4 = arith.constant 0 : index
    %2 = vector.load %arg2[%c0_2, %c0_3, %c0_4] : memref<1x512x256xbf16, #tpu.memory_space<vmem>>, vector<1x512x256xbf16>
    %3 = vector.shape_cast %2 : vector<1x512x256xbf16> to vector<512x256xbf16>
    %4 = arith.extf %3 : vector<512x256xbf16> to vector<512x256xf32>
    %5 = vector.extract_strided_slice %1 {offsets = [0, 0], sizes = [1, 256], strides = [1, 1]} : vector<8x256xf32> to vector<1x256xf32>
    %6 = vector.broadcast %5 : vector<1x256xf32> to vector<512x256xf32>
    %7 = arith.subf %4, %6 : vector<512x256xf32>
    %8 = vector.extract_strided_slice %1 {offsets = [1, 0], sizes = [1, 256], strides = [1, 1]} : vector<8x256xf32> to vector<1x256xf32>
    %9 = vector.broadcast %8 : vector<1x256xf32> to vector<512x256xf32>
    %10 = arith.mulf %7, %9 : vector<512x256xf32>
    %11 = vector.extract_strided_slice %1 {offsets = [2, 0], sizes = [1, 256], strides = [1, 1]} : vector<8x256xf32> to vector<1x256xf32>
    %12 = vector.broadcast %11 : vector<1x256xf32> to vector<512x256xf32>
    %13 = arith.mulf %10, %12 : vector<512x256xf32>
    %14 = vector.extract_strided_slice %1 {offsets = [3, 0], sizes = [1, 256], strides = [1, 1]} : vector<8x256xf32> to vector<1x256xf32>
    %15 = vector.broadcast %14 : vector<1x256xf32> to vector<512x256xf32>
    %16 = arith.addf %13, %15 : vector<512x256xf32>
    %cst = arith.constant 0.000000e+00 : f32
    %17 = vector.broadcast %cst : f32 to vector<512x256xf32>
    %18 = arith.maximumf %16, %17 : vector<512x256xf32>
    %cst_5 = arith.constant dense<0.000000e+00> : vector<256xf32>
    %19 = vector.multi_reduction <add>, %18, %cst_5 [0] : vector<512x256xf32> to vector<256xf32>
    %20 = vector.shape_cast %19 : vector<256xf32> to vector<1x256xf32>
    %c0_6 = arith.constant 0 : index
    %c0_7 = arith.constant 0 : index
    %c0_8 = arith.constant 0 : index
    %c0_9 = arith.constant 0 : index
    %21 = vector.load %arg4[%c0_6, %c0_7, %c0_8, %c0_9] : memref<1x1x2x256xf32, #tpu.memory_space<vmem>>, vector<1x1x1x256xf32>
    %22 = vector.shape_cast %21 : vector<1x1x1x256xf32> to vector<1x256xf32>
    %23 = vector.shape_cast %20 : vector<1x256xf32> to vector<1x1x1x256xf32>
    tpu.vector_store %arg4[%c0_6, %c0_7, %c0_8, %c0_9], %23 {strides = array<i32>} : memref<1x1x2x256xf32, #tpu.memory_space<vmem>>, vector<1x1x1x256xf32>,
    %24 = arith.mulf %18, %18 : vector<512x256xf32>
    %cst_10 = arith.constant dense<0.000000e+00> : vector<256xf32>
    %25 = vector.multi_reduction <add>, %24, %cst_10 [0] : vector<512x256xf32> to vector<256xf32>
    %26 = vector.shape_cast %25 : vector<256xf32> to vector<1x256xf32>
    %c0_11 = arith.constant 0 : index
    %c0_12 = arith.constant 0 : index
    %c1 = arith.constant 1 : index
    %c0_13 = arith.constant 0 : index
    %27 = vector.load %arg4[%c0_11, %c0_12, %c1, %c0_13] : memref<1x1x2x256xf32, #tpu.memory_space<vmem>>, vector<1x1x1x256xf32>
    %28 = vector.shape_cast %27 : vector<1x1x1x256xf32> to vector<1x256xf32>
    %29 = vector.shape_cast %26 : vector<1x256xf32> to vector<1x1x1x256xf32>
    tpu.vector_store %arg4[%c0_11, %c0_12, %c1, %c0_13], %29 {strides = array<i32>} : memref<1x1x2x256xf32, #tpu.memory_space<vmem>>, vector<1x1x1x256xf32>,
    return
  }
  func.func @transform_0(%arg0: i32, %arg1: i32) -> (i32, i32, i32) {
    %c0_i32 = arith.constant 0 : i32
    %c0_i32_0 = arith.constant 0 : i32
    return %arg0, %arg1, %c0_i32 : i32, i32, i32
  }
  func.func @transform_1(%arg0: i32, %arg1: i32) -> (i32, i32, i32) {
    %c0_i32 = arith.constant 0 : i32
    %c0_i32_0 = arith.constant 0 : i32
    %c0_i32_1 = arith.constant 0 : i32
    return %arg0, %c0_i32, %c0_i32_0 : i32, i32, i32
  }
  func.func @transform_2(%arg0: i32, %arg1: i32) -> (i32, i32, i32, i32) {
    %c0_i32 = arith.constant 0 : i32
    %c0_i32_0 = arith.constant 0 : i32
    %c0_i32_1 = arith.constant 0 : i32
    return %arg0, %arg1, %c0_i32, %c0_i32_0 : i32, i32, i32, i32
  }
}

module attributes {stable_mosaic.version = 11 : i64} {
  func.func @_k_bn_bn_linear(%arg0: i32, %arg1: memref<1x512x256xbf16, #tpu.memory_space<vmem>>, %arg2: memref<8x256xf32, #tpu.memory_space<vmem>>, %arg3: memref<256x128xbf16, #tpu.memory_space<vmem>>, %arg4: memref<512x128xbf16, #tpu.memory_space<vmem>>, %arg5: memref<1x2x128xf32, #tpu.memory_space<vmem>>) attributes {dimension_semantics = [#tpu.dimension_semantics<parallel>], iteration_bounds = array<i64: 1>, scalar_prefetch = 0 : i64, scratch_operands = 0 : i64, tpu.core_type = #tpu.core_type<tc>, window_params = [{transform_indices = @transform_0, window_bounds = array<i64: 1, 512, 256>}, {pipeline_mode = #tpu.pipeline_mode<synchronous>, transform_indices = @transform_1, window_bounds = array<i64: 8, 256>}, {pipeline_mode = #tpu.pipeline_mode<synchronous>, transform_indices = @transform_2, window_bounds = array<i64: 256, 128>}, {transform_indices = @transform_3, window_bounds = array<i64: 512, 128>}, {transform_indices = @transform_4, window_bounds = array<i64: 1, 2, 128>}]} {
    %c0 = arith.constant 0 : index
    %c0_0 = arith.constant 0 : index
    %0 = vector.load %arg2[%c0, %c0_0] : memref<8x256xf32, #tpu.memory_space<vmem>>, vector<8x256xf32>
    %c0_1 = arith.constant 0 : index
    %c0_2 = arith.constant 0 : index
    %c0_3 = arith.constant 0 : index
    %1 = vector.load %arg1[%c0_1, %c0_2, %c0_3] : memref<1x512x256xbf16, #tpu.memory_space<vmem>>, vector<1x512x256xbf16>
    %2 = vector.shape_cast %1 : vector<1x512x256xbf16> to vector<512x256xbf16>
    %3 = arith.extf %2 : vector<512x256xbf16> to vector<512x256xf32>
    %4 = vector.extract_strided_slice %0 {offsets = [0, 0], sizes = [1, 256], strides = [1, 1]} : vector<8x256xf32> to vector<1x256xf32>
    %5 = vector.broadcast %4 : vector<1x256xf32> to vector<512x256xf32>
    %6 = arith.subf %3, %5 : vector<512x256xf32>
    %7 = vector.extract_strided_slice %0 {offsets = [1, 0], sizes = [1, 256], strides = [1, 1]} : vector<8x256xf32> to vector<1x256xf32>
    %8 = vector.broadcast %7 : vector<1x256xf32> to vector<512x256xf32>
    %9 = arith.mulf %6, %8 : vector<512x256xf32>
    %10 = vector.extract_strided_slice %0 {offsets = [2, 0], sizes = [1, 256], strides = [1, 1]} : vector<8x256xf32> to vector<1x256xf32>
    %11 = vector.broadcast %10 : vector<1x256xf32> to vector<512x256xf32>
    %12 = arith.mulf %9, %11 : vector<512x256xf32>
    %13 = vector.extract_strided_slice %0 {offsets = [3, 0], sizes = [1, 256], strides = [1, 1]} : vector<8x256xf32> to vector<1x256xf32>
    %14 = vector.broadcast %13 : vector<1x256xf32> to vector<512x256xf32>
    %15 = arith.addf %12, %14 : vector<512x256xf32>
    %cst = arith.constant 0.000000e+00 : f32
    %16 = vector.broadcast %cst : f32 to vector<512x256xf32>
    %17 = arith.maximumf %15, %16 : vector<512x256xf32>
    %18 = vector.extract_strided_slice %0 {offsets = [4, 0], sizes = [1, 256], strides = [1, 1]} : vector<8x256xf32> to vector<1x256xf32>
    %19 = vector.broadcast %18 : vector<1x256xf32> to vector<512x256xf32>
    %20 = arith.subf %17, %19 : vector<512x256xf32>
    %21 = vector.extract_strided_slice %0 {offsets = [5, 0], sizes = [1, 256], strides = [1, 1]} : vector<8x256xf32> to vector<1x256xf32>
    %22 = vector.broadcast %21 : vector<1x256xf32> to vector<512x256xf32>
    %23 = arith.mulf %20, %22 : vector<512x256xf32>
    %24 = arith.truncf %23 : vector<512x256xf32> to vector<512x256xbf16>
    %c0_4 = arith.constant 0 : index
    %c0_5 = arith.constant 0 : index
    %25 = vector.load %arg3[%c0_4, %c0_5] : memref<256x128xbf16, #tpu.memory_space<vmem>>, vector<256x128xbf16>
    %cst_6 = arith.constant dense<0.000000e+00> : vector<512x128xf32>
    %26 = tpu.matmul %24, %25, %cst_6 {dimension_numbers = #tpu.dot_dimension_numbers<[1], [0], [0], [1], [0, 0, 1, 1], [], []>} : vector<512x256xbf16>, vector<256x128xbf16>, vector<512x128xf32> -> vector<512x128xf32>
    %27 = arith.truncf %26 : vector<512x128xf32> to vector<512x128xbf16>
    %c0_7 = arith.constant 0 : index
    %c0_8 = arith.constant 0 : index
    %28 = vector.load %arg4[%c0_7, %c0_8] : memref<512x128xbf16, #tpu.memory_space<vmem>>, vector<512x128xbf16>
    tpu.vector_store %arg4[%c0_7, %c0_8], %27 {strides = array<i32>} : memref<512x128xbf16, #tpu.memory_space<vmem>>, vector<512x128xbf16>,
    %cst_9 = arith.constant dense<0.000000e+00> : vector<128xf32>
    %29 = vector.multi_reduction <add>, %26, %cst_9 [0] : vector<512x128xf32> to vector<128xf32>
    %30 = vector.shape_cast %29 : vector<128xf32> to vector<1x128xf32>
    %c0_10 = arith.constant 0 : index
    %c0_11 = arith.constant 0 : index
    %c0_12 = arith.constant 0 : index
    %31 = vector.load %arg5[%c0_10, %c0_11, %c0_12] : memref<1x2x128xf32, #tpu.memory_space<vmem>>, vector<1x1x128xf32>
    %32 = vector.shape_cast %31 : vector<1x1x128xf32> to vector<1x128xf32>
    %33 = vector.shape_cast %30 : vector<1x128xf32> to vector<1x1x128xf32>
    tpu.vector_store %arg5[%c0_10, %c0_11, %c0_12], %33 {strides = array<i32>} : memref<1x2x128xf32, #tpu.memory_space<vmem>>, vector<1x1x128xf32>,
    %34 = arith.mulf %26, %26 : vector<512x128xf32>
    %cst_13 = arith.constant dense<0.000000e+00> : vector<128xf32>
    %35 = vector.multi_reduction <add>, %34, %cst_13 [0] : vector<512x128xf32> to vector<128xf32>
    %36 = vector.shape_cast %35 : vector<128xf32> to vector<1x128xf32>
    %c0_14 = arith.constant 0 : index
    %c1 = arith.constant 1 : index
    %c0_15 = arith.constant 0 : index
    %37 = vector.load %arg5[%c0_14, %c1, %c0_15] : memref<1x2x128xf32, #tpu.memory_space<vmem>>, vector<1x1x128xf32>
    %38 = vector.shape_cast %37 : vector<1x1x128xf32> to vector<1x128xf32>
    %39 = vector.shape_cast %36 : vector<1x128xf32> to vector<1x1x128xf32>
    tpu.vector_store %arg5[%c0_14, %c1, %c0_15], %39 {strides = array<i32>} : memref<1x2x128xf32, #tpu.memory_space<vmem>>, vector<1x1x128xf32>,
    return
  }
  func.func @transform_0(%arg0: i32) -> (i32, i32, i32) {
    %c0_i32 = arith.constant 0 : i32
    %c0_i32_0 = arith.constant 0 : i32
    %c0_i32_1 = arith.constant 0 : i32
    return %c0_i32, %arg0, %c0_i32_0 : i32, i32, i32
  }
  func.func @transform_1(%arg0: i32) -> (i32, i32) {
    %c0_i32 = arith.constant 0 : i32
    %c0_i32_0 = arith.constant 0 : i32
    %c0_i32_1 = arith.constant 0 : i32
    return %c0_i32, %c0_i32_0 : i32, i32
  }
  func.func @transform_2(%arg0: i32) -> (i32, i32) {
    %c0_i32 = arith.constant 0 : i32
    %c0_i32_0 = arith.constant 0 : i32
    %c0_i32_1 = arith.constant 0 : i32
    return %c0_i32, %c0_i32_0 : i32, i32
  }
  func.func @transform_3(%arg0: i32) -> (i32, i32) {
    %c0_i32 = arith.constant 0 : i32
    %c0_i32_0 = arith.constant 0 : i32
    return %arg0, %c0_i32 : i32, i32
  }
  func.func @transform_4(%arg0: i32) -> (i32, i32, i32) {
    %c0_i32 = arith.constant 0 : i32
    %c0_i32_0 = arith.constant 0 : i32
    %c0_i32_1 = arith.constant 0 : i32
    return %arg0, %c0_i32, %c0_i32_0 : i32, i32, i32
  }
}

module attributes {stable_mosaic.version = 11 : i64} {
  func.func @_k_pred_cosine(%arg0: i32, %arg1: memref<512x128xbf16, #tpu.memory_space<vmem>>, %arg2: memref<8x128xf32, #tpu.memory_space<vmem>>, %arg3: memref<128x256xbf16, #tpu.memory_space<vmem>>, %arg4: memref<1x512x256xbf16, #tpu.memory_space<vmem>>, %arg5: memref<8x256xf32, #tpu.memory_space<vmem>>, %arg6: memref<1x8x128xf32, #tpu.memory_space<vmem>>) attributes {dimension_semantics = [#tpu.dimension_semantics<parallel>], iteration_bounds = array<i64: 1>, scalar_prefetch = 0 : i64, scratch_operands = 0 : i64, tpu.core_type = #tpu.core_type<tc>, window_params = [{transform_indices = @transform_0, window_bounds = array<i64: 512, 128>}, {pipeline_mode = #tpu.pipeline_mode<synchronous>, transform_indices = @transform_1, window_bounds = array<i64: 8, 128>}, {pipeline_mode = #tpu.pipeline_mode<synchronous>, transform_indices = @transform_2, window_bounds = array<i64: 128, 256>}, {transform_indices = @transform_3, window_bounds = array<i64: 1, 512, 256>}, {pipeline_mode = #tpu.pipeline_mode<synchronous>, transform_indices = @transform_4, window_bounds = array<i64: 8, 256>}, {transform_indices = @transform_5, window_bounds = array<i64: 1, 8, 128>}]} {
    %c0 = arith.constant 0 : index
    %c0_0 = arith.constant 0 : index
    %0 = vector.load %arg2[%c0, %c0_0] : memref<8x128xf32, #tpu.memory_space<vmem>>, vector<8x128xf32>
    %c0_1 = arith.constant 0 : index
    %c0_2 = arith.constant 0 : index
    %1 = vector.load %arg5[%c0_1, %c0_2] : memref<8x256xf32, #tpu.memory_space<vmem>>, vector<8x256xf32>
    %c0_3 = arith.constant 0 : index
    %c0_4 = arith.constant 0 : index
    %2 = vector.load %arg1[%c0_3, %c0_4] : memref<512x128xbf16, #tpu.memory_space<vmem>>, vector<512x128xbf16>
    %3 = arith.extf %2 : vector<512x128xbf16> to vector<512x128xf32>
    %4 = vector.extract_strided_slice %0 {offsets = [0, 0], sizes = [1, 128], strides = [1, 1]} : vector<8x128xf32> to vector<1x128xf32>
    %5 = vector.broadcast %4 : vector<1x128xf32> to vector<512x128xf32>
    %6 = arith.subf %3, %5 : vector<512x128xf32>
    %7 = vector.extract_strided_slice %0 {offsets = [1, 0], sizes = [1, 128], strides = [1, 1]} : vector<8x128xf32> to vector<1x128xf32>
    %8 = vector.broadcast %7 : vector<1x128xf32> to vector<512x128xf32>
    %9 = arith.mulf %6, %8 : vector<512x128xf32>
    %10 = vector.extract_strided_slice %0 {offsets = [2, 0], sizes = [1, 128], strides = [1, 1]} : vector<8x128xf32> to vector<1x128xf32>
    %11 = vector.broadcast %10 : vector<1x128xf32> to vector<512x128xf32>
    %12 = arith.mulf %9, %11 : vector<512x128xf32>
    %13 = vector.extract_strided_slice %0 {offsets = [3, 0], sizes = [1, 128], strides = [1, 1]} : vector<8x128xf32> to vector<1x128xf32>
    %14 = vector.broadcast %13 : vector<1x128xf32> to vector<512x128xf32>
    %15 = arith.addf %12, %14 : vector<512x128xf32>
    %cst = arith.constant 0.000000e+00 : f32
    %16 = vector.broadcast %cst : f32 to vector<512x128xf32>
    %17 = arith.maximumf %15, %16 : vector<512x128xf32>
    %18 = arith.truncf %17 : vector<512x128xf32> to vector<512x128xbf16>
    %c0_5 = arith.constant 0 : index
    %c0_6 = arith.constant 0 : index
    %19 = vector.load %arg3[%c0_5, %c0_6] : memref<128x256xbf16, #tpu.memory_space<vmem>>, vector<128x256xbf16>
    %cst_7 = arith.constant dense<0.000000e+00> : vector<512x256xf32>
    %20 = tpu.matmul %18, %19, %cst_7 {dimension_numbers = #tpu.dot_dimension_numbers<[1], [0], [0], [1], [0, 0, 1, 1], [], []>} : vector<512x128xbf16>, vector<128x256xbf16>, vector<512x256xf32> -> vector<512x256xf32>
    %21 = vector.extract_strided_slice %1 {offsets = [6, 0], sizes = [1, 256], strides = [1, 1]} : vector<8x256xf32> to vector<1x256xf32>
    %22 = vector.broadcast %21 : vector<1x256xf32> to vector<512x256xf32>
    %23 = arith.addf %20, %22 : vector<512x256xf32>
    %c0_8 = arith.constant 0 : index
    %c0_9 = arith.constant 0 : index
    %c0_10 = arith.constant 0 : index
    %24 = vector.load %arg4[%c0_8, %c0_9, %c0_10] : memref<1x512x256xbf16, #tpu.memory_space<vmem>>, vector<1x512x256xbf16>
    %25 = vector.shape_cast %24 : vector<1x512x256xbf16> to vector<512x256xbf16>
    %26 = arith.extf %25 : vector<512x256xbf16> to vector<512x256xf32>
    %27 = vector.extract_strided_slice %1 {offsets = [0, 0], sizes = [1, 256], strides = [1, 1]} : vector<8x256xf32> to vector<1x256xf32>
    %28 = vector.broadcast %27 : vector<1x256xf32> to vector<512x256xf32>
    %29 = arith.subf %26, %28 : vector<512x256xf32>
    %30 = vector.extract_strided_slice %1 {offsets = [1, 0], sizes = [1, 256], strides = [1, 1]} : vector<8x256xf32> to vector<1x256xf32>
    %31 = vector.broadcast %30 : vector<1x256xf32> to vector<512x256xf32>
    %32 = arith.mulf %29, %31 : vector<512x256xf32>
    %33 = vector.extract_strided_slice %1 {offsets = [2, 0], sizes = [1, 256], strides = [1, 1]} : vector<8x256xf32> to vector<1x256xf32>
    %34 = vector.broadcast %33 : vector<1x256xf32> to vector<512x256xf32>
    %35 = arith.mulf %32, %34 : vector<512x256xf32>
    %36 = vector.extract_strided_slice %1 {offsets = [3, 0], sizes = [1, 256], strides = [1, 1]} : vector<8x256xf32> to vector<1x256xf32>
    %37 = vector.broadcast %36 : vector<1x256xf32> to vector<512x256xf32>
    %38 = arith.addf %35, %37 : vector<512x256xf32>
    %cst_11 = arith.constant 0.000000e+00 : f32
    %39 = vector.broadcast %cst_11 : f32 to vector<512x256xf32>
    %40 = arith.maximumf %38, %39 : vector<512x256xf32>
    %41 = vector.extract_strided_slice %1 {offsets = [4, 0], sizes = [1, 256], strides = [1, 1]} : vector<8x256xf32> to vector<1x256xf32>
    %42 = vector.broadcast %41 : vector<1x256xf32> to vector<512x256xf32>
    %43 = arith.subf %40, %42 : vector<512x256xf32>
    %44 = vector.extract_strided_slice %1 {offsets = [5, 0], sizes = [1, 256], strides = [1, 1]} : vector<8x256xf32> to vector<1x256xf32>
    %45 = vector.broadcast %44 : vector<1x256xf32> to vector<512x256xf32>
    %46 = arith.mulf %43, %45 : vector<512x256xf32>
    %47 = arith.mulf %23, %46 : vector<512x256xf32>
    %cst_12 = arith.constant dense<0.000000e+00> : vector<512xf32>
    %48 = vector.multi_reduction <add>, %47, %cst_12 [1] : vector<512x256xf32> to vector<512xf32>
    %49 = vector.shape_cast %48 : vector<512xf32> to vector<512x1xf32>
    %50 = arith.mulf %23, %23 : vector<512x256xf32>
    %cst_13 = arith.constant dense<0.000000e+00> : vector<512xf32>
    %51 = vector.multi_reduction <add>, %50, %cst_13 [1] : vector<512x256xf32> to vector<512xf32>
    %52 = vector.shape_cast %51 : vector<512xf32> to vector<512x1xf32>
    %53 = arith.mulf %46, %46 : vector<512x256xf32>
    %cst_14 = arith.constant dense<0.000000e+00> : vector<512xf32>
    %54 = vector.multi_reduction <add>, %53, %cst_14 [1] : vector<512x256xf32> to vector<512xf32>
    %55 = vector.shape_cast %54 : vector<512xf32> to vector<512x1xf32>
    %56 = arith.mulf %52, %55 : vector<512x1xf32>
    %cst_15 = arith.constant 1.000000e-16 : f32
    %57 = vector.broadcast %cst_15 : f32 to vector<512x1xf32>
    %58 = arith.maximumf %56, %57 : vector<512x1xf32>
    %59 = math.rsqrt %58 : vector<512x1xf32>
    %60 = arith.mulf %49, %59 : vector<512x1xf32>
    %61 = vector.shape_cast %60 : vector<512x1xf32> to vector<1x512x1xf32>
    %cst_16 = arith.constant dense<0.000000e+00> : vector<1xf32>
    %62 = vector.multi_reduction <add>, %61, %cst_16 [1, 2] : vector<1x512x1xf32> to vector<1xf32>
    %63 = vector.shape_cast %62 : vector<1xf32> to vector<1x1x1xf32>
    %64 = vector.extract %63[0, 0, 0] : f32 from vector<1x1x1xf32>
    %65 = vector.broadcast %64 : f32 to vector<8x128xf32>
    %c0_17 = arith.constant 0 : index
    %c0_18 = arith.constant 0 : index
    %c0_19 = arith.constant 0 : index
    %66 = vector.load %arg6[%c0_17, %c0_18, %c0_19] : memref<1x8x128xf32, #tpu.memory_space<vmem>>, vector<1x8x128xf32>
    %67 = vector.shape_cast %66 : vector<1x8x128xf32> to vector<8x128xf32>
    %68 = vector.shape_cast %65 : vector<8x128xf32> to vector<1x8x128xf32>
    tpu.vector_store %arg6[%c0_17, %c0_18, %c0_19], %68 {strides = array<i32>} : memref<1x8x128xf32, #tpu.memory_space<vmem>>, vector<1x8x128xf32>,
    return
  }
  func.func @transform_0(%arg0: i32) -> (i32, i32) {
    %c0_i32 = arith.constant 0 : i32
    %c0_i32_0 = arith.constant 0 : i32
    return %arg0, %c0_i32 : i32, i32
  }
  func.func @transform_1(%arg0: i32) -> (i32, i32) {
    %c0_i32 = arith.constant 0 : i32
    %c0_i32_0 = arith.constant 0 : i32
    %c0_i32_1 = arith.constant 0 : i32
    return %c0_i32, %c0_i32_0 : i32, i32
  }
  func.func @transform_2(%arg0: i32) -> (i32, i32) {
    %c0_i32 = arith.constant 0 : i32
    %c0_i32_0 = arith.constant 0 : i32
    %c0_i32_1 = arith.constant 0 : i32
    return %c0_i32, %c0_i32_0 : i32, i32
  }
  func.func @transform_3(%arg0: i32) -> (i32, i32, i32) {
    %c1_i32 = arith.constant 1 : i32
    %c0_i32 = arith.constant 0 : i32
    %c0_i32_0 = arith.constant 0 : i32
    return %c1_i32, %arg0, %c0_i32 : i32, i32, i32
  }
  func.func @transform_4(%arg0: i32) -> (i32, i32) {
    %c0_i32 = arith.constant 0 : i32
    %c0_i32_0 = arith.constant 0 : i32
    %c0_i32_1 = arith.constant 0 : i32
    return %c0_i32, %c0_i32_0 : i32, i32
  }
  func.func @transform_5(%arg0: i32) -> (i32, i32, i32) {
    %c0_i32 = arith.constant 0 : i32
    %c0_i32_0 = arith.constant 0 : i32
    %c0_i32_1 = arith.constant 0 : i32
    return %arg0, %c0_i32, %c0_i32_0 : i32, i32, i32
  }
}

</mosaic_0001>

<llo_original>
// kernel: convmim_forward_loss.5
$region0: #{convmim_forward_loss.5}
  #allocation0 [shape = 'u32[]', space=smem, size = 0x4, offset = 0x4, fixed_abs, tag = 'smem constant byte address 0x4 - core index']
  #allocation1 [shape = 'u32[72,128]{1,0:T(1,128)}', space=vmem, size = 0x9000, scoped, tag = 'internal scratch']
  %s0 = inlined_call_operand.vmem [shape: f32[2,2,256,256], index: 0, kind: input, shape index: {}]
  %s1 = inlined_call_operand.vmem [shape: bf16[256,256], index: 1, kind: input, shape index: {}]
  %s2 = inlined_call_operand.vmem [shape: bf16[2,512,256], index: 2, kind: output, shape index: {0}]
  %s3 = inlined_call_operand.vmem [shape: f32[2,2,2,256], index: 3, kind: output, shape index: {1}]
  %4 = xla_tuple %s2, %s3
  %s5 = sld [smem:[#allocation0]]
  $region49: #{convmim_forward_loss.5} parent=0
    _
  %s7 = ssub.s32 1, %s5
  %s8 = scalar_select 0, %s7, %s5
  loop: start=0, step=1, limit=6
  $region2: #{convmim_forward_loss.5} parent=0 // loop_pre_header
    _
  $region3: #{convmim_forward_loss.5} parent=0 // loop_header
    %s10 = sphi 0, %s14
    %p11 = scmp.ge.s32.totalorder %s10, 6
    %s17 = sphi 0, %s29
    %s18 = sphi 0, %s25
    %s19 = sphi 0, %s17
    %s20 = sphi 0, %s18
    %s21 = sphi 0, %s19
    %s22 = sphi 0, %s20
    %s34 = sphi 0, %s36
    %s37 = sphi 0, %s34
    %s38 = sphi 0, %s37
    %s54 = sphi 0, %s38
    %s58 = sphi 0, %s58
    %s60 = sphi 0, %s58
    %s61 = sphi 0, %s60
    %s75 = sphi 0, %s61
    %s83 = sphi 0, %s85
    %s86 = sphi 0, %s83
    %s87 = sphi 0, %s86
    %s103 = sphi 0, %s87
    %s111 = sphi 0, %s113
    %s114 = sphi 0, %s111
    %s115 = sphi 0, %s114
    %s131 = sphi 0, %s115
  $region4: #{convmim_forward_loss.5} parent=0 // loop_header_branch
    %13 = sbr.rel (%p11) target = $region8
  $region5: #{convmim_forward_loss.5} parent=0 // loop_body
    %s15 = ssub.s32 %s10, 1
    %s16 = ssub.s32 %s10, 2
    %s23 = sadd.s32 1, %s18
    %p24 = scmp.ge.s32.totalorder %s23, 2
    %s25 = scalar_select %p24, 0, %s23
    %s26 = sadd.s32 1, %s17
    %s27 = scalar_select %p24, %s26, %s17
    %p28 = scmp.ge.s32.totalorder %s27, 2
    %s29 = scalar_select %p28, 0, %s27
    %s30 = ssub.s32 %s17, %s29
    %s31 = ssub.s32 %s18, %s25
    %s32 = sor.u32 %s30, %s31
    %p33 = scmp.eq.s32.totalorder %s32, 0
    %s35 = sadd.s32 %s34, 1
    %s36 = scalar_select %p33, %s34, %s35
    %p39 = pneg %p33
    %p40 = scmp.eq.s32.totalorder %s10, 3
    %p41 = por %p39, %p40
    %p42 = scmp.ne.s32.totalorder %s34, %s37
    %p43 = scmp.eq.s32.totalorder %s10, 0
    %p44 = por %p42, %p43
    %p45 = scmp.ne.s32.totalorder %s34, %s37
    %p46 = scmp.eq.s32.totalorder %s15, 3
    %p47 = por %p45, %p46
    %p48 = scmp.ne.s32.totalorder %s37, %s38
    %p49 = scmp.eq.s32.totalorder %s15, 0
    %p50 = por %p48, %p49
    %p51 = scmp.ne.s32.totalorder %s37, %s38
    %p52 = scmp.eq.s32.totalorder %s16, 3
    %p53 = por %p51, %p52
    %p55 = scmp.ne.s32.totalorder %s38, %s54
    %p56 = scmp.eq.s32.totalorder %s16, 0
    %p57 = por %p55, %p56
    %s59 = sadd.s32 %s58, 1
    %p62 = scmp.eq.s32.totalorder %s10, 3
    %p63 = scmp.ne.s32.totalorder %s58, %s60
    %p64 = scmp.eq.s32.totalorder %s10, 0
    %p65 = por %p63, %p64
    %p66 = scmp.ne.s32.totalorder %s58, %s60
    %p67 = scmp.eq.s32.totalorder %s15, 3
    %p68 = por %p66, %p67
    %p69 = scmp.ne.s32.totalorder %s60, %s61
    %p70 = scmp.eq.s32.totalorder %s15, 0
    %p71 = por %p69, %p70
    %p72 = scmp.ne.s32.totalorder %s60, %s61
    %p73 = scmp.eq.s32.totalorder %s16, 3
    %p74 = por %p72, %p73
    %p76 = scmp.ne.s32.totalorder %s61, %s75
    %p77 = scmp.eq.s32.totalorder %s16, 0
    %p78 = por %p76, %p77
    %s79 = ssub.s32 %s17, %s29
    %s80 = ssub.s32 %s18, %s25
    %s81 = sor.u32 %s79, %s80
    %p82 = scmp.eq.s32.totalorder %s81, 0
    %s84 = sadd.s32 %s83, 1
    %s85 = scalar_select %p82, %s83, %s84
    %p88 = pneg %p82
    %p89 = scmp.eq.s32.totalorder %s10, 3
    %p90 = por %p88, %p89
    %p91 = scmp.ne.s32.totalorder %s83, %s86
    %p92 = scmp.eq.s32.totalorder %s10, 0
    %p93 = por %p91, %p92
    %p94 = scmp.ne.s32.totalorder %s83, %s86
    %p95 = scmp.eq.s32.totalorder %s15, 3
    %p96 = por %p94, %p95
    %p97 = scmp.ne.s32.totalorder %s86, %s87
    %p98 = scmp.eq.s32.totalorder %s15, 0
    %p99 = por %p97, %p98
    %p100 = scmp.ne.s32.totalorder %s86, %s87
    %p101 = scmp.eq.s32.totalorder %s16, 3
    %p102 = por %p100, %p101
    %p104 = scmp.ne.s32.totalorder %s87, %s103
    %p105 = scmp.eq.s32.totalorder %s16, 0
    %p106 = por %p104, %p105
    %s107 = ssub.s32 %s17, %s29
    %s108 = ssub.s32 %s18, %s25
    %s109 = sor.u32 %s107, %s108
    %p110 = scmp.eq.s32.totalorder %s109, 0
    %s112 = sadd.s32 %s111, 1
    %s113 = scalar_select %p110, %s111, %s112
    %p116 = pneg %p110
    %p117 = scmp.eq.s32.totalorder %s10, 3
    %p118 = por %p116, %p117
    %p119 = scmp.ne.s32.totalorder %s111, %s114
    %p120 = scmp.eq.s32.totalorder %s10, 0
    %p121 = por %p119, %p120
    %p122 = scmp.ne.s32.totalorder %s111, %s114
    %p123 = scmp.eq.s32.totalorder %s15, 3
    %p124 = por %p122, %p123
    %p125 = scmp.ne.s32.totalorder %s114, %s115
    %p126 = scmp.eq.s32.totalorder %s15, 0
    %p127 = por %p125, %p126
    %p128 = scmp.ne.s32.totalorder %s114, %s115
    %p129 = scmp.eq.s32.totalorder %s16, 3
    %p130 = por %p128, %p129
    %p132 = scmp.ne.s32.totalorder %s115, %s131
    %p133 = scmp.eq.s32.totalorder %s16, 0
    %p134 = por %p132, %p133
    %p135 = scmp.le.s32.totalorder 1, %s10
    %p136 = scmp.lt.s32.totalorder %s10, 5
    %p137 = pnand %p135, %p136
    %p138 = pneg %p137
    // Predicated region
    $region9: #{convmim_forward_loss.5} parent=5 // pred_check
      _
    $region10: #{convmim_forward_loss.5} parent=5 // pred_check_branch
      %140 = sbr.rel (%p137) target = $region12
    $region11: #{convmim_forward_loss.5} parent=5 // pred_region
      %s141 = ssub.s32 %s10, 1
      // Predicated region
      $region13: #{convmim_forward_loss.5} parent=11 // pred_check
        %p142 = pneg %p71
      $region14: #{convmim_forward_loss.5} parent=11 // pred_check_branch
        %144 = sbr.rel (%p142) target = $region16
      $region15: #{convmim_forward_loss.5} parent=11 // pred_region
        _
      $region16: #{convmim_forward_loss.5} parent=11 // pred_fallthru
        _
    $region12: #{convmim_forward_loss.5} parent=5 // pred_fallthru
      _
    %p145 = scmp.lt.s32.totalorder %s10, 4
    // Predicated region
    $region17: #{convmim_forward_loss.5} parent=5 // pred_check
      %p146 = pneg %p145
    $region18: #{convmim_forward_loss.5} parent=5 // pred_check_branch
      %148 = sbr.rel (%p146) target = $region20
    $region19: #{convmim_forward_loss.5} parent=5 // pred_region
      // Predicated region
      $region21: #{convmim_forward_loss.5} parent=19 // pred_check
        %p149 = pneg %p44
      $region22: #{convmim_forward_loss.5} parent=19 // pred_check_branch
        %151 = sbr.rel (%p149) target = $region24
      $region23: #{convmim_forward_loss.5} parent=19 // pred_region
        %p152 = scmp.lt.s32.totalorder %s17, 1
        %s153 = scalar_select %p152, %s17, 1
        %p154 = scmp.lt.s32.totalorder %s18, 1
        %s155 = scalar_select %p154, %s18, 1
        %s156 = smul.addr %s155, 64
        %s157 = smul.addr %s153, 128
        %s158 = sadd.s32 %s156, %s157
        %s159 = smul.addr %s158, 8
        %s160 = scalar_lea.vmem %s0, %s159
      $region24: #{convmim_forward_loss.5} parent=19 // pred_fallthru
        _
    $region20: #{convmim_forward_loss.5} parent=5 // pred_fallthru
      _
    %p161 = scmp.le.s32.totalorder 1, %s10
    %p162 = scmp.lt.s32.totalorder %s10, 5
    %p163 = pnand %p161, %p162
    %p164 = pneg %p163
    // Predicated region
    $region25: #{convmim_forward_loss.5} parent=5 // pred_check
      _
    $region26: #{convmim_forward_loss.5} parent=5 // pred_check_branch
      %166 = sbr.rel (%p163) target = $region28
    $region27: #{convmim_forward_loss.5} parent=5 // pred_region
      %s167 = ssub.s32 %s10, 1
      %p168 = scmp.lt.s32.totalorder %s19, 1
      %s169 = scalar_select %p168, %s19, 1
      %p170 = scmp.lt.s32.totalorder %s20, 1
      %s171 = scalar_select %p170, %s20, 1
      %s172 = smul.addr %s171, 64
      %s173 = smul.addr %s169, 128
      %s174 = sadd.s32 %s172, %s173
      %s175 = smul.addr %s174, 8
      %s176 = scalar_lea.vmem %s0, %s175
      %p177 = pneg %p50
      %p178 = pneg %p47
      %p179 = pneg %p71
      %p180 = pneg %p68
      %p181 = pneg %p99
      %p182 = pneg %p96
      %s183 = smul.u32 32, %s20
      %p184 = scmp.lt.s32.totalorder %s19, 1
      %s185 = scalar_select %p184, %s19, 1
      %p186 = scmp.lt.s32.totalorder %s183, 63
      %s187 = scalar_select %p186, %s183, 63
      %s188 = smul.addr %s187, 2
      %s189 = smul.addr %s185, 128
      %s190 = sadd.s32 %s188, %s189
      %s191 = smul.addr %s190, 4
      %s192 = scalar_lea.vmem %s2, %s191
      %p193 = pneg %p127
      %p194 = pneg %p124
      %p195 = scmp.lt.s32.totalorder %s19, 1
      %s196 = scalar_select %p195, %s19, 1
      %p197 = scmp.lt.s32.totalorder %s20, 1
      %s198 = scalar_select %p197, %s20, 1
      %s199 = smul.addr %s198, 2
      %s200 = smul.addr %s196, 4
      %s201 = sadd.s32 %s199, %s200
      %s202 = smul.addr %s201, 2
      %s203 = scalar_lea.vmem %s3, %s202
      %p204 = scmp.lt.s32.totalorder %s19, 1
      %s205 = scalar_select %p204, %s19, 1
      %p206 = scmp.lt.s32.totalorder %s20, 1
      %s207 = scalar_select %p206, %s20, 1
      %s208 = smul.addr %s207, 64
      %s209 = smul.addr %s205, 128
      %s210 = sadd.s32 %s208, %s209
      %s211 = smul.addr %s210, 8
      %s212 = scalar_lea.vmem %s0, %s211
      %s213 = smul.u32 32, %s20
      %p214 = scmp.lt.s32.totalorder %s19, 1
      %s215 = scalar_select %p214, %s19, 1
      %p216 = scmp.lt.s32.totalorder %s213, 63
      %s217 = scalar_select %p216, %s213, 63
      %s218 = smul.addr %s217, 2
      %s219 = smul.addr %s215, 128
      %s220 = sadd.s32 %s218, %s219
      %s221 = smul.addr %s220, 4
      %s222 = scalar_lea.vmem %s2, %s221
      %s223 = smul.u32 32, %s20
      %p224 = scmp.lt.s32.totalorder %s19, 1
      %s225 = scalar_select %p224, %s19, 1
      %p226 = scmp.lt.s32.totalorder %s20, 1
      %s227 = scalar_select %p226, %s20, 1
      %s228 = smul.addr %s227, 2
      %s229 = smul.addr %s225, 4
      %s230 = sadd.s32 %s228, %s229
      %s231 = smul.addr %s230, 2
      %s232 = scalar_lea.vmem %s3, %s231
      %v233 = vld [vmem:[%s212] sm:$0xff]
      %v234 = vld [vmem:[%s212 + $0x8] sm:$0xff]
      %v235 = vld [vmem:[%s212 + $0x10] sm:$0xff]
      %v236 = vld [vmem:[%s212 + $0x18] sm:$0xff]
      %v237 = vld [vmem:[%s212 + $0x20] sm:$0xff]
      %v238 = vld [vmem:[%s212 + $0x28] sm:$0xff]
      %v239 = vld [vmem:[%s212 + $0x30] sm:$0xff]
      %v240 = vld [vmem:[%s212 + $0x38] sm:$0xff]
      %v241 = vld [vmem:[%s212 + $0x40] sm:$0xff]
      %v242 = vld [vmem:[%s212 + $0x48] sm:$0xff]
      %v243 = vld [vmem:[%s212 + $0x50] sm:$0xff]
      %v244 = vld [vmem:[%s212 + $0x58] sm:$0xff]
      %v245 = vld [vmem:[%s212 + $0x60] sm:$0xff]
      %v246 = vld [vmem:[%s212 + $0x68] sm:$0xff]
      %v247 = vld [vmem:[%s212 + $0x70] sm:$0xff]
      %v248 = vld [vmem:[%s212 + $0x78] sm:$0xff]
      %v249 = vld [vmem:[%s212 + $0x80] sm:$0xff]
      %v250 = vld [vmem:[%s212 + $0x88] sm:$0xff]
      %v251 = vld [vmem:[%s212 + $0x90] sm:$0xff]
      %v252 = vld [vmem:[%s212 + $0x98] sm:$0xff]
      %v253 = vld [vmem:[%s212 + $0xa0] sm:$0xff]
      %v254 = vld [vmem:[%s212 + $0xa8] sm:$0xff]
      %v255 = vld [vmem:[%s212 + $0xb0] sm:$0xff]
      %v256 = vld [vmem:[%s212 + $0xb8] sm:$0xff]
      %v257 = vld [vmem:[%s212 + $0xc0] sm:$0xff]
      %v258 = vld [vmem:[%s212 + $0xc8] sm:$0xff]
      %v259 = vld [vmem:[%s212 + $0xd0] sm:$0xff]
      %v260 = vld [vmem:[%s212 + $0xd8] sm:$0xff]
      %v261 = vld [vmem:[%s212 + $0xe0] sm:$0xff]
      %v262 = vld [vmem:[%s212 + $0xe8] sm:$0xff]
      %v263 = vld [vmem:[%s212 + $0xf0] sm:$0xff]
      %v264 = vld [vmem:[%s212 + $0xf8] sm:$0xff]
      %v265 = vld [vmem:[%s212 + $0x100] sm:$0xff]
      %v266 = vld [vmem:[%s212 + $0x108] sm:$0xff]
      %v267 = vld [vmem:[%s212 + $0x110] sm:$0xff]
      %v268 = vld [vmem:[%s212 + $0x118] sm:$0xff]
      %v269 = vld [vmem:[%s212 + $0x120] sm:$0xff]
      %v270 = vld [vmem:[%s212 + $0x128] sm:$0xff]
      %v271 = vld [vmem:[%s212 + $0x130] sm:$0xff]
      %v272 = vld [vmem:[%s212 + $0x138] sm:$0xff]
      %v273 = vld [vmem:[%s212 + $0x140] sm:$0xff]
      %v274 = vld [vmem:[%s212 + $0x148] sm:$0xff]
      %v275 = vld [vmem:[%s212 + $0x150] sm:$0xff]
      %v276 = vld [vmem:[%s212 + $0x158] sm:$0xff]
      %v277 = vld [vmem:[%s212 + $0x160] sm:$0xff]
      %v278 = vld [vmem:[%s212 + $0x168] sm:$0xff]
      %v279 = vld [vmem:[%s212 + $0x170] sm:$0xff]
      %v280 = vld [vmem:[%s212 + $0x178] sm:$0xff]
      %v281 = vld [vmem:[%s212 + $0x180] sm:$0xff]
      %v282 = vld [vmem:[%s212 + $0x188] sm:$0xff]
      %v283 = vld [vmem:[%s212 + $0x190] sm:$0xff]
      %v284 = vld [vmem:[%s212 + $0x198] sm:$0xff]
      %v285 = vld [vmem:[%s212 + $0x1a0] sm:$0xff]
      %v286 = vld [vmem:[%s212 + $0x1a8] sm:$0xff]
      %v287 = vld [vmem:[%s212 + $0x1b0] sm:$0xff]
      %v288 = vld [vmem:[%s212 + $0x1b8] sm:$0xff]
      %v289 = vld [vmem:[%s212 + $0x1c0] sm:$0xff]
      %v290 = vld [vmem:[%s212 + $0x1c8] sm:$0xff]
      %v291 = vld [vmem:[%s212 + $0x1d0] sm:$0xff]
      %v292 = vld [vmem:[%s212 + $0x1d8] sm:$0xff]
      %v293 = vld [vmem:[%s212 + $0x1e0] sm:$0xff]
      %v294 = vld [vmem:[%s212 + $0x1e8] sm:$0xff]
      %v295 = vld [vmem:[%s212 + $0x1f0] sm:$0xff]
      %v296 = vld [vmem:[%s212 + $0x1f8] sm:$0xff]
      %v297 = vpack.c.bf16 %v235, %v233
      %v298 = vpack.c.bf16 %v236, %v234
      %v299 = vpack.c.bf16 %v239, %v237
      %v300 = vpack.c.bf16 %v240, %v238
      %v301 = vpack.c.bf16 %v243, %v241
      %v302 = vpack.c.bf16 %v244, %v242
      %v303 = vpack.c.bf16 %v247, %v245
      %v304 = vpack.c.bf16 %v248, %v246
      %v305 = vpack.c.bf16 %v251, %v249
      %v306 = vpack.c.bf16 %v252, %v250
      %v307 = vpack.c.bf16 %v255, %v253
      %v308 = vpack.c.bf16 %v256, %v254
      %v309 = vpack.c.bf16 %v259, %v257
      %v310 = vpack.c.bf16 %v260, %v258
      %v311 = vpack.c.bf16 %v263, %v261
      %v312 = vpack.c.bf16 %v264, %v262
      %v313 = vpack.c.bf16 %v267, %v265
      %v314 = vpack.c.bf16 %v268, %v266
      %v315 = vpack.c.bf16 %v271, %v269
      %v316 = vpack.c.bf16 %v272, %v270
      %v317 = vpack.c.bf16 %v275, %v273
      %v318 = vpack.c.bf16 %v276, %v274
      %v319 = vpack.c.bf16 %v279, %v277
      %v320 = vpack.c.bf16 %v280, %v278
      %v321 = vpack.c.bf16 %v283, %v281
      %v322 = vpack.c.bf16 %v284, %v282
      %v323 = vpack.c.bf16 %v287, %v285
      %v324 = vpack.c.bf16 %v288, %v286
      %v325 = vpack.c.bf16 %v291, %v289
      %v326 = vpack.c.bf16 %v292, %v290
      %v327 = vpack.c.bf16 %v295, %v293
      %v328 = vpack.c.bf16 %v296, %v294
      %329 = vxpose.binary.xlu0.c.b16.start [1/16] %v298, %v297, 128
      %330 = vxpose.binary.xlu0.c.b16.cont [2/16] %v300, %v299, 128
      %331 = vxpose.binary.xlu0.c.b16.cont [3/16] %v302, %v301, 128
      %332 = vxpose.binary.xlu0.c.b16.cont [4/16] %v304, %v303, 128
      %333 = vxpose.binary.xlu0.c.b16.cont [5/16] %v306, %v305, 128
      %334 = vxpose.binary.xlu0.c.b16.cont [6/16] %v308, %v307, 128
      %335 = vxpose.binary.xlu0.c.b16.cont [7/16] %v310, %v309, 128
      %336 = vxpose.binary.xlu0.c.b16.end [8/16] %v312, %v311, 128
      %v337 = vpop.trf.xlu0
      %v338 = vpop.trf.xlu0
      %v339 = vpop.trf.xlu0
      %v340 = vpop.trf.xlu0
      %v341 = vpop.trf.xlu0
      %v342 = vpop.trf.xlu0
      %v343 = vpop.trf.xlu0
      %v344 = vpop.trf.xlu0
      %v345 = vpop.trf.xlu0
      %v346 = vpop.trf.xlu0
      %v347 = vpop.trf.xlu0
      %v348 = vpop.trf.xlu0
      %v349 = vpop.trf.xlu0
      %v350 = vpop.trf.xlu0
      %v351 = vpop.trf.xlu0
      %v352 = vpop.trf.xlu0
      %353 = vxpose.binary.xlu0.c.b16.start [1/16] %v314, %v313, 128
      %354 = vxpose.binary.xlu0.c.b16.cont [2/16] %v316, %v315, 128
      %355 = vxpose.binary.xlu0.c.b16.cont [3/16] %v318, %v317, 128
      %356 = vxpose.binary.xlu0.c.b16.cont [4/16] %v320, %v319, 128
      %357 = vxpose.binary.xlu0.c.b16.cont [5/16] %v322, %v321, 128
      %358 = vxpose.binary.xlu0.c.b16.cont [6/16] %v324, %v323, 128
      %359 = vxpose.binary.xlu0.c.b16.cont [7/16] %v326, %v325, 128
      %360 = vxpose.binary.xlu0.c.b16.end [8/16] %v328, %v327, 128
      %v361 = vpop.trf.xlu0
      %v362 = vpop.trf.xlu0
      %v363 = vpop.trf.xlu0
      %v364 = vpop.trf.xlu0
      %v365 = vpop.trf.xlu0
      %v366 = vpop.trf.xlu0
      %v367 = vpop.trf.xlu0
      %v368 = vpop.trf.xlu0
      %v369 = vpop.trf.xlu0
      %v370 = vpop.trf.xlu0
      %v371 = vpop.trf.xlu0
      %v372 = vpop.trf.xlu0
      %v373 = vpop.trf.xlu0
      %v374 = vpop.trf.xlu0
      %v375 = vpop.trf.xlu0
      %v376 = vpop.trf.xlu0
      %v377 = vld [vmem:[%s1] sm:$0xff]
      %v378 = vld [vmem:[%s1 + $0x8] sm:$0xff]
      %v379 = vld [vmem:[%s1 + $0x10] sm:$0xff]
      %v380 = vld [vmem:[%s1 + $0x18] sm:$0xff]
      %v381 = vld [vmem:[%s1 + $0x20] sm:$0xff]
      %v382 = vld [vmem:[%s1 + $0x28] sm:$0xff]
      %v383 = vld [vmem:[%s1 + $0x30] sm:$0xff]
      %v384 = vld [vmem:[%s1 + $0x38] sm:$0xff]
      %v385 = vld [vmem:[%s1 + $0x40] sm:$0xff]
      %v386 = vld [vmem:[%s1 + $0x48] sm:$0xff]
      %v387 = vld [vmem:[%s1 + $0x50] sm:$0xff]
      %v388 = vld [vmem:[%s1 + $0x58] sm:$0xff]
      %v389 = vld [vmem:[%s1 + $0x60] sm:$0xff]
      %v390 = vld [vmem:[%s1 + $0x68] sm:$0xff]
      %v391 = vld [vmem:[%s1 + $0x70] sm:$0xff]
      %v392 = vld [vmem:[%s1 + $0x78] sm:$0xff]
      %v393 = vld [vmem:[%s1 + $0x80] sm:$0xff]
      %v394 = vld [vmem:[%s1 + $0x88] sm:$0xff]
      %v395 = vld [vmem:[%s1 + $0x90] sm:$0xff]
      %v396 = vld [vmem:[%s1 + $0x98] sm:$0xff]
      %v397 = vld [vmem:[%s1 + $0xa0] sm:$0xff]
      %v398 = vld [vmem:[%s1 + $0xa8] sm:$0xff]
      %v399 = vld [vmem:[%s1 + $0xb0] sm:$0xff]
      %v400 = vld [vmem:[%s1 + $0xb8] sm:$0xff]
      %v401 = vld [vmem:[%s1 + $0xc0] sm:$0xff]
      %v402 = vld [vmem:[%s1 + $0xc8] sm:$0xff]
      %v403 = vld [vmem:[%s1 + $0xd0] sm:$0xff]
      %v404 = vld [vmem:[%s1 + $0xd8] sm:$0xff]
      %v405 = vld [vmem:[%s1 + $0xe0] sm:$0xff]
      %v406 = vld [vmem:[%s1 + $0xe8] sm:$0xff]
      %v407 = vld [vmem:[%s1 + $0xf0] sm:$0xff]
      %v408 = vld [vmem:[%s1 + $0xf8] sm:$0xff]
      %v441 = vunpack.c.l.b16 %v377
      %v442 = vunpack.c.h.b16 %v377
      %v443 = vunpack.c.l.b16 %v378
      %v444 = vunpack.c.h.b16 %v378
      %v445 = vunpack.c.l.b16 %v379
      %v446 = vunpack.c.h.b16 %v379
      %v447 = vunpack.c.l.b16 %v380
      %v448 = vunpack.c.h.b16 %v380
      %v449 = vunpack.c.l.b16 %v381
      %v450 = vunpack.c.h.b16 %v381
      %v451 = vunpack.c.l.b16 %v382
      %v452 = vunpack.c.h.b16 %v382
      %v453 = vunpack.c.l.b16 %v383
      %v454 = vunpack.c.h.b16 %v383
      %v455 = vunpack.c.l.b16 %v384
      %v456 = vunpack.c.h.b16 %v384
      %v457 = vunpack.c.l.b16 %v385
      %v458 = vunpack.c.h.b16 %v385
      %v459 = vunpack.c.l.b16 %v386
      %v460 = vunpack.c.h.b16 %v386
      %v461 = vunpack.c.l.b16 %v387
      %v462 = vunpack.c.h.b16 %v387
      %v463 = vunpack.c.l.b16 %v388
      %v464 = vunpack.c.h.b16 %v388
      %v465 = vunpack.c.l.b16 %v389
      %v466 = vunpack.c.h.b16 %v389
      %v467 = vunpack.c.l.b16 %v390
      %v468 = vunpack.c.h.b16 %v390
      %v469 = vunpack.c.l.b16 %v391
      %v470 = vunpack.c.h.b16 %v391
      %v471 = vunpack.c.l.b16 %v392
      %v472 = vunpack.c.h.b16 %v392
      %v473 = vunpack.c.l.b16 %v393
      %v474 = vunpack.c.h.b16 %v393
      %v475 = vunpack.c.l.b16 %v394
      %v476 = vunpack.c.h.b16 %v394
      %v477 = vunpack.c.l.b16 %v395
      %v478 = vunpack.c.h.b16 %v395
      %v479 = vunpack.c.l.b16 %v396
      %v480 = vunpack.c.h.b16 %v396
      %v481 = vunpack.c.l.b16 %v397
      %v482 = vunpack.c.h.b16 %v397
      %v483 = vunpack.c.l.b16 %v398
      %v484 = vunpack.c.h.b16 %v398
      %v485 = vunpack.c.l.b16 %v399
      %v486 = vunpack.c.h.b16 %v399
      %v487 = vunpack.c.l.b16 %v400
      %v488 = vunpack.c.h.b16 %v400
      %v489 = vunpack.c.l.b16 %v401
      %v490 = vunpack.c.h.b16 %v401
      %v491 = vunpack.c.l.b16 %v402
      %v492 = vunpack.c.h.b16 %v402
      %v493 = vunpack.c.l.b16 %v403
      %v494 = vunpack.c.h.b16 %v403
      %v495 = vunpack.c.l.b16 %v404
      %v496 = vunpack.c.h.b16 %v404
      %v497 = vunpack.c.l.b16 %v405
      %v498 = vunpack.c.h.b16 %v405
      %v499 = vunpack.c.l.b16 %v406
      %v500 = vunpack.c.h.b16 %v406
      %v501 = vunpack.c.l.b16 %v407
      %v502 = vunpack.c.h.b16 %v407
      %v503 = vunpack.c.l.b16 %v408
      %v504 = vunpack.c.h.b16 %v408
      %v505 = vpack.c.b16 %v443, %v441
      %v506 = vpack.c.b16 %v444, %v442
      %v507 = vpack.c.b16 %v447, %v445
      %v508 = vpack.c.b16 %v448, %v446
      %v509 = vpack.c.b16 %v451, %v449
      %v510 = vpack.c.b16 %v452, %v450
      %v511 = vpack.c.b16 %v455, %v453
      %v512 = vpack.c.b16 %v456, %v454
      %v513 = vpack.c.b16 %v459, %v457
      %v514 = vpack.c.b16 %v460, %v458
      %v515 = vpack.c.b16 %v463, %v461
      %v516 = vpack.c.b16 %v464, %v462
      %v517 = vpack.c.b16 %v467, %v465
      %v518 = vpack.c.b16 %v468, %v466
      %v519 = vpack.c.b16 %v471, %v469
      %v520 = vpack.c.b16 %v472, %v470
      %v521 = vpack.c.b16 %v475, %v473
      %v522 = vpack.c.b16 %v476, %v474
      %v523 = vpack.c.b16 %v479, %v477
      %v524 = vpack.c.b16 %v480, %v478
      %v525 = vpack.c.b16 %v483, %v481
      %v526 = vpack.c.b16 %v484, %v482
      %v527 = vpack.c.b16 %v487, %v485
      %v528 = vpack.c.b16 %v488, %v486
      %v529 = vpack.c.b16 %v491, %v489
      %v530 = vpack.c.b16 %v492, %v490
      %v531 = vpack.c.b16 %v495, %v493
      %v532 = vpack.c.b16 %v496, %v494
      %v533 = vpack.c.b16 %v499, %v497
      %v534 = vpack.c.b16 %v500, %v498
      %v535 = vpack.c.b16 %v503, %v501
      %v536 = vpack.c.b16 %v504, %v502
      %569 = vmatpush.bf16.msra.mxu0 %v519
      %570 = vmatpush.bf16.msra.mxu0 %v517
      %571 = vmatpush.bf16.msra.mxu0 %v515
      %572 = vmatpush.bf16.msra.mxu0 %v513
      %573 = vmatpush.bf16.msra.mxu0 %v511
      %574 = vmatpush.bf16.msra.mxu0 %v509
      %575 = vmatpush.bf16.msra.mxu0 %v507
      %576 = vmatpush.bf16.msra.mxu0 %v505
      %577 = vmatmul.bf16.gmra.mxu0 %v337
      %v578 = vpop.f32.mrf.mxu0
      %v579 = vadd.f32 0.0, %v578
      %v580 = vpop.f32.mrf.mxu0
      %v581 = vadd.f32 0.0, %v580
      %582 = vmatmul.bf16.gmra.mxu0 %v339
      %v583 = vpop.f32.mrf.mxu0
      %v584 = vadd.f32 0.0, %v583
      %v585 = vpop.f32.mrf.mxu0
      %v586 = vadd.f32 0.0, %v585
      %587 = vmatmul.bf16.gmra.mxu0 %v341
      %v588 = vpop.f32.mrf.mxu0
      %v589 = vadd.f32 0.0, %v588
      %v590 = vpop.f32.mrf.mxu0
      %v591 = vadd.f32 0.0, %v590
      %592 = vmatmul.bf16.gmra.mxu0 %v343
      %v593 = vpop.f32.mrf.mxu0
      %v594 = vadd.f32 0.0, %v593
      %v595 = vpop.f32.mrf.mxu0
      %v596 = vadd.f32 0.0, %v595
      %597 = vmatmul.bf16.gmra.mxu0 %v345
      %v598 = vpop.f32.mrf.mxu0
      %v599 = vadd.f32 0.0, %v598
      %v600 = vpop.f32.mrf.mxu0
      %v601 = vadd.f32 0.0, %v600
      %602 = vmatmul.bf16.gmra.mxu0 %v347
      %v603 = vpop.f32.mrf.mxu0
      %v604 = vadd.f32 0.0, %v603
      %v605 = vpop.f32.mrf.mxu0
      %v606 = vadd.f32 0.0, %v605
      %607 = vmatmul.bf16.gmra.mxu0 %v349
      %v608 = vpop.f32.mrf.mxu0
      %v609 = vadd.f32 0.0, %v608
      %v610 = vpop.f32.mrf.mxu0
      %v611 = vadd.f32 0.0, %v610
      %612 = vmatmul.bf16.gmra.mxu0 %v351
      %v613 = vpop.f32.mrf.mxu0
      %v614 = vadd.f32 0.0, %v613
      %v615 = vpop.f32.mrf.mxu0
      %v616 = vadd.f32 0.0, %v615
      %617 = vmatmul.bf16.gmra.mxu0 %v338
      %v618 = vpop.f32.mrf.mxu0
      %v619 = vadd.f32 0.0, %v618
      %v620 = vpop.f32.mrf.mxu0
      %v621 = vadd.f32 0.0, %v620
      %622 = vmatmul.bf16.gmra.mxu0 %v340
      %v623 = vpop.f32.mrf.mxu0
      %v624 = vadd.f32 0.0, %v623
      %v625 = vpop.f32.mrf.mxu0
      %v626 = vadd.f32 0.0, %v625
      %627 = vmatmul.bf16.gmra.mxu0 %v342
      %v628 = vpop.f32.mrf.mxu0
      %v629 = vadd.f32 0.0, %v628
      %v630 = vpop.f32.mrf.mxu0
      %v631 = vadd.f32 0.0, %v630
      %632 = vmatmul.bf16.gmra.mxu0 %v344
      %v633 = vpop.f32.mrf.mxu0
      %v634 = vadd.f32 0.0, %v633
      %v635 = vpop.f32.mrf.mxu0
      %v636 = vadd.f32 0.0, %v635
      %637 = vmatmul.bf16.gmra.mxu0 %v346
      %v638 = vpop.f32.mrf.mxu0
      %v639 = vadd.f32 0.0, %v638
      %v640 = vpop.f32.mrf.mxu0
      %v641 = vadd.f32 0.0, %v640
      %642 = vmatmul.bf16.gmra.mxu0 %v348
      %v643 = vpop.f32.mrf.mxu0
      %v644 = vadd.f32 0.0, %v643
      %v645 = vpop.f32.mrf.mxu0
      %v646 = vadd.f32 0.0, %v645
      %647 = vmatmul.bf16.gmra.mxu0 %v350
      %v648 = vpop.f32.mrf.mxu0
      %v649 = vadd.f32 0.0, %v648
      %v650 = vpop.f32.mrf.mxu0
      %v651 = vadd.f32 0.0, %v650
      %652 = vmatmul.bf16.gmra.mxu0 %v352
      %v653 = vpop.f32.mrf.mxu0
      %v654 = vadd.f32 0.0, %v653
      %v655 = vpop.f32.mrf.mxu0
      %v656 = vadd.f32 0.0, %v655
      %657 = vdwg.mxu0
      %658 = vmatpush.bf16.msra.mxu0 %v535
      %659 = vmatpush.bf16.msra.mxu0 %v533
      %660 = vmatpush.bf16.msra.mxu0 %v531
      %661 = vmatpush.bf16.msra.mxu0 %v529
      %662 = vmatpush.bf16.msra.mxu0 %v527
      %663 = vmatpush.bf16.msra.mxu0 %v525
      %664 = vmatpush.bf16.msra.mxu0 %v523
      %665 = vmatpush.bf16.msra.mxu0 %v521
      %666 = vmatmul.bf16.gmra.mxu0 %v361
      %v667 = vpop.f32.mrf.mxu0
      %v668 = vadd.f32 %v579, %v667
      %v669 = vpop.f32.mrf.mxu0
      %v670 = vadd.f32 %v581, %v669
      %671 = vmatmul.bf16.gmra.mxu0 %v363
      %v672 = vpop.f32.mrf.mxu0
      %v673 = vadd.f32 %v584, %v672
      %v674 = vpop.f32.mrf.mxu0
      %v675 = vadd.f32 %v586, %v674
      %676 = vmatmul.bf16.gmra.mxu0 %v365
      %v677 = vpop.f32.mrf.mxu0
      %v678 = vadd.f32 %v589, %v677
      %v679 = vpop.f32.mrf.mxu0
      %v680 = vadd.f32 %v591, %v679
      %681 = vmatmul.bf16.gmra.mxu0 %v367
      %v682 = vpop.f32.mrf.mxu0
      %v683 = vadd.f32 %v594, %v682
      %v684 = vpop.f32.mrf.mxu0
      %v685 = vadd.f32 %v596, %v684
      %686 = vmatmul.bf16.gmra.mxu0 %v369
      %v687 = vpop.f32.mrf.mxu0
      %v688 = vadd.f32 %v599, %v687
      %v689 = vpop.f32.mrf.mxu0
      %v690 = vadd.f32 %v601, %v689
      %691 = vmatmul.bf16.gmra.mxu0 %v371
      %v692 = vpop.f32.mrf.mxu0
      %v693 = vadd.f32 %v604, %v692
      %v694 = vpop.f32.mrf.mxu0
      %v695 = vadd.f32 %v606, %v694
      %696 = vmatmul.bf16.gmra.mxu0 %v373
      %v697 = vpop.f32.mrf.mxu0
      %v698 = vadd.f32 %v609, %v697
      %v699 = vpop.f32.mrf.mxu0
      %v700 = vadd.f32 %v611, %v699
      %701 = vmatmul.bf16.gmra.mxu0 %v375
      %v702 = vpop.f32.mrf.mxu0
      %v703 = vadd.f32 %v614, %v702
      %v704 = vpop.f32.mrf.mxu0
      %v705 = vadd.f32 %v616, %v704
      %706 = vmatmul.bf16.gmra.mxu0 %v362
      %v707 = vpop.f32.mrf.mxu0
      %v708 = vadd.f32 %v619, %v707
      %v709 = vpop.f32.mrf.mxu0
      %v710 = vadd.f32 %v621, %v709
      %711 = vmatmul.bf16.gmra.mxu0 %v364
      %v712 = vpop.f32.mrf.mxu0
      %v713 = vadd.f32 %v624, %v712
      %v714 = vpop.f32.mrf.mxu0
      %v715 = vadd.f32 %v626, %v714
      %716 = vmatmul.bf16.gmra.mxu0 %v366
      %v717 = vpop.f32.mrf.mxu0
      %v718 = vadd.f32 %v629, %v717
      %v719 = vpop.f32.mrf.mxu0
      %v720 = vadd.f32 %v631, %v719
      %721 = vmatmul.bf16.gmra.mxu0 %v368
      %v722 = vpop.f32.mrf.mxu0
      %v723 = vadd.f32 %v634, %v722
      %v724 = vpop.f32.mrf.mxu0
      %v725 = vadd.f32 %v636, %v724
      %726 = vmatmul.bf16.gmra.mxu0 %v370
      %v727 = vpop.f32.mrf.mxu0
      %v728 = vadd.f32 %v639, %v727
      %v729 = vpop.f32.mrf.mxu0
      %v730 = vadd.f32 %v641, %v729
      %731 = vmatmul.bf16.gmra.mxu0 %v372
      %v732 = vpop.f32.mrf.mxu0
      %v733 = vadd.f32 %v644, %v732
      %v734 = vpop.f32.mrf.mxu0
      %v735 = vadd.f32 %v646, %v734
      %736 = vmatmul.bf16.gmra.mxu0 %v374
      %v737 = vpop.f32.mrf.mxu0
      %v738 = vadd.f32 %v649, %v737
      %v739 = vpop.f32.mrf.mxu0
      %v740 = vadd.f32 %v651, %v739
      %741 = vmatmul.bf16.gmra.mxu0 %v376
      %v742 = vpop.f32.mrf.mxu0
      %v743 = vadd.f32 %v654, %v742
      %v744 = vpop.f32.mrf.mxu0
      %v745 = vadd.f32 %v656, %v744
      %746 = vdwg.mxu0
      %747 = vmatpush.bf16.msra.mxu0 %v520
      %748 = vmatpush.bf16.msra.mxu0 %v518
      %749 = vmatpush.bf16.msra.mxu0 %v516
      %750 = vmatpush.bf16.msra.mxu0 %v514
      %751 = vmatpush.bf16.msra.mxu0 %v512
      %752 = vmatpush.bf16.msra.mxu0 %v510
      %753 = vmatpush.bf16.msra.mxu0 %v508
      %754 = vmatpush.bf16.msra.mxu0 %v506
      %755 = vmatmul.bf16.gmra.mxu0 %v337
      %v756 = vpop.f32.mrf.mxu0
      %v757 = vadd.f32 0.0, %v756
      %v758 = vpop.f32.mrf.mxu0
      %v759 = vadd.f32 0.0, %v758
      %760 = vmatmul.bf16.gmra.mxu0 %v339
      %v761 = vpop.f32.mrf.mxu0
      %v762 = vadd.f32 0.0, %v761
      %v763 = vpop.f32.mrf.mxu0
      %v764 = vadd.f32 0.0, %v763
      %765 = vmatmul.bf16.gmra.mxu0 %v341
      %v766 = vpop.f32.mrf.mxu0
      %v767 = vadd.f32 0.0, %v766
      %v768 = vpop.f32.mrf.mxu0
      %v769 = vadd.f32 0.0, %v768
      %770 = vmatmul.bf16.gmra.mxu0 %v343
      %v771 = vpop.f32.mrf.mxu0
      %v772 = vadd.f32 0.0, %v771
      %v773 = vpop.f32.mrf.mxu0
      %v774 = vadd.f32 0.0, %v773
      %775 = vmatmul.bf16.gmra.mxu0 %v345
      %v776 = vpop.f32.mrf.mxu0
      %v777 = vadd.f32 0.0, %v776
      %v778 = vpop.f32.mrf.mxu0
      %v779 = vadd.f32 0.0, %v778
      %780 = vmatmul.bf16.gmra.mxu0 %v347
      %v781 = vpop.f32.mrf.mxu0
      %v782 = vadd.f32 0.0, %v781
      %v783 = vpop.f32.mrf.mxu0
      %v784 = vadd.f32 0.0, %v783
      %785 = vmatmul.bf16.gmra.mxu0 %v349
      %v786 = vpop.f32.mrf.mxu0
      %v787 = vadd.f32 0.0, %v786
      %v788 = vpop.f32.mrf.mxu0
      %v789 = vadd.f32 0.0, %v788
      %790 = vmatmul.bf16.gmra.mxu0 %v351
      %v791 = vpop.f32.mrf.mxu0
      %v792 = vadd.f32 0.0, %v791
      %v793 = vpop.f32.mrf.mxu0
      %v794 = vadd.f32 0.0, %v793
      %795 = vmatmul.bf16.gmra.mxu0 %v338
      %v796 = vpop.f32.mrf.mxu0
      %v797 = vadd.f32 0.0, %v796
      %v798 = vpop.f32.mrf.mxu0
      %v799 = vadd.f32 0.0, %v798
      %800 = vmatmul.bf16.gmra.mxu0 %v340
      %v801 = vpop.f32.mrf.mxu0
      %v802 = vadd.f32 0.0, %v801
      %v803 = vpop.f32.mrf.mxu0
      %v804 = vadd.f32 0.0, %v803
      %805 = vmatmul.bf16.gmra.mxu0 %v342
      %v806 = vpop.f32.mrf.mxu0
      %v807 = vadd.f32 0.0, %v806
      %v808 = vpop.f32.mrf.mxu0
      %v809 = vadd.f32 0.0, %v808
      %810 = vmatmul.bf16.gmra.mxu0 %v344
      %v811 = vpop.f32.mrf.mxu0
      %v812 = vadd.f32 0.0, %v811
      %v813 = vpop.f32.mrf.mxu0
      %v814 = vadd.f32 0.0, %v813
      %815 = vmatmul.bf16.gmra.mxu0 %v346
      %v816 = vpop.f32.mrf.mxu0
      %v817 = vadd.f32 0.0, %v816
      %v818 = vpop.f32.mrf.mxu0
      %v819 = vadd.f32 0.0, %v818
      %820 = vmatmul.bf16.gmra.mxu0 %v348
      %v821 = vpop.f32.mrf.mxu0
      %v822 = vadd.f32 0.0, %v821
      %v823 = vpop.f32.mrf.mxu0
      %v824 = vadd.f32 0.0, %v823
      %825 = vmatmul.bf16.gmra.mxu0 %v350
      %v826 = vpop.f32.mrf.mxu0
      %v827 = vadd.f32 0.0, %v826
      %v828 = vpop.f32.mrf.mxu0
      %v829 = vadd.f32 0.0, %v828
      %830 = vmatmul.bf16.gmra.mxu0 %v352
      %v831 = vpop.f32.mrf.mxu0
      %v832 = vadd.f32 0.0, %v831
      %v833 = vpop.f32.mrf.mxu0
      %v834 = vadd.f32 0.0, %v833
      %835 = vdwg.mxu0
      %836 = vmatpush.bf16.msra.mxu0 %v536
      %837 = vmatpush.bf16.msra.mxu0 %v534
      %838 = vmatpush.bf16.msra.mxu0 %v532
      %839 = vmatpush.bf16.msra.mxu0 %v530
      %840 = vmatpush.bf16.msra.mxu0 %v528
      %841 = vmatpush.bf16.msra.mxu0 %v526
      %842 = vmatpush.bf16.msra.mxu0 %v524
      %843 = vmatpush.bf16.msra.mxu0 %v522
      %844 = vmatmul.bf16.gmra.mxu0 %v361
      %v845 = vpop.f32.mrf.mxu0
      %v846 = vadd.f32 %v757, %v845
      %v847 = vpop.f32.mrf.mxu0
      %v848 = vadd.f32 %v759, %v847
      %849 = vmatmul.bf16.gmra.mxu0 %v363
      %v850 = vpop.f32.mrf.mxu0
      %v851 = vadd.f32 %v762, %v850
      %v852 = vpop.f32.mrf.mxu0
      %v853 = vadd.f32 %v764, %v852
      %854 = vmatmul.bf16.gmra.mxu0 %v365
      %v855 = vpop.f32.mrf.mxu0
      %v856 = vadd.f32 %v767, %v855
      %v857 = vpop.f32.mrf.mxu0
      %v858 = vadd.f32 %v769, %v857
      %859 = vmatmul.bf16.gmra.mxu0 %v367
      %v860 = vpop.f32.mrf.mxu0
      %v861 = vadd.f32 %v772, %v860
      %v862 = vpop.f32.mrf.mxu0
      %v863 = vadd.f32 %v774, %v862
      %864 = vmatmul.bf16.gmra.mxu0 %v369
      %v865 = vpop.f32.mrf.mxu0
      %v866 = vadd.f32 %v777, %v865
      %v867 = vpop.f32.mrf.mxu0
      %v868 = vadd.f32 %v779, %v867
      %869 = vmatmul.bf16.gmra.mxu0 %v371
      %v870 = vpop.f32.mrf.mxu0
      %v871 = vadd.f32 %v782, %v870
      %v872 = vpop.f32.mrf.mxu0
      %v873 = vadd.f32 %v784, %v872
      %874 = vmatmul.bf16.gmra.mxu0 %v373
      %v875 = vpop.f32.mrf.mxu0
      %v876 = vadd.f32 %v787, %v875
      %v877 = vpop.f32.mrf.mxu0
      %v878 = vadd.f32 %v789, %v877
      %879 = vmatmul.bf16.gmra.mxu0 %v375
      %v880 = vpop.f32.mrf.mxu0
      %v881 = vadd.f32 %v792, %v880
      %v882 = vpop.f32.mrf.mxu0
      %v883 = vadd.f32 %v794, %v882
      %884 = vmatmul.bf16.gmra.mxu0 %v362
      %v885 = vpop.f32.mrf.mxu0
      %v886 = vadd.f32 %v797, %v885
      %v887 = vpop.f32.mrf.mxu0
      %v888 = vadd.f32 %v799, %v887
      %889 = vmatmul.bf16.gmra.mxu0 %v364
      %v890 = vpop.f32.mrf.mxu0
      %v891 = vadd.f32 %v802, %v890
      %v892 = vpop.f32.mrf.mxu0
      %v893 = vadd.f32 %v804, %v892
      %894 = vmatmul.bf16.gmra.mxu0 %v366
      %v895 = vpop.f32.mrf.mxu0
      %v896 = vadd.f32 %v807, %v895
      %v897 = vpop.f32.mrf.mxu0
      %v898 = vadd.f32 %v809, %v897
      %899 = vmatmul.bf16.gmra.mxu0 %v368
      %v900 = vpop.f32.mrf.mxu0
      %v901 = vadd.f32 %v812, %v900
      %v902 = vpop.f32.mrf.mxu0
      %v903 = vadd.f32 %v814, %v902
      %904 = vmatmul.bf16.gmra.mxu0 %v370
      %v905 = vpop.f32.mrf.mxu0
      %v906 = vadd.f32 %v817, %v905
      %v907 = vpop.f32.mrf.mxu0
      %v908 = vadd.f32 %v819, %v907
      %909 = vmatmul.bf16.gmra.mxu0 %v372
      %v910 = vpop.f32.mrf.mxu0
      %v911 = vadd.f32 %v822, %v910
      %v912 = vpop.f32.mrf.mxu0
      %v913 = vadd.f32 %v824, %v912
      %914 = vmatmul.bf16.gmra.mxu0 %v374
      %v915 = vpop.f32.mrf.mxu0
      %v916 = vadd.f32 %v827, %v915
      %v917 = vpop.f32.mrf.mxu0
      %v918 = vadd.f32 %v829, %v917
      %919 = vmatmul.bf16.gmra.mxu0 %v376
      %v920 = vpop.f32.mrf.mxu0
      %v921 = vadd.f32 %v832, %v920
      %v922 = vpop.f32.mrf.mxu0
      %v923 = vadd.f32 %v834, %v922
      %924 = vdwg.mxu0
      %v925 = vpack.c.bf16 %v846, %v668
      %v926 = vpack.c.bf16 %v848, %v670
      %v927 = vpack.c.bf16 %v851, %v673
      %v928 = vpack.c.bf16 %v853, %v675
      %v929 = vpack.c.bf16 %v856, %v678
      %v930 = vpack.c.bf16 %v858, %v680
      %v931 = vpack.c.bf16 %v861, %v683
      %v932 = vpack.c.bf16 %v863, %v685
      %v933 = vpack.c.bf16 %v866, %v688
      %v934 = vpack.c.bf16 %v868, %v690
      %v935 = vpack.c.bf16 %v871, %v693
      %v936 = vpack.c.bf16 %v873, %v695
      %v937 = vpack.c.bf16 %v876, %v698
      %v938 = vpack.c.bf16 %v878, %v700
      %v939 = vpack.c.bf16 %v881, %v703
      %v940 = vpack.c.bf16 %v883, %v705
      %v941 = vpack.c.bf16 %v886, %v708
      %v942 = vpack.c.bf16 %v888, %v710
      %v943 = vpack.c.bf16 %v891, %v713
      %v944 = vpack.c.bf16 %v893, %v715
      %v945 = vpack.c.bf16 %v896, %v718
      %v946 = vpack.c.bf16 %v898, %v720
      %v947 = vpack.c.bf16 %v901, %v723
      %v948 = vpack.c.bf16 %v903, %v725
      %v949 = vpack.c.bf16 %v906, %v728
      %v950 = vpack.c.bf16 %v908, %v730
      %v951 = vpack.c.bf16 %v911, %v733
      %v952 = vpack.c.bf16 %v913, %v735
      %v953 = vpack.c.bf16 %v916, %v738
      %v954 = vpack.c.bf16 %v918, %v740
      %v955 = vpack.c.bf16 %v921, %v743
      %v956 = vpack.c.bf16 %v923, %v745
      %957 = vst [vmem:[%s222] sm:$0xff] %v925
      %958 = vst [vmem:[%s222 + $0x8] sm:$0xff] %v926
      %959 = vst [vmem:[%s222 + $0x10] sm:$0xff] %v927
      %960 = vst [vmem:[%s222 + $0x18] sm:$0xff] %v928
      %961 = vst [vmem:[%s222 + $0x20] sm:$0xff] %v929
      %962 = vst [vmem:[%s222 + $0x28] sm:$0xff] %v930
      %963 = vst [vmem:[%s222 + $0x30] sm:$0xff] %v931
      %964 = vst [vmem:[%s222 + $0x38] sm:$0xff] %v932
      %965 = vst [vmem:[%s222 + $0x40] sm:$0xff] %v933
      %966 = vst [vmem:[%s222 + $0x48] sm:$0xff] %v934
      %967 = vst [vmem:[%s222 + $0x50] sm:$0xff] %v935
      %968 = vst [vmem:[%s222 + $0x58] sm:$0xff] %v936
      %969 = vst [vmem:[%s222 + $0x60] sm:$0xff] %v937
      %970 = vst [vmem:[%s222 + $0x68] sm:$0xff] %v938
      %971 = vst [vmem:[%s222 + $0x70] sm:$0xff] %v939
      %972 = vst [vmem:[%s222 + $0x78] sm:$0xff] %v940
      %973 = vst [vmem:[%s222 + $0x80] sm:$0xff] %v941
      %974 = vst [vmem:[%s222 + $0x88] sm:$0xff] %v942
      %975 = vst [vmem:[%s222 + $0x90] sm:$0xff] %v943
      %976 = vst [vmem:[%s222 + $0x98] sm:$0xff] %v944
      %977 = vst [vmem:[%s222 + $0xa0] sm:$0xff] %v945
      %978 = vst [vmem:[%s222 + $0xa8] sm:$0xff] %v946
      %979 = vst [vmem:[%s222 + $0xb0] sm:$0xff] %v947
      %980 = vst [vmem:[%s222 + $0xb8] sm:$0xff] %v948
      %981 = vst [vmem:[%s222 + $0xc0] sm:$0xff] %v949
      %982 = vst [vmem:[%s222 + $0xc8] sm:$0xff] %v950
      %983 = vst [vmem:[%s222 + $0xd0] sm:$0xff] %v951
      %984 = vst [vmem:[%s222 + $0xd8] sm:$0xff] %v952
      %985 = vst [vmem:[%s222 + $0xe0] sm:$0xff] %v953
      %986 = vst [vmem:[%s222 + $0xe8] sm:$0xff] %v954
      %987 = vst [vmem:[%s222 + $0xf0] sm:$0xff] %v955
      %988 = vst [vmem:[%s222 + $0xf8] sm:$0xff] %v956
      %v989 = vadd.f32 %v668, %v670
      %v990 = vadd.f32 %v989, %v673
      %v991 = vadd.f32 %v990, %v675
      %v992 = vadd.f32 %v991, %v678
      %v993 = vadd.f32 %v992, %v680
      %v994 = vadd.f32 %v993, %v683
      %v995 = vadd.f32 %v994, %v685
      %v996 = vadd.f32 %v995, %v688
      %v997 = vadd.f32 %v996, %v690
      %v998 = vadd.f32 %v997, %v693
      %v999 = vadd.f32 %v998, %v695
      %v1000 = vadd.f32 %v999, %v698
      %v1001 = vadd.f32 %v1000, %v700
      %v1002 = vadd.f32 %v1001, %v703
      %v1003 = vadd.f32 %v1002, %v705
      %v1004 = vadd.f32 %v1003, %v708
      %v1005 = vadd.f32 %v1004, %v710
      %v1006 = vadd.f32 %v1005, %v713
      %v1007 = vadd.f32 %v1006, %v715
      %v1008 = vadd.f32 %v1007, %v718
      %v1009 = vadd.f32 %v1008, %v720
      %v1010 = vadd.f32 %v1009, %v723
      %v1011 = vadd.f32 %v1010, %v725
      %v1012 = vadd.f32 %v1011, %v728
      %v1013 = vadd.f32 %v1012, %v730
      %v1014 = vadd.f32 %v1013, %v733
      %v1015 = vadd.f32 %v1014, %v735
      %v1016 = vadd.f32 %v1015, %v738
      %v1017 = vadd.f32 %v1016, %v740
      %v1018 = vadd.f32 %v1017, %v743
      %v1019 = vadd.f32 %v1018, %v745
      %v1020 = vrot.slane %v1019, 4
      %v1021 = vadd.f32 %v1019, %v1020
      %v1022 = vrot.slane %v1021, 2
      %v1023 = vadd.f32 %v1021, %v1022
      %v1024 = vrot.slane %v1023, 1
      %v1025 = vadd.f32 %v1023, %v1024
      %v1026 = vadd.f32 %v846, %v848
      %v1027 = vadd.f32 %v1026, %v851
      %v1028 = vadd.f32 %v1027, %v853
      %v1029 = vadd.f32 %v1028, %v856
      %v1030 = vadd.f32 %v1029, %v858
      %v1031 = vadd.f32 %v1030, %v861
      %v1032 = vadd.f32 %v1031, %v863
      %v1033 = vadd.f32 %v1032, %v866
      %v1034 = vadd.f32 %v1033, %v868
      %v1035 = vadd.f32 %v1034, %v871
      %v1036 = vadd.f32 %v1035, %v873
      %v1037 = vadd.f32 %v1036, %v876
      %v1038 = vadd.f32 %v1037, %v878
      %v1039 = vadd.f32 %v1038, %v881
      %v1040 = vadd.f32 %v1039, %v883
      %v1041 = vadd.f32 %v1040, %v886
      %v1042 = vadd.f32 %v1041, %v888
      %v1043 = vadd.f32 %v1042, %v891
      %v1044 = vadd.f32 %v1043, %v893
      %v1045 = vadd.f32 %v1044, %v896
      %v1046 = vadd.f32 %v1045, %v898
      %v1047 = vadd.f32 %v1046, %v901
      %v1048 = vadd.f32 %v1047, %v903
      %v1049 = vadd.f32 %v1048, %v906
      %v1050 = vadd.f32 %v1049, %v908
      %v1051 = vadd.f32 %v1050, %v911
      %v1052 = vadd.f32 %v1051, %v913
      %v1053 = vadd.f32 %v1052, %v916
      %v1054 = vadd.f32 %v1053, %v918
      %v1055 = vadd.f32 %v1054, %v921
      %v1056 = vadd.f32 %v1055, %v923
      %v1057 = vrot.slane %v1056, 4
      %v1058 = vadd.f32 %v1056, %v1057
      %v1059 = vrot.slane %v1058, 2
      %v1060 = vadd.f32 %v1058, %v1059
      %v1061 = vrot.slane %v1060, 1
      %v1062 = vadd.f32 %v1060, %v1061
      %v1065 = vrot.slane %v1062, 7
      %vm1066 = vcmask 1040384
      %v1067 = vsel %vm1066, %v1025, %v1065
      %v1069 = vlaneseq
      %vm1070 = vcmp.ge.s32.totalorder %v1069, 0
      %vm1071 = vcmp.lt.s32.totalorder %v1069, 256
      %vm1072 = vmand %vm1070, %vm1071
      %1073 = vst.msk [vmem:[%s232] ss:$2 sm:$0x3] %vm1072, %v1067
      %v1074 = vmul.f32 %v668, %v668
      %v1075 = vmul.f32 %v846, %v846
      %v1076 = vmul.f32 %v670, %v670
      %v1077 = vmul.f32 %v848, %v848
      %v1078 = vmul.f32 %v673, %v673
      %v1079 = vmul.f32 %v851, %v851
      %v1080 = vmul.f32 %v675, %v675
      %v1081 = vmul.f32 %v853, %v853
      %v1082 = vmul.f32 %v678, %v678
      %v1083 = vmul.f32 %v856, %v856
      %v1084 = vmul.f32 %v680, %v680
      %v1085 = vmul.f32 %v858, %v858
      %v1086 = vmul.f32 %v683, %v683
      %v1087 = vmul.f32 %v861, %v861
      %v1088 = vmul.f32 %v685, %v685
      %v1089 = vmul.f32 %v863, %v863
      %v1090 = vmul.f32 %v688, %v688
      %v1091 = vmul.f32 %v866, %v866
      %v1092 = vmul.f32 %v690, %v690
      %v1093 = vmul.f32 %v868, %v868
      %v1094 = vmul.f32 %v693, %v693
      %v1095 = vmul.f32 %v871, %v871
      %v1096 = vmul.f32 %v695, %v695
      %v1097 = vmul.f32 %v873, %v873
      %v1098 = vmul.f32 %v698, %v698
      %v1099 = vmul.f32 %v876, %v876
      %v1100 = vmul.f32 %v700, %v700
      %v1101 = vmul.f32 %v878, %v878
      %v1102 = vmul.f32 %v703, %v703
      %v1103 = vmul.f32 %v881, %v881
      %v1104 = vmul.f32 %v705, %v705
      %v1105 = vmul.f32 %v883, %v883
      %v1106 = vmul.f32 %v708, %v708
      %v1107 = vmul.f32 %v886, %v886
      %v1108 = vmul.f32 %v710, %v710
      %v1109 = vmul.f32 %v888, %v888
      %v1110 = vmul.f32 %v713, %v713
      %v1111 = vmul.f32 %v891, %v891
      %v1112 = vmul.f32 %v715, %v715
      %v1113 = vmul.f32 %v893, %v893
      %v1114 = vmul.f32 %v718, %v718
      %v1115 = vmul.f32 %v896, %v896
      %v1116 = vmul.f32 %v720, %v720
      %v1117 = vmul.f32 %v898, %v898
      %v1118 = vmul.f32 %v723, %v723
      %v1119 = vmul.f32 %v901, %v901
      %v1120 = vmul.f32 %v725, %v725
      %v1121 = vmul.f32 %v903, %v903
      %v1122 = vmul.f32 %v728, %v728
      %v1123 = vmul.f32 %v906, %v906
      %v1124 = vmul.f32 %v730, %v730
      %v1125 = vmul.f32 %v908, %v908
      %v1126 = vmul.f32 %v733, %v733
      %v1127 = vmul.f32 %v911, %v911
      %v1128 = vmul.f32 %v735, %v735
      %v1129 = vmul.f32 %v913, %v913
      %v1130 = vmul.f32 %v738, %v738
      %v1131 = vmul.f32 %v916, %v916
      %v1132 = vmul.f32 %v740, %v740
      %v1133 = vmul.f32 %v918, %v918
      %v1134 = vmul.f32 %v743, %v743
      %v1135 = vmul.f32 %v921, %v921
      %v1136 = vmul.f32 %v745, %v745
      %v1137 = vmul.f32 %v923, %v923
      %v1138 = vadd.f32 %v1074, %v1076
      %v1139 = vadd.f32 %v1138, %v1078
      %v1140 = vadd.f32 %v1139, %v1080
      %v1141 = vadd.f32 %v1140, %v1082
      %v1142 = vadd.f32 %v1141, %v1084
      %v1143 = vadd.f32 %v1142, %v1086
      %v1144 = vadd.f32 %v1143, %v1088
      %v1145 = vadd.f32 %v1144, %v1090
      %v1146 = vadd.f32 %v1145, %v1092
      %v1147 = vadd.f32 %v1146, %v1094
      %v1148 = vadd.f32 %v1147, %v1096
      %v1149 = vadd.f32 %v1148, %v1098
      %v1150 = vadd.f32 %v1149, %v1100
      %v1151 = vadd.f32 %v1150, %v1102
      %v1152 = vadd.f32 %v1151, %v1104
      %v1153 = vadd.f32 %v1152, %v1106
      %v1154 = vadd.f32 %v1153, %v1108
      %v1155 = vadd.f32 %v1154, %v1110
      %v1156 = vadd.f32 %v1155, %v1112
      %v1157 = vadd.f32 %v1156, %v1114
      %v1158 = vadd.f32 %v1157, %v1116
      %v1159 = vadd.f32 %v1158, %v1118
      %v1160 = vadd.f32 %v1159, %v1120
      %v1161 = vadd.f32 %v1160, %v1122
      %v1162 = vadd.f32 %v1161, %v1124
      %v1163 = vadd.f32 %v1162, %v1126
      %v1164 = vadd.f32 %v1163, %v1128
      %v1165 = vadd.f32 %v1164, %v1130
      %v1166 = vadd.f32 %v1165, %v1132
      %v1167 = vadd.f32 %v1166, %v1134
      %v1168 = vadd.f32 %v1167, %v1136
      %v1169 = vrot.slane %v1168, 4
      %v1170 = vadd.f32 %v1168, %v1169
      %v1171 = vrot.slane %v1170, 2
      %v1172 = vadd.f32 %v1170, %v1171
      %v1173 = vrot.slane %v1172, 1
      %v1174 = vadd.f32 %v1172, %v1173
      %v1175 = vadd.f32 %v1075, %v1077
      %v1176 = vadd.f32 %v1175, %v1079
      %v1177 = vadd.f32 %v1176, %v1081
      %v1178 = vadd.f32 %v1177, %v1083
      %v1179 = vadd.f32 %v1178, %v1085
      %v1180 = vadd.f32 %v1179, %v1087
      %v1181 = vadd.f32 %v1180, %v1089
      %v1182 = vadd.f32 %v1181, %v1091
      %v1183 = vadd.f32 %v1182, %v1093
      %v1184 = vadd.f32 %v1183, %v1095
      %v1185 = vadd.f32 %v1184, %v1097
      %v1186 = vadd.f32 %v1185, %v1099
      %v1187 = vadd.f32 %v1186, %v1101
      %v1188 = vadd.f32 %v1187, %v1103
      %v1189 = vadd.f32 %v1188, %v1105
      %v1190 = vadd.f32 %v1189, %v1107
      %v1191 = vadd.f32 %v1190, %v1109
      %v1192 = vadd.f32 %v1191, %v1111
      %v1193 = vadd.f32 %v1192, %v1113
      %v1194 = vadd.f32 %v1193, %v1115
      %v1195 = vadd.f32 %v1194, %v1117
      %v1196 = vadd.f32 %v1195, %v1119
      %v1197 = vadd.f32 %v1196, %v1121
      %v1198 = vadd.f32 %v1197, %v1123
      %v1199 = vadd.f32 %v1198, %v1125
      %v1200 = vadd.f32 %v1199, %v1127
      %v1201 = vadd.f32 %v1200, %v1129
      %v1202 = vadd.f32 %v1201, %v1131
      %v1203 = vadd.f32 %v1202, %v1133
      %v1204 = vadd.f32 %v1203, %v1135
      %v1205 = vadd.f32 %v1204, %v1137
      %v1206 = vrot.slane %v1205, 4
      %v1207 = vadd.f32 %v1205, %v1206
      %v1208 = vrot.slane %v1207, 2
      %v1209 = vadd.f32 %v1207, %v1208
      %v1210 = vrot.slane %v1209, 1
      %v1211 = vadd.f32 %v1209, %v1210
      %v1214 = vrot.slane %v1211, 7
      %v1215 = vsel %vm1066, %v1174, %v1214
      %s1217 = scalar_lea.vmem %s232, 1
      %1218 = vst.msk [vmem:[%s1217] ss:$2 sm:$0x3] %vm1072, %v1215
      %s1219 = smul.u32 32, %s20
      %p1220 = scmp.lt.s32.totalorder %s19, 1
      %s1221 = scalar_select %p1220, %s19, 1
      %p1222 = scmp.lt.s32.totalorder %s1219, 63
      %s1223 = scalar_select %p1222, %s1219, 63
      %s1224 = smul.addr %s1223, 2
      %s1225 = smul.addr %s1221, 128
      %s1226 = sadd.s32 %s1224, %s1225
      %s1227 = smul.addr %s1226, 4
      %s1228 = scalar_lea.vmem %s2, %s1227
      %p1229 = scmp.lt.s32.totalorder %s19, 1
      %s1230 = scalar_select %p1229, %s19, 1
      %p1231 = scmp.lt.s32.totalorder %s20, 1
      %s1232 = scalar_select %p1231, %s20, 1
      %s1233 = smul.addr %s1232, 2
      %s1234 = smul.addr %s1230, 4
      %s1235 = sadd.s32 %s1233, %s1234
      %s1236 = smul.addr %s1235, 2
      %s1237 = scalar_lea.vmem %s3, %s1236
      // Predicated region
      $region29: #{convmim_forward_loss.5} parent=27 // pred_check
        %p1238 = pneg %p96
      $region30: #{convmim_forward_loss.5} parent=27 // pred_check_branch
        %1240 = sbr.rel (%p1238) target = $region32
      $region31: #{convmim_forward_loss.5} parent=27 // pred_region
        %s1241 = smul.u32 32, %s20
      $region32: #{convmim_forward_loss.5} parent=27 // pred_fallthru
        _
      // Predicated region
      $region33: #{convmim_forward_loss.5} parent=27 // pred_check
        %p1242 = pneg %p124
      $region34: #{convmim_forward_loss.5} parent=27 // pred_check_branch
        %1244 = sbr.rel (%p1242) target = $region36
      $region35: #{convmim_forward_loss.5} parent=27 // pred_region
        _
      $region36: #{convmim_forward_loss.5} parent=27 // pred_fallthru
        _
    $region28: #{convmim_forward_loss.5} parent=5 // pred_fallthru
      _
    %p1245 = scmp.le.s32.totalorder 2, %s10
    // Predicated region
    $region37: #{convmim_forward_loss.5} parent=5 // pred_check
      %p1246 = pneg %p1245
    $region38: #{convmim_forward_loss.5} parent=5 // pred_check_branch
      %1248 = sbr.rel (%p1246) target = $region40
    $region39: #{convmim_forward_loss.5} parent=5 // pred_region
      %s1249 = ssub.s32 %s10, 2
      // Predicated region
      $region41: #{convmim_forward_loss.5} parent=39 // pred_check
        %p1250 = pneg %p102
      $region42: #{convmim_forward_loss.5} parent=39 // pred_check_branch
        %1252 = sbr.rel (%p1250) target = $region44
      $region43: #{convmim_forward_loss.5} parent=39 // pred_region
        %s1253 = smul.u32 32, %s22
        %p1254 = scmp.lt.s32.totalorder %s21, 1
        %s1255 = scalar_select %p1254, %s21, 1
        %p1256 = scmp.lt.s32.totalorder %s1253, 63
        %s1257 = scalar_select %p1256, %s1253, 63
        %s1258 = smul.addr %s1257, 2
        %s1259 = smul.addr %s1255, 128
        %s1260 = sadd.s32 %s1258, %s1259
        %s1261 = smul.addr %s1260, 4
        %s1262 = scalar_lea.vmem %s2, %s1261
      $region44: #{convmim_forward_loss.5} parent=39 // pred_fallthru
        _
      // Predicated region
      $region45: #{convmim_forward_loss.5} parent=39 // pred_check
        %p1263 = pneg %p130
      $region46: #{convmim_forward_loss.5} parent=39 // pred_check_branch
        %1265 = sbr.rel (%p1263) target = $region48
      $region47: #{convmim_forward_loss.5} parent=39 // pred_region
        %p1266 = scmp.lt.s32.totalorder %s21, 1
        %s1267 = scalar_select %p1266, %s21, 1
        %p1268 = scmp.lt.s32.totalorder %s22, 1
        %s1269 = scalar_select %p1268, %s22, 1
        %s1270 = smul.addr %s1269, 2
        %s1271 = smul.addr %s1267, 4
        %s1272 = sadd.s32 %s1270, %s1271
        %s1273 = smul.addr %s1272, 2
        %s1274 = scalar_lea.vmem %s3, %s1273
      $region48: #{convmim_forward_loss.5} parent=39 // pred_fallthru
        _
    $region40: #{convmim_forward_loss.5} parent=5 // pred_fallthru
      _
  $region6: #{convmim_forward_loss.5} parent=0 // loop_footer
    %s14 = sadd.s32 1, %s10
  $region7: #{convmim_forward_loss.5} parent=0 // loop_footer_branch
    %9 = sbr.rel target = $region3
  $region8: #{convmim_forward_loss.5} parent=0 // loop_exit
    _

// kernel: convmim_forward_loss.7
$region0: #{convmim_forward_loss.7}
  #allocation0 [shape = 'u32[]', space=smem, size = 0x4, offset = 0x4, fixed_abs, tag = 'smem constant byte address 0x4 - core index']
  #allocation1 [shape = 'u32[72,128]{1,0:T(1,128)}', space=vmem, size = 0x9000, scoped, tag = 'internal scratch']
  %s0 = inlined_call_operand.vmem [shape: bf16[2,512,256], index: 0, kind: input, shape index: {}]
  %s1 = inlined_call_operand.vmem [shape: f32[2,8,256], index: 1, kind: input, shape index: {}]
  %s2 = inlined_call_operand.vmem [shape: f32[2,1,2,256], index: 2, kind: output, shape index: {}]
  %s3 = sld [smem:[#allocation0]]
  $region41: #{convmim_forward_loss.7} parent=0
    _
  %s5 = ssub.s32 1, %s3
  %s6 = scalar_select 0, %s5, %s3
  loop: start=0, step=1, limit=4
  $region2: #{convmim_forward_loss.7} parent=0 // loop_pre_header
    _
  $region3: #{convmim_forward_loss.7} parent=0 // loop_header
    %s8 = sphi 0, %s12
    %p9 = scmp.ge.s32.totalorder %s8, 4
    %s15 = sphi 0, %s27
    %s16 = sphi 0, %s23
    %s17 = sphi 0, %s15
    %s18 = sphi 0, %s16
    %s19 = sphi 0, %s17
    %s20 = sphi 0, %s18
    %s32 = sphi 0, %s34
    %s35 = sphi 0, %s32
    %s36 = sphi 0, %s35
    %s52 = sphi 0, %s36
    %s58 = sphi 0, %s60
    %s61 = sphi 0, %s58
    %s62 = sphi 0, %s61
    %s78 = sphi 0, %s62
    %s86 = sphi 0, %s88
    %s89 = sphi 0, %s86
    %s90 = sphi 0, %s89
    %s106 = sphi 0, %s90
  $region4: #{convmim_forward_loss.7} parent=0 // loop_header_branch
    %11 = sbr.rel (%p9) target = $region8
  $region5: #{convmim_forward_loss.7} parent=0 // loop_body
    %s13 = ssub.s32 %s8, 1
    %s14 = ssub.s32 %s8, 2
    %s21 = sadd.s32 1, %s16
    %p22 = scmp.ge.s32.totalorder %s21, 1
    %s23 = scalar_select %p22, 0, %s21
    %s24 = sadd.s32 1, %s15
    %s25 = scalar_select %p22, %s24, %s15
    %p26 = scmp.ge.s32.totalorder %s25, 2
    %s27 = scalar_select %p26, 0, %s25
    %s28 = ssub.s32 %s15, %s27
    %s29 = ssub.s32 %s16, %s23
    %s30 = sor.u32 %s28, %s29
    %p31 = scmp.eq.s32.totalorder %s30, 0
    %s33 = sadd.s32 %s32, 1
    %s34 = scalar_select %p31, %s32, %s33
    %p37 = pneg %p31
    %p38 = scmp.eq.s32.totalorder %s8, 1
    %p39 = por %p37, %p38
    %p40 = scmp.ne.s32.totalorder %s32, %s35
    %p41 = scmp.eq.s32.totalorder %s8, 0
    %p42 = por %p40, %p41
    %p43 = scmp.ne.s32.totalorder %s32, %s35
    %p44 = scmp.eq.s32.totalorder %s13, 1
    %p45 = por %p43, %p44
    %p46 = scmp.ne.s32.totalorder %s35, %s36
    %p47 = scmp.eq.s32.totalorder %s13, 0
    %p48 = por %p46, %p47
    %p49 = scmp.ne.s32.totalorder %s35, %s36
    %p50 = scmp.eq.s32.totalorder %s14, 1
    %p51 = por %p49, %p50
    %p53 = scmp.ne.s32.totalorder %s36, %s52
    %p54 = scmp.eq.s32.totalorder %s14, 0
    %p55 = por %p53, %p54
    %s56 = ssub.s32 %s15, %s27
    %p57 = scmp.eq.s32.totalorder %s56, 0
    %s59 = sadd.s32 %s58, 1
    %s60 = scalar_select %p57, %s58, %s59
    %p63 = pneg %p57
    %p64 = scmp.eq.s32.totalorder %s8, 1
    %p65 = por %p63, %p64
    %p66 = scmp.ne.s32.totalorder %s58, %s61
    %p67 = scmp.eq.s32.totalorder %s8, 0
    %p68 = por %p66, %p67
    %p69 = scmp.ne.s32.totalorder %s58, %s61
    %p70 = scmp.eq.s32.totalorder %s13, 1
    %p71 = por %p69, %p70
    %p72 = scmp.ne.s32.totalorder %s61, %s62
    %p73 = scmp.eq.s32.totalorder %s13, 0
    %p74 = por %p72, %p73
    %p75 = scmp.ne.s32.totalorder %s61, %s62
    %p76 = scmp.eq.s32.totalorder %s14, 1
    %p77 = por %p75, %p76
    %p79 = scmp.ne.s32.totalorder %s62, %s78
    %p80 = scmp.eq.s32.totalorder %s14, 0
    %p81 = por %p79, %p80
    %s82 = ssub.s32 %s15, %s27
    %s83 = ssub.s32 %s16, %s23
    %s84 = sor.u32 %s82, %s83
    %p85 = scmp.eq.s32.totalorder %s84, 0
    %s87 = sadd.s32 %s86, 1
    %s88 = scalar_select %p85, %s86, %s87
    %p91 = pneg %p85
    %p92 = scmp.eq.s32.totalorder %s8, 1
    %p93 = por %p91, %p92
    %p94 = scmp.ne.s32.totalorder %s86, %s89
    %p95 = scmp.eq.s32.totalorder %s8, 0
    %p96 = por %p94, %p95
    %p97 = scmp.ne.s32.totalorder %s86, %s89
    %p98 = scmp.eq.s32.totalorder %s13, 1
    %p99 = por %p97, %p98
    %p100 = scmp.ne.s32.totalorder %s89, %s90
    %p101 = scmp.eq.s32.totalorder %s13, 0
    %p102 = por %p100, %p101
    %p103 = scmp.ne.s32.totalorder %s89, %s90
    %p104 = scmp.eq.s32.totalorder %s14, 1
    %p105 = por %p103, %p104
    %p107 = scmp.ne.s32.totalorder %s90, %s106
    %p108 = scmp.eq.s32.totalorder %s14, 0
    %p109 = por %p107, %p108
    %p110 = scmp.le.s32.totalorder 1, %s8
    %p111 = scmp.lt.s32.totalorder %s8, 3
    %p112 = pnand %p110, %p111
    %p113 = pneg %p112
    // Predicated region
    $region9: #{convmim_forward_loss.7} parent=5 // pred_check
      _
    $region10: #{convmim_forward_loss.7} parent=5 // pred_check_branch
      %115 = sbr.rel (%p112) target = $region12
    $region11: #{convmim_forward_loss.7} parent=5 // pred_region
      %s116 = ssub.s32 %s8, 1
    $region12: #{convmim_forward_loss.7} parent=5 // pred_fallthru
      _
    %p117 = scmp.lt.s32.totalorder %s8, 2
    // Predicated region
    $region13: #{convmim_forward_loss.7} parent=5 // pred_check
      %p118 = pneg %p117
    $region14: #{convmim_forward_loss.7} parent=5 // pred_check_branch
      %120 = sbr.rel (%p118) target = $region16
    $region15: #{convmim_forward_loss.7} parent=5 // pred_region
      // Predicated region
      $region17: #{convmim_forward_loss.7} parent=15 // pred_check
        %p121 = pneg %p42
      $region18: #{convmim_forward_loss.7} parent=15 // pred_check_branch
        %123 = sbr.rel (%p121) target = $region20
      $region19: #{convmim_forward_loss.7} parent=15 // pred_region
        %s124 = smul.u32 64, %s16
        %p125 = scmp.lt.s32.totalorder %s15, 1
        %s126 = scalar_select %p125, %s15, 1
        %p127 = scmp.lt.s32.totalorder %s124, 63
        %s128 = scalar_select %p127, %s124, 63
        %s129 = smul.addr %s128, 2
        %s130 = smul.addr %s126, 128
        %s131 = sadd.s32 %s129, %s130
        %s132 = smul.addr %s131, 4
        %s133 = scalar_lea.vmem %s0, %s132
        %s134 = smul.u32 64, %s16
      $region20: #{convmim_forward_loss.7} parent=15 // pred_fallthru
        _
      // Predicated region
      $region21: #{convmim_forward_loss.7} parent=15 // pred_check
        %p135 = pneg %p68
      $region22: #{convmim_forward_loss.7} parent=15 // pred_check_branch
        %137 = sbr.rel (%p135) target = $region24
      $region23: #{convmim_forward_loss.7} parent=15 // pred_region
        %p138 = scmp.lt.s32.totalorder %s15, 1
        %s139 = scalar_select %p138, %s15, 1
        %s140 = smul.addr %s139, 2
        %s141 = smul.addr %s140, 8
        %s142 = scalar_lea.vmem %s1, %s141
      $region24: #{convmim_forward_loss.7} parent=15 // pred_fallthru
        _
    $region16: #{convmim_forward_loss.7} parent=5 // pred_fallthru
      _
    %p143 = scmp.le.s32.totalorder 1, %s8
    %p144 = scmp.lt.s32.totalorder %s8, 3
    %p145 = pnand %p143, %p144
    %p146 = pneg %p145
    // Predicated region
    $region25: #{convmim_forward_loss.7} parent=5 // pred_check
      _
    $region26: #{convmim_forward_loss.7} parent=5 // pred_check_branch
      %148 = sbr.rel (%p145) target = $region28
    $region27: #{convmim_forward_loss.7} parent=5 // pred_region
      %s149 = ssub.s32 %s8, 1
      %s150 = smul.u32 64, %s18
      %p151 = scmp.lt.s32.totalorder %s17, 1
      %s152 = scalar_select %p151, %s17, 1
      %p153 = scmp.lt.s32.totalorder %s150, 63
      %s154 = scalar_select %p153, %s150, 63
      %s155 = smul.addr %s154, 2
      %s156 = smul.addr %s152, 128
      %s157 = sadd.s32 %s155, %s156
      %s158 = smul.addr %s157, 4
      %s159 = scalar_lea.vmem %s0, %s158
      %p160 = pneg %p48
      %p161 = pneg %p45
      %p162 = scmp.lt.s32.totalorder %s17, 1
      %s163 = scalar_select %p162, %s17, 1
      %s164 = smul.addr %s163, 2
      %s165 = smul.addr %s164, 8
      %s166 = scalar_lea.vmem %s1, %s165
      %p167 = pneg %p74
      %p168 = pneg %p71
      %p169 = pneg %p102
      %p170 = pneg %p99
      %p171 = scmp.lt.s32.totalorder %s17, 1
      %s172 = scalar_select %p171, %s17, 1
      %p173 = scmp.lt.s32.totalorder %s18, 0
      %s174 = scalar_select %p173, %s18, 0
      %s175 = smul.addr %s174, 2
      %s176 = smul.addr %s172, 2
      %s177 = sadd.s32 %s175, %s176
      %s178 = smul.addr %s177, 2
      %s179 = scalar_lea.vmem %s2, %s178
      %s180 = smul.u32 64, %s18
      %p181 = scmp.lt.s32.totalorder %s17, 1
      %s182 = scalar_select %p181, %s17, 1
      %p183 = scmp.lt.s32.totalorder %s180, 63
      %s184 = scalar_select %p183, %s180, 63
      %s185 = smul.addr %s184, 2
      %s186 = smul.addr %s182, 128
      %s187 = sadd.s32 %s185, %s186
      %s188 = smul.addr %s187, 4
      %s189 = scalar_lea.vmem %s0, %s188
      %s190 = smul.u32 64, %s18
      %p191 = scmp.lt.s32.totalorder %s17, 1
      %s192 = scalar_select %p191, %s17, 1
      %s193 = smul.addr %s192, 2
      %s194 = smul.addr %s193, 8
      %s195 = scalar_lea.vmem %s1, %s194
      %p196 = scmp.lt.s32.totalorder %s17, 1
      %s197 = scalar_select %p196, %s17, 1
      %p198 = scmp.lt.s32.totalorder %s18, 0
      %s199 = scalar_select %p198, %s18, 0
      %s200 = smul.addr %s199, 2
      %s201 = smul.addr %s197, 2
      %s202 = sadd.s32 %s200, %s201
      %s203 = smul.addr %s202, 2
      %s204 = scalar_lea.vmem %s2, %s203
      %v205 = vld [vmem:[%s195] sm:$0xff]
      %v206 = vld [vmem:[%s195 + $0x8] sm:$0xff]
      %v207 = vld [vmem:[%s189] sm:$0xff]
      %v208 = vld [vmem:[%s189 + $0x8] sm:$0xff]
      %v209 = vld [vmem:[%s189 + $0x10] sm:$0xff]
      %v210 = vld [vmem:[%s189 + $0x18] sm:$0xff]
      %v211 = vld [vmem:[%s189 + $0x20] sm:$0xff]
      %v212 = vld [vmem:[%s189 + $0x28] sm:$0xff]
      %v213 = vld [vmem:[%s189 + $0x30] sm:$0xff]
      %v214 = vld [vmem:[%s189 + $0x38] sm:$0xff]
      %v215 = vld [vmem:[%s189 + $0x40] sm:$0xff]
      %v216 = vld [vmem:[%s189 + $0x48] sm:$0xff]
      %v217 = vld [vmem:[%s189 + $0x50] sm:$0xff]
      %v218 = vld [vmem:[%s189 + $0x58] sm:$0xff]
      %v219 = vld [vmem:[%s189 + $0x60] sm:$0xff]
      %v220 = vld [vmem:[%s189 + $0x68] sm:$0xff]
      %v221 = vld [vmem:[%s189 + $0x70] sm:$0xff]
      %v222 = vld [vmem:[%s189 + $0x78] sm:$0xff]
      %v223 = vld [vmem:[%s189 + $0x80] sm:$0xff]
      %v224 = vld [vmem:[%s189 + $0x88] sm:$0xff]
      %v225 = vld [vmem:[%s189 + $0x90] sm:$0xff]
      %v226 = vld [vmem:[%s189 + $0x98] sm:$0xff]
      %v227 = vld [vmem:[%s189 + $0xa0] sm:$0xff]
      %v228 = vld [vmem:[%s189 + $0xa8] sm:$0xff]
      %v229 = vld [vmem:[%s189 + $0xb0] sm:$0xff]
      %v230 = vld [vmem:[%s189 + $0xb8] sm:$0xff]
      %v231 = vld [vmem:[%s189 + $0xc0] sm:$0xff]
      %v232 = vld [vmem:[%s189 + $0xc8] sm:$0xff]
      %v233 = vld [vmem:[%s189 + $0xd0] sm:$0xff]
      %v234 = vld [vmem:[%s189 + $0xd8] sm:$0xff]
      %v235 = vld [vmem:[%s189 + $0xe0] sm:$0xff]
      %v236 = vld [vmem:[%s189 + $0xe8] sm:$0xff]
      %v237 = vld [vmem:[%s189 + $0xf0] sm:$0xff]
      %v238 = vld [vmem:[%s189 + $0xf8] sm:$0xff]
      %v239 = vld [vmem:[%s189 + $0x100] sm:$0xff]
      %v240 = vld [vmem:[%s189 + $0x108] sm:$0xff]
      %v241 = vld [vmem:[%s189 + $0x110] sm:$0xff]
      %v242 = vld [vmem:[%s189 + $0x118] sm:$0xff]
      %v243 = vld [vmem:[%s189 + $0x120] sm:$0xff]
      %v244 = vld [vmem:[%s189 + $0x128] sm:$0xff]
      %v245 = vld [vmem:[%s189 + $0x130] sm:$0xff]
      %v246 = vld [vmem:[%s189 + $0x138] sm:$0xff]
      %v247 = vld [vmem:[%s189 + $0x140] sm:$0xff]
      %v248 = vld [vmem:[%s189 + $0x148] sm:$0xff]
      %v249 = vld [vmem:[%s189 + $0x150] sm:$0xff]
      %v250 = vld [vmem:[%s189 + $0x158] sm:$0xff]
      %v251 = vld [vmem:[%s189 + $0x160] sm:$0xff]
      %v252 = vld [vmem:[%s189 + $0x168] sm:$0xff]
      %v253 = vld [vmem:[%s189 + $0x170] sm:$0xff]
      %v254 = vld [vmem:[%s189 + $0x178] sm:$0xff]
      %v255 = vld [vmem:[%s189 + $0x180] sm:$0xff]
      %v256 = vld [vmem:[%s189 + $0x188] sm:$0xff]
      %v257 = vld [vmem:[%s189 + $0x190] sm:$0xff]
      %v258 = vld [vmem:[%s189 + $0x198] sm:$0xff]
      %v259 = vld [vmem:[%s189 + $0x1a0] sm:$0xff]
      %v260 = vld [vmem:[%s189 + $0x1a8] sm:$0xff]
      %v261 = vld [vmem:[%s189 + $0x1b0] sm:$0xff]
      %v262 = vld [vmem:[%s189 + $0x1b8] sm:$0xff]
      %v263 = vld [vmem:[%s189 + $0x1c0] sm:$0xff]
      %v264 = vld [vmem:[%s189 + $0x1c8] sm:$0xff]
      %v265 = vld [vmem:[%s189 + $0x1d0] sm:$0xff]
      %v266 = vld [vmem:[%s189 + $0x1d8] sm:$0xff]
      %v267 = vld [vmem:[%s189 + $0x1e0] sm:$0xff]
      %v268 = vld [vmem:[%s189 + $0x1e8] sm:$0xff]
      %v269 = vld [vmem:[%s189 + $0x1f0] sm:$0xff]
      %v270 = vld [vmem:[%s189 + $0x1f8] sm:$0xff]
      %v271 = vunpack.c.l.bf16 %v207
      %v272 = vunpack.c.h.bf16 %v207
      %v273 = vunpack.c.l.bf16 %v208
      %v274 = vunpack.c.h.bf16 %v208
      %v275 = vunpack.c.l.bf16 %v209
      %v276 = vunpack.c.h.bf16 %v209
      %v277 = vunpack.c.l.bf16 %v210
      %v278 = vunpack.c.h.bf16 %v210
      %v279 = vunpack.c.l.bf16 %v211
      %v280 = vunpack.c.h.bf16 %v211
      %v281 = vunpack.c.l.bf16 %v212
      %v282 = vunpack.c.h.bf16 %v212
      %v283 = vunpack.c.l.bf16 %v213
      %v284 = vunpack.c.h.bf16 %v213
      %v285 = vunpack.c.l.bf16 %v214
      %v286 = vunpack.c.h.bf16 %v214
      %v287 = vunpack.c.l.bf16 %v215
      %v288 = vunpack.c.h.bf16 %v215
      %v289 = vunpack.c.l.bf16 %v216
      %v290 = vunpack.c.h.bf16 %v216
      %v291 = vunpack.c.l.bf16 %v217
      %v292 = vunpack.c.h.bf16 %v217
      %v293 = vunpack.c.l.bf16 %v218
      %v294 = vunpack.c.h.bf16 %v218
      %v295 = vunpack.c.l.bf16 %v219
      %v296 = vunpack.c.h.bf16 %v219
      %v297 = vunpack.c.l.bf16 %v220
      %v298 = vunpack.c.h.bf16 %v220
      %v299 = vunpack.c.l.bf16 %v221
      %v300 = vunpack.c.h.bf16 %v221
      %v301 = vunpack.c.l.bf16 %v222
      %v302 = vunpack.c.h.bf16 %v222
      %v303 = vunpack.c.l.bf16 %v223
      %v304 = vunpack.c.h.bf16 %v223
      %v305 = vunpack.c.l.bf16 %v224
      %v306 = vunpack.c.h.bf16 %v224
      %v307 = vunpack.c.l.bf16 %v225
      %v308 = vunpack.c.h.bf16 %v225
      %v309 = vunpack.c.l.bf16 %v226
      %v310 = vunpack.c.h.bf16 %v226
      %v311 = vunpack.c.l.bf16 %v227
      %v312 = vunpack.c.h.bf16 %v227
      %v313 = vunpack.c.l.bf16 %v228
      %v314 = vunpack.c.h.bf16 %v228
      %v315 = vunpack.c.l.bf16 %v229
      %v316 = vunpack.c.h.bf16 %v229
      %v317 = vunpack.c.l.bf16 %v230
      %v318 = vunpack.c.h.bf16 %v230
      %v319 = vunpack.c.l.bf16 %v231
      %v320 = vunpack.c.h.bf16 %v231
      %v321 = vunpack.c.l.bf16 %v232
      %v322 = vunpack.c.h.bf16 %v232
      %v323 = vunpack.c.l.bf16 %v233
      %v324 = vunpack.c.h.bf16 %v233
      %v325 = vunpack.c.l.bf16 %v234
      %v326 = vunpack.c.h.bf16 %v234
      %v327 = vunpack.c.l.bf16 %v235
      %v328 = vunpack.c.h.bf16 %v235
      %v329 = vunpack.c.l.bf16 %v236
      %v330 = vunpack.c.h.bf16 %v236
      %v331 = vunpack.c.l.bf16 %v237
      %v332 = vunpack.c.h.bf16 %v237
      %v333 = vunpack.c.l.bf16 %v238
      %v334 = vunpack.c.h.bf16 %v238
      %v335 = vunpack.c.l.bf16 %v239
      %v336 = vunpack.c.h.bf16 %v239
      %v337 = vunpack.c.l.bf16 %v240
      %v338 = vunpack.c.h.bf16 %v240
      %v339 = vunpack.c.l.bf16 %v241
      %v340 = vunpack.c.h.bf16 %v241
      %v341 = vunpack.c.l.bf16 %v242
      %v342 = vunpack.c.h.bf16 %v242
      %v343 = vunpack.c.l.bf16 %v243
      %v344 = vunpack.c.h.bf16 %v243
      %v345 = vunpack.c.l.bf16 %v244
      %v346 = vunpack.c.h.bf16 %v244
      %v347 = vunpack.c.l.bf16 %v245
      %v348 = vunpack.c.h.bf16 %v245
      %v349 = vunpack.c.l.bf16 %v246
      %v350 = vunpack.c.h.bf16 %v246
      %v351 = vunpack.c.l.bf16 %v247
      %v352 = vunpack.c.h.bf16 %v247
      %v353 = vunpack.c.l.bf16 %v248
      %v354 = vunpack.c.h.bf16 %v248
      %v355 = vunpack.c.l.bf16 %v249
      %v356 = vunpack.c.h.bf16 %v249
      %v357 = vunpack.c.l.bf16 %v250
      %v358 = vunpack.c.h.bf16 %v250
      %v359 = vunpack.c.l.bf16 %v251
      %v360 = vunpack.c.h.bf16 %v251
      %v361 = vunpack.c.l.bf16 %v252
      %v362 = vunpack.c.h.bf16 %v252
      %v363 = vunpack.c.l.bf16 %v253
      %v364 = vunpack.c.h.bf16 %v253
      %v365 = vunpack.c.l.bf16 %v254
      %v366 = vunpack.c.h.bf16 %v254
      %v367 = vunpack.c.l.bf16 %v255
      %v368 = vunpack.c.h.bf16 %v255
      %v369 = vunpack.c.l.bf16 %v256
      %v370 = vunpack.c.h.bf16 %v256
      %v371 = vunpack.c.l.bf16 %v257
      %v372 = vunpack.c.h.bf16 %v257
      %v373 = vunpack.c.l.bf16 %v258
      %v374 = vunpack.c.h.bf16 %v258
      %v375 = vunpack.c.l.bf16 %v259
      %v376 = vunpack.c.h.bf16 %v259
      %v377 = vunpack.c.l.bf16 %v260
      %v378 = vunpack.c.h.bf16 %v260
      %v379 = vunpack.c.l.bf16 %v261
      %v380 = vunpack.c.h.bf16 %v261
      %v381 = vunpack.c.l.bf16 %v262
      %v382 = vunpack.c.h.bf16 %v262
      %v383 = vunpack.c.l.bf16 %v263
      %v384 = vunpack.c.h.bf16 %v263
      %v385 = vunpack.c.l.bf16 %v264
      %v386 = vunpack.c.h.bf16 %v264
      %v387 = vunpack.c.l.bf16 %v265
      %v388 = vunpack.c.h.bf16 %v265
      %v389 = vunpack.c.l.bf16 %v266
      %v390 = vunpack.c.h.bf16 %v266
      %v391 = vunpack.c.l.bf16 %v267
      %v392 = vunpack.c.h.bf16 %v267
      %v393 = vunpack.c.l.bf16 %v268
      %v394 = vunpack.c.h.bf16 %v268
      %v395 = vunpack.c.l.bf16 %v269
      %v396 = vunpack.c.h.bf16 %v269
      %v397 = vunpack.c.l.bf16 %v270
      %v398 = vunpack.c.h.bf16 %v270
      %v399 = vperm.slane %v205, 0
      %v400 = vperm.slane %v206, 0
      %v401 = vsub.f32 %v271, %v399
      %v402 = vsub.f32 %v272, %v400
      %v403 = vsub.f32 %v273, %v399
      %v404 = vsub.f32 %v274, %v400
      %v405 = vsub.f32 %v275, %v399
      %v406 = vsub.f32 %v276, %v400
      %v407 = vsub.f32 %v277, %v399
      %v408 = vsub.f32 %v278, %v400
      %v409 = vsub.f32 %v279, %v399
      %v410 = vsub.f32 %v280, %v400
      %v411 = vsub.f32 %v281, %v399
      %v412 = vsub.f32 %v282, %v400
      %v413 = vsub.f32 %v283, %v399
      %v414 = vsub.f32 %v284, %v400
      %v415 = vsub.f32 %v285, %v399
      %v416 = vsub.f32 %v286, %v400
      %v417 = vsub.f32 %v287, %v399
      %v418 = vsub.f32 %v288, %v400
      %v419 = vsub.f32 %v289, %v399
      %v420 = vsub.f32 %v290, %v400
      %v421 = vsub.f32 %v291, %v399
      %v422 = vsub.f32 %v292, %v400
      %v423 = vsub.f32 %v293, %v399
      %v424 = vsub.f32 %v294, %v400
      %v425 = vsub.f32 %v295, %v399
      %v426 = vsub.f32 %v296, %v400
      %v427 = vsub.f32 %v297, %v399
      %v428 = vsub.f32 %v298, %v400
      %v429 = vsub.f32 %v299, %v399
      %v430 = vsub.f32 %v300, %v400
      %v431 = vsub.f32 %v301, %v399
      %v432 = vsub.f32 %v302, %v400
      %v433 = vsub.f32 %v303, %v399
      %v434 = vsub.f32 %v304, %v400
      %v435 = vsub.f32 %v305, %v399
      %v436 = vsub.f32 %v306, %v400
      %v437 = vsub.f32 %v307, %v399
      %v438 = vsub.f32 %v308, %v400
      %v439 = vsub.f32 %v309, %v399
      %v440 = vsub.f32 %v310, %v400
      %v441 = vsub.f32 %v311, %v399
      %v442 = vsub.f32 %v312, %v400
      %v443 = vsub.f32 %v313, %v399
      %v444 = vsub.f32 %v314, %v400
      %v445 = vsub.f32 %v315, %v399
      %v446 = vsub.f32 %v316, %v400
      %v447 = vsub.f32 %v317, %v399
      %v448 = vsub.f32 %v318, %v400
      %v449 = vsub.f32 %v319, %v399
      %v450 = vsub.f32 %v320, %v400
      %v451 = vsub.f32 %v321, %v399
      %v452 = vsub.f32 %v322, %v400
      %v453 = vsub.f32 %v323, %v399
      %v454 = vsub.f32 %v324, %v400
      %v455 = vsub.f32 %v325, %v399
      %v456 = vsub.f32 %v326, %v400
      %v457 = vsub.f32 %v327, %v399
      %v458 = vsub.f32 %v328, %v400
      %v459 = vsub.f32 %v329, %v399
      %v460 = vsub.f32 %v330, %v400
      %v461 = vsub.f32 %v331, %v399
      %v462 = vsub.f32 %v332, %v400
      %v463 = vsub.f32 %v333, %v399
      %v464 = vsub.f32 %v334, %v400
      %v465 = vsub.f32 %v335, %v399
      %v466 = vsub.f32 %v336, %v400
      %v467 = vsub.f32 %v337, %v399
      %v468 = vsub.f32 %v338, %v400
      %v469 = vsub.f32 %v339, %v399
      %v470 = vsub.f32 %v340, %v400
      %v471 = vsub.f32 %v341, %v399
      %v472 = vsub.f32 %v342, %v400
      %v473 = vsub.f32 %v343, %v399
      %v474 = vsub.f32 %v344, %v400
      %v475 = vsub.f32 %v345, %v399
      %v476 = vsub.f32 %v346, %v400
      %v477 = vsub.f32 %v347, %v399
      %v478 = vsub.f32 %v348, %v400
      %v479 = vsub.f32 %v349, %v399
      %v480 = vsub.f32 %v350, %v400
      %v481 = vsub.f32 %v351, %v399
      %v482 = vsub.f32 %v352, %v400
      %v483 = vsub.f32 %v353, %v399
      %v484 = vsub.f32 %v354, %v400
      %v485 = vsub.f32 %v355, %v399
      %v486 = vsub.f32 %v356, %v400
      %v487 = vsub.f32 %v357, %v399
      %v488 = vsub.f32 %v358, %v400
      %v489 = vsub.f32 %v359, %v399
      %v490 = vsub.f32 %v360, %v400
      %v491 = vsub.f32 %v361, %v399
      %v492 = vsub.f32 %v362, %v400
      %v493 = vsub.f32 %v363, %v399
      %v494 = vsub.f32 %v364, %v400
      %v495 = vsub.f32 %v365, %v399
      %v496 = vsub.f32 %v366, %v400
      %v497 = vsub.f32 %v367, %v399
      %v498 = vsub.f32 %v368, %v400
      %v499 = vsub.f32 %v369, %v399
      %v500 = vsub.f32 %v370, %v400
      %v501 = vsub.f32 %v371, %v399
      %v502 = vsub.f32 %v372, %v400
      %v503 = vsub.f32 %v373, %v399
      %v504 = vsub.f32 %v374, %v400
      %v505 = vsub.f32 %v375, %v399
      %v506 = vsub.f32 %v376, %v400
      %v507 = vsub.f32 %v377, %v399
      %v508 = vsub.f32 %v378, %v400
      %v509 = vsub.f32 %v379, %v399
      %v510 = vsub.f32 %v380, %v400
      %v511 = vsub.f32 %v381, %v399
      %v512 = vsub.f32 %v382, %v400
      %v513 = vsub.f32 %v383, %v399
      %v514 = vsub.f32 %v384, %v400
      %v515 = vsub.f32 %v385, %v399
      %v516 = vsub.f32 %v386, %v400
      %v517 = vsub.f32 %v387, %v399
      %v518 = vsub.f32 %v388, %v400
      %v519 = vsub.f32 %v389, %v399
      %v520 = vsub.f32 %v390, %v400
      %v521 = vsub.f32 %v391, %v399
      %v522 = vsub.f32 %v392, %v400
      %v523 = vsub.f32 %v393, %v399
      %v524 = vsub.f32 %v394, %v400
      %v525 = vsub.f32 %v395, %v399
      %v526 = vsub.f32 %v396, %v400
      %v527 = vsub.f32 %v397, %v399
      %v528 = vsub.f32 %v398, %v400
      %v529 = vperm.slane %v205, 1
      %v530 = vperm.slane %v206, 1
      %v531 = vmul.f32 %v401, %v529
      %v532 = vmul.f32 %v402, %v530
      %v533 = vmul.f32 %v403, %v529
      %v534 = vmul.f32 %v404, %v530
      %v535 = vmul.f32 %v405, %v529
      %v536 = vmul.f32 %v406, %v530
      %v537 = vmul.f32 %v407, %v529
      %v538 = vmul.f32 %v408, %v530
      %v539 = vmul.f32 %v409, %v529
      %v540 = vmul.f32 %v410, %v530
      %v541 = vmul.f32 %v411, %v529
      %v542 = vmul.f32 %v412, %v530
      %v543 = vmul.f32 %v413, %v529
      %v544 = vmul.f32 %v414, %v530
      %v545 = vmul.f32 %v415, %v529
      %v546 = vmul.f32 %v416, %v530
      %v547 = vmul.f32 %v417, %v529
      %v548 = vmul.f32 %v418, %v530
      %v549 = vmul.f32 %v419, %v529
      %v550 = vmul.f32 %v420, %v530
      %v551 = vmul.f32 %v421, %v529
      %v552 = vmul.f32 %v422, %v530
      %v553 = vmul.f32 %v423, %v529
      %v554 = vmul.f32 %v424, %v530
      %v555 = vmul.f32 %v425, %v529
      %v556 = vmul.f32 %v426, %v530
      %v557 = vmul.f32 %v427, %v529
      %v558 = vmul.f32 %v428, %v530
      %v559 = vmul.f32 %v429, %v529
      %v560 = vmul.f32 %v430, %v530
      %v561 = vmul.f32 %v431, %v529
      %v562 = vmul.f32 %v432, %v530
      %v563 = vmul.f32 %v433, %v529
      %v564 = vmul.f32 %v434, %v530
      %v565 = vmul.f32 %v435, %v529
      %v566 = vmul.f32 %v436, %v530
      %v567 = vmul.f32 %v437, %v529
      %v568 = vmul.f32 %v438, %v530
      %v569 = vmul.f32 %v439, %v529
      %v570 = vmul.f32 %v440, %v530
      %v571 = vmul.f32 %v441, %v529
      %v572 = vmul.f32 %v442, %v530
      %v573 = vmul.f32 %v443, %v529
      %v574 = vmul.f32 %v444, %v530
      %v575 = vmul.f32 %v445, %v529
      %v576 = vmul.f32 %v446, %v530
      %v577 = vmul.f32 %v447, %v529
      %v578 = vmul.f32 %v448, %v530
      %v579 = vmul.f32 %v449, %v529
      %v580 = vmul.f32 %v450, %v530
      %v581 = vmul.f32 %v451, %v529
      %v582 = vmul.f32 %v452, %v530
      %v583 = vmul.f32 %v453, %v529
      %v584 = vmul.f32 %v454, %v530
      %v585 = vmul.f32 %v455, %v529
      %v586 = vmul.f32 %v456, %v530
      %v587 = vmul.f32 %v457, %v529
      %v588 = vmul.f32 %v458, %v530
      %v589 = vmul.f32 %v459, %v529
      %v590 = vmul.f32 %v460, %v530
      %v591 = vmul.f32 %v461, %v529
      %v592 = vmul.f32 %v462, %v530
      %v593 = vmul.f32 %v463, %v529
      %v594 = vmul.f32 %v464, %v530
      %v595 = vmul.f32 %v465, %v529
      %v596 = vmul.f32 %v466, %v530
      %v597 = vmul.f32 %v467, %v529
      %v598 = vmul.f32 %v468, %v530
      %v599 = vmul.f32 %v469, %v529
      %v600 = vmul.f32 %v470, %v530
      %v601 = vmul.f32 %v471, %v529
      %v602 = vmul.f32 %v472, %v530
      %v603 = vmul.f32 %v473, %v529
      %v604 = vmul.f32 %v474, %v530
      %v605 = vmul.f32 %v475, %v529
      %v606 = vmul.f32 %v476, %v530
      %v607 = vmul.f32 %v477, %v529
      %v608 = vmul.f32 %v478, %v530
      %v609 = vmul.f32 %v479, %v529
      %v610 = vmul.f32 %v480, %v530
      %v611 = vmul.f32 %v481, %v529
      %v612 = vmul.f32 %v482, %v530
      %v613 = vmul.f32 %v483, %v529
      %v614 = vmul.f32 %v484, %v530
      %v615 = vmul.f32 %v485, %v529
      %v616 = vmul.f32 %v486, %v530
      %v617 = vmul.f32 %v487, %v529
      %v618 = vmul.f32 %v488, %v530
      %v619 = vmul.f32 %v489, %v529
      %v620 = vmul.f32 %v490, %v530
      %v621 = vmul.f32 %v491, %v529
      %v622 = vmul.f32 %v492, %v530
      %v623 = vmul.f32 %v493, %v529
      %v624 = vmul.f32 %v494, %v530
      %v625 = vmul.f32 %v495, %v529
      %v626 = vmul.f32 %v496, %v530
      %v627 = vmul.f32 %v497, %v529
      %v628 = vmul.f32 %v498, %v530
      %v629 = vmul.f32 %v499, %v529
      %v630 = vmul.f32 %v500, %v530
      %v631 = vmul.f32 %v501, %v529
      %v632 = vmul.f32 %v502, %v530
      %v633 = vmul.f32 %v503, %v529
      %v634 = vmul.f32 %v504, %v530
      %v635 = vmul.f32 %v505, %v529
      %v636 = vmul.f32 %v506, %v530
      %v637 = vmul.f32 %v507, %v529
      %v638 = vmul.f32 %v508, %v530
      %v639 = vmul.f32 %v509, %v529
      %v640 = vmul.f32 %v510, %v530
      %v641 = vmul.f32 %v511, %v529
      %v642 = vmul.f32 %v512, %v530
      %v643 = vmul.f32 %v513, %v529
      %v644 = vmul.f32 %v514, %v530
      %v645 = vmul.f32 %v515, %v529
      %v646 = vmul.f32 %v516, %v530
      %v647 = vmul.f32 %v517, %v529
      %v648 = vmul.f32 %v518, %v530
      %v649 = vmul.f32 %v519, %v529
      %v650 = vmul.f32 %v520, %v530
      %v651 = vmul.f32 %v521, %v529
      %v652 = vmul.f32 %v522, %v530
      %v653 = vmul.f32 %v523, %v529
      %v654 = vmul.f32 %v524, %v530
      %v655 = vmul.f32 %v525, %v529
      %v656 = vmul.f32 %v526, %v530
      %v657 = vmul.f32 %v527, %v529
      %v658 = vmul.f32 %v528, %v530
      %v659 = vperm.slane %v205, 2
      %v660 = vperm.slane %v206, 2
      %v661 = vmul.f32 %v531, %v659
      %v662 = vmul.f32 %v532, %v660
      %v663 = vmul.f32 %v533, %v659
      %v664 = vmul.f32 %v534, %v660
      %v665 = vmul.f32 %v535, %v659
      %v666 = vmul.f32 %v536, %v660
      %v667 = vmul.f32 %v537, %v659
      %v668 = vmul.f32 %v538, %v660
      %v669 = vmul.f32 %v539, %v659
      %v670 = vmul.f32 %v540, %v660
      %v671 = vmul.f32 %v541, %v659
      %v672 = vmul.f32 %v542, %v660
      %v673 = vmul.f32 %v543, %v659
      %v674 = vmul.f32 %v544, %v660
      %v675 = vmul.f32 %v545, %v659
      %v676 = vmul.f32 %v546, %v660
      %v677 = vmul.f32 %v547, %v659
      %v678 = vmul.f32 %v548, %v660
      %v679 = vmul.f32 %v549, %v659
      %v680 = vmul.f32 %v550, %v660
      %v681 = vmul.f32 %v551, %v659
      %v682 = vmul.f32 %v552, %v660
      %v683 = vmul.f32 %v553, %v659
      %v684 = vmul.f32 %v554, %v660
      %v685 = vmul.f32 %v555, %v659
      %v686 = vmul.f32 %v556, %v660
      %v687 = vmul.f32 %v557, %v659
      %v688 = vmul.f32 %v558, %v660
      %v689 = vmul.f32 %v559, %v659
      %v690 = vmul.f32 %v560, %v660
      %v691 = vmul.f32 %v561, %v659
      %v692 = vmul.f32 %v562, %v660
      %v693 = vmul.f32 %v563, %v659
      %v694 = vmul.f32 %v564, %v660
      %v695 = vmul.f32 %v565, %v659
      %v696 = vmul.f32 %v566, %v660
      %v697 = vmul.f32 %v567, %v659
      %v698 = vmul.f32 %v568, %v660
      %v699 = vmul.f32 %v569, %v659
      %v700 = vmul.f32 %v570, %v660
      %v701 = vmul.f32 %v571, %v659
      %v702 = vmul.f32 %v572, %v660
      %v703 = vmul.f32 %v573, %v659
      %v704 = vmul.f32 %v574, %v660
      %v705 = vmul.f32 %v575, %v659
      %v706 = vmul.f32 %v576, %v660
      %v707 = vmul.f32 %v577, %v659
      %v708 = vmul.f32 %v578, %v660
      %v709 = vmul.f32 %v579, %v659
      %v710 = vmul.f32 %v580, %v660
      %v711 = vmul.f32 %v581, %v659
      %v712 = vmul.f32 %v582, %v660
      %v713 = vmul.f32 %v583, %v659
      %v714 = vmul.f32 %v584, %v660
      %v715 = vmul.f32 %v585, %v659
      %v716 = vmul.f32 %v586, %v660
      %v717 = vmul.f32 %v587, %v659
      %v718 = vmul.f32 %v588, %v660
      %v719 = vmul.f32 %v589, %v659
      %v720 = vmul.f32 %v590, %v660
      %v721 = vmul.f32 %v591, %v659
      %v722 = vmul.f32 %v592, %v660
      %v723 = vmul.f32 %v593, %v659
      %v724 = vmul.f32 %v594, %v660
      %v725 = vmul.f32 %v595, %v659
      %v726 = vmul.f32 %v596, %v660
      %v727 = vmul.f32 %v597, %v659
      %v728 = vmul.f32 %v598, %v660
      %v729 = vmul.f32 %v599, %v659
      %v730 = vmul.f32 %v600, %v660
      %v731 = vmul.f32 %v601, %v659
      %v732 = vmul.f32 %v602, %v660
      %v733 = vmul.f32 %v603, %v659
      %v734 = vmul.f32 %v604, %v660
      %v735 = vmul.f32 %v605, %v659
      %v736 = vmul.f32 %v606, %v660
      %v737 = vmul.f32 %v607, %v659
      %v738 = vmul.f32 %v608, %v660
      %v739 = vmul.f32 %v609, %v659
      %v740 = vmul.f32 %v610, %v660
      %v741 = vmul.f32 %v611, %v659
      %v742 = vmul.f32 %v612, %v660
      %v743 = vmul.f32 %v613, %v659
      %v744 = vmul.f32 %v614, %v660
      %v745 = vmul.f32 %v615, %v659
      %v746 = vmul.f32 %v616, %v660
      %v747 = vmul.f32 %v617, %v659
      %v748 = vmul.f32 %v618, %v660
      %v749 = vmul.f32 %v619, %v659
      %v750 = vmul.f32 %v620, %v660
      %v751 = vmul.f32 %v621, %v659
      %v752 = vmul.f32 %v622, %v660
      %v753 = vmul.f32 %v623, %v659
      %v754 = vmul.f32 %v624, %v660
      %v755 = vmul.f32 %v625, %v659
      %v756 = vmul.f32 %v626, %v660
      %v757 = vmul.f32 %v627, %v659
      %v758 = vmul.f32 %v628, %v660
      %v759 = vmul.f32 %v629, %v659
      %v760 = vmul.f32 %v630, %v660
      %v761 = vmul.f32 %v631, %v659
      %v762 = vmul.f32 %v632, %v660
      %v763 = vmul.f32 %v633, %v659
      %v764 = vmul.f32 %v634, %v660
      %v765 = vmul.f32 %v635, %v659
      %v766 = vmul.f32 %v636, %v660
      %v767 = vmul.f32 %v637, %v659
      %v768 = vmul.f32 %v638, %v660
      %v769 = vmul.f32 %v639, %v659
      %v770 = vmul.f32 %v640, %v660
      %v771 = vmul.f32 %v641, %v659
      %v772 = vmul.f32 %v642, %v660
      %v773 = vmul.f32 %v643, %v659
      %v774 = vmul.f32 %v644, %v660
      %v775 = vmul.f32 %v645, %v659
      %v776 = vmul.f32 %v646, %v660
      %v777 = vmul.f32 %v647, %v659
      %v778 = vmul.f32 %v648, %v660
      %v779 = vmul.f32 %v649, %v659
      %v780 = vmul.f32 %v650, %v660
      %v781 = vmul.f32 %v651, %v659
      %v782 = vmul.f32 %v652, %v660
      %v783 = vmul.f32 %v653, %v659
      %v784 = vmul.f32 %v654, %v660
      %v785 = vmul.f32 %v655, %v659
      %v786 = vmul.f32 %v656, %v660
      %v787 = vmul.f32 %v657, %v659
      %v788 = vmul.f32 %v658, %v660
      %v789 = vperm.slane %v205, 3
      %v790 = vperm.slane %v206, 3
      %v791 = vadd.f32 %v661, %v789
      %v792 = vadd.f32 %v662, %v790
      %v793 = vadd.f32 %v663, %v789
      %v794 = vadd.f32 %v664, %v790
      %v795 = vadd.f32 %v665, %v789
      %v796 = vadd.f32 %v666, %v790
      %v797 = vadd.f32 %v667, %v789
      %v798 = vadd.f32 %v668, %v790
      %v799 = vadd.f32 %v669, %v789
      %v800 = vadd.f32 %v670, %v790
      %v801 = vadd.f32 %v671, %v789
      %v802 = vadd.f32 %v672, %v790
      %v803 = vadd.f32 %v673, %v789
      %v804 = vadd.f32 %v674, %v790
      %v805 = vadd.f32 %v675, %v789
      %v806 = vadd.f32 %v676, %v790
      %v807 = vadd.f32 %v677, %v789
      %v808 = vadd.f32 %v678, %v790
      %v809 = vadd.f32 %v679, %v789
      %v810 = vadd.f32 %v680, %v790
      %v811 = vadd.f32 %v681, %v789
      %v812 = vadd.f32 %v682, %v790
      %v813 = vadd.f32 %v683, %v789
      %v814 = vadd.f32 %v684, %v790
      %v815 = vadd.f32 %v685, %v789
      %v816 = vadd.f32 %v686, %v790
      %v817 = vadd.f32 %v687, %v789
      %v818 = vadd.f32 %v688, %v790
      %v819 = vadd.f32 %v689, %v789
      %v820 = vadd.f32 %v690, %v790
      %v821 = vadd.f32 %v691, %v789
      %v822 = vadd.f32 %v692, %v790
      %v823 = vadd.f32 %v693, %v789
      %v824 = vadd.f32 %v694, %v790
      %v825 = vadd.f32 %v695, %v789
      %v826 = vadd.f32 %v696, %v790
      %v827 = vadd.f32 %v697, %v789
      %v828 = vadd.f32 %v698, %v790
      %v829 = vadd.f32 %v699, %v789
      %v830 = vadd.f32 %v700, %v790
      %v831 = vadd.f32 %v701, %v789
      %v832 = vadd.f32 %v702, %v790
      %v833 = vadd.f32 %v703, %v789
      %v834 = vadd.f32 %v704, %v790
      %v835 = vadd.f32 %v705, %v789
      %v836 = vadd.f32 %v706, %v790
      %v837 = vadd.f32 %v707, %v789
      %v838 = vadd.f32 %v708, %v790
      %v839 = vadd.f32 %v709, %v789
      %v840 = vadd.f32 %v710, %v790
      %v841 = vadd.f32 %v711, %v789
      %v842 = vadd.f32 %v712, %v790
      %v843 = vadd.f32 %v713, %v789
      %v844 = vadd.f32 %v714, %v790
      %v845 = vadd.f32 %v715, %v789
      %v846 = vadd.f32 %v716, %v790
      %v847 = vadd.f32 %v717, %v789
      %v848 = vadd.f32 %v718, %v790
      %v849 = vadd.f32 %v719, %v789
      %v850 = vadd.f32 %v720, %v790
      %v851 = vadd.f32 %v721, %v789
      %v852 = vadd.f32 %v722, %v790
      %v853 = vadd.f32 %v723, %v789
      %v854 = vadd.f32 %v724, %v790
      %v855 = vadd.f32 %v725, %v789
      %v856 = vadd.f32 %v726, %v790
      %v857 = vadd.f32 %v727, %v789
      %v858 = vadd.f32 %v728, %v790
      %v859 = vadd.f32 %v729, %v789
      %v860 = vadd.f32 %v730, %v790
      %v861 = vadd.f32 %v731, %v789
      %v862 = vadd.f32 %v732, %v790
      %v863 = vadd.f32 %v733, %v789
      %v864 = vadd.f32 %v734, %v790
      %v865 = vadd.f32 %v735, %v789
      %v866 = vadd.f32 %v736, %v790
      %v867 = vadd.f32 %v737, %v789
      %v868 = vadd.f32 %v738, %v790
      %v869 = vadd.f32 %v739, %v789
      %v870 = vadd.f32 %v740, %v790
      %v871 = vadd.f32 %v741, %v789
      %v872 = vadd.f32 %v742, %v790
      %v873 = vadd.f32 %v743, %v789
      %v874 = vadd.f32 %v744, %v790
      %v875 = vadd.f32 %v745, %v789
      %v876 = vadd.f32 %v746, %v790
      %v877 = vadd.f32 %v747, %v789
      %v878 = vadd.f32 %v748, %v790
      %v879 = vadd.f32 %v749, %v789
      %v880 = vadd.f32 %v750, %v790
      %v881 = vadd.f32 %v751, %v789
      %v882 = vadd.f32 %v752, %v790
      %v883 = vadd.f32 %v753, %v789
      %v884 = vadd.f32 %v754, %v790
      %v885 = vadd.f32 %v755, %v789
      %v886 = vadd.f32 %v756, %v790
      %v887 = vadd.f32 %v757, %v789
      %v888 = vadd.f32 %v758, %v790
      %v889 = vadd.f32 %v759, %v789
      %v890 = vadd.f32 %v760, %v790
      %v891 = vadd.f32 %v761, %v789
      %v892 = vadd.f32 %v762, %v790
      %v893 = vadd.f32 %v763, %v789
      %v894 = vadd.f32 %v764, %v790
      %v895 = vadd.f32 %v765, %v789
      %v896 = vadd.f32 %v766, %v790
      %v897 = vadd.f32 %v767, %v789
      %v898 = vadd.f32 %v768, %v790
      %v899 = vadd.f32 %v769, %v789
      %v900 = vadd.f32 %v770, %v790
      %v901 = vadd.f32 %v771, %v789
      %v902 = vadd.f32 %v772, %v790
      %v903 = vadd.f32 %v773, %v789
      %v904 = vadd.f32 %v774, %v790
      %v905 = vadd.f32 %v775, %v789
      %v906 = vadd.f32 %v776, %v790
      %v907 = vadd.f32 %v777, %v789
      %v908 = vadd.f32 %v778, %v790
      %v909 = vadd.f32 %v779, %v789
      %v910 = vadd.f32 %v780, %v790
      %v911 = vadd.f32 %v781, %v789
      %v912 = vadd.f32 %v782, %v790
      %v913 = vadd.f32 %v783, %v789
      %v914 = vadd.f32 %v784, %v790
      %v915 = vadd.f32 %v785, %v789
      %v916 = vadd.f32 %v786, %v790
      %v917 = vadd.f32 %v787, %v789
      %v918 = vadd.f32 %v788, %v790
      %v919 = vmax.f32 %v791, 0.0
      %v920 = vmax.f32 %v792, 0.0
      %v921 = vmax.f32 %v793, 0.0
      %v922 = vmax.f32 %v794, 0.0
      %v923 = vmax.f32 %v795, 0.0
      %v924 = vmax.f32 %v796, 0.0
      %v925 = vmax.f32 %v797, 0.0
      %v926 = vmax.f32 %v798, 0.0
      %v927 = vmax.f32 %v799, 0.0
      %v928 = vmax.f32 %v800, 0.0
      %v929 = vmax.f32 %v801, 0.0
      %v930 = vmax.f32 %v802, 0.0
      %v931 = vmax.f32 %v803, 0.0
      %v932 = vmax.f32 %v804, 0.0
      %v933 = vmax.f32 %v805, 0.0
      %v934 = vmax.f32 %v806, 0.0
      %v935 = vmax.f32 %v807, 0.0
      %v936 = vmax.f32 %v808, 0.0
      %v937 = vmax.f32 %v809, 0.0
      %v938 = vmax.f32 %v810, 0.0
      %v939 = vmax.f32 %v811, 0.0
      %v940 = vmax.f32 %v812, 0.0
      %v941 = vmax.f32 %v813, 0.0
      %v942 = vmax.f32 %v814, 0.0
      %v943 = vmax.f32 %v815, 0.0
      %v944 = vmax.f32 %v816, 0.0
      %v945 = vmax.f32 %v817, 0.0
      %v946 = vmax.f32 %v818, 0.0
      %v947 = vmax.f32 %v819, 0.0
      %v948 = vmax.f32 %v820, 0.0
      %v949 = vmax.f32 %v821, 0.0
      %v950 = vmax.f32 %v822, 0.0
      %v951 = vmax.f32 %v823, 0.0
      %v952 = vmax.f32 %v824, 0.0
      %v953 = vmax.f32 %v825, 0.0
      %v954 = vmax.f32 %v826, 0.0
      %v955 = vmax.f32 %v827, 0.0
      %v956 = vmax.f32 %v828, 0.0
      %v957 = vmax.f32 %v829, 0.0
      %v958 = vmax.f32 %v830, 0.0
      %v959 = vmax.f32 %v831, 0.0
      %v960 = vmax.f32 %v832, 0.0
      %v961 = vmax.f32 %v833, 0.0
      %v962 = vmax.f32 %v834, 0.0
      %v963 = vmax.f32 %v835, 0.0
      %v964 = vmax.f32 %v836, 0.0
      %v965 = vmax.f32 %v837, 0.0
      %v966 = vmax.f32 %v838, 0.0
      %v967 = vmax.f32 %v839, 0.0
      %v968 = vmax.f32 %v840, 0.0
      %v969 = vmax.f32 %v841, 0.0
      %v970 = vmax.f32 %v842, 0.0
      %v971 = vmax.f32 %v843, 0.0
      %v972 = vmax.f32 %v844, 0.0
      %v973 = vmax.f32 %v845, 0.0
      %v974 = vmax.f32 %v846, 0.0
      %v975 = vmax.f32 %v847, 0.0
      %v976 = vmax.f32 %v848, 0.0
      %v977 = vmax.f32 %v849, 0.0
      %v978 = vmax.f32 %v850, 0.0
      %v979 = vmax.f32 %v851, 0.0
      %v980 = vmax.f32 %v852, 0.0
      %v981 = vmax.f32 %v853, 0.0
      %v982 = vmax.f32 %v854, 0.0
      %v983 = vmax.f32 %v855, 0.0
      %v984 = vmax.f32 %v856, 0.0
      %v985 = vmax.f32 %v857, 0.0
      %v986 = vmax.f32 %v858, 0.0
      %v987 = vmax.f32 %v859, 0.0
      %v988 = vmax.f32 %v860, 0.0
      %v989 = vmax.f32 %v861, 0.0
      %v990 = vmax.f32 %v862, 0.0
      %v991 = vmax.f32 %v863, 0.0
      %v992 = vmax.f32 %v864, 0.0
      %v993 = vmax.f32 %v865, 0.0
      %v994 = vmax.f32 %v866, 0.0
      %v995 = vmax.f32 %v867, 0.0
      %v996 = vmax.f32 %v868, 0.0
      %v997 = vmax.f32 %v869, 0.0
      %v998 = vmax.f32 %v870, 0.0
      %v999 = vmax.f32 %v871, 0.0
      %v1000 = vmax.f32 %v872, 0.0
      %v1001 = vmax.f32 %v873, 0.0
      %v1002 = vmax.f32 %v874, 0.0
      %v1003 = vmax.f32 %v875, 0.0
      %v1004 = vmax.f32 %v876, 0.0
      %v1005 = vmax.f32 %v877, 0.0
      %v1006 = vmax.f32 %v878, 0.0
      %v1007 = vmax.f32 %v879, 0.0
      %v1008 = vmax.f32 %v880, 0.0
      %v1009 = vmax.f32 %v881, 0.0
      %v1010 = vmax.f32 %v882, 0.0
      %v1011 = vmax.f32 %v883, 0.0
      %v1012 = vmax.f32 %v884, 0.0
      %v1013 = vmax.f32 %v885, 0.0
      %v1014 = vmax.f32 %v886, 0.0
      %v1015 = vmax.f32 %v887, 0.0
      %v1016 = vmax.f32 %v888, 0.0
      %v1017 = vmax.f32 %v889, 0.0
      %v1018 = vmax.f32 %v890, 0.0
      %v1019 = vmax.f32 %v891, 0.0
      %v1020 = vmax.f32 %v892, 0.0
      %v1021 = vmax.f32 %v893, 0.0
      %v1022 = vmax.f32 %v894, 0.0
      %v1023 = vmax.f32 %v895, 0.0
      %v1024 = vmax.f32 %v896, 0.0
      %v1025 = vmax.f32 %v897, 0.0
      %v1026 = vmax.f32 %v898, 0.0
      %v1027 = vmax.f32 %v899, 0.0
      %v1028 = vmax.f32 %v900, 0.0
      %v1029 = vmax.f32 %v901, 0.0
      %v1030 = vmax.f32 %v902, 0.0
      %v1031 = vmax.f32 %v903, 0.0
      %v1032 = vmax.f32 %v904, 0.0
      %v1033 = vmax.f32 %v905, 0.0
      %v1034 = vmax.f32 %v906, 0.0
      %v1035 = vmax.f32 %v907, 0.0
      %v1036 = vmax.f32 %v908, 0.0
      %v1037 = vmax.f32 %v909, 0.0
      %v1038 = vmax.f32 %v910, 0.0
      %v1039 = vmax.f32 %v911, 0.0
      %v1040 = vmax.f32 %v912, 0.0
      %v1041 = vmax.f32 %v913, 0.0
      %v1042 = vmax.f32 %v914, 0.0
      %v1043 = vmax.f32 %v915, 0.0
      %v1044 = vmax.f32 %v916, 0.0
      %v1045 = vmax.f32 %v917, 0.0
      %v1046 = vmax.f32 %v918, 0.0
      %v1047 = vadd.f32 %v919, %v921
      %v1048 = vadd.f32 %v1047, %v923
      %v1049 = vadd.f32 %v1048, %v925
      %v1050 = vadd.f32 %v1049, %v927
      %v1051 = vadd.f32 %v1050, %v929
      %v1052 = vadd.f32 %v1051, %v931
      %v1053 = vadd.f32 %v1052, %v933
      %v1054 = vadd.f32 %v1053, %v935
      %v1055 = vadd.f32 %v1054, %v937
      %v1056 = vadd.f32 %v1055, %v939
      %v1057 = vadd.f32 %v1056, %v941
      %v1058 = vadd.f32 %v1057, %v943
      %v1059 = vadd.f32 %v1058, %v945
      %v1060 = vadd.f32 %v1059, %v947
      %v1061 = vadd.f32 %v1060, %v949
      %v1062 = vadd.f32 %v1061, %v951
      %v1063 = vadd.f32 %v1062, %v953
      %v1064 = vadd.f32 %v1063, %v955
      %v1065 = vadd.f32 %v1064, %v957
      %v1066 = vadd.f32 %v1065, %v959
      %v1067 = vadd.f32 %v1066, %v961
      %v1068 = vadd.f32 %v1067, %v963
      %v1069 = vadd.f32 %v1068, %v965
      %v1070 = vadd.f32 %v1069, %v967
      %v1071 = vadd.f32 %v1070, %v969
      %v1072 = vadd.f32 %v1071, %v971
      %v1073 = vadd.f32 %v1072, %v973
      %v1074 = vadd.f32 %v1073, %v975
      %v1075 = vadd.f32 %v1074, %v977
      %v1076 = vadd.f32 %v1075, %v979
      %v1077 = vadd.f32 %v1076, %v981
      %v1078 = vadd.f32 %v1077, %v983
      %v1079 = vadd.f32 %v1078, %v985
      %v1080 = vadd.f32 %v1079, %v987
      %v1081 = vadd.f32 %v1080, %v989
      %v1082 = vadd.f32 %v1081, %v991
      %v1083 = vadd.f32 %v1082, %v993
      %v1084 = vadd.f32 %v1083, %v995
      %v1085 = vadd.f32 %v1084, %v997
      %v1086 = vadd.f32 %v1085, %v999
      %v1087 = vadd.f32 %v1086, %v1001
      %v1088 = vadd.f32 %v1087, %v1003
      %v1089 = vadd.f32 %v1088, %v1005
      %v1090 = vadd.f32 %v1089, %v1007
      %v1091 = vadd.f32 %v1090, %v1009
      %v1092 = vadd.f32 %v1091, %v1011
      %v1093 = vadd.f32 %v1092, %v1013
      %v1094 = vadd.f32 %v1093, %v1015
      %v1095 = vadd.f32 %v1094, %v1017
      %v1096 = vadd.f32 %v1095, %v1019
      %v1097 = vadd.f32 %v1096, %v1021
      %v1098 = vadd.f32 %v1097, %v1023
      %v1099 = vadd.f32 %v1098, %v1025
      %v1100 = vadd.f32 %v1099, %v1027
      %v1101 = vadd.f32 %v1100, %v1029
      %v1102 = vadd.f32 %v1101, %v1031
      %v1103 = vadd.f32 %v1102, %v1033
      %v1104 = vadd.f32 %v1103, %v1035
      %v1105 = vadd.f32 %v1104, %v1037
      %v1106 = vadd.f32 %v1105, %v1039
      %v1107 = vadd.f32 %v1106, %v1041
      %v1108 = vadd.f32 %v1107, %v1043
      %v1109 = vadd.f32 %v1108, %v1045
      %v1110 = vrot.slane %v1109, 4
      %v1111 = vadd.f32 %v1109, %v1110
      %v1112 = vrot.slane %v1111, 2
      %v1113 = vadd.f32 %v1111, %v1112
      %v1114 = vrot.slane %v1113, 1
      %v1115 = vadd.f32 %v1113, %v1114
      %v1116 = vadd.f32 %v920, %v922
      %v1117 = vadd.f32 %v1116, %v924
      %v1118 = vadd.f32 %v1117, %v926
      %v1119 = vadd.f32 %v1118, %v928
      %v1120 = vadd.f32 %v1119, %v930
      %v1121 = vadd.f32 %v1120, %v932
      %v1122 = vadd.f32 %v1121, %v934
      %v1123 = vadd.f32 %v1122, %v936
      %v1124 = vadd.f32 %v1123, %v938
      %v1125 = vadd.f32 %v1124, %v940
      %v1126 = vadd.f32 %v1125, %v942
      %v1127 = vadd.f32 %v1126, %v944
      %v1128 = vadd.f32 %v1127, %v946
      %v1129 = vadd.f32 %v1128, %v948
      %v1130 = vadd.f32 %v1129, %v950
      %v1131 = vadd.f32 %v1130, %v952
      %v1132 = vadd.f32 %v1131, %v954
      %v1133 = vadd.f32 %v1132, %v956
      %v1134 = vadd.f32 %v1133, %v958
      %v1135 = vadd.f32 %v1134, %v960
      %v1136 = vadd.f32 %v1135, %v962
      %v1137 = vadd.f32 %v1136, %v964
      %v1138 = vadd.f32 %v1137, %v966
      %v1139 = vadd.f32 %v1138, %v968
      %v1140 = vadd.f32 %v1139, %v970
      %v1141 = vadd.f32 %v1140, %v972
      %v1142 = vadd.f32 %v1141, %v974
      %v1143 = vadd.f32 %v1142, %v976
      %v1144 = vadd.f32 %v1143, %v978
      %v1145 = vadd.f32 %v1144, %v980
      %v1146 = vadd.f32 %v1145, %v982
      %v1147 = vadd.f32 %v1146, %v984
      %v1148 = vadd.f32 %v1147, %v986
      %v1149 = vadd.f32 %v1148, %v988
      %v1150 = vadd.f32 %v1149, %v990
      %v1151 = vadd.f32 %v1150, %v992
      %v1152 = vadd.f32 %v1151, %v994
      %v1153 = vadd.f32 %v1152, %v996
      %v1154 = vadd.f32 %v1153, %v998
      %v1155 = vadd.f32 %v1154, %v1000
      %v1156 = vadd.f32 %v1155, %v1002
      %v1157 = vadd.f32 %v1156, %v1004
      %v1158 = vadd.f32 %v1157, %v1006
      %v1159 = vadd.f32 %v1158, %v1008
      %v1160 = vadd.f32 %v1159, %v1010
      %v1161 = vadd.f32 %v1160, %v1012
      %v1162 = vadd.f32 %v1161, %v1014
      %v1163 = vadd.f32 %v1162, %v1016
      %v1164 = vadd.f32 %v1163, %v1018
      %v1165 = vadd.f32 %v1164, %v1020
      %v1166 = vadd.f32 %v1165, %v1022
      %v1167 = vadd.f32 %v1166, %v1024
      %v1168 = vadd.f32 %v1167, %v1026
      %v1169 = vadd.f32 %v1168, %v1028
      %v1170 = vadd.f32 %v1169, %v1030
      %v1171 = vadd.f32 %v1170, %v1032
      %v1172 = vadd.f32 %v1171, %v1034
      %v1173 = vadd.f32 %v1172, %v1036
      %v1174 = vadd.f32 %v1173, %v1038
      %v1175 = vadd.f32 %v1174, %v1040
      %v1176 = vadd.f32 %v1175, %v1042
      %v1177 = vadd.f32 %v1176, %v1044
      %v1178 = vadd.f32 %v1177, %v1046
      %v1179 = vrot.slane %v1178, 4
      %v1180 = vadd.f32 %v1178, %v1179
      %v1181 = vrot.slane %v1180, 2
      %v1182 = vadd.f32 %v1180, %v1181
      %v1183 = vrot.slane %v1182, 1
      %v1184 = vadd.f32 %v1182, %v1183
      %v1187 = vrot.slane %v1184, 7
      %vm1188 = vcmask 1040384
      %v1189 = vsel %vm1188, %v1115, %v1187
      %v1191 = vlaneseq
      %vm1192 = vcmp.ge.s32.totalorder %v1191, 0
      %vm1193 = vcmp.lt.s32.totalorder %v1191, 256
      %vm1194 = vmand %vm1192, %vm1193
      %1195 = vst.msk [vmem:[%s204] ss:$2 sm:$0x3] %vm1194, %v1189
      %v1196 = vmul.f32 %v919, %v919
      %v1197 = vmul.f32 %v920, %v920
      %v1198 = vmul.f32 %v921, %v921
      %v1199 = vmul.f32 %v922, %v922
      %v1200 = vmul.f32 %v923, %v923
      %v1201 = vmul.f32 %v924, %v924
      %v1202 = vmul.f32 %v925, %v925
      %v1203 = vmul.f32 %v926, %v926
      %v1204 = vmul.f32 %v927, %v927
      %v1205 = vmul.f32 %v928, %v928
      %v1206 = vmul.f32 %v929, %v929
      %v1207 = vmul.f32 %v930, %v930
      %v1208 = vmul.f32 %v931, %v931
      %v1209 = vmul.f32 %v932, %v932
      %v1210 = vmul.f32 %v933, %v933
      %v1211 = vmul.f32 %v934, %v934
      %v1212 = vmul.f32 %v935, %v935
      %v1213 = vmul.f32 %v936, %v936
      %v1214 = vmul.f32 %v937, %v937
      %v1215 = vmul.f32 %v938, %v938
      %v1216 = vmul.f32 %v939, %v939
      %v1217 = vmul.f32 %v940, %v940
      %v1218 = vmul.f32 %v941, %v941
      %v1219 = vmul.f32 %v942, %v942
      %v1220 = vmul.f32 %v943, %v943
      %v1221 = vmul.f32 %v944, %v944
      %v1222 = vmul.f32 %v945, %v945
      %v1223 = vmul.f32 %v946, %v946
      %v1224 = vmul.f32 %v947, %v947
      %v1225 = vmul.f32 %v948, %v948
      %v1226 = vmul.f32 %v949, %v949
      %v1227 = vmul.f32 %v950, %v950
      %v1228 = vmul.f32 %v951, %v951
      %v1229 = vmul.f32 %v952, %v952
      %v1230 = vmul.f32 %v953, %v953
      %v1231 = vmul.f32 %v954, %v954
      %v1232 = vmul.f32 %v955, %v955
      %v1233 = vmul.f32 %v956, %v956
      %v1234 = vmul.f32 %v957, %v957
      %v1235 = vmul.f32 %v958, %v958
      %v1236 = vmul.f32 %v959, %v959
      %v1237 = vmul.f32 %v960, %v960
      %v1238 = vmul.f32 %v961, %v961
      %v1239 = vmul.f32 %v962, %v962
      %v1240 = vmul.f32 %v963, %v963
      %v1241 = vmul.f32 %v964, %v964
      %v1242 = vmul.f32 %v965, %v965
      %v1243 = vmul.f32 %v966, %v966
      %v1244 = vmul.f32 %v967, %v967
      %v1245 = vmul.f32 %v968, %v968
      %v1246 = vmul.f32 %v969, %v969
      %v1247 = vmul.f32 %v970, %v970
      %v1248 = vmul.f32 %v971, %v971
      %v1249 = vmul.f32 %v972, %v972
      %v1250 = vmul.f32 %v973, %v973
      %v1251 = vmul.f32 %v974, %v974
      %v1252 = vmul.f32 %v975, %v975
      %v1253 = vmul.f32 %v976, %v976
      %v1254 = vmul.f32 %v977, %v977
      %v1255 = vmul.f32 %v978, %v978
      %v1256 = vmul.f32 %v979, %v979
      %v1257 = vmul.f32 %v980, %v980
      %v1258 = vmul.f32 %v981, %v981
      %v1259 = vmul.f32 %v982, %v982
      %v1260 = vmul.f32 %v983, %v983
      %v1261 = vmul.f32 %v984, %v984
      %v1262 = vmul.f32 %v985, %v985
      %v1263 = vmul.f32 %v986, %v986
      %v1264 = vmul.f32 %v987, %v987
      %v1265 = vmul.f32 %v988, %v988
      %v1266 = vmul.f32 %v989, %v989
      %v1267 = vmul.f32 %v990, %v990
      %v1268 = vmul.f32 %v991, %v991
      %v1269 = vmul.f32 %v992, %v992
      %v1270 = vmul.f32 %v993, %v993
      %v1271 = vmul.f32 %v994, %v994
      %v1272 = vmul.f32 %v995, %v995
      %v1273 = vmul.f32 %v996, %v996
      %v1274 = vmul.f32 %v997, %v997
      %v1275 = vmul.f32 %v998, %v998
      %v1276 = vmul.f32 %v999, %v999
      %v1277 = vmul.f32 %v1000, %v1000
      %v1278 = vmul.f32 %v1001, %v1001
      %v1279 = vmul.f32 %v1002, %v1002
      %v1280 = vmul.f32 %v1003, %v1003
      %v1281 = vmul.f32 %v1004, %v1004
      %v1282 = vmul.f32 %v1005, %v1005
      %v1283 = vmul.f32 %v1006, %v1006
      %v1284 = vmul.f32 %v1007, %v1007
      %v1285 = vmul.f32 %v1008, %v1008
      %v1286 = vmul.f32 %v1009, %v1009
      %v1287 = vmul.f32 %v1010, %v1010
      %v1288 = vmul.f32 %v1011, %v1011
      %v1289 = vmul.f32 %v1012, %v1012
      %v1290 = vmul.f32 %v1013, %v1013
      %v1291 = vmul.f32 %v1014, %v1014
      %v1292 = vmul.f32 %v1015, %v1015
      %v1293 = vmul.f32 %v1016, %v1016
      %v1294 = vmul.f32 %v1017, %v1017
      %v1295 = vmul.f32 %v1018, %v1018
      %v1296 = vmul.f32 %v1019, %v1019
      %v1297 = vmul.f32 %v1020, %v1020
      %v1298 = vmul.f32 %v1021, %v1021
      %v1299 = vmul.f32 %v1022, %v1022
      %v1300 = vmul.f32 %v1023, %v1023
      %v1301 = vmul.f32 %v1024, %v1024
      %v1302 = vmul.f32 %v1025, %v1025
      %v1303 = vmul.f32 %v1026, %v1026
      %v1304 = vmul.f32 %v1027, %v1027
      %v1305 = vmul.f32 %v1028, %v1028
      %v1306 = vmul.f32 %v1029, %v1029
      %v1307 = vmul.f32 %v1030, %v1030
      %v1308 = vmul.f32 %v1031, %v1031
      %v1309 = vmul.f32 %v1032, %v1032
      %v1310 = vmul.f32 %v1033, %v1033
      %v1311 = vmul.f32 %v1034, %v1034
      %v1312 = vmul.f32 %v1035, %v1035
      %v1313 = vmul.f32 %v1036, %v1036
      %v1314 = vmul.f32 %v1037, %v1037
      %v1315 = vmul.f32 %v1038, %v1038
      %v1316 = vmul.f32 %v1039, %v1039
      %v1317 = vmul.f32 %v1040, %v1040
      %v1318 = vmul.f32 %v1041, %v1041
      %v1319 = vmul.f32 %v1042, %v1042
      %v1320 = vmul.f32 %v1043, %v1043
      %v1321 = vmul.f32 %v1044, %v1044
      %v1322 = vmul.f32 %v1045, %v1045
      %v1323 = vmul.f32 %v1046, %v1046
      %v1324 = vadd.f32 %v1196, %v1198
      %v1325 = vadd.f32 %v1324, %v1200
      %v1326 = vadd.f32 %v1325, %v1202
      %v1327 = vadd.f32 %v1326, %v1204
      %v1328 = vadd.f32 %v1327, %v1206
      %v1329 = vadd.f32 %v1328, %v1208
      %v1330 = vadd.f32 %v1329, %v1210
      %v1331 = vadd.f32 %v1330, %v1212
      %v1332 = vadd.f32 %v1331, %v1214
      %v1333 = vadd.f32 %v1332, %v1216
      %v1334 = vadd.f32 %v1333, %v1218
      %v1335 = vadd.f32 %v1334, %v1220
      %v1336 = vadd.f32 %v1335, %v1222
      %v1337 = vadd.f32 %v1336, %v1224
      %v1338 = vadd.f32 %v1337, %v1226
      %v1339 = vadd.f32 %v1338, %v1228
      %v1340 = vadd.f32 %v1339, %v1230
      %v1341 = vadd.f32 %v1340, %v1232
      %v1342 = vadd.f32 %v1341, %v1234
      %v1343 = vadd.f32 %v1342, %v1236
      %v1344 = vadd.f32 %v1343, %v1238
      %v1345 = vadd.f32 %v1344, %v1240
      %v1346 = vadd.f32 %v1345, %v1242
      %v1347 = vadd.f32 %v1346, %v1244
      %v1348 = vadd.f32 %v1347, %v1246
      %v1349 = vadd.f32 %v1348, %v1248
      %v1350 = vadd.f32 %v1349, %v1250
      %v1351 = vadd.f32 %v1350, %v1252
      %v1352 = vadd.f32 %v1351, %v1254
      %v1353 = vadd.f32 %v1352, %v1256
      %v1354 = vadd.f32 %v1353, %v1258
      %v1355 = vadd.f32 %v1354, %v1260
      %v1356 = vadd.f32 %v1355, %v1262
      %v1357 = vadd.f32 %v1356, %v1264
      %v1358 = vadd.f32 %v1357, %v1266
      %v1359 = vadd.f32 %v1358, %v1268
      %v1360 = vadd.f32 %v1359, %v1270
      %v1361 = vadd.f32 %v1360, %v1272
      %v1362 = vadd.f32 %v1361, %v1274
      %v1363 = vadd.f32 %v1362, %v1276
      %v1364 = vadd.f32 %v1363, %v1278
      %v1365 = vadd.f32 %v1364, %v1280
      %v1366 = vadd.f32 %v1365, %v1282
      %v1367 = vadd.f32 %v1366, %v1284
      %v1368 = vadd.f32 %v1367, %v1286
      %v1369 = vadd.f32 %v1368, %v1288
      %v1370 = vadd.f32 %v1369, %v1290
      %v1371 = vadd.f32 %v1370, %v1292
      %v1372 = vadd.f32 %v1371, %v1294
      %v1373 = vadd.f32 %v1372, %v1296
      %v1374 = vadd.f32 %v1373, %v1298
      %v1375 = vadd.f32 %v1374, %v1300
      %v1376 = vadd.f32 %v1375, %v1302
      %v1377 = vadd.f32 %v1376, %v1304
      %v1378 = vadd.f32 %v1377, %v1306
      %v1379 = vadd.f32 %v1378, %v1308
      %v1380 = vadd.f32 %v1379, %v1310
      %v1381 = vadd.f32 %v1380, %v1312
      %v1382 = vadd.f32 %v1381, %v1314
      %v1383 = vadd.f32 %v1382, %v1316
      %v1384 = vadd.f32 %v1383, %v1318
      %v1385 = vadd.f32 %v1384, %v1320
      %v1386 = vadd.f32 %v1385, %v1322
      %v1387 = vrot.slane %v1386, 4
      %v1388 = vadd.f32 %v1386, %v1387
      %v1389 = vrot.slane %v1388, 2
      %v1390 = vadd.f32 %v1388, %v1389
      %v1391 = vrot.slane %v1390, 1
      %v1392 = vadd.f32 %v1390, %v1391
      %v1393 = vadd.f32 %v1197, %v1199
      %v1394 = vadd.f32 %v1393, %v1201
      %v1395 = vadd.f32 %v1394, %v1203
      %v1396 = vadd.f32 %v1395, %v1205
      %v1397 = vadd.f32 %v1396, %v1207
      %v1398 = vadd.f32 %v1397, %v1209
      %v1399 = vadd.f32 %v1398, %v1211
      %v1400 = vadd.f32 %v1399, %v1213
      %v1401 = vadd.f32 %v1400, %v1215
      %v1402 = vadd.f32 %v1401, %v1217
      %v1403 = vadd.f32 %v1402, %v1219
      %v1404 = vadd.f32 %v1403, %v1221
      %v1405 = vadd.f32 %v1404, %v1223
      %v1406 = vadd.f32 %v1405, %v1225
      %v1407 = vadd.f32 %v1406, %v1227
      %v1408 = vadd.f32 %v1407, %v1229
      %v1409 = vadd.f32 %v1408, %v1231
      %v1410 = vadd.f32 %v1409, %v1233
      %v1411 = vadd.f32 %v1410, %v1235
      %v1412 = vadd.f32 %v1411, %v1237
      %v1413 = vadd.f32 %v1412, %v1239
      %v1414 = vadd.f32 %v1413, %v1241
      %v1415 = vadd.f32 %v1414, %v1243
      %v1416 = vadd.f32 %v1415, %v1245
      %v1417 = vadd.f32 %v1416, %v1247
      %v1418 = vadd.f32 %v1417, %v1249
      %v1419 = vadd.f32 %v1418, %v1251
      %v1420 = vadd.f32 %v1419, %v1253
      %v1421 = vadd.f32 %v1420, %v1255
      %v1422 = vadd.f32 %v1421, %v1257
      %v1423 = vadd.f32 %v1422, %v1259
      %v1424 = vadd.f32 %v1423, %v1261
      %v1425 = vadd.f32 %v1424, %v1263
      %v1426 = vadd.f32 %v1425, %v1265
      %v1427 = vadd.f32 %v1426, %v1267
      %v1428 = vadd.f32 %v1427, %v1269
      %v1429 = vadd.f32 %v1428, %v1271
      %v1430 = vadd.f32 %v1429, %v1273
      %v1431 = vadd.f32 %v1430, %v1275
      %v1432 = vadd.f32 %v1431, %v1277
      %v1433 = vadd.f32 %v1432, %v1279
      %v1434 = vadd.f32 %v1433, %v1281
      %v1435 = vadd.f32 %v1434, %v1283
      %v1436 = vadd.f32 %v1435, %v1285
      %v1437 = vadd.f32 %v1436, %v1287
      %v1438 = vadd.f32 %v1437, %v1289
      %v1439 = vadd.f32 %v1438, %v1291
      %v1440 = vadd.f32 %v1439, %v1293
      %v1441 = vadd.f32 %v1440, %v1295
      %v1442 = vadd.f32 %v1441, %v1297
      %v1443 = vadd.f32 %v1442, %v1299
      %v1444 = vadd.f32 %v1443, %v1301
      %v1445 = vadd.f32 %v1444, %v1303
      %v1446 = vadd.f32 %v1445, %v1305
      %v1447 = vadd.f32 %v1446, %v1307
      %v1448 = vadd.f32 %v1447, %v1309
      %v1449 = vadd.f32 %v1448, %v1311
      %v1450 = vadd.f32 %v1449, %v1313
      %v1451 = vadd.f32 %v1450, %v1315
      %v1452 = vadd.f32 %v1451, %v1317
      %v1453 = vadd.f32 %v1452, %v1319
      %v1454 = vadd.f32 %v1453, %v1321
      %v1455 = vadd.f32 %v1454, %v1323
      %v1456 = vrot.slane %v1455, 4
      %v1457 = vadd.f32 %v1455, %v1456
      %v1458 = vrot.slane %v1457, 2
      %v1459 = vadd.f32 %v1457, %v1458
      %v1460 = vrot.slane %v1459, 1
      %v1461 = vadd.f32 %v1459, %v1460
      %v1464 = vrot.slane %v1461, 7
      %v1465 = vsel %vm1188, %v1392, %v1464
      %s1467 = scalar_lea.vmem %s204, 1
      %1468 = vst.msk [vmem:[%s1467] ss:$2 sm:$0x3] %vm1194, %v1465
      %p1469 = scmp.lt.s32.totalorder %s17, 1
      %s1470 = scalar_select %p1469, %s17, 1
      %p1471 = scmp.lt.s32.totalorder %s18, 0
      %s1472 = scalar_select %p1471, %s18, 0
      %s1473 = smul.addr %s1472, 2
      %s1474 = smul.addr %s1470, 2
      %s1475 = sadd.s32 %s1473, %s1474
      %s1476 = smul.addr %s1475, 2
      %s1477 = scalar_lea.vmem %s2, %s1476
      // Predicated region
      $region29: #{convmim_forward_loss.7} parent=27 // pred_check
        %p1478 = pneg %p99
      $region30: #{convmim_forward_loss.7} parent=27 // pred_check_branch
        %1480 = sbr.rel (%p1478) target = $region32
      $region31: #{convmim_forward_loss.7} parent=27 // pred_region
        _
      $region32: #{convmim_forward_loss.7} parent=27 // pred_fallthru
        _
    $region28: #{convmim_forward_loss.7} parent=5 // pred_fallthru
      _
    %p1481 = scmp.le.s32.totalorder 2, %s8
    // Predicated region
    $region33: #{convmim_forward_loss.7} parent=5 // pred_check
      %p1482 = pneg %p1481
    $region34: #{convmim_forward_loss.7} parent=5 // pred_check_branch
      %1484 = sbr.rel (%p1482) target = $region36
    $region35: #{convmim_forward_loss.7} parent=5 // pred_region
      %s1485 = ssub.s32 %s8, 2
      // Predicated region
      $region37: #{convmim_forward_loss.7} parent=35 // pred_check
        %p1486 = pneg %p105
      $region38: #{convmim_forward_loss.7} parent=35 // pred_check_branch
        %1488 = sbr.rel (%p1486) target = $region40
      $region39: #{convmim_forward_loss.7} parent=35 // pred_region
        %p1489 = scmp.lt.s32.totalorder %s19, 1
        %s1490 = scalar_select %p1489, %s19, 1
        %p1491 = scmp.lt.s32.totalorder %s20, 0
        %s1492 = scalar_select %p1491, %s20, 0
        %s1493 = smul.addr %s1492, 2
        %s1494 = smul.addr %s1490, 2
        %s1495 = sadd.s32 %s1493, %s1494
        %s1496 = smul.addr %s1495, 2
        %s1497 = scalar_lea.vmem %s2, %s1496
      $region40: #{convmim_forward_loss.7} parent=35 // pred_fallthru
        _
    $region36: #{convmim_forward_loss.7} parent=5 // pred_fallthru
      _
  $region6: #{convmim_forward_loss.7} parent=0 // loop_footer
    %s12 = sadd.s32 1, %s8
  $region7: #{convmim_forward_loss.7} parent=0 // loop_footer_branch
    %7 = sbr.rel target = $region3
  $region8: #{convmim_forward_loss.7} parent=0 // loop_exit
    _

// kernel: convmim_forward_loss.6
$region0: #{convmim_forward_loss.6}
  #allocation0 [shape = 'u32[]', space=smem, size = 0x4, offset = 0x4, fixed_abs, tag = 'smem constant byte address 0x4 - core index']
  #allocation1 [shape = 'u32[72,128]{1,0:T(1,128)}', space=vmem, size = 0x9000, scoped, tag = 'internal scratch']
  %s0 = inlined_call_operand.vmem [shape: bf16[2,512,256], index: 0, kind: input, shape index: {}]
  %s1 = inlined_call_operand.vmem [shape: f32[2,8,256], index: 1, kind: input, shape index: {}]
  %s2 = inlined_call_operand.vmem [shape: bf16[256,256], index: 2, kind: input, shape index: {}]
  %s3 = inlined_call_operand.vmem [shape: bf16[2,512,256], index: 3, kind: output, shape index: {0}]
  %s4 = inlined_call_operand.vmem [shape: f32[2,1,2,256], index: 4, kind: output, shape index: {1}]
  %5 = xla_tuple %s3, %s4
  %s6 = sld [smem:[#allocation0]]
  $region53: #{convmim_forward_loss.6} parent=0
    _
  %s8 = ssub.s32 1, %s6
  %s9 = scalar_select 0, %s8, %s6
  loop: start=0, step=1, limit=4
  $region2: #{convmim_forward_loss.6} parent=0 // loop_pre_header
    _
  $region3: #{convmim_forward_loss.6} parent=0 // loop_header
    %s11 = sphi 0, %s15
    %p12 = scmp.ge.s32.totalorder %s11, 4
    %s18 = sphi 0, %s30
    %s19 = sphi 0, %s26
    %s20 = sphi 0, %s18
    %s21 = sphi 0, %s19
    %s22 = sphi 0, %s20
    %s23 = sphi 0, %s21
    %s35 = sphi 0, %s37
    %s38 = sphi 0, %s35
    %s39 = sphi 0, %s38
    %s55 = sphi 0, %s39
    %s61 = sphi 0, %s63
    %s64 = sphi 0, %s61
    %s65 = sphi 0, %s64
    %s81 = sphi 0, %s65
    %s85 = sphi 0, %s85
    %s87 = sphi 0, %s85
    %s88 = sphi 0, %s87
    %s102 = sphi 0, %s88
    %s110 = sphi 0, %s112
    %s113 = sphi 0, %s110
    %s114 = sphi 0, %s113
    %s130 = sphi 0, %s114
    %s138 = sphi 0, %s140
    %s141 = sphi 0, %s138
    %s142 = sphi 0, %s141
    %s158 = sphi 0, %s142
  $region4: #{convmim_forward_loss.6} parent=0 // loop_header_branch
    %14 = sbr.rel (%p12) target = $region8
  $region5: #{convmim_forward_loss.6} parent=0 // loop_body
    %s16 = ssub.s32 %s11, 1
    %s17 = ssub.s32 %s11, 2
    %s24 = sadd.s32 1, %s19
    %p25 = scmp.ge.s32.totalorder %s24, 1
    %s26 = scalar_select %p25, 0, %s24
    %s27 = sadd.s32 1, %s18
    %s28 = scalar_select %p25, %s27, %s18
    %p29 = scmp.ge.s32.totalorder %s28, 2
    %s30 = scalar_select %p29, 0, %s28
    %s31 = ssub.s32 %s18, %s30
    %s32 = ssub.s32 %s19, %s26
    %s33 = sor.u32 %s31, %s32
    %p34 = scmp.eq.s32.totalorder %s33, 0
    %s36 = sadd.s32 %s35, 1
    %s37 = scalar_select %p34, %s35, %s36
    %p40 = pneg %p34
    %p41 = scmp.eq.s32.totalorder %s11, 1
    %p42 = por %p40, %p41
    %p43 = scmp.ne.s32.totalorder %s35, %s38
    %p44 = scmp.eq.s32.totalorder %s11, 0
    %p45 = por %p43, %p44
    %p46 = scmp.ne.s32.totalorder %s35, %s38
    %p47 = scmp.eq.s32.totalorder %s16, 1
    %p48 = por %p46, %p47
    %p49 = scmp.ne.s32.totalorder %s38, %s39
    %p50 = scmp.eq.s32.totalorder %s16, 0
    %p51 = por %p49, %p50
    %p52 = scmp.ne.s32.totalorder %s38, %s39
    %p53 = scmp.eq.s32.totalorder %s17, 1
    %p54 = por %p52, %p53
    %p56 = scmp.ne.s32.totalorder %s39, %s55
    %p57 = scmp.eq.s32.totalorder %s17, 0
    %p58 = por %p56, %p57
    %s59 = ssub.s32 %s18, %s30
    %p60 = scmp.eq.s32.totalorder %s59, 0
    %s62 = sadd.s32 %s61, 1
    %s63 = scalar_select %p60, %s61, %s62
    %p66 = pneg %p60
    %p67 = scmp.eq.s32.totalorder %s11, 1
    %p68 = por %p66, %p67
    %p69 = scmp.ne.s32.totalorder %s61, %s64
    %p70 = scmp.eq.s32.totalorder %s11, 0
    %p71 = por %p69, %p70
    %p72 = scmp.ne.s32.totalorder %s61, %s64
    %p73 = scmp.eq.s32.totalorder %s16, 1
    %p74 = por %p72, %p73
    %p75 = scmp.ne.s32.totalorder %s64, %s65
    %p76 = scmp.eq.s32.totalorder %s16, 0
    %p77 = por %p75, %p76
    %p78 = scmp.ne.s32.totalorder %s64, %s65
    %p79 = scmp.eq.s32.totalorder %s17, 1
    %p80 = por %p78, %p79
    %p82 = scmp.ne.s32.totalorder %s65, %s81
    %p83 = scmp.eq.s32.totalorder %s17, 0
    %p84 = por %p82, %p83
    %s86 = sadd.s32 %s85, 1
    %p89 = scmp.eq.s32.totalorder %s11, 1
    %p90 = scmp.ne.s32.totalorder %s85, %s87
    %p91 = scmp.eq.s32.totalorder %s11, 0
    %p92 = por %p90, %p91
    %p93 = scmp.ne.s32.totalorder %s85, %s87
    %p94 = scmp.eq.s32.totalorder %s16, 1
    %p95 = por %p93, %p94
    %p96 = scmp.ne.s32.totalorder %s87, %s88
    %p97 = scmp.eq.s32.totalorder %s16, 0
    %p98 = por %p96, %p97
    %p99 = scmp.ne.s32.totalorder %s87, %s88
    %p100 = scmp.eq.s32.totalorder %s17, 1
    %p101 = por %p99, %p100
    %p103 = scmp.ne.s32.totalorder %s88, %s102
    %p104 = scmp.eq.s32.totalorder %s17, 0
    %p105 = por %p103, %p104
    %s106 = ssub.s32 %s18, %s30
    %s107 = ssub.s32 %s19, %s26
    %s108 = sor.u32 %s106, %s107
    %p109 = scmp.eq.s32.totalorder %s108, 0
    %s111 = sadd.s32 %s110, 1
    %s112 = scalar_select %p109, %s110, %s111
    %p115 = pneg %p109
    %p116 = scmp.eq.s32.totalorder %s11, 1
    %p117 = por %p115, %p116
    %p118 = scmp.ne.s32.totalorder %s110, %s113
    %p119 = scmp.eq.s32.totalorder %s11, 0
    %p120 = por %p118, %p119
    %p121 = scmp.ne.s32.totalorder %s110, %s113
    %p122 = scmp.eq.s32.totalorder %s16, 1
    %p123 = por %p121, %p122
    %p124 = scmp.ne.s32.totalorder %s113, %s114
    %p125 = scmp.eq.s32.totalorder %s16, 0
    %p126 = por %p124, %p125
    %p127 = scmp.ne.s32.totalorder %s113, %s114
    %p128 = scmp.eq.s32.totalorder %s17, 1
    %p129 = por %p127, %p128
    %p131 = scmp.ne.s32.totalorder %s114, %s130
    %p132 = scmp.eq.s32.totalorder %s17, 0
    %p133 = por %p131, %p132
    %s134 = ssub.s32 %s18, %s30
    %s135 = ssub.s32 %s19, %s26
    %s136 = sor.u32 %s134, %s135
    %p137 = scmp.eq.s32.totalorder %s136, 0
    %s139 = sadd.s32 %s138, 1
    %s140 = scalar_select %p137, %s138, %s139
    %p143 = pneg %p137
    %p144 = scmp.eq.s32.totalorder %s11, 1
    %p145 = por %p143, %p144
    %p146 = scmp.ne.s32.totalorder %s138, %s141
    %p147 = scmp.eq.s32.totalorder %s11, 0
    %p148 = por %p146, %p147
    %p149 = scmp.ne.s32.totalorder %s138, %s141
    %p150 = scmp.eq.s32.totalorder %s16, 1
    %p151 = por %p149, %p150
    %p152 = scmp.ne.s32.totalorder %s141, %s142
    %p153 = scmp.eq.s32.totalorder %s16, 0
    %p154 = por %p152, %p153
    %p155 = scmp.ne.s32.totalorder %s141, %s142
    %p156 = scmp.eq.s32.totalorder %s17, 1
    %p157 = por %p155, %p156
    %p159 = scmp.ne.s32.totalorder %s142, %s158
    %p160 = scmp.eq.s32.totalorder %s17, 0
    %p161 = por %p159, %p160
    %p162 = scmp.le.s32.totalorder 1, %s11
    %p163 = scmp.lt.s32.totalorder %s11, 3
    %p164 = pnand %p162, %p163
    %p165 = pneg %p164
    // Predicated region
    $region9: #{convmim_forward_loss.6} parent=5 // pred_check
      _
    $region10: #{convmim_forward_loss.6} parent=5 // pred_check_branch
      %167 = sbr.rel (%p164) target = $region12
    $region11: #{convmim_forward_loss.6} parent=5 // pred_region
      %s168 = ssub.s32 %s11, 1
      // Predicated region
      $region13: #{convmim_forward_loss.6} parent=11 // pred_check
        %p169 = pneg %p98
      $region14: #{convmim_forward_loss.6} parent=11 // pred_check_branch
        %171 = sbr.rel (%p169) target = $region16
      $region15: #{convmim_forward_loss.6} parent=11 // pred_region
        _
      $region16: #{convmim_forward_loss.6} parent=11 // pred_fallthru
        _
    $region12: #{convmim_forward_loss.6} parent=5 // pred_fallthru
      _
    %p172 = scmp.lt.s32.totalorder %s11, 2
    // Predicated region
    $region17: #{convmim_forward_loss.6} parent=5 // pred_check
      %p173 = pneg %p172
    $region18: #{convmim_forward_loss.6} parent=5 // pred_check_branch
      %175 = sbr.rel (%p173) target = $region20
    $region19: #{convmim_forward_loss.6} parent=5 // pred_region
      // Predicated region
      $region21: #{convmim_forward_loss.6} parent=19 // pred_check
        %p176 = pneg %p45
      $region22: #{convmim_forward_loss.6} parent=19 // pred_check_branch
        %178 = sbr.rel (%p176) target = $region24
      $region23: #{convmim_forward_loss.6} parent=19 // pred_region
        %s179 = smul.u32 64, %s19
        %p180 = scmp.lt.s32.totalorder %s18, 1
        %s181 = scalar_select %p180, %s18, 1
        %p182 = scmp.lt.s32.totalorder %s179, 63
        %s183 = scalar_select %p182, %s179, 63
        %s184 = smul.addr %s183, 2
        %s185 = smul.addr %s181, 128
        %s186 = sadd.s32 %s184, %s185
        %s187 = smul.addr %s186, 4
        %s188 = scalar_lea.vmem %s0, %s187
        %s189 = smul.u32 64, %s19
      $region24: #{convmim_forward_loss.6} parent=19 // pred_fallthru
        _
      // Predicated region
      $region25: #{convmim_forward_loss.6} parent=19 // pred_check
        %p190 = pneg %p71
      $region26: #{convmim_forward_loss.6} parent=19 // pred_check_branch
        %192 = sbr.rel (%p190) target = $region28
      $region27: #{convmim_forward_loss.6} parent=19 // pred_region
        %p193 = scmp.lt.s32.totalorder %s18, 1
        %s194 = scalar_select %p193, %s18, 1
        %s195 = smul.addr %s194, 2
        %s196 = smul.addr %s195, 8
        %s197 = scalar_lea.vmem %s1, %s196
      $region28: #{convmim_forward_loss.6} parent=19 // pred_fallthru
        _
    $region20: #{convmim_forward_loss.6} parent=5 // pred_fallthru
      _
    %p198 = scmp.le.s32.totalorder 1, %s11
    %p199 = scmp.lt.s32.totalorder %s11, 3
    %p200 = pnand %p198, %p199
    %p201 = pneg %p200
    // Predicated region
    $region29: #{convmim_forward_loss.6} parent=5 // pred_check
      _
    $region30: #{convmim_forward_loss.6} parent=5 // pred_check_branch
      %203 = sbr.rel (%p200) target = $region32
    $region31: #{convmim_forward_loss.6} parent=5 // pred_region
      %s204 = ssub.s32 %s11, 1
      %s205 = smul.u32 64, %s21
      %p206 = scmp.lt.s32.totalorder %s20, 1
      %s207 = scalar_select %p206, %s20, 1
      %p208 = scmp.lt.s32.totalorder %s205, 63
      %s209 = scalar_select %p208, %s205, 63
      %s210 = smul.addr %s209, 2
      %s211 = smul.addr %s207, 128
      %s212 = sadd.s32 %s210, %s211
      %s213 = smul.addr %s212, 4
      %s214 = scalar_lea.vmem %s0, %s213
      %p215 = pneg %p51
      %p216 = pneg %p48
      %p217 = scmp.lt.s32.totalorder %s20, 1
      %s218 = scalar_select %p217, %s20, 1
      %s219 = smul.addr %s218, 2
      %s220 = smul.addr %s219, 8
      %s221 = scalar_lea.vmem %s1, %s220
      %p222 = pneg %p77
      %p223 = pneg %p74
      %p224 = pneg %p98
      %p225 = pneg %p95
      %p226 = pneg %p126
      %p227 = pneg %p123
      %s228 = smul.u32 64, %s21
      %p229 = scmp.lt.s32.totalorder %s20, 1
      %s230 = scalar_select %p229, %s20, 1
      %p231 = scmp.lt.s32.totalorder %s228, 63
      %s232 = scalar_select %p231, %s228, 63
      %s233 = smul.addr %s232, 2
      %s234 = smul.addr %s230, 128
      %s235 = sadd.s32 %s233, %s234
      %s236 = smul.addr %s235, 4
      %s237 = scalar_lea.vmem %s3, %s236
      %p238 = pneg %p154
      %p239 = pneg %p151
      %p240 = scmp.lt.s32.totalorder %s20, 1
      %s241 = scalar_select %p240, %s20, 1
      %p242 = scmp.lt.s32.totalorder %s21, 0
      %s243 = scalar_select %p242, %s21, 0
      %s244 = smul.addr %s243, 2
      %s245 = smul.addr %s241, 2
      %s246 = sadd.s32 %s244, %s245
      %s247 = smul.addr %s246, 2
      %s248 = scalar_lea.vmem %s4, %s247
      %s249 = smul.u32 64, %s21
      %p250 = scmp.lt.s32.totalorder %s20, 1
      %s251 = scalar_select %p250, %s20, 1
      %p252 = scmp.lt.s32.totalorder %s249, 63
      %s253 = scalar_select %p252, %s249, 63
      %s254 = smul.addr %s253, 2
      %s255 = smul.addr %s251, 128
      %s256 = sadd.s32 %s254, %s255
      %s257 = smul.addr %s256, 4
      %s258 = scalar_lea.vmem %s0, %s257
      %s259 = smul.u32 64, %s21
      %p260 = scmp.lt.s32.totalorder %s20, 1
      %s261 = scalar_select %p260, %s20, 1
      %s262 = smul.addr %s261, 2
      %s263 = smul.addr %s262, 8
      %s264 = scalar_lea.vmem %s1, %s263
      %s265 = smul.u32 64, %s21
      %p266 = scmp.lt.s32.totalorder %s20, 1
      %s267 = scalar_select %p266, %s20, 1
      %p268 = scmp.lt.s32.totalorder %s265, 63
      %s269 = scalar_select %p268, %s265, 63
      %s270 = smul.addr %s269, 2
      %s271 = smul.addr %s267, 128
      %s272 = sadd.s32 %s270, %s271
      %s273 = smul.addr %s272, 4
      %s274 = scalar_lea.vmem %s3, %s273
      %s275 = smul.u32 64, %s21
      %p276 = scmp.lt.s32.totalorder %s20, 1
      %s277 = scalar_select %p276, %s20, 1
      %p278 = scmp.lt.s32.totalorder %s21, 0
      %s279 = scalar_select %p278, %s21, 0
      %s280 = smul.addr %s279, 2
      %s281 = smul.addr %s277, 2
      %s282 = sadd.s32 %s280, %s281
      %s283 = smul.addr %s282, 2
      %s284 = scalar_lea.vmem %s4, %s283
      %v285 = vld [vmem:[%s264] sm:$0xff]
      %v286 = vld [vmem:[%s264 + $0x8] sm:$0xff]
      %v287 = vld [vmem:[%s258] sm:$0xff]
      %v288 = vld [vmem:[%s258 + $0x8] sm:$0xff]
      %v289 = vld [vmem:[%s258 + $0x10] sm:$0xff]
      %v290 = vld [vmem:[%s258 + $0x18] sm:$0xff]
      %v291 = vld [vmem:[%s258 + $0x20] sm:$0xff]
      %v292 = vld [vmem:[%s258 + $0x28] sm:$0xff]
      %v293 = vld [vmem:[%s258 + $0x30] sm:$0xff]
      %v294 = vld [vmem:[%s258 + $0x38] sm:$0xff]
      %v295 = vld [vmem:[%s258 + $0x40] sm:$0xff]
      %v296 = vld [vmem:[%s258 + $0x48] sm:$0xff]
      %v297 = vld [vmem:[%s258 + $0x50] sm:$0xff]
      %v298 = vld [vmem:[%s258 + $0x58] sm:$0xff]
      %v299 = vld [vmem:[%s258 + $0x60] sm:$0xff]
      %v300 = vld [vmem:[%s258 + $0x68] sm:$0xff]
      %v301 = vld [vmem:[%s258 + $0x70] sm:$0xff]
      %v302 = vld [vmem:[%s258 + $0x78] sm:$0xff]
      %v303 = vld [vmem:[%s258 + $0x80] sm:$0xff]
      %v304 = vld [vmem:[%s258 + $0x88] sm:$0xff]
      %v305 = vld [vmem:[%s258 + $0x90] sm:$0xff]
      %v306 = vld [vmem:[%s258 + $0x98] sm:$0xff]
      %v307 = vld [vmem:[%s258 + $0xa0] sm:$0xff]
      %v308 = vld [vmem:[%s258 + $0xa8] sm:$0xff]
      %v309 = vld [vmem:[%s258 + $0xb0] sm:$0xff]
      %v310 = vld [vmem:[%s258 + $0xb8] sm:$0xff]
      %v311 = vld [vmem:[%s258 + $0xc0] sm:$0xff]
      %v312 = vld [vmem:[%s258 + $0xc8] sm:$0xff]
      %v313 = vld [vmem:[%s258 + $0xd0] sm:$0xff]
      %v314 = vld [vmem:[%s258 + $0xd8] sm:$0xff]
      %v315 = vld [vmem:[%s258 + $0xe0] sm:$0xff]
      %v316 = vld [vmem:[%s258 + $0xe8] sm:$0xff]
      %v317 = vld [vmem:[%s258 + $0xf0] sm:$0xff]
      %v318 = vld [vmem:[%s258 + $0xf8] sm:$0xff]
      %v319 = vld [vmem:[%s258 + $0x100] sm:$0xff]
      %v320 = vld [vmem:[%s258 + $0x108] sm:$0xff]
      %v321 = vld [vmem:[%s258 + $0x110] sm:$0xff]
      %v322 = vld [vmem:[%s258 + $0x118] sm:$0xff]
      %v323 = vld [vmem:[%s258 + $0x120] sm:$0xff]
      %v324 = vld [vmem:[%s258 + $0x128] sm:$0xff]
      %v325 = vld [vmem:[%s258 + $0x130] sm:$0xff]
      %v326 = vld [vmem:[%s258 + $0x138] sm:$0xff]
      %v327 = vld [vmem:[%s258 + $0x140] sm:$0xff]
      %v328 = vld [vmem:[%s258 + $0x148] sm:$0xff]
      %v329 = vld [vmem:[%s258 + $0x150] sm:$0xff]
      %v330 = vld [vmem:[%s258 + $0x158] sm:$0xff]
      %v331 = vld [vmem:[%s258 + $0x160] sm:$0xff]
      %v332 = vld [vmem:[%s258 + $0x168] sm:$0xff]
      %v333 = vld [vmem:[%s258 + $0x170] sm:$0xff]
      %v334 = vld [vmem:[%s258 + $0x178] sm:$0xff]
      %v335 = vld [vmem:[%s258 + $0x180] sm:$0xff]
      %v336 = vld [vmem:[%s258 + $0x188] sm:$0xff]
      %v337 = vld [vmem:[%s258 + $0x190] sm:$0xff]
      %v338 = vld [vmem:[%s258 + $0x198] sm:$0xff]
      %v339 = vld [vmem:[%s258 + $0x1a0] sm:$0xff]
      %v340 = vld [vmem:[%s258 + $0x1a8] sm:$0xff]
      %v341 = vld [vmem:[%s258 + $0x1b0] sm:$0xff]
      %v342 = vld [vmem:[%s258 + $0x1b8] sm:$0xff]
      %v343 = vld [vmem:[%s258 + $0x1c0] sm:$0xff]
      %v344 = vld [vmem:[%s258 + $0x1c8] sm:$0xff]
      %v345 = vld [vmem:[%s258 + $0x1d0] sm:$0xff]
      %v346 = vld [vmem:[%s258 + $0x1d8] sm:$0xff]
      %v347 = vld [vmem:[%s258 + $0x1e0] sm:$0xff]
      %v348 = vld [vmem:[%s258 + $0x1e8] sm:$0xff]
      %v349 = vld [vmem:[%s258 + $0x1f0] sm:$0xff]
      %v350 = vld [vmem:[%s258 + $0x1f8] sm:$0xff]
      %v351 = vunpack.c.l.bf16 %v287
      %v352 = vunpack.c.h.bf16 %v287
      %v353 = vunpack.c.l.bf16 %v288
      %v354 = vunpack.c.h.bf16 %v288
      %v355 = vunpack.c.l.bf16 %v289
      %v356 = vunpack.c.h.bf16 %v289
      %v357 = vunpack.c.l.bf16 %v290
      %v358 = vunpack.c.h.bf16 %v290
      %v359 = vunpack.c.l.bf16 %v291
      %v360 = vunpack.c.h.bf16 %v291
      %v361 = vunpack.c.l.bf16 %v292
      %v362 = vunpack.c.h.bf16 %v292
      %v363 = vunpack.c.l.bf16 %v293
      %v364 = vunpack.c.h.bf16 %v293
      %v365 = vunpack.c.l.bf16 %v294
      %v366 = vunpack.c.h.bf16 %v294
      %v367 = vunpack.c.l.bf16 %v295
      %v368 = vunpack.c.h.bf16 %v295
      %v369 = vunpack.c.l.bf16 %v296
      %v370 = vunpack.c.h.bf16 %v296
      %v371 = vunpack.c.l.bf16 %v297
      %v372 = vunpack.c.h.bf16 %v297
      %v373 = vunpack.c.l.bf16 %v298
      %v374 = vunpack.c.h.bf16 %v298
      %v375 = vunpack.c.l.bf16 %v299
      %v376 = vunpack.c.h.bf16 %v299
      %v377 = vunpack.c.l.bf16 %v300
      %v378 = vunpack.c.h.bf16 %v300
      %v379 = vunpack.c.l.bf16 %v301
      %v380 = vunpack.c.h.bf16 %v301
      %v381 = vunpack.c.l.bf16 %v302
      %v382 = vunpack.c.h.bf16 %v302
      %v383 = vunpack.c.l.bf16 %v303
      %v384 = vunpack.c.h.bf16 %v303
      %v385 = vunpack.c.l.bf16 %v304
      %v386 = vunpack.c.h.bf16 %v304
      %v387 = vunpack.c.l.bf16 %v305
      %v388 = vunpack.c.h.bf16 %v305
      %v389 = vunpack.c.l.bf16 %v306
      %v390 = vunpack.c.h.bf16 %v306
      %v391 = vunpack.c.l.bf16 %v307
      %v392 = vunpack.c.h.bf16 %v307
      %v393 = vunpack.c.l.bf16 %v308
      %v394 = vunpack.c.h.bf16 %v308
      %v395 = vunpack.c.l.bf16 %v309
      %v396 = vunpack.c.h.bf16 %v309
      %v397 = vunpack.c.l.bf16 %v310
      %v398 = vunpack.c.h.bf16 %v310
      %v399 = vunpack.c.l.bf16 %v311
      %v400 = vunpack.c.h.bf16 %v311
      %v401 = vunpack.c.l.bf16 %v312
      %v402 = vunpack.c.h.bf16 %v312
      %v403 = vunpack.c.l.bf16 %v313
      %v404 = vunpack.c.h.bf16 %v313
      %v405 = vunpack.c.l.bf16 %v314
      %v406 = vunpack.c.h.bf16 %v314
      %v407 = vunpack.c.l.bf16 %v315
      %v408 = vunpack.c.h.bf16 %v315
      %v409 = vunpack.c.l.bf16 %v316
      %v410 = vunpack.c.h.bf16 %v316
      %v411 = vunpack.c.l.bf16 %v317
      %v412 = vunpack.c.h.bf16 %v317
      %v413 = vunpack.c.l.bf16 %v318
      %v414 = vunpack.c.h.bf16 %v318
      %v415 = vunpack.c.l.bf16 %v319
      %v416 = vunpack.c.h.bf16 %v319
      %v417 = vunpack.c.l.bf16 %v320
      %v418 = vunpack.c.h.bf16 %v320
      %v419 = vunpack.c.l.bf16 %v321
      %v420 = vunpack.c.h.bf16 %v321
      %v421 = vunpack.c.l.bf16 %v322
      %v422 = vunpack.c.h.bf16 %v322
      %v423 = vunpack.c.l.bf16 %v323
      %v424 = vunpack.c.h.bf16 %v323
      %v425 = vunpack.c.l.bf16 %v324
      %v426 = vunpack.c.h.bf16 %v324
      %v427 = vunpack.c.l.bf16 %v325
      %v428 = vunpack.c.h.bf16 %v325
      %v429 = vunpack.c.l.bf16 %v326
      %v430 = vunpack.c.h.bf16 %v326
      %v431 = vunpack.c.l.bf16 %v327
      %v432 = vunpack.c.h.bf16 %v327
      %v433 = vunpack.c.l.bf16 %v328
      %v434 = vunpack.c.h.bf16 %v328
      %v435 = vunpack.c.l.bf16 %v329
      %v436 = vunpack.c.h.bf16 %v329
      %v437 = vunpack.c.l.bf16 %v330
      %v438 = vunpack.c.h.bf16 %v330
      %v439 = vunpack.c.l.bf16 %v331
      %v440 = vunpack.c.h.bf16 %v331
      %v441 = vunpack.c.l.bf16 %v332
      %v442 = vunpack.c.h.bf16 %v332
      %v443 = vunpack.c.l.bf16 %v333
      %v444 = vunpack.c.h.bf16 %v333
      %v445 = vunpack.c.l.bf16 %v334
      %v446 = vunpack.c.h.bf16 %v334
      %v447 = vunpack.c.l.bf16 %v335
      %v448 = vunpack.c.h.bf16 %v335
      %v449 = vunpack.c.l.bf16 %v336
      %v450 = vunpack.c.h.bf16 %v336
      %v451 = vunpack.c.l.bf16 %v337
      %v452 = vunpack.c.h.bf16 %v337
      %v453 = vunpack.c.l.bf16 %v338
      %v454 = vunpack.c.h.bf16 %v338
      %v455 = vunpack.c.l.bf16 %v339
      %v456 = vunpack.c.h.bf16 %v339
      %v457 = vunpack.c.l.bf16 %v340
      %v458 = vunpack.c.h.bf16 %v340
      %v459 = vunpack.c.l.bf16 %v341
      %v460 = vunpack.c.h.bf16 %v341
      %v461 = vunpack.c.l.bf16 %v342
      %v462 = vunpack.c.h.bf16 %v342
      %v463 = vunpack.c.l.bf16 %v343
      %v464 = vunpack.c.h.bf16 %v343
      %v465 = vunpack.c.l.bf16 %v344
      %v466 = vunpack.c.h.bf16 %v344
      %v467 = vunpack.c.l.bf16 %v345
      %v468 = vunpack.c.h.bf16 %v345
      %v469 = vunpack.c.l.bf16 %v346
      %v470 = vunpack.c.h.bf16 %v346
      %v471 = vunpack.c.l.bf16 %v347
      %v472 = vunpack.c.h.bf16 %v347
      %v473 = vunpack.c.l.bf16 %v348
      %v474 = vunpack.c.h.bf16 %v348
      %v475 = vunpack.c.l.bf16 %v349
      %v476 = vunpack.c.h.bf16 %v349
      %v477 = vunpack.c.l.bf16 %v350
      %v478 = vunpack.c.h.bf16 %v350
      %v479 = vperm.slane %v285, 0
      %v480 = vperm.slane %v286, 0
      %v481 = vsub.f32 %v351, %v479
      %v482 = vsub.f32 %v352, %v480
      %v483 = vsub.f32 %v353, %v479
      %v484 = vsub.f32 %v354, %v480
      %v485 = vsub.f32 %v355, %v479
      %v486 = vsub.f32 %v356, %v480
      %v487 = vsub.f32 %v357, %v479
      %v488 = vsub.f32 %v358, %v480
      %v489 = vsub.f32 %v359, %v479
      %v490 = vsub.f32 %v360, %v480
      %v491 = vsub.f32 %v361, %v479
      %v492 = vsub.f32 %v362, %v480
      %v493 = vsub.f32 %v363, %v479
      %v494 = vsub.f32 %v364, %v480
      %v495 = vsub.f32 %v365, %v479
      %v496 = vsub.f32 %v366, %v480
      %v497 = vsub.f32 %v367, %v479
      %v498 = vsub.f32 %v368, %v480
      %v499 = vsub.f32 %v369, %v479
      %v500 = vsub.f32 %v370, %v480
      %v501 = vsub.f32 %v371, %v479
      %v502 = vsub.f32 %v372, %v480
      %v503 = vsub.f32 %v373, %v479
      %v504 = vsub.f32 %v374, %v480
      %v505 = vsub.f32 %v375, %v479
      %v506 = vsub.f32 %v376, %v480
      %v507 = vsub.f32 %v377, %v479
      %v508 = vsub.f32 %v378, %v480
      %v509 = vsub.f32 %v379, %v479
      %v510 = vsub.f32 %v380, %v480
      %v511 = vsub.f32 %v381, %v479
      %v512 = vsub.f32 %v382, %v480
      %v513 = vsub.f32 %v383, %v479
      %v514 = vsub.f32 %v384, %v480
      %v515 = vsub.f32 %v385, %v479
      %v516 = vsub.f32 %v386, %v480
      %v517 = vsub.f32 %v387, %v479
      %v518 = vsub.f32 %v388, %v480
      %v519 = vsub.f32 %v389, %v479
      %v520 = vsub.f32 %v390, %v480
      %v521 = vsub.f32 %v391, %v479
      %v522 = vsub.f32 %v392, %v480
      %v523 = vsub.f32 %v393, %v479
      %v524 = vsub.f32 %v394, %v480
      %v525 = vsub.f32 %v395, %v479
      %v526 = vsub.f32 %v396, %v480
      %v527 = vsub.f32 %v397, %v479
      %v528 = vsub.f32 %v398, %v480
      %v529 = vsub.f32 %v399, %v479
      %v530 = vsub.f32 %v400, %v480
      %v531 = vsub.f32 %v401, %v479
      %v532 = vsub.f32 %v402, %v480
      %v533 = vsub.f32 %v403, %v479
      %v534 = vsub.f32 %v404, %v480
      %v535 = vsub.f32 %v405, %v479
      %v536 = vsub.f32 %v406, %v480
      %v537 = vsub.f32 %v407, %v479
      %v538 = vsub.f32 %v408, %v480
      %v539 = vsub.f32 %v409, %v479
      %v540 = vsub.f32 %v410, %v480
      %v541 = vsub.f32 %v411, %v479
      %v542 = vsub.f32 %v412, %v480
      %v543 = vsub.f32 %v413, %v479
      %v544 = vsub.f32 %v414, %v480
      %v545 = vsub.f32 %v415, %v479
      %v546 = vsub.f32 %v416, %v480
      %v547 = vsub.f32 %v417, %v479
      %v548 = vsub.f32 %v418, %v480
      %v549 = vsub.f32 %v419, %v479
      %v550 = vsub.f32 %v420, %v480
      %v551 = vsub.f32 %v421, %v479
      %v552 = vsub.f32 %v422, %v480
      %v553 = vsub.f32 %v423, %v479
      %v554 = vsub.f32 %v424, %v480
      %v555 = vsub.f32 %v425, %v479
      %v556 = vsub.f32 %v426, %v480
      %v557 = vsub.f32 %v427, %v479
      %v558 = vsub.f32 %v428, %v480
      %v559 = vsub.f32 %v429, %v479
      %v560 = vsub.f32 %v430, %v480
      %v561 = vsub.f32 %v431, %v479
      %v562 = vsub.f32 %v432, %v480
      %v563 = vsub.f32 %v433, %v479
      %v564 = vsub.f32 %v434, %v480
      %v565 = vsub.f32 %v435, %v479
      %v566 = vsub.f32 %v436, %v480
      %v567 = vsub.f32 %v437, %v479
      %v568 = vsub.f32 %v438, %v480
      %v569 = vsub.f32 %v439, %v479
      %v570 = vsub.f32 %v440, %v480
      %v571 = vsub.f32 %v441, %v479
      %v572 = vsub.f32 %v442, %v480
      %v573 = vsub.f32 %v443, %v479
      %v574 = vsub.f32 %v444, %v480
      %v575 = vsub.f32 %v445, %v479
      %v576 = vsub.f32 %v446, %v480
      %v577 = vsub.f32 %v447, %v479
      %v578 = vsub.f32 %v448, %v480
      %v579 = vsub.f32 %v449, %v479
      %v580 = vsub.f32 %v450, %v480
      %v581 = vsub.f32 %v451, %v479
      %v582 = vsub.f32 %v452, %v480
      %v583 = vsub.f32 %v453, %v479
      %v584 = vsub.f32 %v454, %v480
      %v585 = vsub.f32 %v455, %v479
      %v586 = vsub.f32 %v456, %v480
      %v587 = vsub.f32 %v457, %v479
      %v588 = vsub.f32 %v458, %v480
      %v589 = vsub.f32 %v459, %v479
      %v590 = vsub.f32 %v460, %v480
      %v591 = vsub.f32 %v461, %v479
      %v592 = vsub.f32 %v462, %v480
      %v593 = vsub.f32 %v463, %v479
      %v594 = vsub.f32 %v464, %v480
      %v595 = vsub.f32 %v465, %v479
      %v596 = vsub.f32 %v466, %v480
      %v597 = vsub.f32 %v467, %v479
      %v598 = vsub.f32 %v468, %v480
      %v599 = vsub.f32 %v469, %v479
      %v600 = vsub.f32 %v470, %v480
      %v601 = vsub.f32 %v471, %v479
      %v602 = vsub.f32 %v472, %v480
      %v603 = vsub.f32 %v473, %v479
      %v604 = vsub.f32 %v474, %v480
      %v605 = vsub.f32 %v475, %v479
      %v606 = vsub.f32 %v476, %v480
      %v607 = vsub.f32 %v477, %v479
      %v608 = vsub.f32 %v478, %v480
      %v609 = vperm.slane %v285, 1
      %v610 = vperm.slane %v286, 1
      %v611 = vmul.f32 %v481, %v609
      %v612 = vmul.f32 %v482, %v610
      %v613 = vmul.f32 %v483, %v609
      %v614 = vmul.f32 %v484, %v610
      %v615 = vmul.f32 %v485, %v609
      %v616 = vmul.f32 %v486, %v610
      %v617 = vmul.f32 %v487, %v609
      %v618 = vmul.f32 %v488, %v610
      %v619 = vmul.f32 %v489, %v609
      %v620 = vmul.f32 %v490, %v610
      %v621 = vmul.f32 %v491, %v609
      %v622 = vmul.f32 %v492, %v610
      %v623 = vmul.f32 %v493, %v609
      %v624 = vmul.f32 %v494, %v610
      %v625 = vmul.f32 %v495, %v609
      %v626 = vmul.f32 %v496, %v610
      %v627 = vmul.f32 %v497, %v609
      %v628 = vmul.f32 %v498, %v610
      %v629 = vmul.f32 %v499, %v609
      %v630 = vmul.f32 %v500, %v610
      %v631 = vmul.f32 %v501, %v609
      %v632 = vmul.f32 %v502, %v610
      %v633 = vmul.f32 %v503, %v609
      %v634 = vmul.f32 %v504, %v610
      %v635 = vmul.f32 %v505, %v609
      %v636 = vmul.f32 %v506, %v610
      %v637 = vmul.f32 %v507, %v609
      %v638 = vmul.f32 %v508, %v610
      %v639 = vmul.f32 %v509, %v609
      %v640 = vmul.f32 %v510, %v610
      %v641 = vmul.f32 %v511, %v609
      %v642 = vmul.f32 %v512, %v610
      %v643 = vmul.f32 %v513, %v609
      %v644 = vmul.f32 %v514, %v610
      %v645 = vmul.f32 %v515, %v609
      %v646 = vmul.f32 %v516, %v610
      %v647 = vmul.f32 %v517, %v609
      %v648 = vmul.f32 %v518, %v610
      %v649 = vmul.f32 %v519, %v609
      %v650 = vmul.f32 %v520, %v610
      %v651 = vmul.f32 %v521, %v609
      %v652 = vmul.f32 %v522, %v610
      %v653 = vmul.f32 %v523, %v609
      %v654 = vmul.f32 %v524, %v610
      %v655 = vmul.f32 %v525, %v609
      %v656 = vmul.f32 %v526, %v610
      %v657 = vmul.f32 %v527, %v609
      %v658 = vmul.f32 %v528, %v610
      %v659 = vmul.f32 %v529, %v609
      %v660 = vmul.f32 %v530, %v610
      %v661 = vmul.f32 %v531, %v609
      %v662 = vmul.f32 %v532, %v610
      %v663 = vmul.f32 %v533, %v609
      %v664 = vmul.f32 %v534, %v610
      %v665 = vmul.f32 %v535, %v609
      %v666 = vmul.f32 %v536, %v610
      %v667 = vmul.f32 %v537, %v609
      %v668 = vmul.f32 %v538, %v610
      %v669 = vmul.f32 %v539, %v609
      %v670 = vmul.f32 %v540, %v610
      %v671 = vmul.f32 %v541, %v609
      %v672 = vmul.f32 %v542, %v610
      %v673 = vmul.f32 %v543, %v609
      %v674 = vmul.f32 %v544, %v610
      %v675 = vmul.f32 %v545, %v609
      %v676 = vmul.f32 %v546, %v610
      %v677 = vmul.f32 %v547, %v609
      %v678 = vmul.f32 %v548, %v610
      %v679 = vmul.f32 %v549, %v609
      %v680 = vmul.f32 %v550, %v610
      %v681 = vmul.f32 %v551, %v609
      %v682 = vmul.f32 %v552, %v610
      %v683 = vmul.f32 %v553, %v609
      %v684 = vmul.f32 %v554, %v610
      %v685 = vmul.f32 %v555, %v609
      %v686 = vmul.f32 %v556, %v610
      %v687 = vmul.f32 %v557, %v609
      %v688 = vmul.f32 %v558, %v610
      %v689 = vmul.f32 %v559, %v609
      %v690 = vmul.f32 %v560, %v610
      %v691 = vmul.f32 %v561, %v609
      %v692 = vmul.f32 %v562, %v610
      %v693 = vmul.f32 %v563, %v609
      %v694 = vmul.f32 %v564, %v610
      %v695 = vmul.f32 %v565, %v609
      %v696 = vmul.f32 %v566, %v610
      %v697 = vmul.f32 %v567, %v609
      %v698 = vmul.f32 %v568, %v610
      %v699 = vmul.f32 %v569, %v609
      %v700 = vmul.f32 %v570, %v610
      %v701 = vmul.f32 %v571, %v609
      %v702 = vmul.f32 %v572, %v610
      %v703 = vmul.f32 %v573, %v609
      %v704 = vmul.f32 %v574, %v610
      %v705 = vmul.f32 %v575, %v609
      %v706 = vmul.f32 %v576, %v610
      %v707 = vmul.f32 %v577, %v609
      %v708 = vmul.f32 %v578, %v610
      %v709 = vmul.f32 %v579, %v609
      %v710 = vmul.f32 %v580, %v610
      %v711 = vmul.f32 %v581, %v609
      %v712 = vmul.f32 %v582, %v610
      %v713 = vmul.f32 %v583, %v609
      %v714 = vmul.f32 %v584, %v610
      %v715 = vmul.f32 %v585, %v609
      %v716 = vmul.f32 %v586, %v610
      %v717 = vmul.f32 %v587, %v609
      %v718 = vmul.f32 %v588, %v610
      %v719 = vmul.f32 %v589, %v609
      %v720 = vmul.f32 %v590, %v610
      %v721 = vmul.f32 %v591, %v609
      %v722 = vmul.f32 %v592, %v610
      %v723 = vmul.f32 %v593, %v609
      %v724 = vmul.f32 %v594, %v610
      %v725 = vmul.f32 %v595, %v609
      %v726 = vmul.f32 %v596, %v610
      %v727 = vmul.f32 %v597, %v609
      %v728 = vmul.f32 %v598, %v610
      %v729 = vmul.f32 %v599, %v609
      %v730 = vmul.f32 %v600, %v610
      %v731 = vmul.f32 %v601, %v609
      %v732 = vmul.f32 %v602, %v610
      %v733 = vmul.f32 %v603, %v609
      %v734 = vmul.f32 %v604, %v610
      %v735 = vmul.f32 %v605, %v609
      %v736 = vmul.f32 %v606, %v610
      %v737 = vmul.f32 %v607, %v609
      %v738 = vmul.f32 %v608, %v610
      %v739 = vperm.slane %v285, 2
      %v740 = vperm.slane %v286, 2
      %v741 = vmul.f32 %v611, %v739
      %v742 = vmul.f32 %v612, %v740
      %v743 = vmul.f32 %v613, %v739
      %v744 = vmul.f32 %v614, %v740
      %v745 = vmul.f32 %v615, %v739
      %v746 = vmul.f32 %v616, %v740
      %v747 = vmul.f32 %v617, %v739
      %v748 = vmul.f32 %v618, %v740
      %v749 = vmul.f32 %v619, %v739
      %v750 = vmul.f32 %v620, %v740
      %v751 = vmul.f32 %v621, %v739
      %v752 = vmul.f32 %v622, %v740
      %v753 = vmul.f32 %v623, %v739
      %v754 = vmul.f32 %v624, %v740
      %v755 = vmul.f32 %v625, %v739
      %v756 = vmul.f32 %v626, %v740
      %v757 = vmul.f32 %v627, %v739
      %v758 = vmul.f32 %v628, %v740
      %v759 = vmul.f32 %v629, %v739
      %v760 = vmul.f32 %v630, %v740
      %v761 = vmul.f32 %v631, %v739
      %v762 = vmul.f32 %v632, %v740
      %v763 = vmul.f32 %v633, %v739
      %v764 = vmul.f32 %v634, %v740
      %v765 = vmul.f32 %v635, %v739
      %v766 = vmul.f32 %v636, %v740
      %v767 = vmul.f32 %v637, %v739
      %v768 = vmul.f32 %v638, %v740
      %v769 = vmul.f32 %v639, %v739
      %v770 = vmul.f32 %v640, %v740
      %v771 = vmul.f32 %v641, %v739
      %v772 = vmul.f32 %v642, %v740
      %v773 = vmul.f32 %v643, %v739
      %v774 = vmul.f32 %v644, %v740
      %v775 = vmul.f32 %v645, %v739
      %v776 = vmul.f32 %v646, %v740
      %v777 = vmul.f32 %v647, %v739
      %v778 = vmul.f32 %v648, %v740
      %v779 = vmul.f32 %v649, %v739
      %v780 = vmul.f32 %v650, %v740
      %v781 = vmul.f32 %v651, %v739
      %v782 = vmul.f32 %v652, %v740
      %v783 = vmul.f32 %v653, %v739
      %v784 = vmul.f32 %v654, %v740
      %v785 = vmul.f32 %v655, %v739
      %v786 = vmul.f32 %v656, %v740
      %v787 = vmul.f32 %v657, %v739
      %v788 = vmul.f32 %v658, %v740
      %v789 = vmul.f32 %v659, %v739
      %v790 = vmul.f32 %v660, %v740
      %v791 = vmul.f32 %v661, %v739
      %v792 = vmul.f32 %v662, %v740
      %v793 = vmul.f32 %v663, %v739
      %v794 = vmul.f32 %v664, %v740
      %v795 = vmul.f32 %v665, %v739
      %v796 = vmul.f32 %v666, %v740
      %v797 = vmul.f32 %v667, %v739
      %v798 = vmul.f32 %v668, %v740
      %v799 = vmul.f32 %v669, %v739
      %v800 = vmul.f32 %v670, %v740
      %v801 = vmul.f32 %v671, %v739
      %v802 = vmul.f32 %v672, %v740
      %v803 = vmul.f32 %v673, %v739
      %v804 = vmul.f32 %v674, %v740
      %v805 = vmul.f32 %v675, %v739
      %v806 = vmul.f32 %v676, %v740
      %v807 = vmul.f32 %v677, %v739
      %v808 = vmul.f32 %v678, %v740
      %v809 = vmul.f32 %v679, %v739
      %v810 = vmul.f32 %v680, %v740
      %v811 = vmul.f32 %v681, %v739
      %v812 = vmul.f32 %v682, %v740
      %v813 = vmul.f32 %v683, %v739
      %v814 = vmul.f32 %v684, %v740
      %v815 = vmul.f32 %v685, %v739
      %v816 = vmul.f32 %v686, %v740
      %v817 = vmul.f32 %v687, %v739
      %v818 = vmul.f32 %v688, %v740
      %v819 = vmul.f32 %v689, %v739
      %v820 = vmul.f32 %v690, %v740
      %v821 = vmul.f32 %v691, %v739
      %v822 = vmul.f32 %v692, %v740
      %v823 = vmul.f32 %v693, %v739
      %v824 = vmul.f32 %v694, %v740
      %v825 = vmul.f32 %v695, %v739
      %v826 = vmul.f32 %v696, %v740
      %v827 = vmul.f32 %v697, %v739
      %v828 = vmul.f32 %v698, %v740
      %v829 = vmul.f32 %v699, %v739
      %v830 = vmul.f32 %v700, %v740
      %v831 = vmul.f32 %v701, %v739
      %v832 = vmul.f32 %v702, %v740
      %v833 = vmul.f32 %v703, %v739
      %v834 = vmul.f32 %v704, %v740
      %v835 = vmul.f32 %v705, %v739
      %v836 = vmul.f32 %v706, %v740
      %v837 = vmul.f32 %v707, %v739
      %v838 = vmul.f32 %v708, %v740
      %v839 = vmul.f32 %v709, %v739
      %v840 = vmul.f32 %v710, %v740
      %v841 = vmul.f32 %v711, %v739
      %v842 = vmul.f32 %v712, %v740
      %v843 = vmul.f32 %v713, %v739
      %v844 = vmul.f32 %v714, %v740
      %v845 = vmul.f32 %v715, %v739
      %v846 = vmul.f32 %v716, %v740
      %v847 = vmul.f32 %v717, %v739
      %v848 = vmul.f32 %v718, %v740
      %v849 = vmul.f32 %v719, %v739
      %v850 = vmul.f32 %v720, %v740
      %v851 = vmul.f32 %v721, %v739
      %v852 = vmul.f32 %v722, %v740
      %v853 = vmul.f32 %v723, %v739
      %v854 = vmul.f32 %v724, %v740
      %v855 = vmul.f32 %v725, %v739
      %v856 = vmul.f32 %v726, %v740
      %v857 = vmul.f32 %v727, %v739
      %v858 = vmul.f32 %v728, %v740
      %v859 = vmul.f32 %v729, %v739
      %v860 = vmul.f32 %v730, %v740
      %v861 = vmul.f32 %v731, %v739
      %v862 = vmul.f32 %v732, %v740
      %v863 = vmul.f32 %v733, %v739
      %v864 = vmul.f32 %v734, %v740
      %v865 = vmul.f32 %v735, %v739
      %v866 = vmul.f32 %v736, %v740
      %v867 = vmul.f32 %v737, %v739
      %v868 = vmul.f32 %v738, %v740
      %v869 = vperm.slane %v285, 3
      %v870 = vperm.slane %v286, 3
      %v871 = vadd.f32 %v741, %v869
      %v872 = vadd.f32 %v742, %v870
      %v873 = vadd.f32 %v743, %v869
      %v874 = vadd.f32 %v744, %v870
      %v875 = vadd.f32 %v745, %v869
      %v876 = vadd.f32 %v746, %v870
      %v877 = vadd.f32 %v747, %v869
      %v878 = vadd.f32 %v748, %v870
      %v879 = vadd.f32 %v749, %v869
      %v880 = vadd.f32 %v750, %v870
      %v881 = vadd.f32 %v751, %v869
      %v882 = vadd.f32 %v752, %v870
      %v883 = vadd.f32 %v753, %v869
      %v884 = vadd.f32 %v754, %v870
      %v885 = vadd.f32 %v755, %v869
      %v886 = vadd.f32 %v756, %v870
      %v887 = vadd.f32 %v757, %v869
      %v888 = vadd.f32 %v758, %v870
      %v889 = vadd.f32 %v759, %v869
      %v890 = vadd.f32 %v760, %v870
      %v891 = vadd.f32 %v761, %v869
      %v892 = vadd.f32 %v762, %v870
      %v893 = vadd.f32 %v763, %v869
      %v894 = vadd.f32 %v764, %v870
      %v895 = vadd.f32 %v765, %v869
      %v896 = vadd.f32 %v766, %v870
      %v897 = vadd.f32 %v767, %v869
      %v898 = vadd.f32 %v768, %v870
      %v899 = vadd.f32 %v769, %v869
      %v900 = vadd.f32 %v770, %v870
      %v901 = vadd.f32 %v771, %v869
      %v902 = vadd.f32 %v772, %v870
      %v903 = vadd.f32 %v773, %v869
      %v904 = vadd.f32 %v774, %v870
      %v905 = vadd.f32 %v775, %v869
      %v906 = vadd.f32 %v776, %v870
      %v907 = vadd.f32 %v777, %v869
      %v908 = vadd.f32 %v778, %v870
      %v909 = vadd.f32 %v779, %v869
      %v910 = vadd.f32 %v780, %v870
      %v911 = vadd.f32 %v781, %v869
      %v912 = vadd.f32 %v782, %v870
      %v913 = vadd.f32 %v783, %v869
      %v914 = vadd.f32 %v784, %v870
      %v915 = vadd.f32 %v785, %v869
      %v916 = vadd.f32 %v786, %v870
      %v917 = vadd.f32 %v787, %v869
      %v918 = vadd.f32 %v788, %v870
      %v919 = vadd.f32 %v789, %v869
      %v920 = vadd.f32 %v790, %v870
      %v921 = vadd.f32 %v791, %v869
      %v922 = vadd.f32 %v792, %v870
      %v923 = vadd.f32 %v793, %v869
      %v924 = vadd.f32 %v794, %v870
      %v925 = vadd.f32 %v795, %v869
      %v926 = vadd.f32 %v796, %v870
      %v927 = vadd.f32 %v797, %v869
      %v928 = vadd.f32 %v798, %v870
      %v929 = vadd.f32 %v799, %v869
      %v930 = vadd.f32 %v800, %v870
      %v931 = vadd.f32 %v801, %v869
      %v932 = vadd.f32 %v802, %v870
      %v933 = vadd.f32 %v803, %v869
      %v934 = vadd.f32 %v804, %v870
      %v935 = vadd.f32 %v805, %v869
      %v936 = vadd.f32 %v806, %v870
      %v937 = vadd.f32 %v807, %v869
      %v938 = vadd.f32 %v808, %v870
      %v939 = vadd.f32 %v809, %v869
      %v940 = vadd.f32 %v810, %v870
      %v941 = vadd.f32 %v811, %v869
      %v942 = vadd.f32 %v812, %v870
      %v943 = vadd.f32 %v813, %v869
      %v944 = vadd.f32 %v814, %v870
      %v945 = vadd.f32 %v815, %v869
      %v946 = vadd.f32 %v816, %v870
      %v947 = vadd.f32 %v817, %v869
      %v948 = vadd.f32 %v818, %v870
      %v949 = vadd.f32 %v819, %v869
      %v950 = vadd.f32 %v820, %v870
      %v951 = vadd.f32 %v821, %v869
      %v952 = vadd.f32 %v822, %v870
      %v953 = vadd.f32 %v823, %v869
      %v954 = vadd.f32 %v824, %v870
      %v955 = vadd.f32 %v825, %v869
      %v956 = vadd.f32 %v826, %v870
      %v957 = vadd.f32 %v827, %v869
      %v958 = vadd.f32 %v828, %v870
      %v959 = vadd.f32 %v829, %v869
      %v960 = vadd.f32 %v830, %v870
      %v961 = vadd.f32 %v831, %v869
      %v962 = vadd.f32 %v832, %v870
      %v963 = vadd.f32 %v833, %v869
      %v964 = vadd.f32 %v834, %v870
      %v965 = vadd.f32 %v835, %v869
      %v966 = vadd.f32 %v836, %v870
      %v967 = vadd.f32 %v837, %v869
      %v968 = vadd.f32 %v838, %v870
      %v969 = vadd.f32 %v839, %v869
      %v970 = vadd.f32 %v840, %v870
      %v971 = vadd.f32 %v841, %v869
      %v972 = vadd.f32 %v842, %v870
      %v973 = vadd.f32 %v843, %v869
      %v974 = vadd.f32 %v844, %v870
      %v975 = vadd.f32 %v845, %v869
      %v976 = vadd.f32 %v846, %v870
      %v977 = vadd.f32 %v847, %v869
      %v978 = vadd.f32 %v848, %v870
      %v979 = vadd.f32 %v849, %v869
      %v980 = vadd.f32 %v850, %v870
      %v981 = vadd.f32 %v851, %v869
      %v982 = vadd.f32 %v852, %v870
      %v983 = vadd.f32 %v853, %v869
      %v984 = vadd.f32 %v854, %v870
      %v985 = vadd.f32 %v855, %v869
      %v986 = vadd.f32 %v856, %v870
      %v987 = vadd.f32 %v857, %v869
      %v988 = vadd.f32 %v858, %v870
      %v989 = vadd.f32 %v859, %v869
      %v990 = vadd.f32 %v860, %v870
      %v991 = vadd.f32 %v861, %v869
      %v992 = vadd.f32 %v862, %v870
      %v993 = vadd.f32 %v863, %v869
      %v994 = vadd.f32 %v864, %v870
      %v995 = vadd.f32 %v865, %v869
      %v996 = vadd.f32 %v866, %v870
      %v997 = vadd.f32 %v867, %v869
      %v998 = vadd.f32 %v868, %v870
      %v999 = vmax.f32 %v871, 0.0
      %v1000 = vmax.f32 %v872, 0.0
      %v1001 = vmax.f32 %v873, 0.0
      %v1002 = vmax.f32 %v874, 0.0
      %v1003 = vmax.f32 %v875, 0.0
      %v1004 = vmax.f32 %v876, 0.0
      %v1005 = vmax.f32 %v877, 0.0
      %v1006 = vmax.f32 %v878, 0.0
      %v1007 = vmax.f32 %v879, 0.0
      %v1008 = vmax.f32 %v880, 0.0
      %v1009 = vmax.f32 %v881, 0.0
      %v1010 = vmax.f32 %v882, 0.0
      %v1011 = vmax.f32 %v883, 0.0
      %v1012 = vmax.f32 %v884, 0.0
      %v1013 = vmax.f32 %v885, 0.0
      %v1014 = vmax.f32 %v886, 0.0
      %v1015 = vmax.f32 %v887, 0.0
      %v1016 = vmax.f32 %v888, 0.0
      %v1017 = vmax.f32 %v889, 0.0
      %v1018 = vmax.f32 %v890, 0.0
      %v1019 = vmax.f32 %v891, 0.0
      %v1020 = vmax.f32 %v892, 0.0
      %v1021 = vmax.f32 %v893, 0.0
      %v1022 = vmax.f32 %v894, 0.0
      %v1023 = vmax.f32 %v895, 0.0
      %v1024 = vmax.f32 %v896, 0.0
      %v1025 = vmax.f32 %v897, 0.0
      %v1026 = vmax.f32 %v898, 0.0
      %v1027 = vmax.f32 %v899, 0.0
      %v1028 = vmax.f32 %v900, 0.0
      %v1029 = vmax.f32 %v901, 0.0
      %v1030 = vmax.f32 %v902, 0.0
      %v1031 = vmax.f32 %v903, 0.0
      %v1032 = vmax.f32 %v904, 0.0
      %v1033 = vmax.f32 %v905, 0.0
      %v1034 = vmax.f32 %v906, 0.0
      %v1035 = vmax.f32 %v907, 0.0
      %v1036 = vmax.f32 %v908, 0.0
      %v1037 = vmax.f32 %v909, 0.0
      %v1038 = vmax.f32 %v910, 0.0
      %v1039 = vmax.f32 %v911, 0.0
      %v1040 = vmax.f32 %v912, 0.0
      %v1041 = vmax.f32 %v913, 0.0
      %v1042 = vmax.f32 %v914, 0.0
      %v1043 = vmax.f32 %v915, 0.0
      %v1044 = vmax.f32 %v916, 0.0
      %v1045 = vmax.f32 %v917, 0.0
      %v1046 = vmax.f32 %v918, 0.0
      %v1047 = vmax.f32 %v919, 0.0
      %v1048 = vmax.f32 %v920, 0.0
      %v1049 = vmax.f32 %v921, 0.0
      %v1050 = vmax.f32 %v922, 0.0
      %v1051 = vmax.f32 %v923, 0.0
      %v1052 = vmax.f32 %v924, 0.0
      %v1053 = vmax.f32 %v925, 0.0
      %v1054 = vmax.f32 %v926, 0.0
      %v1055 = vmax.f32 %v927, 0.0
      %v1056 = vmax.f32 %v928, 0.0
      %v1057 = vmax.f32 %v929, 0.0
      %v1058 = vmax.f32 %v930, 0.0
      %v1059 = vmax.f32 %v931, 0.0
      %v1060 = vmax.f32 %v932, 0.0
      %v1061 = vmax.f32 %v933, 0.0
      %v1062 = vmax.f32 %v934, 0.0
      %v1063 = vmax.f32 %v935, 0.0
      %v1064 = vmax.f32 %v936, 0.0
      %v1065 = vmax.f32 %v937, 0.0
      %v1066 = vmax.f32 %v938, 0.0
      %v1067 = vmax.f32 %v939, 0.0
      %v1068 = vmax.f32 %v940, 0.0
      %v1069 = vmax.f32 %v941, 0.0
      %v1070 = vmax.f32 %v942, 0.0
      %v1071 = vmax.f32 %v943, 0.0
      %v1072 = vmax.f32 %v944, 0.0
      %v1073 = vmax.f32 %v945, 0.0
      %v1074 = vmax.f32 %v946, 0.0
      %v1075 = vmax.f32 %v947, 0.0
      %v1076 = vmax.f32 %v948, 0.0
      %v1077 = vmax.f32 %v949, 0.0
      %v1078 = vmax.f32 %v950, 0.0
      %v1079 = vmax.f32 %v951, 0.0
      %v1080 = vmax.f32 %v952, 0.0
      %v1081 = vmax.f32 %v953, 0.0
      %v1082 = vmax.f32 %v954, 0.0
      %v1083 = vmax.f32 %v955, 0.0
      %v1084 = vmax.f32 %v956, 0.0
      %v1085 = vmax.f32 %v957, 0.0
      %v1086 = vmax.f32 %v958, 0.0
      %v1087 = vmax.f32 %v959, 0.0
      %v1088 = vmax.f32 %v960, 0.0
      %v1089 = vmax.f32 %v961, 0.0
      %v1090 = vmax.f32 %v962, 0.0
      %v1091 = vmax.f32 %v963, 0.0
      %v1092 = vmax.f32 %v964, 0.0
      %v1093 = vmax.f32 %v965, 0.0
      %v1094 = vmax.f32 %v966, 0.0
      %v1095 = vmax.f32 %v967, 0.0
      %v1096 = vmax.f32 %v968, 0.0
      %v1097 = vmax.f32 %v969, 0.0
      %v1098 = vmax.f32 %v970, 0.0
      %v1099 = vmax.f32 %v971, 0.0
      %v1100 = vmax.f32 %v972, 0.0
      %v1101 = vmax.f32 %v973, 0.0
      %v1102 = vmax.f32 %v974, 0.0
      %v1103 = vmax.f32 %v975, 0.0
      %v1104 = vmax.f32 %v976, 0.0
      %v1105 = vmax.f32 %v977, 0.0
      %v1106 = vmax.f32 %v978, 0.0
      %v1107 = vmax.f32 %v979, 0.0
      %v1108 = vmax.f32 %v980, 0.0
      %v1109 = vmax.f32 %v981, 0.0
      %v1110 = vmax.f32 %v982, 0.0
      %v1111 = vmax.f32 %v983, 0.0
      %v1112 = vmax.f32 %v984, 0.0
      %v1113 = vmax.f32 %v985, 0.0
      %v1114 = vmax.f32 %v986, 0.0
      %v1115 = vmax.f32 %v987, 0.0
      %v1116 = vmax.f32 %v988, 0.0
      %v1117 = vmax.f32 %v989, 0.0
      %v1118 = vmax.f32 %v990, 0.0
      %v1119 = vmax.f32 %v991, 0.0
      %v1120 = vmax.f32 %v992, 0.0
      %v1121 = vmax.f32 %v993, 0.0
      %v1122 = vmax.f32 %v994, 0.0
      %v1123 = vmax.f32 %v995, 0.0
      %v1124 = vmax.f32 %v996, 0.0
      %v1125 = vmax.f32 %v997, 0.0
      %v1126 = vmax.f32 %v998, 0.0
      %v1127 = vpack.c.bf16 %v1001, %v999
      %v1128 = vpack.c.bf16 %v1002, %v1000
      %v1129 = vpack.c.bf16 %v1005, %v1003
      %v1130 = vpack.c.bf16 %v1006, %v1004
      %v1131 = vpack.c.bf16 %v1009, %v1007
      %v1132 = vpack.c.bf16 %v1010, %v1008
      %v1133 = vpack.c.bf16 %v1013, %v1011
      %v1134 = vpack.c.bf16 %v1014, %v1012
      %v1135 = vpack.c.bf16 %v1017, %v1015
      %v1136 = vpack.c.bf16 %v1018, %v1016
      %v1137 = vpack.c.bf16 %v1021, %v1019
      %v1138 = vpack.c.bf16 %v1022, %v1020
      %v1139 = vpack.c.bf16 %v1025, %v1023
      %v1140 = vpack.c.bf16 %v1026, %v1024
      %v1141 = vpack.c.bf16 %v1029, %v1027
      %v1142 = vpack.c.bf16 %v1030, %v1028
      %v1143 = vpack.c.bf16 %v1033, %v1031
      %v1144 = vpack.c.bf16 %v1034, %v1032
      %v1145 = vpack.c.bf16 %v1037, %v1035
      %v1146 = vpack.c.bf16 %v1038, %v1036
      %v1147 = vpack.c.bf16 %v1041, %v1039
      %v1148 = vpack.c.bf16 %v1042, %v1040
      %v1149 = vpack.c.bf16 %v1045, %v1043
      %v1150 = vpack.c.bf16 %v1046, %v1044
      %v1151 = vpack.c.bf16 %v1049, %v1047
      %v1152 = vpack.c.bf16 %v1050, %v1048
      %v1153 = vpack.c.bf16 %v1053, %v1051
      %v1154 = vpack.c.bf16 %v1054, %v1052
      %v1155 = vpack.c.bf16 %v1057, %v1055
      %v1156 = vpack.c.bf16 %v1058, %v1056
      %v1157 = vpack.c.bf16 %v1061, %v1059
      %v1158 = vpack.c.bf16 %v1062, %v1060
      %v1159 = vpack.c.bf16 %v1065, %v1063
      %v1160 = vpack.c.bf16 %v1066, %v1064
      %v1161 = vpack.c.bf16 %v1069, %v1067
      %v1162 = vpack.c.bf16 %v1070, %v1068
      %v1163 = vpack.c.bf16 %v1073, %v1071
      %v1164 = vpack.c.bf16 %v1074, %v1072
      %v1165 = vpack.c.bf16 %v1077, %v1075
      %v1166 = vpack.c.bf16 %v1078, %v1076
      %v1167 = vpack.c.bf16 %v1081, %v1079
      %v1168 = vpack.c.bf16 %v1082, %v1080
      %v1169 = vpack.c.bf16 %v1085, %v1083
      %v1170 = vpack.c.bf16 %v1086, %v1084
      %v1171 = vpack.c.bf16 %v1089, %v1087
      %v1172 = vpack.c.bf16 %v1090, %v1088
      %v1173 = vpack.c.bf16 %v1093, %v1091
      %v1174 = vpack.c.bf16 %v1094, %v1092
      %v1175 = vpack.c.bf16 %v1097, %v1095
      %v1176 = vpack.c.bf16 %v1098, %v1096
      %v1177 = vpack.c.bf16 %v1101, %v1099
      %v1178 = vpack.c.bf16 %v1102, %v1100
      %v1179 = vpack.c.bf16 %v1105, %v1103
      %v1180 = vpack.c.bf16 %v1106, %v1104
      %v1181 = vpack.c.bf16 %v1109, %v1107
      %v1182 = vpack.c.bf16 %v1110, %v1108
      %v1183 = vpack.c.bf16 %v1113, %v1111
      %v1184 = vpack.c.bf16 %v1114, %v1112
      %v1185 = vpack.c.bf16 %v1117, %v1115
      %v1186 = vpack.c.bf16 %v1118, %v1116
      %v1187 = vpack.c.bf16 %v1121, %v1119
      %v1188 = vpack.c.bf16 %v1122, %v1120
      %v1189 = vpack.c.bf16 %v1125, %v1123
      %v1190 = vpack.c.bf16 %v1126, %v1124
      %v1191 = vld [vmem:[%s2] sm:$0xff]
      %v1192 = vld [vmem:[%s2 + $0x8] sm:$0xff]
      %v1193 = vld [vmem:[%s2 + $0x10] sm:$0xff]
      %v1194 = vld [vmem:[%s2 + $0x18] sm:$0xff]
      %v1195 = vld [vmem:[%s2 + $0x20] sm:$0xff]
      %v1196 = vld [vmem:[%s2 + $0x28] sm:$0xff]
      %v1197 = vld [vmem:[%s2 + $0x30] sm:$0xff]
      %v1198 = vld [vmem:[%s2 + $0x38] sm:$0xff]
      %v1199 = vld [vmem:[%s2 + $0x40] sm:$0xff]
      %v1200 = vld [vmem:[%s2 + $0x48] sm:$0xff]
      %v1201 = vld [vmem:[%s2 + $0x50] sm:$0xff]
      %v1202 = vld [vmem:[%s2 + $0x58] sm:$0xff]
      %v1203 = vld [vmem:[%s2 + $0x60] sm:$0xff]
      %v1204 = vld [vmem:[%s2 + $0x68] sm:$0xff]
      %v1205 = vld [vmem:[%s2 + $0x70] sm:$0xff]
      %v1206 = vld [vmem:[%s2 + $0x78] sm:$0xff]
      %v1207 = vld [vmem:[%s2 + $0x80] sm:$0xff]
      %v1208 = vld [vmem:[%s2 + $0x88] sm:$0xff]
      %v1209 = vld [vmem:[%s2 + $0x90] sm:$0xff]
      %v1210 = vld [vmem:[%s2 + $0x98] sm:$0xff]
      %v1211 = vld [vmem:[%s2 + $0xa0] sm:$0xff]
      %v1212 = vld [vmem:[%s2 + $0xa8] sm:$0xff]
      %v1213 = vld [vmem:[%s2 + $0xb0] sm:$0xff]
      %v1214 = vld [vmem:[%s2 + $0xb8] sm:$0xff]
      %v1215 = vld [vmem:[%s2 + $0xc0] sm:$0xff]
      %v1216 = vld [vmem:[%s2 + $0xc8] sm:$0xff]
      %v1217 = vld [vmem:[%s2 + $0xd0] sm:$0xff]
      %v1218 = vld [vmem:[%s2 + $0xd8] sm:$0xff]
      %v1219 = vld [vmem:[%s2 + $0xe0] sm:$0xff]
      %v1220 = vld [vmem:[%s2 + $0xe8] sm:$0xff]
      %v1221 = vld [vmem:[%s2 + $0xf0] sm:$0xff]
      %v1222 = vld [vmem:[%s2 + $0xf8] sm:$0xff]
      %v1255 = vunpack.c.l.b16 %v1191
      %v1256 = vunpack.c.h.b16 %v1191
      %v1257 = vunpack.c.l.b16 %v1192
      %v1258 = vunpack.c.h.b16 %v1192
      %v1259 = vunpack.c.l.b16 %v1193
      %v1260 = vunpack.c.h.b16 %v1193
      %v1261 = vunpack.c.l.b16 %v1194
      %v1262 = vunpack.c.h.b16 %v1194
      %v1263 = vunpack.c.l.b16 %v1195
      %v1264 = vunpack.c.h.b16 %v1195
      %v1265 = vunpack.c.l.b16 %v1196
      %v1266 = vunpack.c.h.b16 %v1196
      %v1267 = vunpack.c.l.b16 %v1197
      %v1268 = vunpack.c.h.b16 %v1197
      %v1269 = vunpack.c.l.b16 %v1198
      %v1270 = vunpack.c.h.b16 %v1198
      %v1271 = vunpack.c.l.b16 %v1199
      %v1272 = vunpack.c.h.b16 %v1199
      %v1273 = vunpack.c.l.b16 %v1200
      %v1274 = vunpack.c.h.b16 %v1200
      %v1275 = vunpack.c.l.b16 %v1201
      %v1276 = vunpack.c.h.b16 %v1201
      %v1277 = vunpack.c.l.b16 %v1202
      %v1278 = vunpack.c.h.b16 %v1202
      %v1279 = vunpack.c.l.b16 %v1203
      %v1280 = vunpack.c.h.b16 %v1203
      %v1281 = vunpack.c.l.b16 %v1204
      %v1282 = vunpack.c.h.b16 %v1204
      %v1283 = vunpack.c.l.b16 %v1205
      %v1284 = vunpack.c.h.b16 %v1205
      %v1285 = vunpack.c.l.b16 %v1206
      %v1286 = vunpack.c.h.b16 %v1206
      %v1287 = vunpack.c.l.b16 %v1207
      %v1288 = vunpack.c.h.b16 %v1207
      %v1289 = vunpack.c.l.b16 %v1208
      %v1290 = vunpack.c.h.b16 %v1208
      %v1291 = vunpack.c.l.b16 %v1209
      %v1292 = vunpack.c.h.b16 %v1209
      %v1293 = vunpack.c.l.b16 %v1210
      %v1294 = vunpack.c.h.b16 %v1210
      %v1295 = vunpack.c.l.b16 %v1211
      %v1296 = vunpack.c.h.b16 %v1211
      %v1297 = vunpack.c.l.b16 %v1212
      %v1298 = vunpack.c.h.b16 %v1212
      %v1299 = vunpack.c.l.b16 %v1213
      %v1300 = vunpack.c.h.b16 %v1213
      %v1301 = vunpack.c.l.b16 %v1214
      %v1302 = vunpack.c.h.b16 %v1214
      %v1303 = vunpack.c.l.b16 %v1215
      %v1304 = vunpack.c.h.b16 %v1215
      %v1305 = vunpack.c.l.b16 %v1216
      %v1306 = vunpack.c.h.b16 %v1216
      %v1307 = vunpack.c.l.b16 %v1217
      %v1308 = vunpack.c.h.b16 %v1217
      %v1309 = vunpack.c.l.b16 %v1218
      %v1310 = vunpack.c.h.b16 %v1218
      %v1311 = vunpack.c.l.b16 %v1219
      %v1312 = vunpack.c.h.b16 %v1219
      %v1313 = vunpack.c.l.b16 %v1220
      %v1314 = vunpack.c.h.b16 %v1220
      %v1315 = vunpack.c.l.b16 %v1221
      %v1316 = vunpack.c.h.b16 %v1221
      %v1317 = vunpack.c.l.b16 %v1222
      %v1318 = vunpack.c.h.b16 %v1222
      %v1319 = vpack.c.b16 %v1257, %v1255
      %v1320 = vpack.c.b16 %v1258, %v1256
      %v1321 = vpack.c.b16 %v1261, %v1259
      %v1322 = vpack.c.b16 %v1262, %v1260
      %v1323 = vpack.c.b16 %v1265, %v1263
      %v1324 = vpack.c.b16 %v1266, %v1264
      %v1325 = vpack.c.b16 %v1269, %v1267
      %v1326 = vpack.c.b16 %v1270, %v1268
      %v1327 = vpack.c.b16 %v1273, %v1271
      %v1328 = vpack.c.b16 %v1274, %v1272
      %v1329 = vpack.c.b16 %v1277, %v1275
      %v1330 = vpack.c.b16 %v1278, %v1276
      %v1331 = vpack.c.b16 %v1281, %v1279
      %v1332 = vpack.c.b16 %v1282, %v1280
      %v1333 = vpack.c.b16 %v1285, %v1283
      %v1334 = vpack.c.b16 %v1286, %v1284
      %v1335 = vpack.c.b16 %v1289, %v1287
      %v1336 = vpack.c.b16 %v1290, %v1288
      %v1337 = vpack.c.b16 %v1293, %v1291
      %v1338 = vpack.c.b16 %v1294, %v1292
      %v1339 = vpack.c.b16 %v1297, %v1295
      %v1340 = vpack.c.b16 %v1298, %v1296
      %v1341 = vpack.c.b16 %v1301, %v1299
      %v1342 = vpack.c.b16 %v1302, %v1300
      %v1343 = vpack.c.b16 %v1305, %v1303
      %v1344 = vpack.c.b16 %v1306, %v1304
      %v1345 = vpack.c.b16 %v1309, %v1307
      %v1346 = vpack.c.b16 %v1310, %v1308
      %v1347 = vpack.c.b16 %v1313, %v1311
      %v1348 = vpack.c.b16 %v1314, %v1312
      %v1349 = vpack.c.b16 %v1317, %v1315
      %v1350 = vpack.c.b16 %v1318, %v1316
      %1383 = vmatpush.bf16.msra.mxu0 %v1333
      %1384 = vmatpush.bf16.msra.mxu0 %v1331
      %1385 = vmatpush.bf16.msra.mxu0 %v1329
      %1386 = vmatpush.bf16.msra.mxu0 %v1327
      %1387 = vmatpush.bf16.msra.mxu0 %v1325
      %1388 = vmatpush.bf16.msra.mxu0 %v1323
      %1389 = vmatpush.bf16.msra.mxu0 %v1321
      %1390 = vmatpush.bf16.msra.mxu0 %v1319
      %1391 = vmatmul.bf16.gmra.mxu0 %v1127
      %v1392 = vpop.f32.mrf.mxu0
      %v1393 = vadd.f32 0.0, %v1392
      %v1394 = vpop.f32.mrf.mxu0
      %v1395 = vadd.f32 0.0, %v1394
      %1396 = vmatmul.bf16.gmra.mxu0 %v1129
      %v1397 = vpop.f32.mrf.mxu0
      %v1398 = vadd.f32 0.0, %v1397
      %v1399 = vpop.f32.mrf.mxu0
      %v1400 = vadd.f32 0.0, %v1399
      %1401 = vmatmul.bf16.gmra.mxu0 %v1131
      %v1402 = vpop.f32.mrf.mxu0
      %v1403 = vadd.f32 0.0, %v1402
      %v1404 = vpop.f32.mrf.mxu0
      %v1405 = vadd.f32 0.0, %v1404
      %1406 = vmatmul.bf16.gmra.mxu0 %v1133
      %v1407 = vpop.f32.mrf.mxu0
      %v1408 = vadd.f32 0.0, %v1407
      %v1409 = vpop.f32.mrf.mxu0
      %v1410 = vadd.f32 0.0, %v1409
      %1411 = vmatmul.bf16.gmra.mxu0 %v1135
      %v1412 = vpop.f32.mrf.mxu0
      %v1413 = vadd.f32 0.0, %v1412
      %v1414 = vpop.f32.mrf.mxu0
      %v1415 = vadd.f32 0.0, %v1414
      %1416 = vmatmul.bf16.gmra.mxu0 %v1137
      %v1417 = vpop.f32.mrf.mxu0
      %v1418 = vadd.f32 0.0, %v1417
      %v1419 = vpop.f32.mrf.mxu0
      %v1420 = vadd.f32 0.0, %v1419
      %1421 = vmatmul.bf16.gmra.mxu0 %v1139
      %v1422 = vpop.f32.mrf.mxu0
      %v1423 = vadd.f32 0.0, %v1422
      %v1424 = vpop.f32.mrf.mxu0
      %v1425 = vadd.f32 0.0, %v1424
      %1426 = vmatmul.bf16.gmra.mxu0 %v1141
      %v1427 = vpop.f32.mrf.mxu0
      %v1428 = vadd.f32 0.0, %v1427
      %v1429 = vpop.f32.mrf.mxu0
      %v1430 = vadd.f32 0.0, %v1429
      %1431 = vmatmul.bf16.gmra.mxu0 %v1143
      %v1432 = vpop.f32.mrf.mxu0
      %v1433 = vadd.f32 0.0, %v1432
      %v1434 = vpop.f32.mrf.mxu0
      %v1435 = vadd.f32 0.0, %v1434
      %1436 = vmatmul.bf16.gmra.mxu0 %v1145
      %v1437 = vpop.f32.mrf.mxu0
      %v1438 = vadd.f32 0.0, %v1437
      %v1439 = vpop.f32.mrf.mxu0
      %v1440 = vadd.f32 0.0, %v1439
      %1441 = vmatmul.bf16.gmra.mxu0 %v1147
      %v1442 = vpop.f32.mrf.mxu0
      %v1443 = vadd.f32 0.0, %v1442
      %v1444 = vpop.f32.mrf.mxu0
      %v1445 = vadd.f32 0.0, %v1444
      %1446 = vmatmul.bf16.gmra.mxu0 %v1149
      %v1447 = vpop.f32.mrf.mxu0
      %v1448 = vadd.f32 0.0, %v1447
      %v1449 = vpop.f32.mrf.mxu0
      %v1450 = vadd.f32 0.0, %v1449
      %1451 = vmatmul.bf16.gmra.mxu0 %v1151
      %v1452 = vpop.f32.mrf.mxu0
      %v1453 = vadd.f32 0.0, %v1452
      %v1454 = vpop.f32.mrf.mxu0
      %v1455 = vadd.f32 0.0, %v1454
      %1456 = vmatmul.bf16.gmra.mxu0 %v1153
      %v1457 = vpop.f32.mrf.mxu0
      %v1458 = vadd.f32 0.0, %v1457
      %v1459 = vpop.f32.mrf.mxu0
      %v1460 = vadd.f32 0.0, %v1459
      %1461 = vmatmul.bf16.gmra.mxu0 %v1155
      %v1462 = vpop.f32.mrf.mxu0
      %v1463 = vadd.f32 0.0, %v1462
      %v1464 = vpop.f32.mrf.mxu0
      %v1465 = vadd.f32 0.0, %v1464
      %1466 = vmatmul.bf16.gmra.mxu0 %v1157
      %v1467 = vpop.f32.mrf.mxu0
      %v1468 = vadd.f32 0.0, %v1467
      %v1469 = vpop.f32.mrf.mxu0
      %v1470 = vadd.f32 0.0, %v1469
      %1471 = vmatmul.bf16.gmra.mxu0 %v1159
      %v1472 = vpop.f32.mrf.mxu0
      %v1473 = vadd.f32 0.0, %v1472
      %v1474 = vpop.f32.mrf.mxu0
      %v1475 = vadd.f32 0.0, %v1474
      %1476 = vmatmul.bf16.gmra.mxu0 %v1161
      %v1477 = vpop.f32.mrf.mxu0
      %v1478 = vadd.f32 0.0, %v1477
      %v1479 = vpop.f32.mrf.mxu0
      %v1480 = vadd.f32 0.0, %v1479
      %1481 = vmatmul.bf16.gmra.mxu0 %v1163
      %v1482 = vpop.f32.mrf.mxu0
      %v1483 = vadd.f32 0.0, %v1482
      %v1484 = vpop.f32.mrf.mxu0
      %v1485 = vadd.f32 0.0, %v1484
      %1486 = vmatmul.bf16.gmra.mxu0 %v1165
      %v1487 = vpop.f32.mrf.mxu0
      %v1488 = vadd.f32 0.0, %v1487
      %v1489 = vpop.f32.mrf.mxu0
      %v1490 = vadd.f32 0.0, %v1489
      %1491 = vmatmul.bf16.gmra.mxu0 %v1167
      %v1492 = vpop.f32.mrf.mxu0
      %v1493 = vadd.f32 0.0, %v1492
      %v1494 = vpop.f32.mrf.mxu0
      %v1495 = vadd.f32 0.0, %v1494
      %1496 = vmatmul.bf16.gmra.mxu0 %v1169
      %v1497 = vpop.f32.mrf.mxu0
      %v1498 = vadd.f32 0.0, %v1497
      %v1499 = vpop.f32.mrf.mxu0
      %v1500 = vadd.f32 0.0, %v1499
      %1501 = vmatmul.bf16.gmra.mxu0 %v1171
      %v1502 = vpop.f32.mrf.mxu0
      %v1503 = vadd.f32 0.0, %v1502
      %v1504 = vpop.f32.mrf.mxu0
      %v1505 = vadd.f32 0.0, %v1504
      %1506 = vmatmul.bf16.gmra.mxu0 %v1173
      %v1507 = vpop.f32.mrf.mxu0
      %v1508 = vadd.f32 0.0, %v1507
      %v1509 = vpop.f32.mrf.mxu0
      %v1510 = vadd.f32 0.0, %v1509
      %1511 = vmatmul.bf16.gmra.mxu0 %v1175
      %v1512 = vpop.f32.mrf.mxu0
      %v1513 = vadd.f32 0.0, %v1512
      %v1514 = vpop.f32.mrf.mxu0
      %v1515 = vadd.f32 0.0, %v1514
      %1516 = vmatmul.bf16.gmra.mxu0 %v1177
      %v1517 = vpop.f32.mrf.mxu0
      %v1518 = vadd.f32 0.0, %v1517
      %v1519 = vpop.f32.mrf.mxu0
      %v1520 = vadd.f32 0.0, %v1519
      %1521 = vmatmul.bf16.gmra.mxu0 %v1179
      %v1522 = vpop.f32.mrf.mxu0
      %v1523 = vadd.f32 0.0, %v1522
      %v1524 = vpop.f32.mrf.mxu0
      %v1525 = vadd.f32 0.0, %v1524
      %1526 = vmatmul.bf16.gmra.mxu0 %v1181
      %v1527 = vpop.f32.mrf.mxu0
      %v1528 = vadd.f32 0.0, %v1527
      %v1529 = vpop.f32.mrf.mxu0
      %v1530 = vadd.f32 0.0, %v1529
      %1531 = vmatmul.bf16.gmra.mxu0 %v1183
      %v1532 = vpop.f32.mrf.mxu0
      %v1533 = vadd.f32 0.0, %v1532
      %v1534 = vpop.f32.mrf.mxu0
      %v1535 = vadd.f32 0.0, %v1534
      %1536 = vmatmul.bf16.gmra.mxu0 %v1185
      %v1537 = vpop.f32.mrf.mxu0
      %v1538 = vadd.f32 0.0, %v1537
      %v1539 = vpop.f32.mrf.mxu0
      %v1540 = vadd.f32 0.0, %v1539
      %1541 = vmatmul.bf16.gmra.mxu0 %v1187
      %v1542 = vpop.f32.mrf.mxu0
      %v1543 = vadd.f32 0.0, %v1542
      %v1544 = vpop.f32.mrf.mxu0
      %v1545 = vadd.f32 0.0, %v1544
      %1546 = vmatmul.bf16.gmra.mxu0 %v1189
      %v1547 = vpop.f32.mrf.mxu0
      %v1548 = vadd.f32 0.0, %v1547
      %v1549 = vpop.f32.mrf.mxu0
      %v1550 = vadd.f32 0.0, %v1549
      %1551 = vdwg.mxu0
      %1552 = vmatpush.bf16.msra.mxu0 %v1349
      %1553 = vmatpush.bf16.msra.mxu0 %v1347
      %1554 = vmatpush.bf16.msra.mxu0 %v1345
      %1555 = vmatpush.bf16.msra.mxu0 %v1343
      %1556 = vmatpush.bf16.msra.mxu0 %v1341
      %1557 = vmatpush.bf16.msra.mxu0 %v1339
      %1558 = vmatpush.bf16.msra.mxu0 %v1337
      %1559 = vmatpush.bf16.msra.mxu0 %v1335
      %1560 = vmatmul.bf16.gmra.mxu0 %v1128
      %v1561 = vpop.f32.mrf.mxu0
      %v1562 = vadd.f32 %v1393, %v1561
      %v1563 = vpop.f32.mrf.mxu0
      %v1564 = vadd.f32 %v1395, %v1563
      %1565 = vmatmul.bf16.gmra.mxu0 %v1130
      %v1566 = vpop.f32.mrf.mxu0
      %v1567 = vadd.f32 %v1398, %v1566
      %v1568 = vpop.f32.mrf.mxu0
      %v1569 = vadd.f32 %v1400, %v1568
      %1570 = vmatmul.bf16.gmra.mxu0 %v1132
      %v1571 = vpop.f32.mrf.mxu0
      %v1572 = vadd.f32 %v1403, %v1571
      %v1573 = vpop.f32.mrf.mxu0
      %v1574 = vadd.f32 %v1405, %v1573
      %1575 = vmatmul.bf16.gmra.mxu0 %v1134
      %v1576 = vpop.f32.mrf.mxu0
      %v1577 = vadd.f32 %v1408, %v1576
      %v1578 = vpop.f32.mrf.mxu0
      %v1579 = vadd.f32 %v1410, %v1578
      %1580 = vmatmul.bf16.gmra.mxu0 %v1136
      %v1581 = vpop.f32.mrf.mxu0
      %v1582 = vadd.f32 %v1413, %v1581
      %v1583 = vpop.f32.mrf.mxu0
      %v1584 = vadd.f32 %v1415, %v1583
      %1585 = vmatmul.bf16.gmra.mxu0 %v1138
      %v1586 = vpop.f32.mrf.mxu0
      %v1587 = vadd.f32 %v1418, %v1586
      %v1588 = vpop.f32.mrf.mxu0
      %v1589 = vadd.f32 %v1420, %v1588
      %1590 = vmatmul.bf16.gmra.mxu0 %v1140
      %v1591 = vpop.f32.mrf.mxu0
      %v1592 = vadd.f32 %v1423, %v1591
      %v1593 = vpop.f32.mrf.mxu0
      %v1594 = vadd.f32 %v1425, %v1593
      %1595 = vmatmul.bf16.gmra.mxu0 %v1142
      %v1596 = vpop.f32.mrf.mxu0
      %v1597 = vadd.f32 %v1428, %v1596
      %v1598 = vpop.f32.mrf.mxu0
      %v1599 = vadd.f32 %v1430, %v1598
      %1600 = vmatmul.bf16.gmra.mxu0 %v1144
      %v1601 = vpop.f32.mrf.mxu0
      %v1602 = vadd.f32 %v1433, %v1601
      %v1603 = vpop.f32.mrf.mxu0
      %v1604 = vadd.f32 %v1435, %v1603
      %1605 = vmatmul.bf16.gmra.mxu0 %v1146
      %v1606 = vpop.f32.mrf.mxu0
      %v1607 = vadd.f32 %v1438, %v1606
      %v1608 = vpop.f32.mrf.mxu0
      %v1609 = vadd.f32 %v1440, %v1608
      %1610 = vmatmul.bf16.gmra.mxu0 %v1148
      %v1611 = vpop.f32.mrf.mxu0
      %v1612 = vadd.f32 %v1443, %v1611
      %v1613 = vpop.f32.mrf.mxu0
      %v1614 = vadd.f32 %v1445, %v1613
      %1615 = vmatmul.bf16.gmra.mxu0 %v1150
      %v1616 = vpop.f32.mrf.mxu0
      %v1617 = vadd.f32 %v1448, %v1616
      %v1618 = vpop.f32.mrf.mxu0
      %v1619 = vadd.f32 %v1450, %v1618
      %1620 = vmatmul.bf16.gmra.mxu0 %v1152
      %v1621 = vpop.f32.mrf.mxu0
      %v1622 = vadd.f32 %v1453, %v1621
      %v1623 = vpop.f32.mrf.mxu0
      %v1624 = vadd.f32 %v1455, %v1623
      %1625 = vmatmul.bf16.gmra.mxu0 %v1154
      %v1626 = vpop.f32.mrf.mxu0
      %v1627 = vadd.f32 %v1458, %v1626
      %v1628 = vpop.f32.mrf.mxu0
      %v1629 = vadd.f32 %v1460, %v1628
      %1630 = vmatmul.bf16.gmra.mxu0 %v1156
      %v1631 = vpop.f32.mrf.mxu0
      %v1632 = vadd.f32 %v1463, %v1631
      %v1633 = vpop.f32.mrf.mxu0
      %v1634 = vadd.f32 %v1465, %v1633
      %1635 = vmatmul.bf16.gmra.mxu0 %v1158
      %v1636 = vpop.f32.mrf.mxu0
      %v1637 = vadd.f32 %v1468, %v1636
      %v1638 = vpop.f32.mrf.mxu0
      %v1639 = vadd.f32 %v1470, %v1638
      %1640 = vmatmul.bf16.gmra.mxu0 %v1160
      %v1641 = vpop.f32.mrf.mxu0
      %v1642 = vadd.f32 %v1473, %v1641
      %v1643 = vpop.f32.mrf.mxu0
      %v1644 = vadd.f32 %v1475, %v1643
      %1645 = vmatmul.bf16.gmra.mxu0 %v1162
      %v1646 = vpop.f32.mrf.mxu0
      %v1647 = vadd.f32 %v1478, %v1646
      %v1648 = vpop.f32.mrf.mxu0
      %v1649 = vadd.f32 %v1480, %v1648
      %1650 = vmatmul.bf16.gmra.mxu0 %v1164
      %v1651 = vpop.f32.mrf.mxu0
      %v1652 = vadd.f32 %v1483, %v1651
      %v1653 = vpop.f32.mrf.mxu0
      %v1654 = vadd.f32 %v1485, %v1653
      %1655 = vmatmul.bf16.gmra.mxu0 %v1166
      %v1656 = vpop.f32.mrf.mxu0
      %v1657 = vadd.f32 %v1488, %v1656
      %v1658 = vpop.f32.mrf.mxu0
      %v1659 = vadd.f32 %v1490, %v1658
      %1660 = vmatmul.bf16.gmra.mxu0 %v1168
      %v1661 = vpop.f32.mrf.mxu0
      %v1662 = vadd.f32 %v1493, %v1661
      %v1663 = vpop.f32.mrf.mxu0
      %v1664 = vadd.f32 %v1495, %v1663
      %1665 = vmatmul.bf16.gmra.mxu0 %v1170
      %v1666 = vpop.f32.mrf.mxu0
      %v1667 = vadd.f32 %v1498, %v1666
      %v1668 = vpop.f32.mrf.mxu0
      %v1669 = vadd.f32 %v1500, %v1668
      %1670 = vmatmul.bf16.gmra.mxu0 %v1172
      %v1671 = vpop.f32.mrf.mxu0
      %v1672 = vadd.f32 %v1503, %v1671
      %v1673 = vpop.f32.mrf.mxu0
      %v1674 = vadd.f32 %v1505, %v1673
      %1675 = vmatmul.bf16.gmra.mxu0 %v1174
      %v1676 = vpop.f32.mrf.mxu0
      %v1677 = vadd.f32 %v1508, %v1676
      %v1678 = vpop.f32.mrf.mxu0
      %v1679 = vadd.f32 %v1510, %v1678
      %1680 = vmatmul.bf16.gmra.mxu0 %v1176
      %v1681 = vpop.f32.mrf.mxu0
      %v1682 = vadd.f32 %v1513, %v1681
      %v1683 = vpop.f32.mrf.mxu0
      %v1684 = vadd.f32 %v1515, %v1683
      %1685 = vmatmul.bf16.gmra.mxu0 %v1178
      %v1686 = vpop.f32.mrf.mxu0
      %v1687 = vadd.f32 %v1518, %v1686
      %v1688 = vpop.f32.mrf.mxu0
      %v1689 = vadd.f32 %v1520, %v1688
      %1690 = vmatmul.bf16.gmra.mxu0 %v1180
      %v1691 = vpop.f32.mrf.mxu0
      %v1692 = vadd.f32 %v1523, %v1691
      %v1693 = vpop.f32.mrf.mxu0
      %v1694 = vadd.f32 %v1525, %v1693
      %1695 = vmatmul.bf16.gmra.mxu0 %v1182
      %v1696 = vpop.f32.mrf.mxu0
      %v1697 = vadd.f32 %v1528, %v1696
      %v1698 = vpop.f32.mrf.mxu0
      %v1699 = vadd.f32 %v1530, %v1698
      %1700 = vmatmul.bf16.gmra.mxu0 %v1184
      %v1701 = vpop.f32.mrf.mxu0
      %v1702 = vadd.f32 %v1533, %v1701
      %v1703 = vpop.f32.mrf.mxu0
      %v1704 = vadd.f32 %v1535, %v1703
      %1705 = vmatmul.bf16.gmra.mxu0 %v1186
      %v1706 = vpop.f32.mrf.mxu0
      %v1707 = vadd.f32 %v1538, %v1706
      %v1708 = vpop.f32.mrf.mxu0
      %v1709 = vadd.f32 %v1540, %v1708
      %1710 = vmatmul.bf16.gmra.mxu0 %v1188
      %v1711 = vpop.f32.mrf.mxu0
      %v1712 = vadd.f32 %v1543, %v1711
      %v1713 = vpop.f32.mrf.mxu0
      %v1714 = vadd.f32 %v1545, %v1713
      %1715 = vmatmul.bf16.gmra.mxu0 %v1190
      %v1716 = vpop.f32.mrf.mxu0
      %v1717 = vadd.f32 %v1548, %v1716
      %v1718 = vpop.f32.mrf.mxu0
      %v1719 = vadd.f32 %v1550, %v1718
      %1720 = vdwg.mxu0
      %1721 = vmatpush.bf16.msra.mxu0 %v1334
      %1722 = vmatpush.bf16.msra.mxu0 %v1332
      %1723 = vmatpush.bf16.msra.mxu0 %v1330
      %1724 = vmatpush.bf16.msra.mxu0 %v1328
      %1725 = vmatpush.bf16.msra.mxu0 %v1326
      %1726 = vmatpush.bf16.msra.mxu0 %v1324
      %1727 = vmatpush.bf16.msra.mxu0 %v1322
      %1728 = vmatpush.bf16.msra.mxu0 %v1320
      %1729 = vmatmul.bf16.gmra.mxu0 %v1127
      %v1730 = vpop.f32.mrf.mxu0
      %v1731 = vadd.f32 0.0, %v1730
      %v1732 = vpop.f32.mrf.mxu0
      %v1733 = vadd.f32 0.0, %v1732
      %1734 = vmatmul.bf16.gmra.mxu0 %v1129
      %v1735 = vpop.f32.mrf.mxu0
      %v1736 = vadd.f32 0.0, %v1735
      %v1737 = vpop.f32.mrf.mxu0
      %v1738 = vadd.f32 0.0, %v1737
      %1739 = vmatmul.bf16.gmra.mxu0 %v1131
      %v1740 = vpop.f32.mrf.mxu0
      %v1741 = vadd.f32 0.0, %v1740
      %v1742 = vpop.f32.mrf.mxu0
      %v1743 = vadd.f32 0.0, %v1742
      %1744 = vmatmul.bf16.gmra.mxu0 %v1133
      %v1745 = vpop.f32.mrf.mxu0
      %v1746 = vadd.f32 0.0, %v1745
      %v1747 = vpop.f32.mrf.mxu0
      %v1748 = vadd.f32 0.0, %v1747
      %1749 = vmatmul.bf16.gmra.mxu0 %v1135
      %v1750 = vpop.f32.mrf.mxu0
      %v1751 = vadd.f32 0.0, %v1750
      %v1752 = vpop.f32.mrf.mxu0
      %v1753 = vadd.f32 0.0, %v1752
      %1754 = vmatmul.bf16.gmra.mxu0 %v1137
      %v1755 = vpop.f32.mrf.mxu0
      %v1756 = vadd.f32 0.0, %v1755
      %v1757 = vpop.f32.mrf.mxu0
      %v1758 = vadd.f32 0.0, %v1757
      %1759 = vmatmul.bf16.gmra.mxu0 %v1139
      %v1760 = vpop.f32.mrf.mxu0
      %v1761 = vadd.f32 0.0, %v1760
      %v1762 = vpop.f32.mrf.mxu0
      %v1763 = vadd.f32 0.0, %v1762
      %1764 = vmatmul.bf16.gmra.mxu0 %v1141
      %v1765 = vpop.f32.mrf.mxu0
      %v1766 = vadd.f32 0.0, %v1765
      %v1767 = vpop.f32.mrf.mxu0
      %v1768 = vadd.f32 0.0, %v1767
      %1769 = vmatmul.bf16.gmra.mxu0 %v1143
      %v1770 = vpop.f32.mrf.mxu0
      %v1771 = vadd.f32 0.0, %v1770
      %v1772 = vpop.f32.mrf.mxu0
      %v1773 = vadd.f32 0.0, %v1772
      %1774 = vmatmul.bf16.gmra.mxu0 %v1145
      %v1775 = vpop.f32.mrf.mxu0
      %v1776 = vadd.f32 0.0, %v1775
      %v1777 = vpop.f32.mrf.mxu0
      %v1778 = vadd.f32 0.0, %v1777
      %1779 = vmatmul.bf16.gmra.mxu0 %v1147
      %v1780 = vpop.f32.mrf.mxu0
      %v1781 = vadd.f32 0.0, %v1780
      %v1782 = vpop.f32.mrf.mxu0
      %v1783 = vadd.f32 0.0, %v1782
      %1784 = vmatmul.bf16.gmra.mxu0 %v1149
      %v1785 = vpop.f32.mrf.mxu0
      %v1786 = vadd.f32 0.0, %v1785
      %v1787 = vpop.f32.mrf.mxu0
      %v1788 = vadd.f32 0.0, %v1787
      %1789 = vmatmul.bf16.gmra.mxu0 %v1151
      %v1790 = vpop.f32.mrf.mxu0
      %v1791 = vadd.f32 0.0, %v1790
      %v1792 = vpop.f32.mrf.mxu0
      %v1793 = vadd.f32 0.0, %v1792
      %1794 = vmatmul.bf16.gmra.mxu0 %v1153
      %v1795 = vpop.f32.mrf.mxu0
      %v1796 = vadd.f32 0.0, %v1795
      %v1797 = vpop.f32.mrf.mxu0
      %v1798 = vadd.f32 0.0, %v1797
      %1799 = vmatmul.bf16.gmra.mxu0 %v1155
      %v1800 = vpop.f32.mrf.mxu0
      %v1801 = vadd.f32 0.0, %v1800
      %v1802 = vpop.f32.mrf.mxu0
      %v1803 = vadd.f32 0.0, %v1802
      %1804 = vmatmul.bf16.gmra.mxu0 %v1157
      %v1805 = vpop.f32.mrf.mxu0
      %v1806 = vadd.f32 0.0, %v1805
      %v1807 = vpop.f32.mrf.mxu0
      %v1808 = vadd.f32 0.0, %v1807
      %1809 = vmatmul.bf16.gmra.mxu0 %v1159
      %v1810 = vpop.f32.mrf.mxu0
      %v1811 = vadd.f32 0.0, %v1810
      %v1812 = vpop.f32.mrf.mxu0
      %v1813 = vadd.f32 0.0, %v1812
      %1814 = vmatmul.bf16.gmra.mxu0 %v1161
      %v1815 = vpop.f32.mrf.mxu0
      %v1816 = vadd.f32 0.0, %v1815
      %v1817 = vpop.f32.mrf.mxu0
      %v1818 = vadd.f32 0.0, %v1817
      %1819 = vmatmul.bf16.gmra.mxu0 %v1163
      %v1820 = vpop.f32.mrf.mxu0
      %v1821 = vadd.f32 0.0, %v1820
      %v1822 = vpop.f32.mrf.mxu0
      %v1823 = vadd.f32 0.0, %v1822
      %1824 = vmatmul.bf16.gmra.mxu0 %v1165
      %v1825 = vpop.f32.mrf.mxu0
      %v1826 = vadd.f32 0.0, %v1825
      %v1827 = vpop.f32.mrf.mxu0
      %v1828 = vadd.f32 0.0, %v1827
      %1829 = vmatmul.bf16.gmra.mxu0 %v1167
      %v1830 = vpop.f32.mrf.mxu0
      %v1831 = vadd.f32 0.0, %v1830
      %v1832 = vpop.f32.mrf.mxu0
      %v1833 = vadd.f32 0.0, %v1832
      %1834 = vmatmul.bf16.gmra.mxu0 %v1169
      %v1835 = vpop.f32.mrf.mxu0
      %v1836 = vadd.f32 0.0, %v1835
      %v1837 = vpop.f32.mrf.mxu0
      %v1838 = vadd.f32 0.0, %v1837
      %1839 = vmatmul.bf16.gmra.mxu0 %v1171
      %v1840 = vpop.f32.mrf.mxu0
      %v1841 = vadd.f32 0.0, %v1840
      %v1842 = vpop.f32.mrf.mxu0
      %v1843 = vadd.f32 0.0, %v1842
      %1844 = vmatmul.bf16.gmra.mxu0 %v1173
      %v1845 = vpop.f32.mrf.mxu0
      %v1846 = vadd.f32 0.0, %v1845
      %v1847 = vpop.f32.mrf.mxu0
      %v1848 = vadd.f32 0.0, %v1847
      %1849 = vmatmul.bf16.gmra.mxu0 %v1175
      %v1850 = vpop.f32.mrf.mxu0
      %v1851 = vadd.f32 0.0, %v1850
      %v1852 = vpop.f32.mrf.mxu0
      %v1853 = vadd.f32 0.0, %v1852
      %1854 = vmatmul.bf16.gmra.mxu0 %v1177
      %v1855 = vpop.f32.mrf.mxu0
      %v1856 = vadd.f32 0.0, %v1855
      %v1857 = vpop.f32.mrf.mxu0
      %v1858 = vadd.f32 0.0, %v1857
      %1859 = vmatmul.bf16.gmra.mxu0 %v1179
      %v1860 = vpop.f32.mrf.mxu0
      %v1861 = vadd.f32 0.0, %v1860
      %v1862 = vpop.f32.mrf.mxu0
      %v1863 = vadd.f32 0.0, %v1862
      %1864 = vmatmul.bf16.gmra.mxu0 %v1181
      %v1865 = vpop.f32.mrf.mxu0
      %v1866 = vadd.f32 0.0, %v1865
      %v1867 = vpop.f32.mrf.mxu0
      %v1868 = vadd.f32 0.0, %v1867
      %1869 = vmatmul.bf16.gmra.mxu0 %v1183
      %v1870 = vpop.f32.mrf.mxu0
      %v1871 = vadd.f32 0.0, %v1870
      %v1872 = vpop.f32.mrf.mxu0
      %v1873 = vadd.f32 0.0, %v1872
      %1874 = vmatmul.bf16.gmra.mxu0 %v1185
      %v1875 = vpop.f32.mrf.mxu0
      %v1876 = vadd.f32 0.0, %v1875
      %v1877 = vpop.f32.mrf.mxu0
      %v1878 = vadd.f32 0.0, %v1877
      %1879 = vmatmul.bf16.gmra.mxu0 %v1187
      %v1880 = vpop.f32.mrf.mxu0
      %v1881 = vadd.f32 0.0, %v1880
      %v1882 = vpop.f32.mrf.mxu0
      %v1883 = vadd.f32 0.0, %v1882
      %1884 = vmatmul.bf16.gmra.mxu0 %v1189
      %v1885 = vpop.f32.mrf.mxu0
      %v1886 = vadd.f32 0.0, %v1885
      %v1887 = vpop.f32.mrf.mxu0
      %v1888 = vadd.f32 0.0, %v1887
      %1889 = vdwg.mxu0
      %1890 = vmatpush.bf16.msra.mxu0 %v1350
      %1891 = vmatpush.bf16.msra.mxu0 %v1348
      %1892 = vmatpush.bf16.msra.mxu0 %v1346
      %1893 = vmatpush.bf16.msra.mxu0 %v1344
      %1894 = vmatpush.bf16.msra.mxu0 %v1342
      %1895 = vmatpush.bf16.msra.mxu0 %v1340
      %1896 = vmatpush.bf16.msra.mxu0 %v1338
      %1897 = vmatpush.bf16.msra.mxu0 %v1336
      %1898 = vmatmul.bf16.gmra.mxu0 %v1128
      %v1899 = vpop.f32.mrf.mxu0
      %v1900 = vadd.f32 %v1731, %v1899
      %v1901 = vpop.f32.mrf.mxu0
      %v1902 = vadd.f32 %v1733, %v1901
      %1903 = vmatmul.bf16.gmra.mxu0 %v1130
      %v1904 = vpop.f32.mrf.mxu0
      %v1905 = vadd.f32 %v1736, %v1904
      %v1906 = vpop.f32.mrf.mxu0
      %v1907 = vadd.f32 %v1738, %v1906
      %1908 = vmatmul.bf16.gmra.mxu0 %v1132
      %v1909 = vpop.f32.mrf.mxu0
      %v1910 = vadd.f32 %v1741, %v1909
      %v1911 = vpop.f32.mrf.mxu0
      %v1912 = vadd.f32 %v1743, %v1911
      %1913 = vmatmul.bf16.gmra.mxu0 %v1134
      %v1914 = vpop.f32.mrf.mxu0
      %v1915 = vadd.f32 %v1746, %v1914
      %v1916 = vpop.f32.mrf.mxu0
      %v1917 = vadd.f32 %v1748, %v1916
      %1918 = vmatmul.bf16.gmra.mxu0 %v1136
      %v1919 = vpop.f32.mrf.mxu0
      %v1920 = vadd.f32 %v1751, %v1919
      %v1921 = vpop.f32.mrf.mxu0
      %v1922 = vadd.f32 %v1753, %v1921
      %1923 = vmatmul.bf16.gmra.mxu0 %v1138
      %v1924 = vpop.f32.mrf.mxu0
      %v1925 = vadd.f32 %v1756, %v1924
      %v1926 = vpop.f32.mrf.mxu0
      %v1927 = vadd.f32 %v1758, %v1926
      %1928 = vmatmul.bf16.gmra.mxu0 %v1140
      %v1929 = vpop.f32.mrf.mxu0
      %v1930 = vadd.f32 %v1761, %v1929
      %v1931 = vpop.f32.mrf.mxu0
      %v1932 = vadd.f32 %v1763, %v1931
      %1933 = vmatmul.bf16.gmra.mxu0 %v1142
      %v1934 = vpop.f32.mrf.mxu0
      %v1935 = vadd.f32 %v1766, %v1934
      %v1936 = vpop.f32.mrf.mxu0
      %v1937 = vadd.f32 %v1768, %v1936
      %1938 = vmatmul.bf16.gmra.mxu0 %v1144
      %v1939 = vpop.f32.mrf.mxu0
      %v1940 = vadd.f32 %v1771, %v1939
      %v1941 = vpop.f32.mrf.mxu0
      %v1942 = vadd.f32 %v1773, %v1941
      %1943 = vmatmul.bf16.gmra.mxu0 %v1146
      %v1944 = vpop.f32.mrf.mxu0
      %v1945 = vadd.f32 %v1776, %v1944
      %v1946 = vpop.f32.mrf.mxu0
      %v1947 = vadd.f32 %v1778, %v1946
      %1948 = vmatmul.bf16.gmra.mxu0 %v1148
      %v1949 = vpop.f32.mrf.mxu0
      %v1950 = vadd.f32 %v1781, %v1949
      %v1951 = vpop.f32.mrf.mxu0
      %v1952 = vadd.f32 %v1783, %v1951
      %1953 = vmatmul.bf16.gmra.mxu0 %v1150
      %v1954 = vpop.f32.mrf.mxu0
      %v1955 = vadd.f32 %v1786, %v1954
      %v1956 = vpop.f32.mrf.mxu0
      %v1957 = vadd.f32 %v1788, %v1956
      %1958 = vmatmul.bf16.gmra.mxu0 %v1152
      %v1959 = vpop.f32.mrf.mxu0
      %v1960 = vadd.f32 %v1791, %v1959
      %v1961 = vpop.f32.mrf.mxu0
      %v1962 = vadd.f32 %v1793, %v1961
      %1963 = vmatmul.bf16.gmra.mxu0 %v1154
      %v1964 = vpop.f32.mrf.mxu0
      %v1965 = vadd.f32 %v1796, %v1964
      %v1966 = vpop.f32.mrf.mxu0
      %v1967 = vadd.f32 %v1798, %v1966
      %1968 = vmatmul.bf16.gmra.mxu0 %v1156
      %v1969 = vpop.f32.mrf.mxu0
      %v1970 = vadd.f32 %v1801, %v1969
      %v1971 = vpop.f32.mrf.mxu0
      %v1972 = vadd.f32 %v1803, %v1971
      %1973 = vmatmul.bf16.gmra.mxu0 %v1158
      %v1974 = vpop.f32.mrf.mxu0
      %v1975 = vadd.f32 %v1806, %v1974
      %v1976 = vpop.f32.mrf.mxu0
      %v1977 = vadd.f32 %v1808, %v1976
      %1978 = vmatmul.bf16.gmra.mxu0 %v1160
      %v1979 = vpop.f32.mrf.mxu0
      %v1980 = vadd.f32 %v1811, %v1979
      %v1981 = vpop.f32.mrf.mxu0
      %v1982 = vadd.f32 %v1813, %v1981
      %1983 = vmatmul.bf16.gmra.mxu0 %v1162
      %v1984 = vpop.f32.mrf.mxu0
      %v1985 = vadd.f32 %v1816, %v1984
      %v1986 = vpop.f32.mrf.mxu0
      %v1987 = vadd.f32 %v1818, %v1986
      %1988 = vmatmul.bf16.gmra.mxu0 %v1164
      %v1989 = vpop.f32.mrf.mxu0
      %v1990 = vadd.f32 %v1821, %v1989
      %v1991 = vpop.f32.mrf.mxu0
      %v1992 = vadd.f32 %v1823, %v1991
      %1993 = vmatmul.bf16.gmra.mxu0 %v1166
      %v1994 = vpop.f32.mrf.mxu0
      %v1995 = vadd.f32 %v1826, %v1994
      %v1996 = vpop.f32.mrf.mxu0
      %v1997 = vadd.f32 %v1828, %v1996
      %1998 = vmatmul.bf16.gmra.mxu0 %v1168
      %v1999 = vpop.f32.mrf.mxu0
      %v2000 = vadd.f32 %v1831, %v1999
      %v2001 = vpop.f32.mrf.mxu0
      %v2002 = vadd.f32 %v1833, %v2001
      %2003 = vmatmul.bf16.gmra.mxu0 %v1170
      %v2004 = vpop.f32.mrf.mxu0
      %v2005 = vadd.f32 %v1836, %v2004
      %v2006 = vpop.f32.mrf.mxu0
      %v2007 = vadd.f32 %v1838, %v2006
      %2008 = vmatmul.bf16.gmra.mxu0 %v1172
      %v2009 = vpop.f32.mrf.mxu0
      %v2010 = vadd.f32 %v1841, %v2009
      %v2011 = vpop.f32.mrf.mxu0
      %v2012 = vadd.f32 %v1843, %v2011
      %2013 = vmatmul.bf16.gmra.mxu0 %v1174
      %v2014 = vpop.f32.mrf.mxu0
      %v2015 = vadd.f32 %v1846, %v2014
      %v2016 = vpop.f32.mrf.mxu0
      %v2017 = vadd.f32 %v1848, %v2016
      %2018 = vmatmul.bf16.gmra.mxu0 %v1176
      %v2019 = vpop.f32.mrf.mxu0
      %v2020 = vadd.f32 %v1851, %v2019
      %v2021 = vpop.f32.mrf.mxu0
      %v2022 = vadd.f32 %v1853, %v2021
      %2023 = vmatmul.bf16.gmra.mxu0 %v1178
      %v2024 = vpop.f32.mrf.mxu0
      %v2025 = vadd.f32 %v1856, %v2024
      %v2026 = vpop.f32.mrf.mxu0
      %v2027 = vadd.f32 %v1858, %v2026
      %2028 = vmatmul.bf16.gmra.mxu0 %v1180
      %v2029 = vpop.f32.mrf.mxu0
      %v2030 = vadd.f32 %v1861, %v2029
      %v2031 = vpop.f32.mrf.mxu0
      %v2032 = vadd.f32 %v1863, %v2031
      %2033 = vmatmul.bf16.gmra.mxu0 %v1182
      %v2034 = vpop.f32.mrf.mxu0
      %v2035 = vadd.f32 %v1866, %v2034
      %v2036 = vpop.f32.mrf.mxu0
      %v2037 = vadd.f32 %v1868, %v2036
      %2038 = vmatmul.bf16.gmra.mxu0 %v1184
      %v2039 = vpop.f32.mrf.mxu0
      %v2040 = vadd.f32 %v1871, %v2039
      %v2041 = vpop.f32.mrf.mxu0
      %v2042 = vadd.f32 %v1873, %v2041
      %2043 = vmatmul.bf16.gmra.mxu0 %v1186
      %v2044 = vpop.f32.mrf.mxu0
      %v2045 = vadd.f32 %v1876, %v2044
      %v2046 = vpop.f32.mrf.mxu0
      %v2047 = vadd.f32 %v1878, %v2046
      %2048 = vmatmul.bf16.gmra.mxu0 %v1188
      %v2049 = vpop.f32.mrf.mxu0
      %v2050 = vadd.f32 %v1881, %v2049
      %v2051 = vpop.f32.mrf.mxu0
      %v2052 = vadd.f32 %v1883, %v2051
      %2053 = vmatmul.bf16.gmra.mxu0 %v1190
      %v2054 = vpop.f32.mrf.mxu0
      %v2055 = vadd.f32 %v1886, %v2054
      %v2056 = vpop.f32.mrf.mxu0
      %v2057 = vadd.f32 %v1888, %v2056
      %2058 = vdwg.mxu0
      %v2059 = vpack.c.bf16 %v1900, %v1562
      %v2060 = vpack.c.bf16 %v1902, %v1564
      %v2061 = vpack.c.bf16 %v1905, %v1567
      %v2062 = vpack.c.bf16 %v1907, %v1569
      %v2063 = vpack.c.bf16 %v1910, %v1572
      %v2064 = vpack.c.bf16 %v1912, %v1574
      %v2065 = vpack.c.bf16 %v1915, %v1577
      %v2066 = vpack.c.bf16 %v1917, %v1579
      %v2067 = vpack.c.bf16 %v1920, %v1582
      %v2068 = vpack.c.bf16 %v1922, %v1584
      %v2069 = vpack.c.bf16 %v1925, %v1587
      %v2070 = vpack.c.bf16 %v1927, %v1589
      %v2071 = vpack.c.bf16 %v1930, %v1592
      %v2072 = vpack.c.bf16 %v1932, %v1594
      %v2073 = vpack.c.bf16 %v1935, %v1597
      %v2074 = vpack.c.bf16 %v1937, %v1599
      %v2075 = vpack.c.bf16 %v1940, %v1602
      %v2076 = vpack.c.bf16 %v1942, %v1604
      %v2077 = vpack.c.bf16 %v1945, %v1607
      %v2078 = vpack.c.bf16 %v1947, %v1609
      %v2079 = vpack.c.bf16 %v1950, %v1612
      %v2080 = vpack.c.bf16 %v1952, %v1614
      %v2081 = vpack.c.bf16 %v1955, %v1617
      %v2082 = vpack.c.bf16 %v1957, %v1619
      %v2083 = vpack.c.bf16 %v1960, %v1622
      %v2084 = vpack.c.bf16 %v1962, %v1624
      %v2085 = vpack.c.bf16 %v1965, %v1627
      %v2086 = vpack.c.bf16 %v1967, %v1629
      %v2087 = vpack.c.bf16 %v1970, %v1632
      %v2088 = vpack.c.bf16 %v1972, %v1634
      %v2089 = vpack.c.bf16 %v1975, %v1637
      %v2090 = vpack.c.bf16 %v1977, %v1639
      %v2091 = vpack.c.bf16 %v1980, %v1642
      %v2092 = vpack.c.bf16 %v1982, %v1644
      %v2093 = vpack.c.bf16 %v1985, %v1647
      %v2094 = vpack.c.bf16 %v1987, %v1649
      %v2095 = vpack.c.bf16 %v1990, %v1652
      %v2096 = vpack.c.bf16 %v1992, %v1654
      %v2097 = vpack.c.bf16 %v1995, %v1657
      %v2098 = vpack.c.bf16 %v1997, %v1659
      %v2099 = vpack.c.bf16 %v2000, %v1662
      %v2100 = vpack.c.bf16 %v2002, %v1664
      %v2101 = vpack.c.bf16 %v2005, %v1667
      %v2102 = vpack.c.bf16 %v2007, %v1669
      %v2103 = vpack.c.bf16 %v2010, %v1672
      %v2104 = vpack.c.bf16 %v2012, %v1674
      %v2105 = vpack.c.bf16 %v2015, %v1677
      %v2106 = vpack.c.bf16 %v2017, %v1679
      %v2107 = vpack.c.bf16 %v2020, %v1682
      %v2108 = vpack.c.bf16 %v2022, %v1684
      %v2109 = vpack.c.bf16 %v2025, %v1687
      %v2110 = vpack.c.bf16 %v2027, %v1689
      %v2111 = vpack.c.bf16 %v2030, %v1692
      %v2112 = vpack.c.bf16 %v2032, %v1694
      %v2113 = vpack.c.bf16 %v2035, %v1697
      %v2114 = vpack.c.bf16 %v2037, %v1699
      %v2115 = vpack.c.bf16 %v2040, %v1702
      %v2116 = vpack.c.bf16 %v2042, %v1704
      %v2117 = vpack.c.bf16 %v2045, %v1707
      %v2118 = vpack.c.bf16 %v2047, %v1709
      %v2119 = vpack.c.bf16 %v2050, %v1712
      %v2120 = vpack.c.bf16 %v2052, %v1714
      %v2121 = vpack.c.bf16 %v2055, %v1717
      %v2122 = vpack.c.bf16 %v2057, %v1719
      %2123 = vst [vmem:[%s274] sm:$0xff] %v2059
      %2124 = vst [vmem:[%s274 + $0x8] sm:$0xff] %v2060
      %2125 = vst [vmem:[%s274 + $0x10] sm:$0xff] %v2061
      %2126 = vst [vmem:[%s274 + $0x18] sm:$0xff] %v2062
      %2127 = vst [vmem:[%s274 + $0x20] sm:$0xff] %v2063
      %2128 = vst [vmem:[%s274 + $0x28] sm:$0xff] %v2064
      %2129 = vst [vmem:[%s274 + $0x30] sm:$0xff] %v2065
      %2130 = vst [vmem:[%s274 + $0x38] sm:$0xff] %v2066
      %2131 = vst [vmem:[%s274 + $0x40] sm:$0xff] %v2067
      %2132 = vst [vmem:[%s274 + $0x48] sm:$0xff] %v2068
      %2133 = vst [vmem:[%s274 + $0x50] sm:$0xff] %v2069
      %2134 = vst [vmem:[%s274 + $0x58] sm:$0xff] %v2070
      %2135 = vst [vmem:[%s274 + $0x60] sm:$0xff] %v2071
      %2136 = vst [vmem:[%s274 + $0x68] sm:$0xff] %v2072
      %2137 = vst [vmem:[%s274 + $0x70] sm:$0xff] %v2073
      %2138 = vst [vmem:[%s274 + $0x78] sm:$0xff] %v2074
      %2139 = vst [vmem:[%s274 + $0x80] sm:$0xff] %v2075
      %2140 = vst [vmem:[%s274 + $0x88] sm:$0xff] %v2076
      %2141 = vst [vmem:[%s274 + $0x90] sm:$0xff] %v2077
      %2142 = vst [vmem:[%s274 + $0x98] sm:$0xff] %v2078
      %2143 = vst [vmem:[%s274 + $0xa0] sm:$0xff] %v2079
      %2144 = vst [vmem:[%s274 + $0xa8] sm:$0xff] %v2080
      %2145 = vst [vmem:[%s274 + $0xb0] sm:$0xff] %v2081
      %2146 = vst [vmem:[%s274 + $0xb8] sm:$0xff] %v2082
      %2147 = vst [vmem:[%s274 + $0xc0] sm:$0xff] %v2083
      %2148 = vst [vmem:[%s274 + $0xc8] sm:$0xff] %v2084
      %2149 = vst [vmem:[%s274 + $0xd0] sm:$0xff] %v2085
      %2150 = vst [vmem:[%s274 + $0xd8] sm:$0xff] %v2086
      %2151 = vst [vmem:[%s274 + $0xe0] sm:$0xff] %v2087
      %2152 = vst [vmem:[%s274 + $0xe8] sm:$0xff] %v2088
      %2153 = vst [vmem:[%s274 + $0xf0] sm:$0xff] %v2089
      %2154 = vst [vmem:[%s274 + $0xf8] sm:$0xff] %v2090
      %2155 = vst [vmem:[%s274 + $0x100] sm:$0xff] %v2091
      %2156 = vst [vmem:[%s274 + $0x108] sm:$0xff] %v2092
      %2157 = vst [vmem:[%s274 + $0x110] sm:$0xff] %v2093
      %2158 = vst [vmem:[%s274 + $0x118] sm:$0xff] %v2094
      %2159 = vst [vmem:[%s274 + $0x120] sm:$0xff] %v2095
      %2160 = vst [vmem:[%s274 + $0x128] sm:$0xff] %v2096
      %2161 = vst [vmem:[%s274 + $0x130] sm:$0xff] %v2097
      %2162 = vst [vmem:[%s274 + $0x138] sm:$0xff] %v2098
      %2163 = vst [vmem:[%s274 + $0x140] sm:$0xff] %v2099
      %2164 = vst [vmem:[%s274 + $0x148] sm:$0xff] %v2100
      %2165 = vst [vmem:[%s274 + $0x150] sm:$0xff] %v2101
      %2166 = vst [vmem:[%s274 + $0x158] sm:$0xff] %v2102
      %2167 = vst [vmem:[%s274 + $0x160] sm:$0xff] %v2103
      %2168 = vst [vmem:[%s274 + $0x168] sm:$0xff] %v2104
      %2169 = vst [vmem:[%s274 + $0x170] sm:$0xff] %v2105
      %2170 = vst [vmem:[%s274 + $0x178] sm:$0xff] %v2106
      %2171 = vst [vmem:[%s274 + $0x180] sm:$0xff] %v2107
      %2172 = vst [vmem:[%s274 + $0x188] sm:$0xff] %v2108
      %2173 = vst [vmem:[%s274 + $0x190] sm:$0xff] %v2109
      %2174 = vst [vmem:[%s274 + $0x198] sm:$0xff] %v2110
      %2175 = vst [vmem:[%s274 + $0x1a0] sm:$0xff] %v2111
      %2176 = vst [vmem:[%s274 + $0x1a8] sm:$0xff] %v2112
      %2177 = vst [vmem:[%s274 + $0x1b0] sm:$0xff] %v2113
      %2178 = vst [vmem:[%s274 + $0x1b8] sm:$0xff] %v2114
      %2179 = vst [vmem:[%s274 + $0x1c0] sm:$0xff] %v2115
      %2180 = vst [vmem:[%s274 + $0x1c8] sm:$0xff] %v2116
      %2181 = vst [vmem:[%s274 + $0x1d0] sm:$0xff] %v2117
      %2182 = vst [vmem:[%s274 + $0x1d8] sm:$0xff] %v2118
      %2183 = vst [vmem:[%s274 + $0x1e0] sm:$0xff] %v2119
      %2184 = vst [vmem:[%s274 + $0x1e8] sm:$0xff] %v2120
      %2185 = vst [vmem:[%s274 + $0x1f0] sm:$0xff] %v2121
      %2186 = vst [vmem:[%s274 + $0x1f8] sm:$0xff] %v2122
      %v2187 = vadd.f32 %v1562, %v1564
      %v2188 = vadd.f32 %v2187, %v1567
      %v2189 = vadd.f32 %v2188, %v1569
      %v2190 = vadd.f32 %v2189, %v1572
      %v2191 = vadd.f32 %v2190, %v1574
      %v2192 = vadd.f32 %v2191, %v1577
      %v2193 = vadd.f32 %v2192, %v1579
      %v2194 = vadd.f32 %v2193, %v1582
      %v2195 = vadd.f32 %v2194, %v1584
      %v2196 = vadd.f32 %v2195, %v1587
      %v2197 = vadd.f32 %v2196, %v1589
      %v2198 = vadd.f32 %v2197, %v1592
      %v2199 = vadd.f32 %v2198, %v1594
      %v2200 = vadd.f32 %v2199, %v1597
      %v2201 = vadd.f32 %v2200, %v1599
      %v2202 = vadd.f32 %v2201, %v1602
      %v2203 = vadd.f32 %v2202, %v1604
      %v2204 = vadd.f32 %v2203, %v1607
      %v2205 = vadd.f32 %v2204, %v1609
      %v2206 = vadd.f32 %v2205, %v1612
      %v2207 = vadd.f32 %v2206, %v1614
      %v2208 = vadd.f32 %v2207, %v1617
      %v2209 = vadd.f32 %v2208, %v1619
      %v2210 = vadd.f32 %v2209, %v1622
      %v2211 = vadd.f32 %v2210, %v1624
      %v2212 = vadd.f32 %v2211, %v1627
      %v2213 = vadd.f32 %v2212, %v1629
      %v2214 = vadd.f32 %v2213, %v1632
      %v2215 = vadd.f32 %v2214, %v1634
      %v2216 = vadd.f32 %v2215, %v1637
      %v2217 = vadd.f32 %v2216, %v1639
      %v2218 = vadd.f32 %v2217, %v1642
      %v2219 = vadd.f32 %v2218, %v1644
      %v2220 = vadd.f32 %v2219, %v1647
      %v2221 = vadd.f32 %v2220, %v1649
      %v2222 = vadd.f32 %v2221, %v1652
      %v2223 = vadd.f32 %v2222, %v1654
      %v2224 = vadd.f32 %v2223, %v1657
      %v2225 = vadd.f32 %v2224, %v1659
      %v2226 = vadd.f32 %v2225, %v1662
      %v2227 = vadd.f32 %v2226, %v1664
      %v2228 = vadd.f32 %v2227, %v1667
      %v2229 = vadd.f32 %v2228, %v1669
      %v2230 = vadd.f32 %v2229, %v1672
      %v2231 = vadd.f32 %v2230, %v1674
      %v2232 = vadd.f32 %v2231, %v1677
      %v2233 = vadd.f32 %v2232, %v1679
      %v2234 = vadd.f32 %v2233, %v1682
      %v2235 = vadd.f32 %v2234, %v1684
      %v2236 = vadd.f32 %v2235, %v1687
      %v2237 = vadd.f32 %v2236, %v1689
      %v2238 = vadd.f32 %v2237, %v1692
      %v2239 = vadd.f32 %v2238, %v1694
      %v2240 = vadd.f32 %v2239, %v1697
      %v2241 = vadd.f32 %v2240, %v1699
      %v2242 = vadd.f32 %v2241, %v1702
      %v2243 = vadd.f32 %v2242, %v1704
      %v2244 = vadd.f32 %v2243, %v1707
      %v2245 = vadd.f32 %v2244, %v1709
      %v2246 = vadd.f32 %v2245, %v1712
      %v2247 = vadd.f32 %v2246, %v1714
      %v2248 = vadd.f32 %v2247, %v1717
      %v2249 = vadd.f32 %v2248, %v1719
      %v2250 = vrot.slane %v2249, 4
      %v2251 = vadd.f32 %v2249, %v2250
      %v2252 = vrot.slane %v2251, 2
      %v2253 = vadd.f32 %v2251, %v2252
      %v2254 = vrot.slane %v2253, 1
      %v2255 = vadd.f32 %v2253, %v2254
      %v2256 = vadd.f32 %v1900, %v1902
      %v2257 = vadd.f32 %v2256, %v1905
      %v2258 = vadd.f32 %v2257, %v1907
      %v2259 = vadd.f32 %v2258, %v1910
      %v2260 = vadd.f32 %v2259, %v1912
      %v2261 = vadd.f32 %v2260, %v1915
      %v2262 = vadd.f32 %v2261, %v1917
      %v2263 = vadd.f32 %v2262, %v1920
      %v2264 = vadd.f32 %v2263, %v1922
      %v2265 = vadd.f32 %v2264, %v1925
      %v2266 = vadd.f32 %v2265, %v1927
      %v2267 = vadd.f32 %v2266, %v1930
      %v2268 = vadd.f32 %v2267, %v1932
      %v2269 = vadd.f32 %v2268, %v1935
      %v2270 = vadd.f32 %v2269, %v1937
      %v2271 = vadd.f32 %v2270, %v1940
      %v2272 = vadd.f32 %v2271, %v1942
      %v2273 = vadd.f32 %v2272, %v1945
      %v2274 = vadd.f32 %v2273, %v1947
      %v2275 = vadd.f32 %v2274, %v1950
      %v2276 = vadd.f32 %v2275, %v1952
      %v2277 = vadd.f32 %v2276, %v1955
      %v2278 = vadd.f32 %v2277, %v1957
      %v2279 = vadd.f32 %v2278, %v1960
      %v2280 = vadd.f32 %v2279, %v1962
      %v2281 = vadd.f32 %v2280, %v1965
      %v2282 = vadd.f32 %v2281, %v1967
      %v2283 = vadd.f32 %v2282, %v1970
      %v2284 = vadd.f32 %v2283, %v1972
      %v2285 = vadd.f32 %v2284, %v1975
      %v2286 = vadd.f32 %v2285, %v1977
      %v2287 = vadd.f32 %v2286, %v1980
      %v2288 = vadd.f32 %v2287, %v1982
      %v2289 = vadd.f32 %v2288, %v1985
      %v2290 = vadd.f32 %v2289, %v1987
      %v2291 = vadd.f32 %v2290, %v1990
      %v2292 = vadd.f32 %v2291, %v1992
      %v2293 = vadd.f32 %v2292, %v1995
      %v2294 = vadd.f32 %v2293, %v1997
      %v2295 = vadd.f32 %v2294, %v2000
      %v2296 = vadd.f32 %v2295, %v2002
      %v2297 = vadd.f32 %v2296, %v2005
      %v2298 = vadd.f32 %v2297, %v2007
      %v2299 = vadd.f32 %v2298, %v2010
      %v2300 = vadd.f32 %v2299, %v2012
      %v2301 = vadd.f32 %v2300, %v2015
      %v2302 = vadd.f32 %v2301, %v2017
      %v2303 = vadd.f32 %v2302, %v2020
      %v2304 = vadd.f32 %v2303, %v2022
      %v2305 = vadd.f32 %v2304, %v2025
      %v2306 = vadd.f32 %v2305, %v2027
      %v2307 = vadd.f32 %v2306, %v2030
      %v2308 = vadd.f32 %v2307, %v2032
      %v2309 = vadd.f32 %v2308, %v2035
      %v2310 = vadd.f32 %v2309, %v2037
      %v2311 = vadd.f32 %v2310, %v2040
      %v2312 = vadd.f32 %v2311, %v2042
      %v2313 = vadd.f32 %v2312, %v2045
      %v2314 = vadd.f32 %v2313, %v2047
      %v2315 = vadd.f32 %v2314, %v2050
      %v2316 = vadd.f32 %v2315, %v2052
      %v2317 = vadd.f32 %v2316, %v2055
      %v2318 = vadd.f32 %v2317, %v2057
      %v2319 = vrot.slane %v2318, 4
      %v2320 = vadd.f32 %v2318, %v2319
      %v2321 = vrot.slane %v2320, 2
      %v2322 = vadd.f32 %v2320, %v2321
      %v2323 = vrot.slane %v2322, 1
      %v2324 = vadd.f32 %v2322, %v2323
      %v2327 = vrot.slane %v2324, 7
      %vm2328 = vcmask 1040384
      %v2329 = vsel %vm2328, %v2255, %v2327
      %v2331 = vlaneseq
      %vm2332 = vcmp.ge.s32.totalorder %v2331, 0
      %vm2333 = vcmp.lt.s32.totalorder %v2331, 256
      %vm2334 = vmand %vm2332, %vm2333
      %2335 = vst.msk [vmem:[%s284] ss:$2 sm:$0x3] %vm2334, %v2329
      %v2336 = vmul.f32 %v1562, %v1562
      %v2337 = vmul.f32 %v1900, %v1900
      %v2338 = vmul.f32 %v1564, %v1564
      %v2339 = vmul.f32 %v1902, %v1902
      %v2340 = vmul.f32 %v1567, %v1567
      %v2341 = vmul.f32 %v1905, %v1905
      %v2342 = vmul.f32 %v1569, %v1569
      %v2343 = vmul.f32 %v1907, %v1907
      %v2344 = vmul.f32 %v1572, %v1572
      %v2345 = vmul.f32 %v1910, %v1910
      %v2346 = vmul.f32 %v1574, %v1574
      %v2347 = vmul.f32 %v1912, %v1912
      %v2348 = vmul.f32 %v1577, %v1577
      %v2349 = vmul.f32 %v1915, %v1915
      %v2350 = vmul.f32 %v1579, %v1579
      %v2351 = vmul.f32 %v1917, %v1917
      %v2352 = vmul.f32 %v1582, %v1582
      %v2353 = vmul.f32 %v1920, %v1920
      %v2354 = vmul.f32 %v1584, %v1584
      %v2355 = vmul.f32 %v1922, %v1922
      %v2356 = vmul.f32 %v1587, %v1587
      %v2357 = vmul.f32 %v1925, %v1925
      %v2358 = vmul.f32 %v1589, %v1589
      %v2359 = vmul.f32 %v1927, %v1927
      %v2360 = vmul.f32 %v1592, %v1592
      %v2361 = vmul.f32 %v1930, %v1930
      %v2362 = vmul.f32 %v1594, %v1594
      %v2363 = vmul.f32 %v1932, %v1932
      %v2364 = vmul.f32 %v1597, %v1597
      %v2365 = vmul.f32 %v1935, %v1935
      %v2366 = vmul.f32 %v1599, %v1599
      %v2367 = vmul.f32 %v1937, %v1937
      %v2368 = vmul.f32 %v1602, %v1602
      %v2369 = vmul.f32 %v1940, %v1940
      %v2370 = vmul.f32 %v1604, %v1604
      %v2371 = vmul.f32 %v1942, %v1942
      %v2372 = vmul.f32 %v1607, %v1607
      %v2373 = vmul.f32 %v1945, %v1945
      %v2374 = vmul.f32 %v1609, %v1609
      %v2375 = vmul.f32 %v1947, %v1947
      %v2376 = vmul.f32 %v1612, %v1612
      %v2377 = vmul.f32 %v1950, %v1950
      %v2378 = vmul.f32 %v1614, %v1614
      %v2379 = vmul.f32 %v1952, %v1952
      %v2380 = vmul.f32 %v1617, %v1617
      %v2381 = vmul.f32 %v1955, %v1955
      %v2382 = vmul.f32 %v1619, %v1619
      %v2383 = vmul.f32 %v1957, %v1957
      %v2384 = vmul.f32 %v1622, %v1622
      %v2385 = vmul.f32 %v1960, %v1960
      %v2386 = vmul.f32 %v1624, %v1624
      %v2387 = vmul.f32 %v1962, %v1962
      %v2388 = vmul.f32 %v1627, %v1627
      %v2389 = vmul.f32 %v1965, %v1965
      %v2390 = vmul.f32 %v1629, %v1629
      %v2391 = vmul.f32 %v1967, %v1967
      %v2392 = vmul.f32 %v1632, %v1632
      %v2393 = vmul.f32 %v1970, %v1970
      %v2394 = vmul.f32 %v1634, %v1634
      %v2395 = vmul.f32 %v1972, %v1972
      %v2396 = vmul.f32 %v1637, %v1637
      %v2397 = vmul.f32 %v1975, %v1975
      %v2398 = vmul.f32 %v1639, %v1639
      %v2399 = vmul.f32 %v1977, %v1977
      %v2400 = vmul.f32 %v1642, %v1642
      %v2401 = vmul.f32 %v1980, %v1980
      %v2402 = vmul.f32 %v1644, %v1644
      %v2403 = vmul.f32 %v1982, %v1982
      %v2404 = vmul.f32 %v1647, %v1647
      %v2405 = vmul.f32 %v1985, %v1985
      %v2406 = vmul.f32 %v1649, %v1649
      %v2407 = vmul.f32 %v1987, %v1987
      %v2408 = vmul.f32 %v1652, %v1652
      %v2409 = vmul.f32 %v1990, %v1990
      %v2410 = vmul.f32 %v1654, %v1654
      %v2411 = vmul.f32 %v1992, %v1992
      %v2412 = vmul.f32 %v1657, %v1657
      %v2413 = vmul.f32 %v1995, %v1995
      %v2414 = vmul.f32 %v1659, %v1659
      %v2415 = vmul.f32 %v1997, %v1997
      %v2416 = vmul.f32 %v1662, %v1662
      %v2417 = vmul.f32 %v2000, %v2000
      %v2418 = vmul.f32 %v1664, %v1664
      %v2419 = vmul.f32 %v2002, %v2002
      %v2420 = vmul.f32 %v1667, %v1667
      %v2421 = vmul.f32 %v2005, %v2005
      %v2422 = vmul.f32 %v1669, %v1669
      %v2423 = vmul.f32 %v2007, %v2007
      %v2424 = vmul.f32 %v1672, %v1672
      %v2425 = vmul.f32 %v2010, %v2010
      %v2426 = vmul.f32 %v1674, %v1674
      %v2427 = vmul.f32 %v2012, %v2012
      %v2428 = vmul.f32 %v1677, %v1677
      %v2429 = vmul.f32 %v2015, %v2015
      %v2430 = vmul.f32 %v1679, %v1679
      %v2431 = vmul.f32 %v2017, %v2017
      %v2432 = vmul.f32 %v1682, %v1682
      %v2433 = vmul.f32 %v2020, %v2020
      %v2434 = vmul.f32 %v1684, %v1684
      %v2435 = vmul.f32 %v2022, %v2022
      %v2436 = vmul.f32 %v1687, %v1687
      %v2437 = vmul.f32 %v2025, %v2025
      %v2438 = vmul.f32 %v1689, %v1689
      %v2439 = vmul.f32 %v2027, %v2027
      %v2440 = vmul.f32 %v1692, %v1692
      %v2441 = vmul.f32 %v2030, %v2030
      %v2442 = vmul.f32 %v1694, %v1694
      %v2443 = vmul.f32 %v2032, %v2032
      %v2444 = vmul.f32 %v1697, %v1697
      %v2445 = vmul.f32 %v2035, %v2035
      %v2446 = vmul.f32 %v1699, %v1699
      %v2447 = vmul.f32 %v2037, %v2037
      %v2448 = vmul.f32 %v1702, %v1702
      %v2449 = vmul.f32 %v2040, %v2040
      %v2450 = vmul.f32 %v1704, %v1704
      %v2451 = vmul.f32 %v2042, %v2042
      %v2452 = vmul.f32 %v1707, %v1707
      %v2453 = vmul.f32 %v2045, %v2045
      %v2454 = vmul.f32 %v1709, %v1709
      %v2455 = vmul.f32 %v2047, %v2047
      %v2456 = vmul.f32 %v1712, %v1712
      %v2457 = vmul.f32 %v2050, %v2050
      %v2458 = vmul.f32 %v1714, %v1714
      %v2459 = vmul.f32 %v2052, %v2052
      %v2460 = vmul.f32 %v1717, %v1717
      %v2461 = vmul.f32 %v2055, %v2055
      %v2462 = vmul.f32 %v1719, %v1719
      %v2463 = vmul.f32 %v2057, %v2057
      %v2464 = vadd.f32 %v2336, %v2338
      %v2465 = vadd.f32 %v2464, %v2340
      %v2466 = vadd.f32 %v2465, %v2342
      %v2467 = vadd.f32 %v2466, %v2344
      %v2468 = vadd.f32 %v2467, %v2346
      %v2469 = vadd.f32 %v2468, %v2348
      %v2470 = vadd.f32 %v2469, %v2350
      %v2471 = vadd.f32 %v2470, %v2352
      %v2472 = vadd.f32 %v2471, %v2354
      %v2473 = vadd.f32 %v2472, %v2356
      %v2474 = vadd.f32 %v2473, %v2358
      %v2475 = vadd.f32 %v2474, %v2360
      %v2476 = vadd.f32 %v2475, %v2362
      %v2477 = vadd.f32 %v2476, %v2364
      %v2478 = vadd.f32 %v2477, %v2366
      %v2479 = vadd.f32 %v2478, %v2368
      %v2480 = vadd.f32 %v2479, %v2370
      %v2481 = vadd.f32 %v2480, %v2372
      %v2482 = vadd.f32 %v2481, %v2374
      %v2483 = vadd.f32 %v2482, %v2376
      %v2484 = vadd.f32 %v2483, %v2378
      %v2485 = vadd.f32 %v2484, %v2380
      %v2486 = vadd.f32 %v2485, %v2382
      %v2487 = vadd.f32 %v2486, %v2384
      %v2488 = vadd.f32 %v2487, %v2386
      %v2489 = vadd.f32 %v2488, %v2388
      %v2490 = vadd.f32 %v2489, %v2390
      %v2491 = vadd.f32 %v2490, %v2392
      %v2492 = vadd.f32 %v2491, %v2394
      %v2493 = vadd.f32 %v2492, %v2396
      %v2494 = vadd.f32 %v2493, %v2398
      %v2495 = vadd.f32 %v2494, %v2400
      %v2496 = vadd.f32 %v2495, %v2402
      %v2497 = vadd.f32 %v2496, %v2404
      %v2498 = vadd.f32 %v2497, %v2406
      %v2499 = vadd.f32 %v2498, %v2408
      %v2500 = vadd.f32 %v2499, %v2410
      %v2501 = vadd.f32 %v2500, %v2412
      %v2502 = vadd.f32 %v2501, %v2414
      %v2503 = vadd.f32 %v2502, %v2416
      %v2504 = vadd.f32 %v2503, %v2418
      %v2505 = vadd.f32 %v2504, %v2420
      %v2506 = vadd.f32 %v2505, %v2422
      %v2507 = vadd.f32 %v2506, %v2424
      %v2508 = vadd.f32 %v2507, %v2426
      %v2509 = vadd.f32 %v2508, %v2428
      %v2510 = vadd.f32 %v2509, %v2430
      %v2511 = vadd.f32 %v2510, %v2432
      %v2512 = vadd.f32 %v2511, %v2434
      %v2513 = vadd.f32 %v2512, %v2436
      %v2514 = vadd.f32 %v2513, %v2438
      %v2515 = vadd.f32 %v2514, %v2440
      %v2516 = vadd.f32 %v2515, %v2442
      %v2517 = vadd.f32 %v2516, %v2444
      %v2518 = vadd.f32 %v2517, %v2446
      %v2519 = vadd.f32 %v2518, %v2448
      %v2520 = vadd.f32 %v2519, %v2450
      %v2521 = vadd.f32 %v2520, %v2452
      %v2522 = vadd.f32 %v2521, %v2454
      %v2523 = vadd.f32 %v2522, %v2456
      %v2524 = vadd.f32 %v2523, %v2458
      %v2525 = vadd.f32 %v2524, %v2460
      %v2526 = vadd.f32 %v2525, %v2462
      %v2527 = vrot.slane %v2526, 4
      %v2528 = vadd.f32 %v2526, %v2527
      %v2529 = vrot.slane %v2528, 2
      %v2530 = vadd.f32 %v2528, %v2529
      %v2531 = vrot.slane %v2530, 1
      %v2532 = vadd.f32 %v2530, %v2531
      %v2533 = vadd.f32 %v2337, %v2339
      %v2534 = vadd.f32 %v2533, %v2341
      %v2535 = vadd.f32 %v2534, %v2343
      %v2536 = vadd.f32 %v2535, %v2345
      %v2537 = vadd.f32 %v2536, %v2347
      %v2538 = vadd.f32 %v2537, %v2349
      %v2539 = vadd.f32 %v2538, %v2351
      %v2540 = vadd.f32 %v2539, %v2353
      %v2541 = vadd.f32 %v2540, %v2355
      %v2542 = vadd.f32 %v2541, %v2357
      %v2543 = vadd.f32 %v2542, %v2359
      %v2544 = vadd.f32 %v2543, %v2361
      %v2545 = vadd.f32 %v2544, %v2363
      %v2546 = vadd.f32 %v2545, %v2365
      %v2547 = vadd.f32 %v2546, %v2367
      %v2548 = vadd.f32 %v2547, %v2369
      %v2549 = vadd.f32 %v2548, %v2371
      %v2550 = vadd.f32 %v2549, %v2373
      %v2551 = vadd.f32 %v2550, %v2375
      %v2552 = vadd.f32 %v2551, %v2377
      %v2553 = vadd.f32 %v2552, %v2379
      %v2554 = vadd.f32 %v2553, %v2381
      %v2555 = vadd.f32 %v2554, %v2383
      %v2556 = vadd.f32 %v2555, %v2385
      %v2557 = vadd.f32 %v2556, %v2387
      %v2558 = vadd.f32 %v2557, %v2389
      %v2559 = vadd.f32 %v2558, %v2391
      %v2560 = vadd.f32 %v2559, %v2393
      %v2561 = vadd.f32 %v2560, %v2395
      %v2562 = vadd.f32 %v2561, %v2397
      %v2563 = vadd.f32 %v2562, %v2399
      %v2564 = vadd.f32 %v2563, %v2401
      %v2565 = vadd.f32 %v2564, %v2403
      %v2566 = vadd.f32 %v2565, %v2405
      %v2567 = vadd.f32 %v2566, %v2407
      %v2568 = vadd.f32 %v2567, %v2409
      %v2569 = vadd.f32 %v2568, %v2411
      %v2570 = vadd.f32 %v2569, %v2413
      %v2571 = vadd.f32 %v2570, %v2415
      %v2572 = vadd.f32 %v2571, %v2417
      %v2573 = vadd.f32 %v2572, %v2419
      %v2574 = vadd.f32 %v2573, %v2421
      %v2575 = vadd.f32 %v2574, %v2423
      %v2576 = vadd.f32 %v2575, %v2425
      %v2577 = vadd.f32 %v2576, %v2427
      %v2578 = vadd.f32 %v2577, %v2429
      %v2579 = vadd.f32 %v2578, %v2431
      %v2580 = vadd.f32 %v2579, %v2433
      %v2581 = vadd.f32 %v2580, %v2435
      %v2582 = vadd.f32 %v2581, %v2437
      %v2583 = vadd.f32 %v2582, %v2439
      %v2584 = vadd.f32 %v2583, %v2441
      %v2585 = vadd.f32 %v2584, %v2443
      %v2586 = vadd.f32 %v2585, %v2445
      %v2587 = vadd.f32 %v2586, %v2447
      %v2588 = vadd.f32 %v2587, %v2449
      %v2589 = vadd.f32 %v2588, %v2451
      %v2590 = vadd.f32 %v2589, %v2453
      %v2591 = vadd.f32 %v2590, %v2455
      %v2592 = vadd.f32 %v2591, %v2457
      %v2593 = vadd.f32 %v2592, %v2459
      %v2594 = vadd.f32 %v2593, %v2461
      %v2595 = vadd.f32 %v2594, %v2463
      %v2596 = vrot.slane %v2595, 4
      %v2597 = vadd.f32 %v2595, %v2596
      %v2598 = vrot.slane %v2597, 2
      %v2599 = vadd.f32 %v2597, %v2598
      %v2600 = vrot.slane %v2599, 1
      %v2601 = vadd.f32 %v2599, %v2600
      %v2604 = vrot.slane %v2601, 7
      %v2605 = vsel %vm2328, %v2532, %v2604
      %s2607 = scalar_lea.vmem %s284, 1
      %2608 = vst.msk [vmem:[%s2607] ss:$2 sm:$0x3] %vm2334, %v2605
      %s2609 = smul.u32 64, %s21
      %p2610 = scmp.lt.s32.totalorder %s20, 1
      %s2611 = scalar_select %p2610, %s20, 1
      %p2612 = scmp.lt.s32.totalorder %s2609, 63
      %s2613 = scalar_select %p2612, %s2609, 63
      %s2614 = smul.addr %s2613, 2
      %s2615 = smul.addr %s2611, 128
      %s2616 = sadd.s32 %s2614, %s2615
      %s2617 = smul.addr %s2616, 4
      %s2618 = scalar_lea.vmem %s3, %s2617
      %p2619 = scmp.lt.s32.totalorder %s20, 1
      %s2620 = scalar_select %p2619, %s20, 1
      %p2621 = scmp.lt.s32.totalorder %s21, 0
      %s2622 = scalar_select %p2621, %s21, 0
      %s2623 = smul.addr %s2622, 2
      %s2624 = smul.addr %s2620, 2
      %s2625 = sadd.s32 %s2623, %s2624
      %s2626 = smul.addr %s2625, 2
      %s2627 = scalar_lea.vmem %s4, %s2626
      // Predicated region
      $region33: #{convmim_forward_loss.6} parent=31 // pred_check
        %p2628 = pneg %p123
      $region34: #{convmim_forward_loss.6} parent=31 // pred_check_branch
        %2630 = sbr.rel (%p2628) target = $region36
      $region35: #{convmim_forward_loss.6} parent=31 // pred_region
        %s2631 = smul.u32 64, %s21
      $region36: #{convmim_forward_loss.6} parent=31 // pred_fallthru
        _
      // Predicated region
      $region37: #{convmim_forward_loss.6} parent=31 // pred_check
        %p2632 = pneg %p151
      $region38: #{convmim_forward_loss.6} parent=31 // pred_check_branch
        %2634 = sbr.rel (%p2632) target = $region40
      $region39: #{convmim_forward_loss.6} parent=31 // pred_region
        _
      $region40: #{convmim_forward_loss.6} parent=31 // pred_fallthru
        _
    $region32: #{convmim_forward_loss.6} parent=5 // pred_fallthru
      _
    %p2635 = scmp.le.s32.totalorder 2, %s11
    // Predicated region
    $region41: #{convmim_forward_loss.6} parent=5 // pred_check
      %p2636 = pneg %p2635
    $region42: #{convmim_forward_loss.6} parent=5 // pred_check_branch
      %2638 = sbr.rel (%p2636) target = $region44
    $region43: #{convmim_forward_loss.6} parent=5 // pred_region
      %s2639 = ssub.s32 %s11, 2
      // Predicated region
      $region45: #{convmim_forward_loss.6} parent=43 // pred_check
        %p2640 = pneg %p129
      $region46: #{convmim_forward_loss.6} parent=43 // pred_check_branch
        %2642 = sbr.rel (%p2640) target = $region48
      $region47: #{convmim_forward_loss.6} parent=43 // pred_region
        %s2643 = smul.u32 64, %s23
        %p2644 = scmp.lt.s32.totalorder %s22, 1
        %s2645 = scalar_select %p2644, %s22, 1
        %p2646 = scmp.lt.s32.totalorder %s2643, 63
        %s2647 = scalar_select %p2646, %s2643, 63
        %s2648 = smul.addr %s2647, 2
        %s2649 = smul.addr %s2645, 128
        %s2650 = sadd.s32 %s2648, %s2649
        %s2651 = smul.addr %s2650, 4
        %s2652 = scalar_lea.vmem %s3, %s2651
      $region48: #{convmim_forward_loss.6} parent=43 // pred_fallthru
        _
      // Predicated region
      $region49: #{convmim_forward_loss.6} parent=43 // pred_check
        %p2653 = pneg %p157
      $region50: #{convmim_forward_loss.6} parent=43 // pred_check_branch
        %2655 = sbr.rel (%p2653) target = $region52
      $region51: #{convmim_forward_loss.6} parent=43 // pred_region
        %p2656 = scmp.lt.s32.totalorder %s22, 1
        %s2657 = scalar_select %p2656, %s22, 1
        %p2658 = scmp.lt.s32.totalorder %s23, 0
        %s2659 = scalar_select %p2658, %s23, 0
        %s2660 = smul.addr %s2659, 2
        %s2661 = smul.addr %s2657, 2
        %s2662 = sadd.s32 %s2660, %s2661
        %s2663 = smul.addr %s2662, 2
        %s2664 = scalar_lea.vmem %s4, %s2663
      $region52: #{convmim_forward_loss.6} parent=43 // pred_fallthru
        _
    $region44: #{convmim_forward_loss.6} parent=5 // pred_fallthru
      _
  $region6: #{convmim_forward_loss.6} parent=0 // loop_footer
    %s15 = sadd.s32 1, %s11
  $region7: #{convmim_forward_loss.6} parent=0 // loop_footer_branch
    %10 = sbr.rel target = $region3
  $region8: #{convmim_forward_loss.6} parent=0 // loop_exit
    _

// kernel: convmim_forward_loss.8
$region0: #{convmim_forward_loss.8}
  #allocation0 [shape = 'u32[]', space=smem, size = 0x4, offset = 0x4, fixed_abs, tag = 'smem constant byte address 0x4 - core index']
  #allocation1 [shape = 'u32[72,128]{1,0:T(1,128)}', space=vmem, size = 0x9000, scoped, tag = 'internal scratch']
  %s0 = inlined_call_operand.vmem [shape: bf16[2,512,256], index: 0, kind: input, shape index: {}]
  %s1 = inlined_call_operand.vmem [shape: f32[8,256], index: 1, kind: input, shape index: {}]
  %s2 = inlined_call_operand.vmem [shape: bf16[256,128], index: 2, kind: input, shape index: {}]
  %s3 = inlined_call_operand.vmem [shape: bf16[512,128], index: 3, kind: output, shape index: {0}]
  %s4 = inlined_call_operand.vmem [shape: f32[1,2,128], index: 4, kind: output, shape index: {1}]
  %5 = xla_tuple %s3, %s4
  %s6 = sld [smem:[#allocation0]]
  $region30: #{convmim_forward_loss.8} parent=0
    _
  %s8 = ssub.s32 1, %s6
  %s9 = scalar_select 0, %s8, %s6
  // Predicated region
  $region2: #{convmim_forward_loss.8} parent=0 // pred_check
    _
  $region3: #{convmim_forward_loss.8} parent=0 // pred_check_branch
    %11 = sbr.rel (0) target = $region5
  $region4: #{convmim_forward_loss.8} parent=0 // pred_region
    _
  $region5: #{convmim_forward_loss.8} parent=0 // pred_fallthru
    _
  // Predicated region
  $region6: #{convmim_forward_loss.8} parent=0 // pred_check
    _
  $region7: #{convmim_forward_loss.8} parent=0 // pred_check_branch
    %13 = sbr.rel (0) target = $region9
  $region8: #{convmim_forward_loss.8} parent=0 // pred_region
    _
  $region9: #{convmim_forward_loss.8} parent=0 // pred_fallthru
    _
  // Predicated region
  $region10: #{convmim_forward_loss.8} parent=0 // pred_check
    _
  $region11: #{convmim_forward_loss.8} parent=0 // pred_check_branch
    %15 = sbr.rel (0) target = $region13
  $region12: #{convmim_forward_loss.8} parent=0 // pred_region
    _
  $region13: #{convmim_forward_loss.8} parent=0 // pred_fallthru
    _
  %v16 = vld [vmem:[%s1] sm:$0xff]
  %v17 = vld [vmem:[%s1 + $0x8] sm:$0xff]
  %v18 = vld [vmem:[%s0] sm:$0xff]
  %v19 = vld [vmem:[%s0 + $0x8] sm:$0xff]
  %v20 = vld [vmem:[%s0 + $0x10] sm:$0xff]
  %v21 = vld [vmem:[%s0 + $0x18] sm:$0xff]
  %v22 = vld [vmem:[%s0 + $0x20] sm:$0xff]
  %v23 = vld [vmem:[%s0 + $0x28] sm:$0xff]
  %v24 = vld [vmem:[%s0 + $0x30] sm:$0xff]
  %v25 = vld [vmem:[%s0 + $0x38] sm:$0xff]
  %v26 = vld [vmem:[%s0 + $0x40] sm:$0xff]
  %v27 = vld [vmem:[%s0 + $0x48] sm:$0xff]
  %v28 = vld [vmem:[%s0 + $0x50] sm:$0xff]
  %v29 = vld [vmem:[%s0 + $0x58] sm:$0xff]
  %v30 = vld [vmem:[%s0 + $0x60] sm:$0xff]
  %v31 = vld [vmem:[%s0 + $0x68] sm:$0xff]
  %v32 = vld [vmem:[%s0 + $0x70] sm:$0xff]
  %v33 = vld [vmem:[%s0 + $0x78] sm:$0xff]
  %v34 = vld [vmem:[%s0 + $0x80] sm:$0xff]
  %v35 = vld [vmem:[%s0 + $0x88] sm:$0xff]
  %v36 = vld [vmem:[%s0 + $0x90] sm:$0xff]
  %v37 = vld [vmem:[%s0 + $0x98] sm:$0xff]
  %v38 = vld [vmem:[%s0 + $0xa0] sm:$0xff]
  %v39 = vld [vmem:[%s0 + $0xa8] sm:$0xff]
  %v40 = vld [vmem:[%s0 + $0xb0] sm:$0xff]
  %v41 = vld [vmem:[%s0 + $0xb8] sm:$0xff]
  %v42 = vld [vmem:[%s0 + $0xc0] sm:$0xff]
  %v43 = vld [vmem:[%s0 + $0xc8] sm:$0xff]
  %v44 = vld [vmem:[%s0 + $0xd0] sm:$0xff]
  %v45 = vld [vmem:[%s0 + $0xd8] sm:$0xff]
  %v46 = vld [vmem:[%s0 + $0xe0] sm:$0xff]
  %v47 = vld [vmem:[%s0 + $0xe8] sm:$0xff]
  %v48 = vld [vmem:[%s0 + $0xf0] sm:$0xff]
  %v49 = vld [vmem:[%s0 + $0xf8] sm:$0xff]
  %v50 = vld [vmem:[%s0 + $0x100] sm:$0xff]
  %v51 = vld [vmem:[%s0 + $0x108] sm:$0xff]
  %v52 = vld [vmem:[%s0 + $0x110] sm:$0xff]
  %v53 = vld [vmem:[%s0 + $0x118] sm:$0xff]
  %v54 = vld [vmem:[%s0 + $0x120] sm:$0xff]
  %v55 = vld [vmem:[%s0 + $0x128] sm:$0xff]
  %v56 = vld [vmem:[%s0 + $0x130] sm:$0xff]
  %v57 = vld [vmem:[%s0 + $0x138] sm:$0xff]
  %v58 = vld [vmem:[%s0 + $0x140] sm:$0xff]
  %v59 = vld [vmem:[%s0 + $0x148] sm:$0xff]
  %v60 = vld [vmem:[%s0 + $0x150] sm:$0xff]
  %v61 = vld [vmem:[%s0 + $0x158] sm:$0xff]
  %v62 = vld [vmem:[%s0 + $0x160] sm:$0xff]
  %v63 = vld [vmem:[%s0 + $0x168] sm:$0xff]
  %v64 = vld [vmem:[%s0 + $0x170] sm:$0xff]
  %v65 = vld [vmem:[%s0 + $0x178] sm:$0xff]
  %v66 = vld [vmem:[%s0 + $0x180] sm:$0xff]
  %v67 = vld [vmem:[%s0 + $0x188] sm:$0xff]
  %v68 = vld [vmem:[%s0 + $0x190] sm:$0xff]
  %v69 = vld [vmem:[%s0 + $0x198] sm:$0xff]
  %v70 = vld [vmem:[%s0 + $0x1a0] sm:$0xff]
  %v71 = vld [vmem:[%s0 + $0x1a8] sm:$0xff]
  %v72 = vld [vmem:[%s0 + $0x1b0] sm:$0xff]
  %v73 = vld [vmem:[%s0 + $0x1b8] sm:$0xff]
  %v74 = vld [vmem:[%s0 + $0x1c0] sm:$0xff]
  %v75 = vld [vmem:[%s0 + $0x1c8] sm:$0xff]
  %v76 = vld [vmem:[%s0 + $0x1d0] sm:$0xff]
  %v77 = vld [vmem:[%s0 + $0x1d8] sm:$0xff]
  %v78 = vld [vmem:[%s0 + $0x1e0] sm:$0xff]
  %v79 = vld [vmem:[%s0 + $0x1e8] sm:$0xff]
  %v80 = vld [vmem:[%s0 + $0x1f0] sm:$0xff]
  %v81 = vld [vmem:[%s0 + $0x1f8] sm:$0xff]
  %v82 = vunpack.c.l.bf16 %v18
  %v83 = vunpack.c.h.bf16 %v18
  %v84 = vunpack.c.l.bf16 %v19
  %v85 = vunpack.c.h.bf16 %v19
  %v86 = vunpack.c.l.bf16 %v20
  %v87 = vunpack.c.h.bf16 %v20
  %v88 = vunpack.c.l.bf16 %v21
  %v89 = vunpack.c.h.bf16 %v21
  %v90 = vunpack.c.l.bf16 %v22
  %v91 = vunpack.c.h.bf16 %v22
  %v92 = vunpack.c.l.bf16 %v23
  %v93 = vunpack.c.h.bf16 %v23
  %v94 = vunpack.c.l.bf16 %v24
  %v95 = vunpack.c.h.bf16 %v24
  %v96 = vunpack.c.l.bf16 %v25
  %v97 = vunpack.c.h.bf16 %v25
  %v98 = vunpack.c.l.bf16 %v26
  %v99 = vunpack.c.h.bf16 %v26
  %v100 = vunpack.c.l.bf16 %v27
  %v101 = vunpack.c.h.bf16 %v27
  %v102 = vunpack.c.l.bf16 %v28
  %v103 = vunpack.c.h.bf16 %v28
  %v104 = vunpack.c.l.bf16 %v29
  %v105 = vunpack.c.h.bf16 %v29
  %v106 = vunpack.c.l.bf16 %v30
  %v107 = vunpack.c.h.bf16 %v30
  %v108 = vunpack.c.l.bf16 %v31
  %v109 = vunpack.c.h.bf16 %v31
  %v110 = vunpack.c.l.bf16 %v32
  %v111 = vunpack.c.h.bf16 %v32
  %v112 = vunpack.c.l.bf16 %v33
  %v113 = vunpack.c.h.bf16 %v33
  %v114 = vunpack.c.l.bf16 %v34
  %v115 = vunpack.c.h.bf16 %v34
  %v116 = vunpack.c.l.bf16 %v35
  %v117 = vunpack.c.h.bf16 %v35
  %v118 = vunpack.c.l.bf16 %v36
  %v119 = vunpack.c.h.bf16 %v36
  %v120 = vunpack.c.l.bf16 %v37
  %v121 = vunpack.c.h.bf16 %v37
  %v122 = vunpack.c.l.bf16 %v38
  %v123 = vunpack.c.h.bf16 %v38
  %v124 = vunpack.c.l.bf16 %v39
  %v125 = vunpack.c.h.bf16 %v39
  %v126 = vunpack.c.l.bf16 %v40
  %v127 = vunpack.c.h.bf16 %v40
  %v128 = vunpack.c.l.bf16 %v41
  %v129 = vunpack.c.h.bf16 %v41
  %v130 = vunpack.c.l.bf16 %v42
  %v131 = vunpack.c.h.bf16 %v42
  %v132 = vunpack.c.l.bf16 %v43
  %v133 = vunpack.c.h.bf16 %v43
  %v134 = vunpack.c.l.bf16 %v44
  %v135 = vunpack.c.h.bf16 %v44
  %v136 = vunpack.c.l.bf16 %v45
  %v137 = vunpack.c.h.bf16 %v45
  %v138 = vunpack.c.l.bf16 %v46
  %v139 = vunpack.c.h.bf16 %v46
  %v140 = vunpack.c.l.bf16 %v47
  %v141 = vunpack.c.h.bf16 %v47
  %v142 = vunpack.c.l.bf16 %v48
  %v143 = vunpack.c.h.bf16 %v48
  %v144 = vunpack.c.l.bf16 %v49
  %v145 = vunpack.c.h.bf16 %v49
  %v146 = vunpack.c.l.bf16 %v50
  %v147 = vunpack.c.h.bf16 %v50
  %v148 = vunpack.c.l.bf16 %v51
  %v149 = vunpack.c.h.bf16 %v51
  %v150 = vunpack.c.l.bf16 %v52
  %v151 = vunpack.c.h.bf16 %v52
  %v152 = vunpack.c.l.bf16 %v53
  %v153 = vunpack.c.h.bf16 %v53
  %v154 = vunpack.c.l.bf16 %v54
  %v155 = vunpack.c.h.bf16 %v54
  %v156 = vunpack.c.l.bf16 %v55
  %v157 = vunpack.c.h.bf16 %v55
  %v158 = vunpack.c.l.bf16 %v56
  %v159 = vunpack.c.h.bf16 %v56
  %v160 = vunpack.c.l.bf16 %v57
  %v161 = vunpack.c.h.bf16 %v57
  %v162 = vunpack.c.l.bf16 %v58
  %v163 = vunpack.c.h.bf16 %v58
  %v164 = vunpack.c.l.bf16 %v59
  %v165 = vunpack.c.h.bf16 %v59
  %v166 = vunpack.c.l.bf16 %v60
  %v167 = vunpack.c.h.bf16 %v60
  %v168 = vunpack.c.l.bf16 %v61
  %v169 = vunpack.c.h.bf16 %v61
  %v170 = vunpack.c.l.bf16 %v62
  %v171 = vunpack.c.h.bf16 %v62
  %v172 = vunpack.c.l.bf16 %v63
  %v173 = vunpack.c.h.bf16 %v63
  %v174 = vunpack.c.l.bf16 %v64
  %v175 = vunpack.c.h.bf16 %v64
  %v176 = vunpack.c.l.bf16 %v65
  %v177 = vunpack.c.h.bf16 %v65
  %v178 = vunpack.c.l.bf16 %v66
  %v179 = vunpack.c.h.bf16 %v66
  %v180 = vunpack.c.l.bf16 %v67
  %v181 = vunpack.c.h.bf16 %v67
  %v182 = vunpack.c.l.bf16 %v68
  %v183 = vunpack.c.h.bf16 %v68
  %v184 = vunpack.c.l.bf16 %v69
  %v185 = vunpack.c.h.bf16 %v69
  %v186 = vunpack.c.l.bf16 %v70
  %v187 = vunpack.c.h.bf16 %v70
  %v188 = vunpack.c.l.bf16 %v71
  %v189 = vunpack.c.h.bf16 %v71
  %v190 = vunpack.c.l.bf16 %v72
  %v191 = vunpack.c.h.bf16 %v72
  %v192 = vunpack.c.l.bf16 %v73
  %v193 = vunpack.c.h.bf16 %v73
  %v194 = vunpack.c.l.bf16 %v74
  %v195 = vunpack.c.h.bf16 %v74
  %v196 = vunpack.c.l.bf16 %v75
  %v197 = vunpack.c.h.bf16 %v75
  %v198 = vunpack.c.l.bf16 %v76
  %v199 = vunpack.c.h.bf16 %v76
  %v200 = vunpack.c.l.bf16 %v77
  %v201 = vunpack.c.h.bf16 %v77
  %v202 = vunpack.c.l.bf16 %v78
  %v203 = vunpack.c.h.bf16 %v78
  %v204 = vunpack.c.l.bf16 %v79
  %v205 = vunpack.c.h.bf16 %v79
  %v206 = vunpack.c.l.bf16 %v80
  %v207 = vunpack.c.h.bf16 %v80
  %v208 = vunpack.c.l.bf16 %v81
  %v209 = vunpack.c.h.bf16 %v81
  %v210 = vperm.slane %v16, 0
  %v211 = vperm.slane %v17, 0
  %v212 = vsub.f32 %v82, %v210
  %v213 = vsub.f32 %v83, %v211
  %v214 = vsub.f32 %v84, %v210
  %v215 = vsub.f32 %v85, %v211
  %v216 = vsub.f32 %v86, %v210
  %v217 = vsub.f32 %v87, %v211
  %v218 = vsub.f32 %v88, %v210
  %v219 = vsub.f32 %v89, %v211
  %v220 = vsub.f32 %v90, %v210
  %v221 = vsub.f32 %v91, %v211
  %v222 = vsub.f32 %v92, %v210
  %v223 = vsub.f32 %v93, %v211
  %v224 = vsub.f32 %v94, %v210
  %v225 = vsub.f32 %v95, %v211
  %v226 = vsub.f32 %v96, %v210
  %v227 = vsub.f32 %v97, %v211
  %v228 = vsub.f32 %v98, %v210
  %v229 = vsub.f32 %v99, %v211
  %v230 = vsub.f32 %v100, %v210
  %v231 = vsub.f32 %v101, %v211
  %v232 = vsub.f32 %v102, %v210
  %v233 = vsub.f32 %v103, %v211
  %v234 = vsub.f32 %v104, %v210
  %v235 = vsub.f32 %v105, %v211
  %v236 = vsub.f32 %v106, %v210
  %v237 = vsub.f32 %v107, %v211
  %v238 = vsub.f32 %v108, %v210
  %v239 = vsub.f32 %v109, %v211
  %v240 = vsub.f32 %v110, %v210
  %v241 = vsub.f32 %v111, %v211
  %v242 = vsub.f32 %v112, %v210
  %v243 = vsub.f32 %v113, %v211
  %v244 = vsub.f32 %v114, %v210
  %v245 = vsub.f32 %v115, %v211
  %v246 = vsub.f32 %v116, %v210
  %v247 = vsub.f32 %v117, %v211
  %v248 = vsub.f32 %v118, %v210
  %v249 = vsub.f32 %v119, %v211
  %v250 = vsub.f32 %v120, %v210
  %v251 = vsub.f32 %v121, %v211
  %v252 = vsub.f32 %v122, %v210
  %v253 = vsub.f32 %v123, %v211
  %v254 = vsub.f32 %v124, %v210
  %v255 = vsub.f32 %v125, %v211
  %v256 = vsub.f32 %v126, %v210
  %v257 = vsub.f32 %v127, %v211
  %v258 = vsub.f32 %v128, %v210
  %v259 = vsub.f32 %v129, %v211
  %v260 = vsub.f32 %v130, %v210
  %v261 = vsub.f32 %v131, %v211
  %v262 = vsub.f32 %v132, %v210
  %v263 = vsub.f32 %v133, %v211
  %v264 = vsub.f32 %v134, %v210
  %v265 = vsub.f32 %v135, %v211
  %v266 = vsub.f32 %v136, %v210
  %v267 = vsub.f32 %v137, %v211
  %v268 = vsub.f32 %v138, %v210
  %v269 = vsub.f32 %v139, %v211
  %v270 = vsub.f32 %v140, %v210
  %v271 = vsub.f32 %v141, %v211
  %v272 = vsub.f32 %v142, %v210
  %v273 = vsub.f32 %v143, %v211
  %v274 = vsub.f32 %v144, %v210
  %v275 = vsub.f32 %v145, %v211
  %v276 = vsub.f32 %v146, %v210
  %v277 = vsub.f32 %v147, %v211
  %v278 = vsub.f32 %v148, %v210
  %v279 = vsub.f32 %v149, %v211
  %v280 = vsub.f32 %v150, %v210
  %v281 = vsub.f32 %v151, %v211
  %v282 = vsub.f32 %v152, %v210
  %v283 = vsub.f32 %v153, %v211
  %v284 = vsub.f32 %v154, %v210
  %v285 = vsub.f32 %v155, %v211
  %v286 = vsub.f32 %v156, %v210
  %v287 = vsub.f32 %v157, %v211
  %v288 = vsub.f32 %v158, %v210
  %v289 = vsub.f32 %v159, %v211
  %v290 = vsub.f32 %v160, %v210
  %v291 = vsub.f32 %v161, %v211
  %v292 = vsub.f32 %v162, %v210
  %v293 = vsub.f32 %v163, %v211
  %v294 = vsub.f32 %v164, %v210
  %v295 = vsub.f32 %v165, %v211
  %v296 = vsub.f32 %v166, %v210
  %v297 = vsub.f32 %v167, %v211
  %v298 = vsub.f32 %v168, %v210
  %v299 = vsub.f32 %v169, %v211
  %v300 = vsub.f32 %v170, %v210
  %v301 = vsub.f32 %v171, %v211
  %v302 = vsub.f32 %v172, %v210
  %v303 = vsub.f32 %v173, %v211
  %v304 = vsub.f32 %v174, %v210
  %v305 = vsub.f32 %v175, %v211
  %v306 = vsub.f32 %v176, %v210
  %v307 = vsub.f32 %v177, %v211
  %v308 = vsub.f32 %v178, %v210
  %v309 = vsub.f32 %v179, %v211
  %v310 = vsub.f32 %v180, %v210
  %v311 = vsub.f32 %v181, %v211
  %v312 = vsub.f32 %v182, %v210
  %v313 = vsub.f32 %v183, %v211
  %v314 = vsub.f32 %v184, %v210
  %v315 = vsub.f32 %v185, %v211
  %v316 = vsub.f32 %v186, %v210
  %v317 = vsub.f32 %v187, %v211
  %v318 = vsub.f32 %v188, %v210
  %v319 = vsub.f32 %v189, %v211
  %v320 = vsub.f32 %v190, %v210
  %v321 = vsub.f32 %v191, %v211
  %v322 = vsub.f32 %v192, %v210
  %v323 = vsub.f32 %v193, %v211
  %v324 = vsub.f32 %v194, %v210
  %v325 = vsub.f32 %v195, %v211
  %v326 = vsub.f32 %v196, %v210
  %v327 = vsub.f32 %v197, %v211
  %v328 = vsub.f32 %v198, %v210
  %v329 = vsub.f32 %v199, %v211
  %v330 = vsub.f32 %v200, %v210
  %v331 = vsub.f32 %v201, %v211
  %v332 = vsub.f32 %v202, %v210
  %v333 = vsub.f32 %v203, %v211
  %v334 = vsub.f32 %v204, %v210
  %v335 = vsub.f32 %v205, %v211
  %v336 = vsub.f32 %v206, %v210
  %v337 = vsub.f32 %v207, %v211
  %v338 = vsub.f32 %v208, %v210
  %v339 = vsub.f32 %v209, %v211
  %v340 = vperm.slane %v16, 1
  %v341 = vperm.slane %v17, 1
  %v342 = vmul.f32 %v212, %v340
  %v343 = vmul.f32 %v213, %v341
  %v344 = vmul.f32 %v214, %v340
  %v345 = vmul.f32 %v215, %v341
  %v346 = vmul.f32 %v216, %v340
  %v347 = vmul.f32 %v217, %v341
  %v348 = vmul.f32 %v218, %v340
  %v349 = vmul.f32 %v219, %v341
  %v350 = vmul.f32 %v220, %v340
  %v351 = vmul.f32 %v221, %v341
  %v352 = vmul.f32 %v222, %v340
  %v353 = vmul.f32 %v223, %v341
  %v354 = vmul.f32 %v224, %v340
  %v355 = vmul.f32 %v225, %v341
  %v356 = vmul.f32 %v226, %v340
  %v357 = vmul.f32 %v227, %v341
  %v358 = vmul.f32 %v228, %v340
  %v359 = vmul.f32 %v229, %v341
  %v360 = vmul.f32 %v230, %v340
  %v361 = vmul.f32 %v231, %v341
  %v362 = vmul.f32 %v232, %v340
  %v363 = vmul.f32 %v233, %v341
  %v364 = vmul.f32 %v234, %v340
  %v365 = vmul.f32 %v235, %v341
  %v366 = vmul.f32 %v236, %v340
  %v367 = vmul.f32 %v237, %v341
  %v368 = vmul.f32 %v238, %v340
  %v369 = vmul.f32 %v239, %v341
  %v370 = vmul.f32 %v240, %v340
  %v371 = vmul.f32 %v241, %v341
  %v372 = vmul.f32 %v242, %v340
  %v373 = vmul.f32 %v243, %v341
  %v374 = vmul.f32 %v244, %v340
  %v375 = vmul.f32 %v245, %v341
  %v376 = vmul.f32 %v246, %v340
  %v377 = vmul.f32 %v247, %v341
  %v378 = vmul.f32 %v248, %v340
  %v379 = vmul.f32 %v249, %v341
  %v380 = vmul.f32 %v250, %v340
  %v381 = vmul.f32 %v251, %v341
  %v382 = vmul.f32 %v252, %v340
  %v383 = vmul.f32 %v253, %v341
  %v384 = vmul.f32 %v254, %v340
  %v385 = vmul.f32 %v255, %v341
  %v386 = vmul.f32 %v256, %v340
  %v387 = vmul.f32 %v257, %v341
  %v388 = vmul.f32 %v258, %v340
  %v389 = vmul.f32 %v259, %v341
  %v390 = vmul.f32 %v260, %v340
  %v391 = vmul.f32 %v261, %v341
  %v392 = vmul.f32 %v262, %v340
  %v393 = vmul.f32 %v263, %v341
  %v394 = vmul.f32 %v264, %v340
  %v395 = vmul.f32 %v265, %v341
  %v396 = vmul.f32 %v266, %v340
  %v397 = vmul.f32 %v267, %v341
  %v398 = vmul.f32 %v268, %v340
  %v399 = vmul.f32 %v269, %v341
  %v400 = vmul.f32 %v270, %v340
  %v401 = vmul.f32 %v271, %v341
  %v402 = vmul.f32 %v272, %v340
  %v403 = vmul.f32 %v273, %v341
  %v404 = vmul.f32 %v274, %v340
  %v405 = vmul.f32 %v275, %v341
  %v406 = vmul.f32 %v276, %v340
  %v407 = vmul.f32 %v277, %v341
  %v408 = vmul.f32 %v278, %v340
  %v409 = vmul.f32 %v279, %v341
  %v410 = vmul.f32 %v280, %v340
  %v411 = vmul.f32 %v281, %v341
  %v412 = vmul.f32 %v282, %v340
  %v413 = vmul.f32 %v283, %v341
  %v414 = vmul.f32 %v284, %v340
  %v415 = vmul.f32 %v285, %v341
  %v416 = vmul.f32 %v286, %v340
  %v417 = vmul.f32 %v287, %v341
  %v418 = vmul.f32 %v288, %v340
  %v419 = vmul.f32 %v289, %v341
  %v420 = vmul.f32 %v290, %v340
  %v421 = vmul.f32 %v291, %v341
  %v422 = vmul.f32 %v292, %v340
  %v423 = vmul.f32 %v293, %v341
  %v424 = vmul.f32 %v294, %v340
  %v425 = vmul.f32 %v295, %v341
  %v426 = vmul.f32 %v296, %v340
  %v427 = vmul.f32 %v297, %v341
  %v428 = vmul.f32 %v298, %v340
  %v429 = vmul.f32 %v299, %v341
  %v430 = vmul.f32 %v300, %v340
  %v431 = vmul.f32 %v301, %v341
  %v432 = vmul.f32 %v302, %v340
  %v433 = vmul.f32 %v303, %v341
  %v434 = vmul.f32 %v304, %v340
  %v435 = vmul.f32 %v305, %v341
  %v436 = vmul.f32 %v306, %v340
  %v437 = vmul.f32 %v307, %v341
  %v438 = vmul.f32 %v308, %v340
  %v439 = vmul.f32 %v309, %v341
  %v440 = vmul.f32 %v310, %v340
  %v441 = vmul.f32 %v311, %v341
  %v442 = vmul.f32 %v312, %v340
  %v443 = vmul.f32 %v313, %v341
  %v444 = vmul.f32 %v314, %v340
  %v445 = vmul.f32 %v315, %v341
  %v446 = vmul.f32 %v316, %v340
  %v447 = vmul.f32 %v317, %v341
  %v448 = vmul.f32 %v318, %v340
  %v449 = vmul.f32 %v319, %v341
  %v450 = vmul.f32 %v320, %v340
  %v451 = vmul.f32 %v321, %v341
  %v452 = vmul.f32 %v322, %v340
  %v453 = vmul.f32 %v323, %v341
  %v454 = vmul.f32 %v324, %v340
  %v455 = vmul.f32 %v325, %v341
  %v456 = vmul.f32 %v326, %v340
  %v457 = vmul.f32 %v327, %v341
  %v458 = vmul.f32 %v328, %v340
  %v459 = vmul.f32 %v329, %v341
  %v460 = vmul.f32 %v330, %v340
  %v461 = vmul.f32 %v331, %v341
  %v462 = vmul.f32 %v332, %v340
  %v463 = vmul.f32 %v333, %v341
  %v464 = vmul.f32 %v334, %v340
  %v465 = vmul.f32 %v335, %v341
  %v466 = vmul.f32 %v336, %v340
  %v467 = vmul.f32 %v337, %v341
  %v468 = vmul.f32 %v338, %v340
  %v469 = vmul.f32 %v339, %v341
  %v470 = vperm.slane %v16, 2
  %v471 = vperm.slane %v17, 2
  %v472 = vmul.f32 %v342, %v470
  %v473 = vmul.f32 %v343, %v471
  %v474 = vmul.f32 %v344, %v470
  %v475 = vmul.f32 %v345, %v471
  %v476 = vmul.f32 %v346, %v470
  %v477 = vmul.f32 %v347, %v471
  %v478 = vmul.f32 %v348, %v470
  %v479 = vmul.f32 %v349, %v471
  %v480 = vmul.f32 %v350, %v470
  %v481 = vmul.f32 %v351, %v471
  %v482 = vmul.f32 %v352, %v470
  %v483 = vmul.f32 %v353, %v471
  %v484 = vmul.f32 %v354, %v470
  %v485 = vmul.f32 %v355, %v471
  %v486 = vmul.f32 %v356, %v470
  %v487 = vmul.f32 %v357, %v471
  %v488 = vmul.f32 %v358, %v470
  %v489 = vmul.f32 %v359, %v471
  %v490 = vmul.f32 %v360, %v470
  %v491 = vmul.f32 %v361, %v471
  %v492 = vmul.f32 %v362, %v470
  %v493 = vmul.f32 %v363, %v471
  %v494 = vmul.f32 %v364, %v470
  %v495 = vmul.f32 %v365, %v471
  %v496 = vmul.f32 %v366, %v470
  %v497 = vmul.f32 %v367, %v471
  %v498 = vmul.f32 %v368, %v470
  %v499 = vmul.f32 %v369, %v471
  %v500 = vmul.f32 %v370, %v470
  %v501 = vmul.f32 %v371, %v471
  %v502 = vmul.f32 %v372, %v470
  %v503 = vmul.f32 %v373, %v471
  %v504 = vmul.f32 %v374, %v470
  %v505 = vmul.f32 %v375, %v471
  %v506 = vmul.f32 %v376, %v470
  %v507 = vmul.f32 %v377, %v471
  %v508 = vmul.f32 %v378, %v470
  %v509 = vmul.f32 %v379, %v471
  %v510 = vmul.f32 %v380, %v470
  %v511 = vmul.f32 %v381, %v471
  %v512 = vmul.f32 %v382, %v470
  %v513 = vmul.f32 %v383, %v471
  %v514 = vmul.f32 %v384, %v470
  %v515 = vmul.f32 %v385, %v471
  %v516 = vmul.f32 %v386, %v470
  %v517 = vmul.f32 %v387, %v471
  %v518 = vmul.f32 %v388, %v470
  %v519 = vmul.f32 %v389, %v471
  %v520 = vmul.f32 %v390, %v470
  %v521 = vmul.f32 %v391, %v471
  %v522 = vmul.f32 %v392, %v470
  %v523 = vmul.f32 %v393, %v471
  %v524 = vmul.f32 %v394, %v470
  %v525 = vmul.f32 %v395, %v471
  %v526 = vmul.f32 %v396, %v470
  %v527 = vmul.f32 %v397, %v471
  %v528 = vmul.f32 %v398, %v470
  %v529 = vmul.f32 %v399, %v471
  %v530 = vmul.f32 %v400, %v470
  %v531 = vmul.f32 %v401, %v471
  %v532 = vmul.f32 %v402, %v470
  %v533 = vmul.f32 %v403, %v471
  %v534 = vmul.f32 %v404, %v470
  %v535 = vmul.f32 %v405, %v471
  %v536 = vmul.f32 %v406, %v470
  %v537 = vmul.f32 %v407, %v471
  %v538 = vmul.f32 %v408, %v470
  %v539 = vmul.f32 %v409, %v471
  %v540 = vmul.f32 %v410, %v470
  %v541 = vmul.f32 %v411, %v471
  %v542 = vmul.f32 %v412, %v470
  %v543 = vmul.f32 %v413, %v471
  %v544 = vmul.f32 %v414, %v470
  %v545 = vmul.f32 %v415, %v471
  %v546 = vmul.f32 %v416, %v470
  %v547 = vmul.f32 %v417, %v471
  %v548 = vmul.f32 %v418, %v470
  %v549 = vmul.f32 %v419, %v471
  %v550 = vmul.f32 %v420, %v470
  %v551 = vmul.f32 %v421, %v471
  %v552 = vmul.f32 %v422, %v470
  %v553 = vmul.f32 %v423, %v471
  %v554 = vmul.f32 %v424, %v470
  %v555 = vmul.f32 %v425, %v471
  %v556 = vmul.f32 %v426, %v470
  %v557 = vmul.f32 %v427, %v471
  %v558 = vmul.f32 %v428, %v470
  %v559 = vmul.f32 %v429, %v471
  %v560 = vmul.f32 %v430, %v470
  %v561 = vmul.f32 %v431, %v471
  %v562 = vmul.f32 %v432, %v470
  %v563 = vmul.f32 %v433, %v471
  %v564 = vmul.f32 %v434, %v470
  %v565 = vmul.f32 %v435, %v471
  %v566 = vmul.f32 %v436, %v470
  %v567 = vmul.f32 %v437, %v471
  %v568 = vmul.f32 %v438, %v470
  %v569 = vmul.f32 %v439, %v471
  %v570 = vmul.f32 %v440, %v470
  %v571 = vmul.f32 %v441, %v471
  %v572 = vmul.f32 %v442, %v470
  %v573 = vmul.f32 %v443, %v471
  %v574 = vmul.f32 %v444, %v470
  %v575 = vmul.f32 %v445, %v471
  %v576 = vmul.f32 %v446, %v470
  %v577 = vmul.f32 %v447, %v471
  %v578 = vmul.f32 %v448, %v470
  %v579 = vmul.f32 %v449, %v471
  %v580 = vmul.f32 %v450, %v470
  %v581 = vmul.f32 %v451, %v471
  %v582 = vmul.f32 %v452, %v470
  %v583 = vmul.f32 %v453, %v471
  %v584 = vmul.f32 %v454, %v470
  %v585 = vmul.f32 %v455, %v471
  %v586 = vmul.f32 %v456, %v470
  %v587 = vmul.f32 %v457, %v471
  %v588 = vmul.f32 %v458, %v470
  %v589 = vmul.f32 %v459, %v471
  %v590 = vmul.f32 %v460, %v470
  %v591 = vmul.f32 %v461, %v471
  %v592 = vmul.f32 %v462, %v470
  %v593 = vmul.f32 %v463, %v471
  %v594 = vmul.f32 %v464, %v470
  %v595 = vmul.f32 %v465, %v471
  %v596 = vmul.f32 %v466, %v470
  %v597 = vmul.f32 %v467, %v471
  %v598 = vmul.f32 %v468, %v470
  %v599 = vmul.f32 %v469, %v471
  %v600 = vperm.slane %v16, 3
  %v601 = vperm.slane %v17, 3
  %v602 = vadd.f32 %v472, %v600
  %v603 = vadd.f32 %v473, %v601
  %v604 = vadd.f32 %v474, %v600
  %v605 = vadd.f32 %v475, %v601
  %v606 = vadd.f32 %v476, %v600
  %v607 = vadd.f32 %v477, %v601
  %v608 = vadd.f32 %v478, %v600
  %v609 = vadd.f32 %v479, %v601
  %v610 = vadd.f32 %v480, %v600
  %v611 = vadd.f32 %v481, %v601
  %v612 = vadd.f32 %v482, %v600
  %v613 = vadd.f32 %v483, %v601
  %v614 = vadd.f32 %v484, %v600
  %v615 = vadd.f32 %v485, %v601
  %v616 = vadd.f32 %v486, %v600
  %v617 = vadd.f32 %v487, %v601
  %v618 = vadd.f32 %v488, %v600
  %v619 = vadd.f32 %v489, %v601
  %v620 = vadd.f32 %v490, %v600
  %v621 = vadd.f32 %v491, %v601
  %v622 = vadd.f32 %v492, %v600
  %v623 = vadd.f32 %v493, %v601
  %v624 = vadd.f32 %v494, %v600
  %v625 = vadd.f32 %v495, %v601
  %v626 = vadd.f32 %v496, %v600
  %v627 = vadd.f32 %v497, %v601
  %v628 = vadd.f32 %v498, %v600
  %v629 = vadd.f32 %v499, %v601
  %v630 = vadd.f32 %v500, %v600
  %v631 = vadd.f32 %v501, %v601
  %v632 = vadd.f32 %v502, %v600
  %v633 = vadd.f32 %v503, %v601
  %v634 = vadd.f32 %v504, %v600
  %v635 = vadd.f32 %v505, %v601
  %v636 = vadd.f32 %v506, %v600
  %v637 = vadd.f32 %v507, %v601
  %v638 = vadd.f32 %v508, %v600
  %v639 = vadd.f32 %v509, %v601
  %v640 = vadd.f32 %v510, %v600
  %v641 = vadd.f32 %v511, %v601
  %v642 = vadd.f32 %v512, %v600
  %v643 = vadd.f32 %v513, %v601
  %v644 = vadd.f32 %v514, %v600
  %v645 = vadd.f32 %v515, %v601
  %v646 = vadd.f32 %v516, %v600
  %v647 = vadd.f32 %v517, %v601
  %v648 = vadd.f32 %v518, %v600
  %v649 = vadd.f32 %v519, %v601
  %v650 = vadd.f32 %v520, %v600
  %v651 = vadd.f32 %v521, %v601
  %v652 = vadd.f32 %v522, %v600
  %v653 = vadd.f32 %v523, %v601
  %v654 = vadd.f32 %v524, %v600
  %v655 = vadd.f32 %v525, %v601
  %v656 = vadd.f32 %v526, %v600
  %v657 = vadd.f32 %v527, %v601
  %v658 = vadd.f32 %v528, %v600
  %v659 = vadd.f32 %v529, %v601
  %v660 = vadd.f32 %v530, %v600
  %v661 = vadd.f32 %v531, %v601
  %v662 = vadd.f32 %v532, %v600
  %v663 = vadd.f32 %v533, %v601
  %v664 = vadd.f32 %v534, %v600
  %v665 = vadd.f32 %v535, %v601
  %v666 = vadd.f32 %v536, %v600
  %v667 = vadd.f32 %v537, %v601
  %v668 = vadd.f32 %v538, %v600
  %v669 = vadd.f32 %v539, %v601
  %v670 = vadd.f32 %v540, %v600
  %v671 = vadd.f32 %v541, %v601
  %v672 = vadd.f32 %v542, %v600
  %v673 = vadd.f32 %v543, %v601
  %v674 = vadd.f32 %v544, %v600
  %v675 = vadd.f32 %v545, %v601
  %v676 = vadd.f32 %v546, %v600
  %v677 = vadd.f32 %v547, %v601
  %v678 = vadd.f32 %v548, %v600
  %v679 = vadd.f32 %v549, %v601
  %v680 = vadd.f32 %v550, %v600
  %v681 = vadd.f32 %v551, %v601
  %v682 = vadd.f32 %v552, %v600
  %v683 = vadd.f32 %v553, %v601
  %v684 = vadd.f32 %v554, %v600
  %v685 = vadd.f32 %v555, %v601
  %v686 = vadd.f32 %v556, %v600
  %v687 = vadd.f32 %v557, %v601
  %v688 = vadd.f32 %v558, %v600
  %v689 = vadd.f32 %v559, %v601
  %v690 = vadd.f32 %v560, %v600
  %v691 = vadd.f32 %v561, %v601
  %v692 = vadd.f32 %v562, %v600
  %v693 = vadd.f32 %v563, %v601
  %v694 = vadd.f32 %v564, %v600
  %v695 = vadd.f32 %v565, %v601
  %v696 = vadd.f32 %v566, %v600
  %v697 = vadd.f32 %v567, %v601
  %v698 = vadd.f32 %v568, %v600
  %v699 = vadd.f32 %v569, %v601
  %v700 = vadd.f32 %v570, %v600
  %v701 = vadd.f32 %v571, %v601
  %v702 = vadd.f32 %v572, %v600
  %v703 = vadd.f32 %v573, %v601
  %v704 = vadd.f32 %v574, %v600
  %v705 = vadd.f32 %v575, %v601
  %v706 = vadd.f32 %v576, %v600
  %v707 = vadd.f32 %v577, %v601
  %v708 = vadd.f32 %v578, %v600
  %v709 = vadd.f32 %v579, %v601
  %v710 = vadd.f32 %v580, %v600
  %v711 = vadd.f32 %v581, %v601
  %v712 = vadd.f32 %v582, %v600
  %v713 = vadd.f32 %v583, %v601
  %v714 = vadd.f32 %v584, %v600
  %v715 = vadd.f32 %v585, %v601
  %v716 = vadd.f32 %v586, %v600
  %v717 = vadd.f32 %v587, %v601
  %v718 = vadd.f32 %v588, %v600
  %v719 = vadd.f32 %v589, %v601
  %v720 = vadd.f32 %v590, %v600
  %v721 = vadd.f32 %v591, %v601
  %v722 = vadd.f32 %v592, %v600
  %v723 = vadd.f32 %v593, %v601
  %v724 = vadd.f32 %v594, %v600
  %v725 = vadd.f32 %v595, %v601
  %v726 = vadd.f32 %v596, %v600
  %v727 = vadd.f32 %v597, %v601
  %v728 = vadd.f32 %v598, %v600
  %v729 = vadd.f32 %v599, %v601
  %v730 = vmax.f32 %v602, 0.0
  %v731 = vmax.f32 %v603, 0.0
  %v732 = vmax.f32 %v604, 0.0
  %v733 = vmax.f32 %v605, 0.0
  %v734 = vmax.f32 %v606, 0.0
  %v735 = vmax.f32 %v607, 0.0
  %v736 = vmax.f32 %v608, 0.0
  %v737 = vmax.f32 %v609, 0.0
  %v738 = vmax.f32 %v610, 0.0
  %v739 = vmax.f32 %v611, 0.0
  %v740 = vmax.f32 %v612, 0.0
  %v741 = vmax.f32 %v613, 0.0
  %v742 = vmax.f32 %v614, 0.0
  %v743 = vmax.f32 %v615, 0.0
  %v744 = vmax.f32 %v616, 0.0
  %v745 = vmax.f32 %v617, 0.0
  %v746 = vmax.f32 %v618, 0.0
  %v747 = vmax.f32 %v619, 0.0
  %v748 = vmax.f32 %v620, 0.0
  %v749 = vmax.f32 %v621, 0.0
  %v750 = vmax.f32 %v622, 0.0
  %v751 = vmax.f32 %v623, 0.0
  %v752 = vmax.f32 %v624, 0.0
  %v753 = vmax.f32 %v625, 0.0
  %v754 = vmax.f32 %v626, 0.0
  %v755 = vmax.f32 %v627, 0.0
  %v756 = vmax.f32 %v628, 0.0
  %v757 = vmax.f32 %v629, 0.0
  %v758 = vmax.f32 %v630, 0.0
  %v759 = vmax.f32 %v631, 0.0
  %v760 = vmax.f32 %v632, 0.0
  %v761 = vmax.f32 %v633, 0.0
  %v762 = vmax.f32 %v634, 0.0
  %v763 = vmax.f32 %v635, 0.0
  %v764 = vmax.f32 %v636, 0.0
  %v765 = vmax.f32 %v637, 0.0
  %v766 = vmax.f32 %v638, 0.0
  %v767 = vmax.f32 %v639, 0.0
  %v768 = vmax.f32 %v640, 0.0
  %v769 = vmax.f32 %v641, 0.0
  %v770 = vmax.f32 %v642, 0.0
  %v771 = vmax.f32 %v643, 0.0
  %v772 = vmax.f32 %v644, 0.0
  %v773 = vmax.f32 %v645, 0.0
  %v774 = vmax.f32 %v646, 0.0
  %v775 = vmax.f32 %v647, 0.0
  %v776 = vmax.f32 %v648, 0.0
  %v777 = vmax.f32 %v649, 0.0
  %v778 = vmax.f32 %v650, 0.0
  %v779 = vmax.f32 %v651, 0.0
  %v780 = vmax.f32 %v652, 0.0
  %v781 = vmax.f32 %v653, 0.0
  %v782 = vmax.f32 %v654, 0.0
  %v783 = vmax.f32 %v655, 0.0
  %v784 = vmax.f32 %v656, 0.0
  %v785 = vmax.f32 %v657, 0.0
  %v786 = vmax.f32 %v658, 0.0
  %v787 = vmax.f32 %v659, 0.0
  %v788 = vmax.f32 %v660, 0.0
  %v789 = vmax.f32 %v661, 0.0
  %v790 = vmax.f32 %v662, 0.0
  %v791 = vmax.f32 %v663, 0.0
  %v792 = vmax.f32 %v664, 0.0
  %v793 = vmax.f32 %v665, 0.0
  %v794 = vmax.f32 %v666, 0.0
  %v795 = vmax.f32 %v667, 0.0
  %v796 = vmax.f32 %v668, 0.0
  %v797 = vmax.f32 %v669, 0.0
  %v798 = vmax.f32 %v670, 0.0
  %v799 = vmax.f32 %v671, 0.0
  %v800 = vmax.f32 %v672, 0.0
  %v801 = vmax.f32 %v673, 0.0
  %v802 = vmax.f32 %v674, 0.0
  %v803 = vmax.f32 %v675, 0.0
  %v804 = vmax.f32 %v676, 0.0
  %v805 = vmax.f32 %v677, 0.0
  %v806 = vmax.f32 %v678, 0.0
  %v807 = vmax.f32 %v679, 0.0
  %v808 = vmax.f32 %v680, 0.0
  %v809 = vmax.f32 %v681, 0.0
  %v810 = vmax.f32 %v682, 0.0
  %v811 = vmax.f32 %v683, 0.0
  %v812 = vmax.f32 %v684, 0.0
  %v813 = vmax.f32 %v685, 0.0
  %v814 = vmax.f32 %v686, 0.0
  %v815 = vmax.f32 %v687, 0.0
  %v816 = vmax.f32 %v688, 0.0
  %v817 = vmax.f32 %v689, 0.0
  %v818 = vmax.f32 %v690, 0.0
  %v819 = vmax.f32 %v691, 0.0
  %v820 = vmax.f32 %v692, 0.0
  %v821 = vmax.f32 %v693, 0.0
  %v822 = vmax.f32 %v694, 0.0
  %v823 = vmax.f32 %v695, 0.0
  %v824 = vmax.f32 %v696, 0.0
  %v825 = vmax.f32 %v697, 0.0
  %v826 = vmax.f32 %v698, 0.0
  %v827 = vmax.f32 %v699, 0.0
  %v828 = vmax.f32 %v700, 0.0
  %v829 = vmax.f32 %v701, 0.0
  %v830 = vmax.f32 %v702, 0.0
  %v831 = vmax.f32 %v703, 0.0
  %v832 = vmax.f32 %v704, 0.0
  %v833 = vmax.f32 %v705, 0.0
  %v834 = vmax.f32 %v706, 0.0
  %v835 = vmax.f32 %v707, 0.0
  %v836 = vmax.f32 %v708, 0.0
  %v837 = vmax.f32 %v709, 0.0
  %v838 = vmax.f32 %v710, 0.0
  %v839 = vmax.f32 %v711, 0.0
  %v840 = vmax.f32 %v712, 0.0
  %v841 = vmax.f32 %v713, 0.0
  %v842 = vmax.f32 %v714, 0.0
  %v843 = vmax.f32 %v715, 0.0
  %v844 = vmax.f32 %v716, 0.0
  %v845 = vmax.f32 %v717, 0.0
  %v846 = vmax.f32 %v718, 0.0
  %v847 = vmax.f32 %v719, 0.0
  %v848 = vmax.f32 %v720, 0.0
  %v849 = vmax.f32 %v721, 0.0
  %v850 = vmax.f32 %v722, 0.0
  %v851 = vmax.f32 %v723, 0.0
  %v852 = vmax.f32 %v724, 0.0
  %v853 = vmax.f32 %v725, 0.0
  %v854 = vmax.f32 %v726, 0.0
  %v855 = vmax.f32 %v727, 0.0
  %v856 = vmax.f32 %v728, 0.0
  %v857 = vmax.f32 %v729, 0.0
  %v858 = vperm.slane %v16, 4
  %v859 = vperm.slane %v17, 4
  %v860 = vsub.f32 %v730, %v858
  %v861 = vsub.f32 %v731, %v859
  %v862 = vsub.f32 %v732, %v858
  %v863 = vsub.f32 %v733, %v859
  %v864 = vsub.f32 %v734, %v858
  %v865 = vsub.f32 %v735, %v859
  %v866 = vsub.f32 %v736, %v858
  %v867 = vsub.f32 %v737, %v859
  %v868 = vsub.f32 %v738, %v858
  %v869 = vsub.f32 %v739, %v859
  %v870 = vsub.f32 %v740, %v858
  %v871 = vsub.f32 %v741, %v859
  %v872 = vsub.f32 %v742, %v858
  %v873 = vsub.f32 %v743, %v859
  %v874 = vsub.f32 %v744, %v858
  %v875 = vsub.f32 %v745, %v859
  %v876 = vsub.f32 %v746, %v858
  %v877 = vsub.f32 %v747, %v859
  %v878 = vsub.f32 %v748, %v858
  %v879 = vsub.f32 %v749, %v859
  %v880 = vsub.f32 %v750, %v858
  %v881 = vsub.f32 %v751, %v859
  %v882 = vsub.f32 %v752, %v858
  %v883 = vsub.f32 %v753, %v859
  %v884 = vsub.f32 %v754, %v858
  %v885 = vsub.f32 %v755, %v859
  %v886 = vsub.f32 %v756, %v858
  %v887 = vsub.f32 %v757, %v859
  %v888 = vsub.f32 %v758, %v858
  %v889 = vsub.f32 %v759, %v859
  %v890 = vsub.f32 %v760, %v858
  %v891 = vsub.f32 %v761, %v859
  %v892 = vsub.f32 %v762, %v858
  %v893 = vsub.f32 %v763, %v859
  %v894 = vsub.f32 %v764, %v858
  %v895 = vsub.f32 %v765, %v859
  %v896 = vsub.f32 %v766, %v858
  %v897 = vsub.f32 %v767, %v859
  %v898 = vsub.f32 %v768, %v858
  %v899 = vsub.f32 %v769, %v859
  %v900 = vsub.f32 %v770, %v858
  %v901 = vsub.f32 %v771, %v859
  %v902 = vsub.f32 %v772, %v858
  %v903 = vsub.f32 %v773, %v859
  %v904 = vsub.f32 %v774, %v858
  %v905 = vsub.f32 %v775, %v859
  %v906 = vsub.f32 %v776, %v858
  %v907 = vsub.f32 %v777, %v859
  %v908 = vsub.f32 %v778, %v858
  %v909 = vsub.f32 %v779, %v859
  %v910 = vsub.f32 %v780, %v858
  %v911 = vsub.f32 %v781, %v859
  %v912 = vsub.f32 %v782, %v858
  %v913 = vsub.f32 %v783, %v859
  %v914 = vsub.f32 %v784, %v858
  %v915 = vsub.f32 %v785, %v859
  %v916 = vsub.f32 %v786, %v858
  %v917 = vsub.f32 %v787, %v859
  %v918 = vsub.f32 %v788, %v858
  %v919 = vsub.f32 %v789, %v859
  %v920 = vsub.f32 %v790, %v858
  %v921 = vsub.f32 %v791, %v859
  %v922 = vsub.f32 %v792, %v858
  %v923 = vsub.f32 %v793, %v859
  %v924 = vsub.f32 %v794, %v858
  %v925 = vsub.f32 %v795, %v859
  %v926 = vsub.f32 %v796, %v858
  %v927 = vsub.f32 %v797, %v859
  %v928 = vsub.f32 %v798, %v858
  %v929 = vsub.f32 %v799, %v859
  %v930 = vsub.f32 %v800, %v858
  %v931 = vsub.f32 %v801, %v859
  %v932 = vsub.f32 %v802, %v858
  %v933 = vsub.f32 %v803, %v859
  %v934 = vsub.f32 %v804, %v858
  %v935 = vsub.f32 %v805, %v859
  %v936 = vsub.f32 %v806, %v858
  %v937 = vsub.f32 %v807, %v859
  %v938 = vsub.f32 %v808, %v858
  %v939 = vsub.f32 %v809, %v859
  %v940 = vsub.f32 %v810, %v858
  %v941 = vsub.f32 %v811, %v859
  %v942 = vsub.f32 %v812, %v858
  %v943 = vsub.f32 %v813, %v859
  %v944 = vsub.f32 %v814, %v858
  %v945 = vsub.f32 %v815, %v859
  %v946 = vsub.f32 %v816, %v858
  %v947 = vsub.f32 %v817, %v859
  %v948 = vsub.f32 %v818, %v858
  %v949 = vsub.f32 %v819, %v859
  %v950 = vsub.f32 %v820, %v858
  %v951 = vsub.f32 %v821, %v859
  %v952 = vsub.f32 %v822, %v858
  %v953 = vsub.f32 %v823, %v859
  %v954 = vsub.f32 %v824, %v858
  %v955 = vsub.f32 %v825, %v859
  %v956 = vsub.f32 %v826, %v858
  %v957 = vsub.f32 %v827, %v859
  %v958 = vsub.f32 %v828, %v858
  %v959 = vsub.f32 %v829, %v859
  %v960 = vsub.f32 %v830, %v858
  %v961 = vsub.f32 %v831, %v859
  %v962 = vsub.f32 %v832, %v858
  %v963 = vsub.f32 %v833, %v859
  %v964 = vsub.f32 %v834, %v858
  %v965 = vsub.f32 %v835, %v859
  %v966 = vsub.f32 %v836, %v858
  %v967 = vsub.f32 %v837, %v859
  %v968 = vsub.f32 %v838, %v858
  %v969 = vsub.f32 %v839, %v859
  %v970 = vsub.f32 %v840, %v858
  %v971 = vsub.f32 %v841, %v859
  %v972 = vsub.f32 %v842, %v858
  %v973 = vsub.f32 %v843, %v859
  %v974 = vsub.f32 %v844, %v858
  %v975 = vsub.f32 %v845, %v859
  %v976 = vsub.f32 %v846, %v858
  %v977 = vsub.f32 %v847, %v859
  %v978 = vsub.f32 %v848, %v858
  %v979 = vsub.f32 %v849, %v859
  %v980 = vsub.f32 %v850, %v858
  %v981 = vsub.f32 %v851, %v859
  %v982 = vsub.f32 %v852, %v858
  %v983 = vsub.f32 %v853, %v859
  %v984 = vsub.f32 %v854, %v858
  %v985 = vsub.f32 %v855, %v859
  %v986 = vsub.f32 %v856, %v858
  %v987 = vsub.f32 %v857, %v859
  %v988 = vperm.slane %v16, 5
  %v989 = vperm.slane %v17, 5
  %v990 = vmul.f32 %v860, %v988
  %v991 = vmul.f32 %v861, %v989
  %v992 = vmul.f32 %v862, %v988
  %v993 = vmul.f32 %v863, %v989
  %v994 = vmul.f32 %v864, %v988
  %v995 = vmul.f32 %v865, %v989
  %v996 = vmul.f32 %v866, %v988
  %v997 = vmul.f32 %v867, %v989
  %v998 = vmul.f32 %v868, %v988
  %v999 = vmul.f32 %v869, %v989
  %v1000 = vmul.f32 %v870, %v988
  %v1001 = vmul.f32 %v871, %v989
  %v1002 = vmul.f32 %v872, %v988
  %v1003 = vmul.f32 %v873, %v989
  %v1004 = vmul.f32 %v874, %v988
  %v1005 = vmul.f32 %v875, %v989
  %v1006 = vmul.f32 %v876, %v988
  %v1007 = vmul.f32 %v877, %v989
  %v1008 = vmul.f32 %v878, %v988
  %v1009 = vmul.f32 %v879, %v989
  %v1010 = vmul.f32 %v880, %v988
  %v1011 = vmul.f32 %v881, %v989
  %v1012 = vmul.f32 %v882, %v988
  %v1013 = vmul.f32 %v883, %v989
  %v1014 = vmul.f32 %v884, %v988
  %v1015 = vmul.f32 %v885, %v989
  %v1016 = vmul.f32 %v886, %v988
  %v1017 = vmul.f32 %v887, %v989
  %v1018 = vmul.f32 %v888, %v988
  %v1019 = vmul.f32 %v889, %v989
  %v1020 = vmul.f32 %v890, %v988
  %v1021 = vmul.f32 %v891, %v989
  %v1022 = vmul.f32 %v892, %v988
  %v1023 = vmul.f32 %v893, %v989
  %v1024 = vmul.f32 %v894, %v988
  %v1025 = vmul.f32 %v895, %v989
  %v1026 = vmul.f32 %v896, %v988
  %v1027 = vmul.f32 %v897, %v989
  %v1028 = vmul.f32 %v898, %v988
  %v1029 = vmul.f32 %v899, %v989
  %v1030 = vmul.f32 %v900, %v988
  %v1031 = vmul.f32 %v901, %v989
  %v1032 = vmul.f32 %v902, %v988
  %v1033 = vmul.f32 %v903, %v989
  %v1034 = vmul.f32 %v904, %v988
  %v1035 = vmul.f32 %v905, %v989
  %v1036 = vmul.f32 %v906, %v988
  %v1037 = vmul.f32 %v907, %v989
  %v1038 = vmul.f32 %v908, %v988
  %v1039 = vmul.f32 %v909, %v989
  %v1040 = vmul.f32 %v910, %v988
  %v1041 = vmul.f32 %v911, %v989
  %v1042 = vmul.f32 %v912, %v988
  %v1043 = vmul.f32 %v913, %v989
  %v1044 = vmul.f32 %v914, %v988
  %v1045 = vmul.f32 %v915, %v989
  %v1046 = vmul.f32 %v916, %v988
  %v1047 = vmul.f32 %v917, %v989
  %v1048 = vmul.f32 %v918, %v988
  %v1049 = vmul.f32 %v919, %v989
  %v1050 = vmul.f32 %v920, %v988
  %v1051 = vmul.f32 %v921, %v989
  %v1052 = vmul.f32 %v922, %v988
  %v1053 = vmul.f32 %v923, %v989
  %v1054 = vmul.f32 %v924, %v988
  %v1055 = vmul.f32 %v925, %v989
  %v1056 = vmul.f32 %v926, %v988
  %v1057 = vmul.f32 %v927, %v989
  %v1058 = vmul.f32 %v928, %v988
  %v1059 = vmul.f32 %v929, %v989
  %v1060 = vmul.f32 %v930, %v988
  %v1061 = vmul.f32 %v931, %v989
  %v1062 = vmul.f32 %v932, %v988
  %v1063 = vmul.f32 %v933, %v989
  %v1064 = vmul.f32 %v934, %v988
  %v1065 = vmul.f32 %v935, %v989
  %v1066 = vmul.f32 %v936, %v988
  %v1067 = vmul.f32 %v937, %v989
  %v1068 = vmul.f32 %v938, %v988
  %v1069 = vmul.f32 %v939, %v989
  %v1070 = vmul.f32 %v940, %v988
  %v1071 = vmul.f32 %v941, %v989
  %v1072 = vmul.f32 %v942, %v988
  %v1073 = vmul.f32 %v943, %v989
  %v1074 = vmul.f32 %v944, %v988
  %v1075 = vmul.f32 %v945, %v989
  %v1076 = vmul.f32 %v946, %v988
  %v1077 = vmul.f32 %v947, %v989
  %v1078 = vmul.f32 %v948, %v988
  %v1079 = vmul.f32 %v949, %v989
  %v1080 = vmul.f32 %v950, %v988
  %v1081 = vmul.f32 %v951, %v989
  %v1082 = vmul.f32 %v952, %v988
  %v1083 = vmul.f32 %v953, %v989
  %v1084 = vmul.f32 %v954, %v988
  %v1085 = vmul.f32 %v955, %v989
  %v1086 = vmul.f32 %v956, %v988
  %v1087 = vmul.f32 %v957, %v989
  %v1088 = vmul.f32 %v958, %v988
  %v1089 = vmul.f32 %v959, %v989
  %v1090 = vmul.f32 %v960, %v988
  %v1091 = vmul.f32 %v961, %v989
  %v1092 = vmul.f32 %v962, %v988
  %v1093 = vmul.f32 %v963, %v989
  %v1094 = vmul.f32 %v964, %v988
  %v1095 = vmul.f32 %v965, %v989
  %v1096 = vmul.f32 %v966, %v988
  %v1097 = vmul.f32 %v967, %v989
  %v1098 = vmul.f32 %v968, %v988
  %v1099 = vmul.f32 %v969, %v989
  %v1100 = vmul.f32 %v970, %v988
  %v1101 = vmul.f32 %v971, %v989
  %v1102 = vmul.f32 %v972, %v988
  %v1103 = vmul.f32 %v973, %v989
  %v1104 = vmul.f32 %v974, %v988
  %v1105 = vmul.f32 %v975, %v989
  %v1106 = vmul.f32 %v976, %v988
  %v1107 = vmul.f32 %v977, %v989
  %v1108 = vmul.f32 %v978, %v988
  %v1109 = vmul.f32 %v979, %v989
  %v1110 = vmul.f32 %v980, %v988
  %v1111 = vmul.f32 %v981, %v989
  %v1112 = vmul.f32 %v982, %v988
  %v1113 = vmul.f32 %v983, %v989
  %v1114 = vmul.f32 %v984, %v988
  %v1115 = vmul.f32 %v985, %v989
  %v1116 = vmul.f32 %v986, %v988
  %v1117 = vmul.f32 %v987, %v989
  %v1118 = vpack.c.bf16 %v992, %v990
  %v1119 = vpack.c.bf16 %v993, %v991
  %v1120 = vpack.c.bf16 %v996, %v994
  %v1121 = vpack.c.bf16 %v997, %v995
  %v1122 = vpack.c.bf16 %v1000, %v998
  %v1123 = vpack.c.bf16 %v1001, %v999
  %v1124 = vpack.c.bf16 %v1004, %v1002
  %v1125 = vpack.c.bf16 %v1005, %v1003
  %v1126 = vpack.c.bf16 %v1008, %v1006
  %v1127 = vpack.c.bf16 %v1009, %v1007
  %v1128 = vpack.c.bf16 %v1012, %v1010
  %v1129 = vpack.c.bf16 %v1013, %v1011
  %v1130 = vpack.c.bf16 %v1016, %v1014
  %v1131 = vpack.c.bf16 %v1017, %v1015
  %v1132 = vpack.c.bf16 %v1020, %v1018
  %v1133 = vpack.c.bf16 %v1021, %v1019
  %v1134 = vpack.c.bf16 %v1024, %v1022
  %v1135 = vpack.c.bf16 %v1025, %v1023
  %v1136 = vpack.c.bf16 %v1028, %v1026
  %v1137 = vpack.c.bf16 %v1029, %v1027
  %v1138 = vpack.c.bf16 %v1032, %v1030
  %v1139 = vpack.c.bf16 %v1033, %v1031
  %v1140 = vpack.c.bf16 %v1036, %v1034
  %v1141 = vpack.c.bf16 %v1037, %v1035
  %v1142 = vpack.c.bf16 %v1040, %v1038
  %v1143 = vpack.c.bf16 %v1041, %v1039
  %v1144 = vpack.c.bf16 %v1044, %v1042
  %v1145 = vpack.c.bf16 %v1045, %v1043
  %v1146 = vpack.c.bf16 %v1048, %v1046
  %v1147 = vpack.c.bf16 %v1049, %v1047
  %v1148 = vpack.c.bf16 %v1052, %v1050
  %v1149 = vpack.c.bf16 %v1053, %v1051
  %v1150 = vpack.c.bf16 %v1056, %v1054
  %v1151 = vpack.c.bf16 %v1057, %v1055
  %v1152 = vpack.c.bf16 %v1060, %v1058
  %v1153 = vpack.c.bf16 %v1061, %v1059
  %v1154 = vpack.c.bf16 %v1064, %v1062
  %v1155 = vpack.c.bf16 %v1065, %v1063
  %v1156 = vpack.c.bf16 %v1068, %v1066
  %v1157 = vpack.c.bf16 %v1069, %v1067
  %v1158 = vpack.c.bf16 %v1072, %v1070
  %v1159 = vpack.c.bf16 %v1073, %v1071
  %v1160 = vpack.c.bf16 %v1076, %v1074
  %v1161 = vpack.c.bf16 %v1077, %v1075
  %v1162 = vpack.c.bf16 %v1080, %v1078
  %v1163 = vpack.c.bf16 %v1081, %v1079
  %v1164 = vpack.c.bf16 %v1084, %v1082
  %v1165 = vpack.c.bf16 %v1085, %v1083
  %v1166 = vpack.c.bf16 %v1088, %v1086
  %v1167 = vpack.c.bf16 %v1089, %v1087
  %v1168 = vpack.c.bf16 %v1092, %v1090
  %v1169 = vpack.c.bf16 %v1093, %v1091
  %v1170 = vpack.c.bf16 %v1096, %v1094
  %v1171 = vpack.c.bf16 %v1097, %v1095
  %v1172 = vpack.c.bf16 %v1100, %v1098
  %v1173 = vpack.c.bf16 %v1101, %v1099
  %v1174 = vpack.c.bf16 %v1104, %v1102
  %v1175 = vpack.c.bf16 %v1105, %v1103
  %v1176 = vpack.c.bf16 %v1108, %v1106
  %v1177 = vpack.c.bf16 %v1109, %v1107
  %v1178 = vpack.c.bf16 %v1112, %v1110
  %v1179 = vpack.c.bf16 %v1113, %v1111
  %v1180 = vpack.c.bf16 %v1116, %v1114
  %v1181 = vpack.c.bf16 %v1117, %v1115
  %v1182 = vld [vmem:[%s2] sm:$0xf]
  %v1183 = vld [vmem:[%s2 + $0x4] sm:$0xf]
  %v1184 = vld [vmem:[%s2 + $0x8] sm:$0xf]
  %v1185 = vld [vmem:[%s2 + $0xc] sm:$0xf]
  %v1186 = vld [vmem:[%s2 + $0x10] sm:$0xf]
  %v1187 = vld [vmem:[%s2 + $0x14] sm:$0xf]
  %v1188 = vld [vmem:[%s2 + $0x18] sm:$0xf]
  %v1189 = vld [vmem:[%s2 + $0x1c] sm:$0xf]
  %v1190 = vld [vmem:[%s2 + $0x20] sm:$0xf]
  %v1191 = vld [vmem:[%s2 + $0x24] sm:$0xf]
  %v1192 = vld [vmem:[%s2 + $0x28] sm:$0xf]
  %v1193 = vld [vmem:[%s2 + $0x2c] sm:$0xf]
  %v1194 = vld [vmem:[%s2 + $0x30] sm:$0xf]
  %v1195 = vld [vmem:[%s2 + $0x34] sm:$0xf]
  %v1196 = vld [vmem:[%s2 + $0x38] sm:$0xf]
  %v1197 = vld [vmem:[%s2 + $0x3c] sm:$0xf]
  %v1198 = vld [vmem:[%s2 + $0x40] sm:$0xf]
  %v1199 = vld [vmem:[%s2 + $0x44] sm:$0xf]
  %v1200 = vld [vmem:[%s2 + $0x48] sm:$0xf]
  %v1201 = vld [vmem:[%s2 + $0x4c] sm:$0xf]
  %v1202 = vld [vmem:[%s2 + $0x50] sm:$0xf]
  %v1203 = vld [vmem:[%s2 + $0x54] sm:$0xf]
  %v1204 = vld [vmem:[%s2 + $0x58] sm:$0xf]
  %v1205 = vld [vmem:[%s2 + $0x5c] sm:$0xf]
  %v1206 = vld [vmem:[%s2 + $0x60] sm:$0xf]
  %v1207 = vld [vmem:[%s2 + $0x64] sm:$0xf]
  %v1208 = vld [vmem:[%s2 + $0x68] sm:$0xf]
  %v1209 = vld [vmem:[%s2 + $0x6c] sm:$0xf]
  %v1210 = vld [vmem:[%s2 + $0x70] sm:$0xf]
  %v1211 = vld [vmem:[%s2 + $0x74] sm:$0xf]
  %v1212 = vld [vmem:[%s2 + $0x78] sm:$0xf]
  %v1213 = vld [vmem:[%s2 + $0x7c] sm:$0xf]
  %v1246 = vunpack.c.l.b16 %v1182
  %v1247 = vunpack.c.l.b16 %v1183
  %v1248 = vunpack.c.l.b16 %v1184
  %v1249 = vunpack.c.l.b16 %v1185
  %v1250 = vunpack.c.l.b16 %v1186
  %v1251 = vunpack.c.l.b16 %v1187
  %v1252 = vunpack.c.l.b16 %v1188
  %v1253 = vunpack.c.l.b16 %v1189
  %v1254 = vunpack.c.l.b16 %v1190
  %v1255 = vunpack.c.l.b16 %v1191
  %v1256 = vunpack.c.l.b16 %v1192
  %v1257 = vunpack.c.l.b16 %v1193
  %v1258 = vunpack.c.l.b16 %v1194
  %v1259 = vunpack.c.l.b16 %v1195
  %v1260 = vunpack.c.l.b16 %v1196
  %v1261 = vunpack.c.l.b16 %v1197
  %v1262 = vunpack.c.l.b16 %v1198
  %v1263 = vunpack.c.l.b16 %v1199
  %v1264 = vunpack.c.l.b16 %v1200
  %v1265 = vunpack.c.l.b16 %v1201
  %v1266 = vunpack.c.l.b16 %v1202
  %v1267 = vunpack.c.l.b16 %v1203
  %v1268 = vunpack.c.l.b16 %v1204
  %v1269 = vunpack.c.l.b16 %v1205
  %v1270 = vunpack.c.l.b16 %v1206
  %v1271 = vunpack.c.l.b16 %v1207
  %v1272 = vunpack.c.l.b16 %v1208
  %v1273 = vunpack.c.l.b16 %v1209
  %v1274 = vunpack.c.l.b16 %v1210
  %v1275 = vunpack.c.l.b16 %v1211
  %v1276 = vunpack.c.l.b16 %v1212
  %v1277 = vunpack.c.l.b16 %v1213
  %v1278 = vpack.c.b16 %v1247, %v1246
  %v1279 = vpack.c.b16 %v1249, %v1248
  %v1280 = vpack.c.b16 %v1251, %v1250
  %v1281 = vpack.c.b16 %v1253, %v1252
  %v1282 = vpack.c.b16 %v1255, %v1254
  %v1283 = vpack.c.b16 %v1257, %v1256
  %v1284 = vpack.c.b16 %v1259, %v1258
  %v1285 = vpack.c.b16 %v1261, %v1260
  %v1286 = vpack.c.b16 %v1263, %v1262
  %v1287 = vpack.c.b16 %v1265, %v1264
  %v1288 = vpack.c.b16 %v1267, %v1266
  %v1289 = vpack.c.b16 %v1269, %v1268
  %v1290 = vpack.c.b16 %v1271, %v1270
  %v1291 = vpack.c.b16 %v1273, %v1272
  %v1292 = vpack.c.b16 %v1275, %v1274
  %v1293 = vpack.c.b16 %v1277, %v1276
  %1310 = vmatpush.bf16.msra.mxu0 %v1285
  %1311 = vmatpush.bf16.msra.mxu0 %v1284
  %1312 = vmatpush.bf16.msra.mxu0 %v1283
  %1313 = vmatpush.bf16.msra.mxu0 %v1282
  %1314 = vmatpush.bf16.msra.mxu0 %v1281
  %1315 = vmatpush.bf16.msra.mxu0 %v1280
  %1316 = vmatpush.bf16.msra.mxu0 %v1279
  %1317 = vmatpush.bf16.msra.mxu0 %v1278
  %1318 = vmatmul.bf16.gmra.mxu0 %v1118
  %v1319 = vpop.f32.mrf.mxu0
  %v1320 = vadd.f32 0.0, %v1319
  %v1321 = vpop.f32.mrf.mxu0
  %v1322 = vadd.f32 0.0, %v1321
  %1323 = vmatmul.bf16.gmra.mxu0 %v1120
  %v1324 = vpop.f32.mrf.mxu0
  %v1325 = vadd.f32 0.0, %v1324
  %v1326 = vpop.f32.mrf.mxu0
  %v1327 = vadd.f32 0.0, %v1326
  %1328 = vmatmul.bf16.gmra.mxu0 %v1122
  %v1329 = vpop.f32.mrf.mxu0
  %v1330 = vadd.f32 0.0, %v1329
  %v1331 = vpop.f32.mrf.mxu0
  %v1332 = vadd.f32 0.0, %v1331
  %1333 = vmatmul.bf16.gmra.mxu0 %v1124
  %v1334 = vpop.f32.mrf.mxu0
  %v1335 = vadd.f32 0.0, %v1334
  %v1336 = vpop.f32.mrf.mxu0
  %v1337 = vadd.f32 0.0, %v1336
  %1338 = vmatmul.bf16.gmra.mxu0 %v1126
  %v1339 = vpop.f32.mrf.mxu0
  %v1340 = vadd.f32 0.0, %v1339
  %v1341 = vpop.f32.mrf.mxu0
  %v1342 = vadd.f32 0.0, %v1341
  %1343 = vmatmul.bf16.gmra.mxu0 %v1128
  %v1344 = vpop.f32.mrf.mxu0
  %v1345 = vadd.f32 0.0, %v1344
  %v1346 = vpop.f32.mrf.mxu0
  %v1347 = vadd.f32 0.0, %v1346
  %1348 = vmatmul.bf16.gmra.mxu0 %v1130
  %v1349 = vpop.f32.mrf.mxu0
  %v1350 = vadd.f32 0.0, %v1349
  %v1351 = vpop.f32.mrf.mxu0
  %v1352 = vadd.f32 0.0, %v1351
  %1353 = vmatmul.bf16.gmra.mxu0 %v1132
  %v1354 = vpop.f32.mrf.mxu0
  %v1355 = vadd.f32 0.0, %v1354
  %v1356 = vpop.f32.mrf.mxu0
  %v1357 = vadd.f32 0.0, %v1356
  %1358 = vmatmul.bf16.gmra.mxu0 %v1134
  %v1359 = vpop.f32.mrf.mxu0
  %v1360 = vadd.f32 0.0, %v1359
  %v1361 = vpop.f32.mrf.mxu0
  %v1362 = vadd.f32 0.0, %v1361
  %1363 = vmatmul.bf16.gmra.mxu0 %v1136
  %v1364 = vpop.f32.mrf.mxu0
  %v1365 = vadd.f32 0.0, %v1364
  %v1366 = vpop.f32.mrf.mxu0
  %v1367 = vadd.f32 0.0, %v1366
  %1368 = vmatmul.bf16.gmra.mxu0 %v1138
  %v1369 = vpop.f32.mrf.mxu0
  %v1370 = vadd.f32 0.0, %v1369
  %v1371 = vpop.f32.mrf.mxu0
  %v1372 = vadd.f32 0.0, %v1371
  %1373 = vmatmul.bf16.gmra.mxu0 %v1140
  %v1374 = vpop.f32.mrf.mxu0
  %v1375 = vadd.f32 0.0, %v1374
  %v1376 = vpop.f32.mrf.mxu0
  %v1377 = vadd.f32 0.0, %v1376
  %1378 = vmatmul.bf16.gmra.mxu0 %v1142
  %v1379 = vpop.f32.mrf.mxu0
  %v1380 = vadd.f32 0.0, %v1379
  %v1381 = vpop.f32.mrf.mxu0
  %v1382 = vadd.f32 0.0, %v1381
  %1383 = vmatmul.bf16.gmra.mxu0 %v1144
  %v1384 = vpop.f32.mrf.mxu0
  %v1385 = vadd.f32 0.0, %v1384
  %v1386 = vpop.f32.mrf.mxu0
  %v1387 = vadd.f32 0.0, %v1386
  %1388 = vmatmul.bf16.gmra.mxu0 %v1146
  %v1389 = vpop.f32.mrf.mxu0
  %v1390 = vadd.f32 0.0, %v1389
  %v1391 = vpop.f32.mrf.mxu0
  %v1392 = vadd.f32 0.0, %v1391
  %1393 = vmatmul.bf16.gmra.mxu0 %v1148
  %v1394 = vpop.f32.mrf.mxu0
  %v1395 = vadd.f32 0.0, %v1394
  %v1396 = vpop.f32.mrf.mxu0
  %v1397 = vadd.f32 0.0, %v1396
  %1398 = vmatmul.bf16.gmra.mxu0 %v1150
  %v1399 = vpop.f32.mrf.mxu0
  %v1400 = vadd.f32 0.0, %v1399
  %v1401 = vpop.f32.mrf.mxu0
  %v1402 = vadd.f32 0.0, %v1401
  %1403 = vmatmul.bf16.gmra.mxu0 %v1152
  %v1404 = vpop.f32.mrf.mxu0
  %v1405 = vadd.f32 0.0, %v1404
  %v1406 = vpop.f32.mrf.mxu0
  %v1407 = vadd.f32 0.0, %v1406
  %1408 = vmatmul.bf16.gmra.mxu0 %v1154
  %v1409 = vpop.f32.mrf.mxu0
  %v1410 = vadd.f32 0.0, %v1409
  %v1411 = vpop.f32.mrf.mxu0
  %v1412 = vadd.f32 0.0, %v1411
  %1413 = vmatmul.bf16.gmra.mxu0 %v1156
  %v1414 = vpop.f32.mrf.mxu0
  %v1415 = vadd.f32 0.0, %v1414
  %v1416 = vpop.f32.mrf.mxu0
  %v1417 = vadd.f32 0.0, %v1416
  %1418 = vmatmul.bf16.gmra.mxu0 %v1158
  %v1419 = vpop.f32.mrf.mxu0
  %v1420 = vadd.f32 0.0, %v1419
  %v1421 = vpop.f32.mrf.mxu0
  %v1422 = vadd.f32 0.0, %v1421
  %1423 = vmatmul.bf16.gmra.mxu0 %v1160
  %v1424 = vpop.f32.mrf.mxu0
  %v1425 = vadd.f32 0.0, %v1424
  %v1426 = vpop.f32.mrf.mxu0
  %v1427 = vadd.f32 0.0, %v1426
  %1428 = vmatmul.bf16.gmra.mxu0 %v1162
  %v1429 = vpop.f32.mrf.mxu0
  %v1430 = vadd.f32 0.0, %v1429
  %v1431 = vpop.f32.mrf.mxu0
  %v1432 = vadd.f32 0.0, %v1431
  %1433 = vmatmul.bf16.gmra.mxu0 %v1164
  %v1434 = vpop.f32.mrf.mxu0
  %v1435 = vadd.f32 0.0, %v1434
  %v1436 = vpop.f32.mrf.mxu0
  %v1437 = vadd.f32 0.0, %v1436
  %1438 = vmatmul.bf16.gmra.mxu0 %v1166
  %v1439 = vpop.f32.mrf.mxu0
  %v1440 = vadd.f32 0.0, %v1439
  %v1441 = vpop.f32.mrf.mxu0
  %v1442 = vadd.f32 0.0, %v1441
  %1443 = vmatmul.bf16.gmra.mxu0 %v1168
  %v1444 = vpop.f32.mrf.mxu0
  %v1445 = vadd.f32 0.0, %v1444
  %v1446 = vpop.f32.mrf.mxu0
  %v1447 = vadd.f32 0.0, %v1446
  %1448 = vmatmul.bf16.gmra.mxu0 %v1170
  %v1449 = vpop.f32.mrf.mxu0
  %v1450 = vadd.f32 0.0, %v1449
  %v1451 = vpop.f32.mrf.mxu0
  %v1452 = vadd.f32 0.0, %v1451
  %1453 = vmatmul.bf16.gmra.mxu0 %v1172
  %v1454 = vpop.f32.mrf.mxu0
  %v1455 = vadd.f32 0.0, %v1454
  %v1456 = vpop.f32.mrf.mxu0
  %v1457 = vadd.f32 0.0, %v1456
  %1458 = vmatmul.bf16.gmra.mxu0 %v1174
  %v1459 = vpop.f32.mrf.mxu0
  %v1460 = vadd.f32 0.0, %v1459
  %v1461 = vpop.f32.mrf.mxu0
  %v1462 = vadd.f32 0.0, %v1461
  %1463 = vmatmul.bf16.gmra.mxu0 %v1176
  %v1464 = vpop.f32.mrf.mxu0
  %v1465 = vadd.f32 0.0, %v1464
  %v1466 = vpop.f32.mrf.mxu0
  %v1467 = vadd.f32 0.0, %v1466
  %1468 = vmatmul.bf16.gmra.mxu0 %v1178
  %v1469 = vpop.f32.mrf.mxu0
  %v1470 = vadd.f32 0.0, %v1469
  %v1471 = vpop.f32.mrf.mxu0
  %v1472 = vadd.f32 0.0, %v1471
  %1473 = vmatmul.bf16.gmra.mxu0 %v1180
  %v1474 = vpop.f32.mrf.mxu0
  %v1475 = vadd.f32 0.0, %v1474
  %v1476 = vpop.f32.mrf.mxu0
  %v1477 = vadd.f32 0.0, %v1476
  %1478 = vdwg.mxu0
  %1479 = vmatpush.bf16.msra.mxu0 %v1293
  %1480 = vmatpush.bf16.msra.mxu0 %v1292
  %1481 = vmatpush.bf16.msra.mxu0 %v1291
  %1482 = vmatpush.bf16.msra.mxu0 %v1290
  %1483 = vmatpush.bf16.msra.mxu0 %v1289
  %1484 = vmatpush.bf16.msra.mxu0 %v1288
  %1485 = vmatpush.bf16.msra.mxu0 %v1287
  %1486 = vmatpush.bf16.msra.mxu0 %v1286
  %1487 = vmatmul.bf16.gmra.mxu0 %v1119
  %v1488 = vpop.f32.mrf.mxu0
  %v1489 = vadd.f32 %v1320, %v1488
  %v1490 = vpop.f32.mrf.mxu0
  %v1491 = vadd.f32 %v1322, %v1490
  %1492 = vmatmul.bf16.gmra.mxu0 %v1121
  %v1493 = vpop.f32.mrf.mxu0
  %v1494 = vadd.f32 %v1325, %v1493
  %v1495 = vpop.f32.mrf.mxu0
  %v1496 = vadd.f32 %v1327, %v1495
  %1497 = vmatmul.bf16.gmra.mxu0 %v1123
  %v1498 = vpop.f32.mrf.mxu0
  %v1499 = vadd.f32 %v1330, %v1498
  %v1500 = vpop.f32.mrf.mxu0
  %v1501 = vadd.f32 %v1332, %v1500
  %1502 = vmatmul.bf16.gmra.mxu0 %v1125
  %v1503 = vpop.f32.mrf.mxu0
  %v1504 = vadd.f32 %v1335, %v1503
  %v1505 = vpop.f32.mrf.mxu0
  %v1506 = vadd.f32 %v1337, %v1505
  %1507 = vmatmul.bf16.gmra.mxu0 %v1127
  %v1508 = vpop.f32.mrf.mxu0
  %v1509 = vadd.f32 %v1340, %v1508
  %v1510 = vpop.f32.mrf.mxu0
  %v1511 = vadd.f32 %v1342, %v1510
  %1512 = vmatmul.bf16.gmra.mxu0 %v1129
  %v1513 = vpop.f32.mrf.mxu0
  %v1514 = vadd.f32 %v1345, %v1513
  %v1515 = vpop.f32.mrf.mxu0
  %v1516 = vadd.f32 %v1347, %v1515
  %1517 = vmatmul.bf16.gmra.mxu0 %v1131
  %v1518 = vpop.f32.mrf.mxu0
  %v1519 = vadd.f32 %v1350, %v1518
  %v1520 = vpop.f32.mrf.mxu0
  %v1521 = vadd.f32 %v1352, %v1520
  %1522 = vmatmul.bf16.gmra.mxu0 %v1133
  %v1523 = vpop.f32.mrf.mxu0
  %v1524 = vadd.f32 %v1355, %v1523
  %v1525 = vpop.f32.mrf.mxu0
  %v1526 = vadd.f32 %v1357, %v1525
  %1527 = vmatmul.bf16.gmra.mxu0 %v1135
  %v1528 = vpop.f32.mrf.mxu0
  %v1529 = vadd.f32 %v1360, %v1528
  %v1530 = vpop.f32.mrf.mxu0
  %v1531 = vadd.f32 %v1362, %v1530
  %1532 = vmatmul.bf16.gmra.mxu0 %v1137
  %v1533 = vpop.f32.mrf.mxu0
  %v1534 = vadd.f32 %v1365, %v1533
  %v1535 = vpop.f32.mrf.mxu0
  %v1536 = vadd.f32 %v1367, %v1535
  %1537 = vmatmul.bf16.gmra.mxu0 %v1139
  %v1538 = vpop.f32.mrf.mxu0
  %v1539 = vadd.f32 %v1370, %v1538
  %v1540 = vpop.f32.mrf.mxu0
  %v1541 = vadd.f32 %v1372, %v1540
  %1542 = vmatmul.bf16.gmra.mxu0 %v1141
  %v1543 = vpop.f32.mrf.mxu0
  %v1544 = vadd.f32 %v1375, %v1543
  %v1545 = vpop.f32.mrf.mxu0
  %v1546 = vadd.f32 %v1377, %v1545
  %1547 = vmatmul.bf16.gmra.mxu0 %v1143
  %v1548 = vpop.f32.mrf.mxu0
  %v1549 = vadd.f32 %v1380, %v1548
  %v1550 = vpop.f32.mrf.mxu0
  %v1551 = vadd.f32 %v1382, %v1550
  %1552 = vmatmul.bf16.gmra.mxu0 %v1145
  %v1553 = vpop.f32.mrf.mxu0
  %v1554 = vadd.f32 %v1385, %v1553
  %v1555 = vpop.f32.mrf.mxu0
  %v1556 = vadd.f32 %v1387, %v1555
  %1557 = vmatmul.bf16.gmra.mxu0 %v1147
  %v1558 = vpop.f32.mrf.mxu0
  %v1559 = vadd.f32 %v1390, %v1558
  %v1560 = vpop.f32.mrf.mxu0
  %v1561 = vadd.f32 %v1392, %v1560
  %1562 = vmatmul.bf16.gmra.mxu0 %v1149
  %v1563 = vpop.f32.mrf.mxu0
  %v1564 = vadd.f32 %v1395, %v1563
  %v1565 = vpop.f32.mrf.mxu0
  %v1566 = vadd.f32 %v1397, %v1565
  %1567 = vmatmul.bf16.gmra.mxu0 %v1151
  %v1568 = vpop.f32.mrf.mxu0
  %v1569 = vadd.f32 %v1400, %v1568
  %v1570 = vpop.f32.mrf.mxu0
  %v1571 = vadd.f32 %v1402, %v1570
  %1572 = vmatmul.bf16.gmra.mxu0 %v1153
  %v1573 = vpop.f32.mrf.mxu0
  %v1574 = vadd.f32 %v1405, %v1573
  %v1575 = vpop.f32.mrf.mxu0
  %v1576 = vadd.f32 %v1407, %v1575
  %1577 = vmatmul.bf16.gmra.mxu0 %v1155
  %v1578 = vpop.f32.mrf.mxu0
  %v1579 = vadd.f32 %v1410, %v1578
  %v1580 = vpop.f32.mrf.mxu0
  %v1581 = vadd.f32 %v1412, %v1580
  %1582 = vmatmul.bf16.gmra.mxu0 %v1157
  %v1583 = vpop.f32.mrf.mxu0
  %v1584 = vadd.f32 %v1415, %v1583
  %v1585 = vpop.f32.mrf.mxu0
  %v1586 = vadd.f32 %v1417, %v1585
  %1587 = vmatmul.bf16.gmra.mxu0 %v1159
  %v1588 = vpop.f32.mrf.mxu0
  %v1589 = vadd.f32 %v1420, %v1588
  %v1590 = vpop.f32.mrf.mxu0
  %v1591 = vadd.f32 %v1422, %v1590
  %1592 = vmatmul.bf16.gmra.mxu0 %v1161
  %v1593 = vpop.f32.mrf.mxu0
  %v1594 = vadd.f32 %v1425, %v1593
  %v1595 = vpop.f32.mrf.mxu0
  %v1596 = vadd.f32 %v1427, %v1595
  %1597 = vmatmul.bf16.gmra.mxu0 %v1163
  %v1598 = vpop.f32.mrf.mxu0
  %v1599 = vadd.f32 %v1430, %v1598
  %v1600 = vpop.f32.mrf.mxu0
  %v1601 = vadd.f32 %v1432, %v1600
  %1602 = vmatmul.bf16.gmra.mxu0 %v1165
  %v1603 = vpop.f32.mrf.mxu0
  %v1604 = vadd.f32 %v1435, %v1603
  %v1605 = vpop.f32.mrf.mxu0
  %v1606 = vadd.f32 %v1437, %v1605
  %1607 = vmatmul.bf16.gmra.mxu0 %v1167
  %v1608 = vpop.f32.mrf.mxu0
  %v1609 = vadd.f32 %v1440, %v1608
  %v1610 = vpop.f32.mrf.mxu0
  %v1611 = vadd.f32 %v1442, %v1610
  %1612 = vmatmul.bf16.gmra.mxu0 %v1169
  %v1613 = vpop.f32.mrf.mxu0
  %v1614 = vadd.f32 %v1445, %v1613
  %v1615 = vpop.f32.mrf.mxu0
  %v1616 = vadd.f32 %v1447, %v1615
  %1617 = vmatmul.bf16.gmra.mxu0 %v1171
  %v1618 = vpop.f32.mrf.mxu0
  %v1619 = vadd.f32 %v1450, %v1618
  %v1620 = vpop.f32.mrf.mxu0
  %v1621 = vadd.f32 %v1452, %v1620
  %1622 = vmatmul.bf16.gmra.mxu0 %v1173
  %v1623 = vpop.f32.mrf.mxu0
  %v1624 = vadd.f32 %v1455, %v1623
  %v1625 = vpop.f32.mrf.mxu0
  %v1626 = vadd.f32 %v1457, %v1625
  %1627 = vmatmul.bf16.gmra.mxu0 %v1175
  %v1628 = vpop.f32.mrf.mxu0
  %v1629 = vadd.f32 %v1460, %v1628
  %v1630 = vpop.f32.mrf.mxu0
  %v1631 = vadd.f32 %v1462, %v1630
  %1632 = vmatmul.bf16.gmra.mxu0 %v1177
  %v1633 = vpop.f32.mrf.mxu0
  %v1634 = vadd.f32 %v1465, %v1633
  %v1635 = vpop.f32.mrf.mxu0
  %v1636 = vadd.f32 %v1467, %v1635
  %1637 = vmatmul.bf16.gmra.mxu0 %v1179
  %v1638 = vpop.f32.mrf.mxu0
  %v1639 = vadd.f32 %v1470, %v1638
  %v1640 = vpop.f32.mrf.mxu0
  %v1641 = vadd.f32 %v1472, %v1640
  %1642 = vmatmul.bf16.gmra.mxu0 %v1181
  %v1643 = vpop.f32.mrf.mxu0
  %v1644 = vadd.f32 %v1475, %v1643
  %v1645 = vpop.f32.mrf.mxu0
  %v1646 = vadd.f32 %v1477, %v1645
  %1647 = vdwg.mxu0
  %v1648 = vpack.c.bf16 %v1489, %v1489
  %v1649 = vpack.c.bf16 %v1491, %v1491
  %v1650 = vpack.c.bf16 %v1494, %v1494
  %v1651 = vpack.c.bf16 %v1496, %v1496
  %v1652 = vpack.c.bf16 %v1499, %v1499
  %v1653 = vpack.c.bf16 %v1501, %v1501
  %v1654 = vpack.c.bf16 %v1504, %v1504
  %v1655 = vpack.c.bf16 %v1506, %v1506
  %v1656 = vpack.c.bf16 %v1509, %v1509
  %v1657 = vpack.c.bf16 %v1511, %v1511
  %v1658 = vpack.c.bf16 %v1514, %v1514
  %v1659 = vpack.c.bf16 %v1516, %v1516
  %v1660 = vpack.c.bf16 %v1519, %v1519
  %v1661 = vpack.c.bf16 %v1521, %v1521
  %v1662 = vpack.c.bf16 %v1524, %v1524
  %v1663 = vpack.c.bf16 %v1526, %v1526
  %v1664 = vpack.c.bf16 %v1529, %v1529
  %v1665 = vpack.c.bf16 %v1531, %v1531
  %v1666 = vpack.c.bf16 %v1534, %v1534
  %v1667 = vpack.c.bf16 %v1536, %v1536
  %v1668 = vpack.c.bf16 %v1539, %v1539
  %v1669 = vpack.c.bf16 %v1541, %v1541
  %v1670 = vpack.c.bf16 %v1544, %v1544
  %v1671 = vpack.c.bf16 %v1546, %v1546
  %v1672 = vpack.c.bf16 %v1549, %v1549
  %v1673 = vpack.c.bf16 %v1551, %v1551
  %v1674 = vpack.c.bf16 %v1554, %v1554
  %v1675 = vpack.c.bf16 %v1556, %v1556
  %v1676 = vpack.c.bf16 %v1559, %v1559
  %v1677 = vpack.c.bf16 %v1561, %v1561
  %v1678 = vpack.c.bf16 %v1564, %v1564
  %v1679 = vpack.c.bf16 %v1566, %v1566
  %v1680 = vpack.c.bf16 %v1569, %v1569
  %v1681 = vpack.c.bf16 %v1571, %v1571
  %v1682 = vpack.c.bf16 %v1574, %v1574
  %v1683 = vpack.c.bf16 %v1576, %v1576
  %v1684 = vpack.c.bf16 %v1579, %v1579
  %v1685 = vpack.c.bf16 %v1581, %v1581
  %v1686 = vpack.c.bf16 %v1584, %v1584
  %v1687 = vpack.c.bf16 %v1586, %v1586
  %v1688 = vpack.c.bf16 %v1589, %v1589
  %v1689 = vpack.c.bf16 %v1591, %v1591
  %v1690 = vpack.c.bf16 %v1594, %v1594
  %v1691 = vpack.c.bf16 %v1596, %v1596
  %v1692 = vpack.c.bf16 %v1599, %v1599
  %v1693 = vpack.c.bf16 %v1601, %v1601
  %v1694 = vpack.c.bf16 %v1604, %v1604
  %v1695 = vpack.c.bf16 %v1606, %v1606
  %v1696 = vpack.c.bf16 %v1609, %v1609
  %v1697 = vpack.c.bf16 %v1611, %v1611
  %v1698 = vpack.c.bf16 %v1614, %v1614
  %v1699 = vpack.c.bf16 %v1616, %v1616
  %v1700 = vpack.c.bf16 %v1619, %v1619
  %v1701 = vpack.c.bf16 %v1621, %v1621
  %v1702 = vpack.c.bf16 %v1624, %v1624
  %v1703 = vpack.c.bf16 %v1626, %v1626
  %v1704 = vpack.c.bf16 %v1629, %v1629
  %v1705 = vpack.c.bf16 %v1631, %v1631
  %v1706 = vpack.c.bf16 %v1634, %v1634
  %v1707 = vpack.c.bf16 %v1636, %v1636
  %v1708 = vpack.c.bf16 %v1639, %v1639
  %v1709 = vpack.c.bf16 %v1641, %v1641
  %v1710 = vpack.c.bf16 %v1644, %v1644
  %v1711 = vpack.c.bf16 %v1646, %v1646
  %1712 = vst [vmem:[%s3] sm:$0xf] %v1648
  %1713 = vst [vmem:[%s3 + $0x4] sm:$0xf] %v1649
  %1714 = vst [vmem:[%s3 + $0x8] sm:$0xf] %v1650
  %1715 = vst [vmem:[%s3 + $0xc] sm:$0xf] %v1651
  %1716 = vst [vmem:[%s3 + $0x10] sm:$0xf] %v1652
  %1717 = vst [vmem:[%s3 + $0x14] sm:$0xf] %v1653
  %1718 = vst [vmem:[%s3 + $0x18] sm:$0xf] %v1654
  %1719 = vst [vmem:[%s3 + $0x1c] sm:$0xf] %v1655
  %1720 = vst [vmem:[%s3 + $0x20] sm:$0xf] %v1656
  %1721 = vst [vmem:[%s3 + $0x24] sm:$0xf] %v1657
  %1722 = vst [vmem:[%s3 + $0x28] sm:$0xf] %v1658
  %1723 = vst [vmem:[%s3 + $0x2c] sm:$0xf] %v1659
  %1724 = vst [vmem:[%s3 + $0x30] sm:$0xf] %v1660
  %1725 = vst [vmem:[%s3 + $0x34] sm:$0xf] %v1661
  %1726 = vst [vmem:[%s3 + $0x38] sm:$0xf] %v1662
  %1727 = vst [vmem:[%s3 + $0x3c] sm:$0xf] %v1663
  %1728 = vst [vmem:[%s3 + $0x40] sm:$0xf] %v1664
  %1729 = vst [vmem:[%s3 + $0x44] sm:$0xf] %v1665
  %1730 = vst [vmem:[%s3 + $0x48] sm:$0xf] %v1666
  %1731 = vst [vmem:[%s3 + $0x4c] sm:$0xf] %v1667
  %1732 = vst [vmem:[%s3 + $0x50] sm:$0xf] %v1668
  %1733 = vst [vmem:[%s3 + $0x54] sm:$0xf] %v1669
  %1734 = vst [vmem:[%s3 + $0x58] sm:$0xf] %v1670
  %1735 = vst [vmem:[%s3 + $0x5c] sm:$0xf] %v1671
  %1736 = vst [vmem:[%s3 + $0x60] sm:$0xf] %v1672
  %1737 = vst [vmem:[%s3 + $0x64] sm:$0xf] %v1673
  %1738 = vst [vmem:[%s3 + $0x68] sm:$0xf] %v1674
  %1739 = vst [vmem:[%s3 + $0x6c] sm:$0xf] %v1675
  %1740 = vst [vmem:[%s3 + $0x70] sm:$0xf] %v1676
  %1741 = vst [vmem:[%s3 + $0x74] sm:$0xf] %v1677
  %1742 = vst [vmem:[%s3 + $0x78] sm:$0xf] %v1678
  %1743 = vst [vmem:[%s3 + $0x7c] sm:$0xf] %v1679
  %1744 = vst [vmem:[%s3 + $0x80] sm:$0xf] %v1680
  %1745 = vst [vmem:[%s3 + $0x84] sm:$0xf] %v1681
  %1746 = vst [vmem:[%s3 + $0x88] sm:$0xf] %v1682
  %1747 = vst [vmem:[%s3 + $0x8c] sm:$0xf] %v1683
  %1748 = vst [vmem:[%s3 + $0x90] sm:$0xf] %v1684
  %1749 = vst [vmem:[%s3 + $0x94] sm:$0xf] %v1685
  %1750 = vst [vmem:[%s3 + $0x98] sm:$0xf] %v1686
  %1751 = vst [vmem:[%s3 + $0x9c] sm:$0xf] %v1687
  %1752 = vst [vmem:[%s3 + $0xa0] sm:$0xf] %v1688
  %1753 = vst [vmem:[%s3 + $0xa4] sm:$0xf] %v1689
  %1754 = vst [vmem:[%s3 + $0xa8] sm:$0xf] %v1690
  %1755 = vst [vmem:[%s3 + $0xac] sm:$0xf] %v1691
  %1756 = vst [vmem:[%s3 + $0xb0] sm:$0xf] %v1692
  %1757 = vst [vmem:[%s3 + $0xb4] sm:$0xf] %v1693
  %1758 = vst [vmem:[%s3 + $0xb8] sm:$0xf] %v1694
  %1759 = vst [vmem:[%s3 + $0xbc] sm:$0xf] %v1695
  %1760 = vst [vmem:[%s3 + $0xc0] sm:$0xf] %v1696
  %1761 = vst [vmem:[%s3 + $0xc4] sm:$0xf] %v1697
  %1762 = vst [vmem:[%s3 + $0xc8] sm:$0xf] %v1698
  %1763 = vst [vmem:[%s3 + $0xcc] sm:$0xf] %v1699
  %1764 = vst [vmem:[%s3 + $0xd0] sm:$0xf] %v1700
  %1765 = vst [vmem:[%s3 + $0xd4] sm:$0xf] %v1701
  %1766 = vst [vmem:[%s3 + $0xd8] sm:$0xf] %v1702
  %1767 = vst [vmem:[%s3 + $0xdc] sm:$0xf] %v1703
  %1768 = vst [vmem:[%s3 + $0xe0] sm:$0xf] %v1704
  %1769 = vst [vmem:[%s3 + $0xe4] sm:$0xf] %v1705
  %1770 = vst [vmem:[%s3 + $0xe8] sm:$0xf] %v1706
  %1771 = vst [vmem:[%s3 + $0xec] sm:$0xf] %v1707
  %1772 = vst [vmem:[%s3 + $0xf0] sm:$0xf] %v1708
  %1773 = vst [vmem:[%s3 + $0xf4] sm:$0xf] %v1709
  %1774 = vst [vmem:[%s3 + $0xf8] sm:$0xf] %v1710
  %1775 = vst [vmem:[%s3 + $0xfc] sm:$0xf] %v1711
  %v1776 = vadd.f32 %v1489, %v1491
  %v1777 = vadd.f32 %v1776, %v1494
  %v1778 = vadd.f32 %v1777, %v1496
  %v1779 = vadd.f32 %v1778, %v1499
  %v1780 = vadd.f32 %v1779, %v1501
  %v1781 = vadd.f32 %v1780, %v1504
  %v1782 = vadd.f32 %v1781, %v1506
  %v1783 = vadd.f32 %v1782, %v1509
  %v1784 = vadd.f32 %v1783, %v1511
  %v1785 = vadd.f32 %v1784, %v1514
  %v1786 = vadd.f32 %v1785, %v1516
  %v1787 = vadd.f32 %v1786, %v1519
  %v1788 = vadd.f32 %v1787, %v1521
  %v1789 = vadd.f32 %v1788, %v1524
  %v1790 = vadd.f32 %v1789, %v1526
  %v1791 = vadd.f32 %v1790, %v1529
  %v1792 = vadd.f32 %v1791, %v1531
  %v1793 = vadd.f32 %v1792, %v1534
  %v1794 = vadd.f32 %v1793, %v1536
  %v1795 = vadd.f32 %v1794, %v1539
  %v1796 = vadd.f32 %v1795, %v1541
  %v1797 = vadd.f32 %v1796, %v1544
  %v1798 = vadd.f32 %v1797, %v1546
  %v1799 = vadd.f32 %v1798, %v1549
  %v1800 = vadd.f32 %v1799, %v1551
  %v1801 = vadd.f32 %v1800, %v1554
  %v1802 = vadd.f32 %v1801, %v1556
  %v1803 = vadd.f32 %v1802, %v1559
  %v1804 = vadd.f32 %v1803, %v1561
  %v1805 = vadd.f32 %v1804, %v1564
  %v1806 = vadd.f32 %v1805, %v1566
  %v1807 = vadd.f32 %v1806, %v1569
  %v1808 = vadd.f32 %v1807, %v1571
  %v1809 = vadd.f32 %v1808, %v1574
  %v1810 = vadd.f32 %v1809, %v1576
  %v1811 = vadd.f32 %v1810, %v1579
  %v1812 = vadd.f32 %v1811, %v1581
  %v1813 = vadd.f32 %v1812, %v1584
  %v1814 = vadd.f32 %v1813, %v1586
  %v1815 = vadd.f32 %v1814, %v1589
  %v1816 = vadd.f32 %v1815, %v1591
  %v1817 = vadd.f32 %v1816, %v1594
  %v1818 = vadd.f32 %v1817, %v1596
  %v1819 = vadd.f32 %v1818, %v1599
  %v1820 = vadd.f32 %v1819, %v1601
  %v1821 = vadd.f32 %v1820, %v1604
  %v1822 = vadd.f32 %v1821, %v1606
  %v1823 = vadd.f32 %v1822, %v1609
  %v1824 = vadd.f32 %v1823, %v1611
  %v1825 = vadd.f32 %v1824, %v1614
  %v1826 = vadd.f32 %v1825, %v1616
  %v1827 = vadd.f32 %v1826, %v1619
  %v1828 = vadd.f32 %v1827, %v1621
  %v1829 = vadd.f32 %v1828, %v1624
  %v1830 = vadd.f32 %v1829, %v1626
  %v1831 = vadd.f32 %v1830, %v1629
  %v1832 = vadd.f32 %v1831, %v1631
  %v1833 = vadd.f32 %v1832, %v1634
  %v1834 = vadd.f32 %v1833, %v1636
  %v1835 = vadd.f32 %v1834, %v1639
  %v1836 = vadd.f32 %v1835, %v1641
  %v1837 = vadd.f32 %v1836, %v1644
  %v1838 = vadd.f32 %v1837, %v1646
  %v1839 = vrot.slane %v1838, 4
  %v1840 = vadd.f32 %v1838, %v1839
  %v1841 = vrot.slane %v1840, 2
  %v1842 = vadd.f32 %v1840, %v1841
  %v1843 = vrot.slane %v1842, 1
  %v1844 = vadd.f32 %v1842, %v1843
  %1845 = vst [vmem:[%s4] sm:$0x1] %v1844
  %v1846 = vmul.f32 %v1489, %v1489
  %v1847 = vmul.f32 %v1491, %v1491
  %v1848 = vmul.f32 %v1494, %v1494
  %v1849 = vmul.f32 %v1496, %v1496
  %v1850 = vmul.f32 %v1499, %v1499
  %v1851 = vmul.f32 %v1501, %v1501
  %v1852 = vmul.f32 %v1504, %v1504
  %v1853 = vmul.f32 %v1506, %v1506
  %v1854 = vmul.f32 %v1509, %v1509
  %v1855 = vmul.f32 %v1511, %v1511
  %v1856 = vmul.f32 %v1514, %v1514
  %v1857 = vmul.f32 %v1516, %v1516
  %v1858 = vmul.f32 %v1519, %v1519
  %v1859 = vmul.f32 %v1521, %v1521
  %v1860 = vmul.f32 %v1524, %v1524
  %v1861 = vmul.f32 %v1526, %v1526
  %v1862 = vmul.f32 %v1529, %v1529
  %v1863 = vmul.f32 %v1531, %v1531
  %v1864 = vmul.f32 %v1534, %v1534
  %v1865 = vmul.f32 %v1536, %v1536
  %v1866 = vmul.f32 %v1539, %v1539
  %v1867 = vmul.f32 %v1541, %v1541
  %v1868 = vmul.f32 %v1544, %v1544
  %v1869 = vmul.f32 %v1546, %v1546
  %v1870 = vmul.f32 %v1549, %v1549
  %v1871 = vmul.f32 %v1551, %v1551
  %v1872 = vmul.f32 %v1554, %v1554
  %v1873 = vmul.f32 %v1556, %v1556
  %v1874 = vmul.f32 %v1559, %v1559
  %v1875 = vmul.f32 %v1561, %v1561
  %v1876 = vmul.f32 %v1564, %v1564
  %v1877 = vmul.f32 %v1566, %v1566
  %v1878 = vmul.f32 %v1569, %v1569
  %v1879 = vmul.f32 %v1571, %v1571
  %v1880 = vmul.f32 %v1574, %v1574
  %v1881 = vmul.f32 %v1576, %v1576
  %v1882 = vmul.f32 %v1579, %v1579
  %v1883 = vmul.f32 %v1581, %v1581
  %v1884 = vmul.f32 %v1584, %v1584
  %v1885 = vmul.f32 %v1586, %v1586
  %v1886 = vmul.f32 %v1589, %v1589
  %v1887 = vmul.f32 %v1591, %v1591
  %v1888 = vmul.f32 %v1594, %v1594
  %v1889 = vmul.f32 %v1596, %v1596
  %v1890 = vmul.f32 %v1599, %v1599
  %v1891 = vmul.f32 %v1601, %v1601
  %v1892 = vmul.f32 %v1604, %v1604
  %v1893 = vmul.f32 %v1606, %v1606
  %v1894 = vmul.f32 %v1609, %v1609
  %v1895 = vmul.f32 %v1611, %v1611
  %v1896 = vmul.f32 %v1614, %v1614
  %v1897 = vmul.f32 %v1616, %v1616
  %v1898 = vmul.f32 %v1619, %v1619
  %v1899 = vmul.f32 %v1621, %v1621
  %v1900 = vmul.f32 %v1624, %v1624
  %v1901 = vmul.f32 %v1626, %v1626
  %v1902 = vmul.f32 %v1629, %v1629
  %v1903 = vmul.f32 %v1631, %v1631
  %v1904 = vmul.f32 %v1634, %v1634
  %v1905 = vmul.f32 %v1636, %v1636
  %v1906 = vmul.f32 %v1639, %v1639
  %v1907 = vmul.f32 %v1641, %v1641
  %v1908 = vmul.f32 %v1644, %v1644
  %v1909 = vmul.f32 %v1646, %v1646
  %v1910 = vadd.f32 %v1846, %v1847
  %v1911 = vadd.f32 %v1910, %v1848
  %v1912 = vadd.f32 %v1911, %v1849
  %v1913 = vadd.f32 %v1912, %v1850
  %v1914 = vadd.f32 %v1913, %v1851
  %v1915 = vadd.f32 %v1914, %v1852
  %v1916 = vadd.f32 %v1915, %v1853
  %v1917 = vadd.f32 %v1916, %v1854
  %v1918 = vadd.f32 %v1917, %v1855
  %v1919 = vadd.f32 %v1918, %v1856
  %v1920 = vadd.f32 %v1919, %v1857
  %v1921 = vadd.f32 %v1920, %v1858
  %v1922 = vadd.f32 %v1921, %v1859
  %v1923 = vadd.f32 %v1922, %v1860
  %v1924 = vadd.f32 %v1923, %v1861
  %v1925 = vadd.f32 %v1924, %v1862
  %v1926 = vadd.f32 %v1925, %v1863
  %v1927 = vadd.f32 %v1926, %v1864
  %v1928 = vadd.f32 %v1927, %v1865
  %v1929 = vadd.f32 %v1928, %v1866
  %v1930 = vadd.f32 %v1929, %v1867
  %v1931 = vadd.f32 %v1930, %v1868
  %v1932 = vadd.f32 %v1931, %v1869
  %v1933 = vadd.f32 %v1932, %v1870
  %v1934 = vadd.f32 %v1933, %v1871
  %v1935 = vadd.f32 %v1934, %v1872
  %v1936 = vadd.f32 %v1935, %v1873
  %v1937 = vadd.f32 %v1936, %v1874
  %v1938 = vadd.f32 %v1937, %v1875
  %v1939 = vadd.f32 %v1938, %v1876
  %v1940 = vadd.f32 %v1939, %v1877
  %v1941 = vadd.f32 %v1940, %v1878
  %v1942 = vadd.f32 %v1941, %v1879
  %v1943 = vadd.f32 %v1942, %v1880
  %v1944 = vadd.f32 %v1943, %v1881
  %v1945 = vadd.f32 %v1944, %v1882
  %v1946 = vadd.f32 %v1945, %v1883
  %v1947 = vadd.f32 %v1946, %v1884
  %v1948 = vadd.f32 %v1947, %v1885
  %v1949 = vadd.f32 %v1948, %v1886
  %v1950 = vadd.f32 %v1949, %v1887
  %v1951 = vadd.f32 %v1950, %v1888
  %v1952 = vadd.f32 %v1951, %v1889
  %v1953 = vadd.f32 %v1952, %v1890
  %v1954 = vadd.f32 %v1953, %v1891
  %v1955 = vadd.f32 %v1954, %v1892
  %v1956 = vadd.f32 %v1955, %v1893
  %v1957 = vadd.f32 %v1956, %v1894
  %v1958 = vadd.f32 %v1957, %v1895
  %v1959 = vadd.f32 %v1958, %v1896
  %v1960 = vadd.f32 %v1959, %v1897
  %v1961 = vadd.f32 %v1960, %v1898
  %v1962 = vadd.f32 %v1961, %v1899
  %v1963 = vadd.f32 %v1962, %v1900
  %v1964 = vadd.f32 %v1963, %v1901
  %v1965 = vadd.f32 %v1964, %v1902
  %v1966 = vadd.f32 %v1965, %v1903
  %v1967 = vadd.f32 %v1966, %v1904
  %v1968 = vadd.f32 %v1967, %v1905
  %v1969 = vadd.f32 %v1968, %v1906
  %v1970 = vadd.f32 %v1969, %v1907
  %v1971 = vadd.f32 %v1970, %v1908
  %v1972 = vadd.f32 %v1971, %v1909
  %v1973 = vrot.slane %v1972, 4
  %v1974 = vadd.f32 %v1972, %v1973
  %v1975 = vrot.slane %v1974, 2
  %v1976 = vadd.f32 %v1974, %v1975
  %v1977 = vrot.slane %v1976, 1
  %v1978 = vadd.f32 %v1976, %v1977
  %1979 = vst [vmem:[%s4 + $0x1] sm:$0x1] %v1978
  // Predicated region
  $region14: #{convmim_forward_loss.8} parent=0 // pred_check
    _
  $region15: #{convmim_forward_loss.8} parent=0 // pred_check_branch
    %1981 = sbr.rel (0) target = $region17
  $region16: #{convmim_forward_loss.8} parent=0 // pred_region
    _
  $region17: #{convmim_forward_loss.8} parent=0 // pred_fallthru
    _
  // Predicated region
  $region18: #{convmim_forward_loss.8} parent=0 // pred_check
    _
  $region19: #{convmim_forward_loss.8} parent=0 // pred_check_branch
    %1983 = sbr.rel (0) target = $region21
  $region20: #{convmim_forward_loss.8} parent=0 // pred_region
    _
  $region21: #{convmim_forward_loss.8} parent=0 // pred_fallthru
    _
  // Predicated region
  $region22: #{convmim_forward_loss.8} parent=0 // pred_check
    _
  $region23: #{convmim_forward_loss.8} parent=0 // pred_check_branch
    %1985 = sbr.rel (0) target = $region25
  $region24: #{convmim_forward_loss.8} parent=0 // pred_region
    _
  $region25: #{convmim_forward_loss.8} parent=0 // pred_fallthru
    _
  // Predicated region
  $region26: #{convmim_forward_loss.8} parent=0 // pred_check
    _
  $region27: #{convmim_forward_loss.8} parent=0 // pred_check_branch
    %1987 = sbr.rel (0) target = $region29
  $region28: #{convmim_forward_loss.8} parent=0 // pred_region
    _
  $region29: #{convmim_forward_loss.8} parent=0 // pred_fallthru
    _

// kernel: convmim_forward_loss.9
$region0: #{convmim_forward_loss.9}
  #allocation0 [shape = 'u32[]', space=smem, size = 0x4, offset = 0x4, fixed_abs, tag = 'smem constant byte address 0x4 - core index']
  #allocation1 [shape = 'u32[72,128]{1,0:T(1,128)}', space=vmem, size = 0x9000, scoped, tag = 'internal scratch']
  %s0 = inlined_call_operand.vmem [shape: bf16[512,128], index: 0, kind: input, shape index: {}]
  %s1 = inlined_call_operand.vmem [shape: f32[8,128], index: 1, kind: input, shape index: {}]
  %s2 = inlined_call_operand.vmem [shape: bf16[128,256], index: 2, kind: input, shape index: {}]
  %s3 = inlined_call_operand.vmem [shape: bf16[2,512,256], index: 3, kind: input, shape index: {}]
  %s4 = inlined_call_operand.vmem [shape: f32[8,256], index: 4, kind: input, shape index: {}]
  %s5 = inlined_call_operand.vmem [shape: f32[1,8,128], index: 5, kind: output, shape index: {}]
  %s6 = sld [smem:[#allocation0]]
  $region30: #{convmim_forward_loss.9} parent=0
    _
  %s8 = ssub.s32 1, %s6
  %s9 = scalar_select 0, %s8, %s6
  // Predicated region
  $region2: #{convmim_forward_loss.9} parent=0 // pred_check
    _
  $region3: #{convmim_forward_loss.9} parent=0 // pred_check_branch
    %11 = sbr.rel (0) target = $region5
  $region4: #{convmim_forward_loss.9} parent=0 // pred_region
    _
  $region5: #{convmim_forward_loss.9} parent=0 // pred_fallthru
    _
  // Predicated region
  $region6: #{convmim_forward_loss.9} parent=0 // pred_check
    _
  $region7: #{convmim_forward_loss.9} parent=0 // pred_check_branch
    %13 = sbr.rel (0) target = $region9
  $region8: #{convmim_forward_loss.9} parent=0 // pred_region
    _
  $region9: #{convmim_forward_loss.9} parent=0 // pred_fallthru
    _
  // Predicated region
  $region10: #{convmim_forward_loss.9} parent=0 // pred_check
    _
  $region11: #{convmim_forward_loss.9} parent=0 // pred_check_branch
    %15 = sbr.rel (0) target = $region13
  $region12: #{convmim_forward_loss.9} parent=0 // pred_region
    _
  $region13: #{convmim_forward_loss.9} parent=0 // pred_fallthru
    _
  // Predicated region
  $region14: #{convmim_forward_loss.9} parent=0 // pred_check
    _
  $region15: #{convmim_forward_loss.9} parent=0 // pred_check_branch
    %17 = sbr.rel (0) target = $region17
  $region16: #{convmim_forward_loss.9} parent=0 // pred_region
    %s18 = scalar_lea.vmem %s3, 512
  $region17: #{convmim_forward_loss.9} parent=0 // pred_fallthru
    _
  // Predicated region
  $region18: #{convmim_forward_loss.9} parent=0 // pred_check
    _
  $region19: #{convmim_forward_loss.9} parent=0 // pred_check_branch
    %20 = sbr.rel (0) target = $region21
  $region20: #{convmim_forward_loss.9} parent=0 // pred_region
    _
  $region21: #{convmim_forward_loss.9} parent=0 // pred_fallthru
    _
  %s21 = scalar_lea.vmem %s3, 512
  %s22 = scalar_lea.vmem %s3, 512
  %v23 = vld [vmem:[%s1] sm:$0xff]
  %v24 = vld [vmem:[%s4] sm:$0xff]
  %v25 = vld [vmem:[%s4 + $0x8] sm:$0xff]
  %v26 = vld [vmem:[%s0] sm:$0xf]
  %v27 = vld [vmem:[%s0 + $0x4] sm:$0xf]
  %v28 = vld [vmem:[%s0 + $0x8] sm:$0xf]
  %v29 = vld [vmem:[%s0 + $0xc] sm:$0xf]
  %v30 = vld [vmem:[%s0 + $0x10] sm:$0xf]
  %v31 = vld [vmem:[%s0 + $0x14] sm:$0xf]
  %v32 = vld [vmem:[%s0 + $0x18] sm:$0xf]
  %v33 = vld [vmem:[%s0 + $0x1c] sm:$0xf]
  %v34 = vld [vmem:[%s0 + $0x20] sm:$0xf]
  %v35 = vld [vmem:[%s0 + $0x24] sm:$0xf]
  %v36 = vld [vmem:[%s0 + $0x28] sm:$0xf]
  %v37 = vld [vmem:[%s0 + $0x2c] sm:$0xf]
  %v38 = vld [vmem:[%s0 + $0x30] sm:$0xf]
  %v39 = vld [vmem:[%s0 + $0x34] sm:$0xf]
  %v40 = vld [vmem:[%s0 + $0x38] sm:$0xf]
  %v41 = vld [vmem:[%s0 + $0x3c] sm:$0xf]
  %v42 = vld [vmem:[%s0 + $0x40] sm:$0xf]
  %v43 = vld [vmem:[%s0 + $0x44] sm:$0xf]
  %v44 = vld [vmem:[%s0 + $0x48] sm:$0xf]
  %v45 = vld [vmem:[%s0 + $0x4c] sm:$0xf]
  %v46 = vld [vmem:[%s0 + $0x50] sm:$0xf]
  %v47 = vld [vmem:[%s0 + $0x54] sm:$0xf]
  %v48 = vld [vmem:[%s0 + $0x58] sm:$0xf]
  %v49 = vld [vmem:[%s0 + $0x5c] sm:$0xf]
  %v50 = vld [vmem:[%s0 + $0x60] sm:$0xf]
  %v51 = vld [vmem:[%s0 + $0x64] sm:$0xf]
  %v52 = vld [vmem:[%s0 + $0x68] sm:$0xf]
  %v53 = vld [vmem:[%s0 + $0x6c] sm:$0xf]
  %v54 = vld [vmem:[%s0 + $0x70] sm:$0xf]
  %v55 = vld [vmem:[%s0 + $0x74] sm:$0xf]
  %v56 = vld [vmem:[%s0 + $0x78] sm:$0xf]
  %v57 = vld [vmem:[%s0 + $0x7c] sm:$0xf]
  %v58 = vld [vmem:[%s0 + $0x80] sm:$0xf]
  %v59 = vld [vmem:[%s0 + $0x84] sm:$0xf]
  %v60 = vld [vmem:[%s0 + $0x88] sm:$0xf]
  %v61 = vld [vmem:[%s0 + $0x8c] sm:$0xf]
  %v62 = vld [vmem:[%s0 + $0x90] sm:$0xf]
  %v63 = vld [vmem:[%s0 + $0x94] sm:$0xf]
  %v64 = vld [vmem:[%s0 + $0x98] sm:$0xf]
  %v65 = vld [vmem:[%s0 + $0x9c] sm:$0xf]
  %v66 = vld [vmem:[%s0 + $0xa0] sm:$0xf]
  %v67 = vld [vmem:[%s0 + $0xa4] sm:$0xf]
  %v68 = vld [vmem:[%s0 + $0xa8] sm:$0xf]
  %v69 = vld [vmem:[%s0 + $0xac] sm:$0xf]
  %v70 = vld [vmem:[%s0 + $0xb0] sm:$0xf]
  %v71 = vld [vmem:[%s0 + $0xb4] sm:$0xf]
  %v72 = vld [vmem:[%s0 + $0xb8] sm:$0xf]
  %v73 = vld [vmem:[%s0 + $0xbc] sm:$0xf]
  %v74 = vld [vmem:[%s0 + $0xc0] sm:$0xf]
  %v75 = vld [vmem:[%s0 + $0xc4] sm:$0xf]
  %v76 = vld [vmem:[%s0 + $0xc8] sm:$0xf]
  %v77 = vld [vmem:[%s0 + $0xcc] sm:$0xf]
  %v78 = vld [vmem:[%s0 + $0xd0] sm:$0xf]
  %v79 = vld [vmem:[%s0 + $0xd4] sm:$0xf]
  %v80 = vld [vmem:[%s0 + $0xd8] sm:$0xf]
  %v81 = vld [vmem:[%s0 + $0xdc] sm:$0xf]
  %v82 = vld [vmem:[%s0 + $0xe0] sm:$0xf]
  %v83 = vld [vmem:[%s0 + $0xe4] sm:$0xf]
  %v84 = vld [vmem:[%s0 + $0xe8] sm:$0xf]
  %v85 = vld [vmem:[%s0 + $0xec] sm:$0xf]
  %v86 = vld [vmem:[%s0 + $0xf0] sm:$0xf]
  %v87 = vld [vmem:[%s0 + $0xf4] sm:$0xf]
  %v88 = vld [vmem:[%s0 + $0xf8] sm:$0xf]
  %v89 = vld [vmem:[%s0 + $0xfc] sm:$0xf]
  %v90 = vunpack.c.l.bf16 %v26
  %v91 = vunpack.c.l.bf16 %v27
  %v92 = vunpack.c.l.bf16 %v28
  %v93 = vunpack.c.l.bf16 %v29
  %v94 = vunpack.c.l.bf16 %v30
  %v95 = vunpack.c.l.bf16 %v31
  %v96 = vunpack.c.l.bf16 %v32
  %v97 = vunpack.c.l.bf16 %v33
  %v98 = vunpack.c.l.bf16 %v34
  %v99 = vunpack.c.l.bf16 %v35
  %v100 = vunpack.c.l.bf16 %v36
  %v101 = vunpack.c.l.bf16 %v37
  %v102 = vunpack.c.l.bf16 %v38
  %v103 = vunpack.c.l.bf16 %v39
  %v104 = vunpack.c.l.bf16 %v40
  %v105 = vunpack.c.l.bf16 %v41
  %v106 = vunpack.c.l.bf16 %v42
  %v107 = vunpack.c.l.bf16 %v43
  %v108 = vunpack.c.l.bf16 %v44
  %v109 = vunpack.c.l.bf16 %v45
  %v110 = vunpack.c.l.bf16 %v46
  %v111 = vunpack.c.l.bf16 %v47
  %v112 = vunpack.c.l.bf16 %v48
  %v113 = vunpack.c.l.bf16 %v49
  %v114 = vunpack.c.l.bf16 %v50
  %v115 = vunpack.c.l.bf16 %v51
  %v116 = vunpack.c.l.bf16 %v52
  %v117 = vunpack.c.l.bf16 %v53
  %v118 = vunpack.c.l.bf16 %v54
  %v119 = vunpack.c.l.bf16 %v55
  %v120 = vunpack.c.l.bf16 %v56
  %v121 = vunpack.c.l.bf16 %v57
  %v122 = vunpack.c.l.bf16 %v58
  %v123 = vunpack.c.l.bf16 %v59
  %v124 = vunpack.c.l.bf16 %v60
  %v125 = vunpack.c.l.bf16 %v61
  %v126 = vunpack.c.l.bf16 %v62
  %v127 = vunpack.c.l.bf16 %v63
  %v128 = vunpack.c.l.bf16 %v64
  %v129 = vunpack.c.l.bf16 %v65
  %v130 = vunpack.c.l.bf16 %v66
  %v131 = vunpack.c.l.bf16 %v67
  %v132 = vunpack.c.l.bf16 %v68
  %v133 = vunpack.c.l.bf16 %v69
  %v134 = vunpack.c.l.bf16 %v70
  %v135 = vunpack.c.l.bf16 %v71
  %v136 = vunpack.c.l.bf16 %v72
  %v137 = vunpack.c.l.bf16 %v73
  %v138 = vunpack.c.l.bf16 %v74
  %v139 = vunpack.c.l.bf16 %v75
  %v140 = vunpack.c.l.bf16 %v76
  %v141 = vunpack.c.l.bf16 %v77
  %v142 = vunpack.c.l.bf16 %v78
  %v143 = vunpack.c.l.bf16 %v79
  %v144 = vunpack.c.l.bf16 %v80
  %v145 = vunpack.c.l.bf16 %v81
  %v146 = vunpack.c.l.bf16 %v82
  %v147 = vunpack.c.l.bf16 %v83
  %v148 = vunpack.c.l.bf16 %v84
  %v149 = vunpack.c.l.bf16 %v85
  %v150 = vunpack.c.l.bf16 %v86
  %v151 = vunpack.c.l.bf16 %v87
  %v152 = vunpack.c.l.bf16 %v88
  %v153 = vunpack.c.l.bf16 %v89
  %v154 = vperm.slane %v23, 0
  %v155 = vsub.f32 %v90, %v154
  %v156 = vsub.f32 %v91, %v154
  %v157 = vsub.f32 %v92, %v154
  %v158 = vsub.f32 %v93, %v154
  %v159 = vsub.f32 %v94, %v154
  %v160 = vsub.f32 %v95, %v154
  %v161 = vsub.f32 %v96, %v154
  %v162 = vsub.f32 %v97, %v154
  %v163 = vsub.f32 %v98, %v154
  %v164 = vsub.f32 %v99, %v154
  %v165 = vsub.f32 %v100, %v154
  %v166 = vsub.f32 %v101, %v154
  %v167 = vsub.f32 %v102, %v154
  %v168 = vsub.f32 %v103, %v154
  %v169 = vsub.f32 %v104, %v154
  %v170 = vsub.f32 %v105, %v154
  %v171 = vsub.f32 %v106, %v154
  %v172 = vsub.f32 %v107, %v154
  %v173 = vsub.f32 %v108, %v154
  %v174 = vsub.f32 %v109, %v154
  %v175 = vsub.f32 %v110, %v154
  %v176 = vsub.f32 %v111, %v154
  %v177 = vsub.f32 %v112, %v154
  %v178 = vsub.f32 %v113, %v154
  %v179 = vsub.f32 %v114, %v154
  %v180 = vsub.f32 %v115, %v154
  %v181 = vsub.f32 %v116, %v154
  %v182 = vsub.f32 %v117, %v154
  %v183 = vsub.f32 %v118, %v154
  %v184 = vsub.f32 %v119, %v154
  %v185 = vsub.f32 %v120, %v154
  %v186 = vsub.f32 %v121, %v154
  %v187 = vsub.f32 %v122, %v154
  %v188 = vsub.f32 %v123, %v154
  %v189 = vsub.f32 %v124, %v154
  %v190 = vsub.f32 %v125, %v154
  %v191 = vsub.f32 %v126, %v154
  %v192 = vsub.f32 %v127, %v154
  %v193 = vsub.f32 %v128, %v154
  %v194 = vsub.f32 %v129, %v154
  %v195 = vsub.f32 %v130, %v154
  %v196 = vsub.f32 %v131, %v154
  %v197 = vsub.f32 %v132, %v154
  %v198 = vsub.f32 %v133, %v154
  %v199 = vsub.f32 %v134, %v154
  %v200 = vsub.f32 %v135, %v154
  %v201 = vsub.f32 %v136, %v154
  %v202 = vsub.f32 %v137, %v154
  %v203 = vsub.f32 %v138, %v154
  %v204 = vsub.f32 %v139, %v154
  %v205 = vsub.f32 %v140, %v154
  %v206 = vsub.f32 %v141, %v154
  %v207 = vsub.f32 %v142, %v154
  %v208 = vsub.f32 %v143, %v154
  %v209 = vsub.f32 %v144, %v154
  %v210 = vsub.f32 %v145, %v154
  %v211 = vsub.f32 %v146, %v154
  %v212 = vsub.f32 %v147, %v154
  %v213 = vsub.f32 %v148, %v154
  %v214 = vsub.f32 %v149, %v154
  %v215 = vsub.f32 %v150, %v154
  %v216 = vsub.f32 %v151, %v154
  %v217 = vsub.f32 %v152, %v154
  %v218 = vsub.f32 %v153, %v154
  %v219 = vperm.slane %v23, 1
  %v220 = vmul.f32 %v155, %v219
  %v221 = vmul.f32 %v156, %v219
  %v222 = vmul.f32 %v157, %v219
  %v223 = vmul.f32 %v158, %v219
  %v224 = vmul.f32 %v159, %v219
  %v225 = vmul.f32 %v160, %v219
  %v226 = vmul.f32 %v161, %v219
  %v227 = vmul.f32 %v162, %v219
  %v228 = vmul.f32 %v163, %v219
  %v229 = vmul.f32 %v164, %v219
  %v230 = vmul.f32 %v165, %v219
  %v231 = vmul.f32 %v166, %v219
  %v232 = vmul.f32 %v167, %v219
  %v233 = vmul.f32 %v168, %v219
  %v234 = vmul.f32 %v169, %v219
  %v235 = vmul.f32 %v170, %v219
  %v236 = vmul.f32 %v171, %v219
  %v237 = vmul.f32 %v172, %v219
  %v238 = vmul.f32 %v173, %v219
  %v239 = vmul.f32 %v174, %v219
  %v240 = vmul.f32 %v175, %v219
  %v241 = vmul.f32 %v176, %v219
  %v242 = vmul.f32 %v177, %v219
  %v243 = vmul.f32 %v178, %v219
  %v244 = vmul.f32 %v179, %v219
  %v245 = vmul.f32 %v180, %v219
  %v246 = vmul.f32 %v181, %v219
  %v247 = vmul.f32 %v182, %v219
  %v248 = vmul.f32 %v183, %v219
  %v249 = vmul.f32 %v184, %v219
  %v250 = vmul.f32 %v185, %v219
  %v251 = vmul.f32 %v186, %v219
  %v252 = vmul.f32 %v187, %v219
  %v253 = vmul.f32 %v188, %v219
  %v254 = vmul.f32 %v189, %v219
  %v255 = vmul.f32 %v190, %v219
  %v256 = vmul.f32 %v191, %v219
  %v257 = vmul.f32 %v192, %v219
  %v258 = vmul.f32 %v193, %v219
  %v259 = vmul.f32 %v194, %v219
  %v260 = vmul.f32 %v195, %v219
  %v261 = vmul.f32 %v196, %v219
  %v262 = vmul.f32 %v197, %v219
  %v263 = vmul.f32 %v198, %v219
  %v264 = vmul.f32 %v199, %v219
  %v265 = vmul.f32 %v200, %v219
  %v266 = vmul.f32 %v201, %v219
  %v267 = vmul.f32 %v202, %v219
  %v268 = vmul.f32 %v203, %v219
  %v269 = vmul.f32 %v204, %v219
  %v270 = vmul.f32 %v205, %v219
  %v271 = vmul.f32 %v206, %v219
  %v272 = vmul.f32 %v207, %v219
  %v273 = vmul.f32 %v208, %v219
  %v274 = vmul.f32 %v209, %v219
  %v275 = vmul.f32 %v210, %v219
  %v276 = vmul.f32 %v211, %v219
  %v277 = vmul.f32 %v212, %v219
  %v278 = vmul.f32 %v213, %v219
  %v279 = vmul.f32 %v214, %v219
  %v280 = vmul.f32 %v215, %v219
  %v281 = vmul.f32 %v216, %v219
  %v282 = vmul.f32 %v217, %v219
  %v283 = vmul.f32 %v218, %v219
  %v284 = vperm.slane %v23, 2
  %v285 = vmul.f32 %v220, %v284
  %v286 = vmul.f32 %v221, %v284
  %v287 = vmul.f32 %v222, %v284
  %v288 = vmul.f32 %v223, %v284
  %v289 = vmul.f32 %v224, %v284
  %v290 = vmul.f32 %v225, %v284
  %v291 = vmul.f32 %v226, %v284
  %v292 = vmul.f32 %v227, %v284
  %v293 = vmul.f32 %v228, %v284
  %v294 = vmul.f32 %v229, %v284
  %v295 = vmul.f32 %v230, %v284
  %v296 = vmul.f32 %v231, %v284
  %v297 = vmul.f32 %v232, %v284
  %v298 = vmul.f32 %v233, %v284
  %v299 = vmul.f32 %v234, %v284
  %v300 = vmul.f32 %v235, %v284
  %v301 = vmul.f32 %v236, %v284
  %v302 = vmul.f32 %v237, %v284
  %v303 = vmul.f32 %v238, %v284
  %v304 = vmul.f32 %v239, %v284
  %v305 = vmul.f32 %v240, %v284
  %v306 = vmul.f32 %v241, %v284
  %v307 = vmul.f32 %v242, %v284
  %v308 = vmul.f32 %v243, %v284
  %v309 = vmul.f32 %v244, %v284
  %v310 = vmul.f32 %v245, %v284
  %v311 = vmul.f32 %v246, %v284
  %v312 = vmul.f32 %v247, %v284
  %v313 = vmul.f32 %v248, %v284
  %v314 = vmul.f32 %v249, %v284
  %v315 = vmul.f32 %v250, %v284
  %v316 = vmul.f32 %v251, %v284
  %v317 = vmul.f32 %v252, %v284
  %v318 = vmul.f32 %v253, %v284
  %v319 = vmul.f32 %v254, %v284
  %v320 = vmul.f32 %v255, %v284
  %v321 = vmul.f32 %v256, %v284
  %v322 = vmul.f32 %v257, %v284
  %v323 = vmul.f32 %v258, %v284
  %v324 = vmul.f32 %v259, %v284
  %v325 = vmul.f32 %v260, %v284
  %v326 = vmul.f32 %v261, %v284
  %v327 = vmul.f32 %v262, %v284
  %v328 = vmul.f32 %v263, %v284
  %v329 = vmul.f32 %v264, %v284
  %v330 = vmul.f32 %v265, %v284
  %v331 = vmul.f32 %v266, %v284
  %v332 = vmul.f32 %v267, %v284
  %v333 = vmul.f32 %v268, %v284
  %v334 = vmul.f32 %v269, %v284
  %v335 = vmul.f32 %v270, %v284
  %v336 = vmul.f32 %v271, %v284
  %v337 = vmul.f32 %v272, %v284
  %v338 = vmul.f32 %v273, %v284
  %v339 = vmul.f32 %v274, %v284
  %v340 = vmul.f32 %v275, %v284
  %v341 = vmul.f32 %v276, %v284
  %v342 = vmul.f32 %v277, %v284
  %v343 = vmul.f32 %v278, %v284
  %v344 = vmul.f32 %v279, %v284
  %v345 = vmul.f32 %v280, %v284
  %v346 = vmul.f32 %v281, %v284
  %v347 = vmul.f32 %v282, %v284
  %v348 = vmul.f32 %v283, %v284
  %v349 = vperm.slane %v23, 3
  %v350 = vadd.f32 %v285, %v349
  %v351 = vadd.f32 %v286, %v349
  %v352 = vadd.f32 %v287, %v349
  %v353 = vadd.f32 %v288, %v349
  %v354 = vadd.f32 %v289, %v349
  %v355 = vadd.f32 %v290, %v349
  %v356 = vadd.f32 %v291, %v349
  %v357 = vadd.f32 %v292, %v349
  %v358 = vadd.f32 %v293, %v349
  %v359 = vadd.f32 %v294, %v349
  %v360 = vadd.f32 %v295, %v349
  %v361 = vadd.f32 %v296, %v349
  %v362 = vadd.f32 %v297, %v349
  %v363 = vadd.f32 %v298, %v349
  %v364 = vadd.f32 %v299, %v349
  %v365 = vadd.f32 %v300, %v349
  %v366 = vadd.f32 %v301, %v349
  %v367 = vadd.f32 %v302, %v349
  %v368 = vadd.f32 %v303, %v349
  %v369 = vadd.f32 %v304, %v349
  %v370 = vadd.f32 %v305, %v349
  %v371 = vadd.f32 %v306, %v349
  %v372 = vadd.f32 %v307, %v349
  %v373 = vadd.f32 %v308, %v349
  %v374 = vadd.f32 %v309, %v349
  %v375 = vadd.f32 %v310, %v349
  %v376 = vadd.f32 %v311, %v349
  %v377 = vadd.f32 %v312, %v349
  %v378 = vadd.f32 %v313, %v349
  %v379 = vadd.f32 %v314, %v349
  %v380 = vadd.f32 %v315, %v349
  %v381 = vadd.f32 %v316, %v349
  %v382 = vadd.f32 %v317, %v349
  %v383 = vadd.f32 %v318, %v349
  %v384 = vadd.f32 %v319, %v349
  %v385 = vadd.f32 %v320, %v349
  %v386 = vadd.f32 %v321, %v349
  %v387 = vadd.f32 %v322, %v349
  %v388 = vadd.f32 %v323, %v349
  %v389 = vadd.f32 %v324, %v349
  %v390 = vadd.f32 %v325, %v349
  %v391 = vadd.f32 %v326, %v349
  %v392 = vadd.f32 %v327, %v349
  %v393 = vadd.f32 %v328, %v349
  %v394 = vadd.f32 %v329, %v349
  %v395 = vadd.f32 %v330, %v349
  %v396 = vadd.f32 %v331, %v349
  %v397 = vadd.f32 %v332, %v349
  %v398 = vadd.f32 %v333, %v349
  %v399 = vadd.f32 %v334, %v349
  %v400 = vadd.f32 %v335, %v349
  %v401 = vadd.f32 %v336, %v349
  %v402 = vadd.f32 %v337, %v349
  %v403 = vadd.f32 %v338, %v349
  %v404 = vadd.f32 %v339, %v349
  %v405 = vadd.f32 %v340, %v349
  %v406 = vadd.f32 %v341, %v349
  %v407 = vadd.f32 %v342, %v349
  %v408 = vadd.f32 %v343, %v349
  %v409 = vadd.f32 %v344, %v349
  %v410 = vadd.f32 %v345, %v349
  %v411 = vadd.f32 %v346, %v349
  %v412 = vadd.f32 %v347, %v349
  %v413 = vadd.f32 %v348, %v349
  %v414 = vmax.f32 %v350, 0.0
  %v415 = vmax.f32 %v351, 0.0
  %v416 = vmax.f32 %v352, 0.0
  %v417 = vmax.f32 %v353, 0.0
  %v418 = vmax.f32 %v354, 0.0
  %v419 = vmax.f32 %v355, 0.0
  %v420 = vmax.f32 %v356, 0.0
  %v421 = vmax.f32 %v357, 0.0
  %v422 = vmax.f32 %v358, 0.0
  %v423 = vmax.f32 %v359, 0.0
  %v424 = vmax.f32 %v360, 0.0
  %v425 = vmax.f32 %v361, 0.0
  %v426 = vmax.f32 %v362, 0.0
  %v427 = vmax.f32 %v363, 0.0
  %v428 = vmax.f32 %v364, 0.0
  %v429 = vmax.f32 %v365, 0.0
  %v430 = vmax.f32 %v366, 0.0
  %v431 = vmax.f32 %v367, 0.0
  %v432 = vmax.f32 %v368, 0.0
  %v433 = vmax.f32 %v369, 0.0
  %v434 = vmax.f32 %v370, 0.0
  %v435 = vmax.f32 %v371, 0.0
  %v436 = vmax.f32 %v372, 0.0
  %v437 = vmax.f32 %v373, 0.0
  %v438 = vmax.f32 %v374, 0.0
  %v439 = vmax.f32 %v375, 0.0
  %v440 = vmax.f32 %v376, 0.0
  %v441 = vmax.f32 %v377, 0.0
  %v442 = vmax.f32 %v378, 0.0
  %v443 = vmax.f32 %v379, 0.0
  %v444 = vmax.f32 %v380, 0.0
  %v445 = vmax.f32 %v381, 0.0
  %v446 = vmax.f32 %v382, 0.0
  %v447 = vmax.f32 %v383, 0.0
  %v448 = vmax.f32 %v384, 0.0
  %v449 = vmax.f32 %v385, 0.0
  %v450 = vmax.f32 %v386, 0.0
  %v451 = vmax.f32 %v387, 0.0
  %v452 = vmax.f32 %v388, 0.0
  %v453 = vmax.f32 %v389, 0.0
  %v454 = vmax.f32 %v390, 0.0
  %v455 = vmax.f32 %v391, 0.0
  %v456 = vmax.f32 %v392, 0.0
  %v457 = vmax.f32 %v393, 0.0
  %v458 = vmax.f32 %v394, 0.0
  %v459 = vmax.f32 %v395, 0.0
  %v460 = vmax.f32 %v396, 0.0
  %v461 = vmax.f32 %v397, 0.0
  %v462 = vmax.f32 %v398, 0.0
  %v463 = vmax.f32 %v399, 0.0
  %v464 = vmax.f32 %v400, 0.0
  %v465 = vmax.f32 %v401, 0.0
  %v466 = vmax.f32 %v402, 0.0
  %v467 = vmax.f32 %v403, 0.0
  %v468 = vmax.f32 %v404, 0.0
  %v469 = vmax.f32 %v405, 0.0
  %v470 = vmax.f32 %v406, 0.0
  %v471 = vmax.f32 %v407, 0.0
  %v472 = vmax.f32 %v408, 0.0
  %v473 = vmax.f32 %v409, 0.0
  %v474 = vmax.f32 %v410, 0.0
  %v475 = vmax.f32 %v411, 0.0
  %v476 = vmax.f32 %v412, 0.0
  %v477 = vmax.f32 %v413, 0.0
  %v478 = vpack.c.bf16 %v415, %v414
  %v479 = vpack.c.bf16 %v417, %v416
  %v480 = vpack.c.bf16 %v419, %v418
  %v481 = vpack.c.bf16 %v421, %v420
  %v482 = vpack.c.bf16 %v423, %v422
  %v483 = vpack.c.bf16 %v425, %v424
  %v484 = vpack.c.bf16 %v427, %v426
  %v485 = vpack.c.bf16 %v429, %v428
  %v486 = vpack.c.bf16 %v431, %v430
  %v487 = vpack.c.bf16 %v433, %v432
  %v488 = vpack.c.bf16 %v435, %v434
  %v489 = vpack.c.bf16 %v437, %v436
  %v490 = vpack.c.bf16 %v439, %v438
  %v491 = vpack.c.bf16 %v441, %v440
  %v492 = vpack.c.bf16 %v443, %v442
  %v493 = vpack.c.bf16 %v445, %v444
  %v494 = vpack.c.bf16 %v447, %v446
  %v495 = vpack.c.bf16 %v449, %v448
  %v496 = vpack.c.bf16 %v451, %v450
  %v497 = vpack.c.bf16 %v453, %v452
  %v498 = vpack.c.bf16 %v455, %v454
  %v499 = vpack.c.bf16 %v457, %v456
  %v500 = vpack.c.bf16 %v459, %v458
  %v501 = vpack.c.bf16 %v461, %v460
  %v502 = vpack.c.bf16 %v463, %v462
  %v503 = vpack.c.bf16 %v465, %v464
  %v504 = vpack.c.bf16 %v467, %v466
  %v505 = vpack.c.bf16 %v469, %v468
  %v506 = vpack.c.bf16 %v471, %v470
  %v507 = vpack.c.bf16 %v473, %v472
  %v508 = vpack.c.bf16 %v475, %v474
  %v509 = vpack.c.bf16 %v477, %v476
  %v510 = vld [vmem:[%s2] sm:$0xff]
  %v511 = vld [vmem:[%s2 + $0x8] sm:$0xff]
  %v512 = vld [vmem:[%s2 + $0x10] sm:$0xff]
  %v513 = vld [vmem:[%s2 + $0x18] sm:$0xff]
  %v514 = vld [vmem:[%s2 + $0x20] sm:$0xff]
  %v515 = vld [vmem:[%s2 + $0x28] sm:$0xff]
  %v516 = vld [vmem:[%s2 + $0x30] sm:$0xff]
  %v517 = vld [vmem:[%s2 + $0x38] sm:$0xff]
  %v518 = vld [vmem:[%s2 + $0x40] sm:$0xff]
  %v519 = vld [vmem:[%s2 + $0x48] sm:$0xff]
  %v520 = vld [vmem:[%s2 + $0x50] sm:$0xff]
  %v521 = vld [vmem:[%s2 + $0x58] sm:$0xff]
  %v522 = vld [vmem:[%s2 + $0x60] sm:$0xff]
  %v523 = vld [vmem:[%s2 + $0x68] sm:$0xff]
  %v524 = vld [vmem:[%s2 + $0x70] sm:$0xff]
  %v525 = vld [vmem:[%s2 + $0x78] sm:$0xff]
  %v526 = vperm.slane %v24, 6
  %v527 = vperm.slane %v25, 6
  %v544 = vunpack.c.l.b16 %v510
  %v545 = vunpack.c.h.b16 %v510
  %v546 = vunpack.c.l.b16 %v511
  %v547 = vunpack.c.h.b16 %v511
  %v548 = vunpack.c.l.b16 %v512
  %v549 = vunpack.c.h.b16 %v512
  %v550 = vunpack.c.l.b16 %v513
  %v551 = vunpack.c.h.b16 %v513
  %v552 = vunpack.c.l.b16 %v514
  %v553 = vunpack.c.h.b16 %v514
  %v554 = vunpack.c.l.b16 %v515
  %v555 = vunpack.c.h.b16 %v515
  %v556 = vunpack.c.l.b16 %v516
  %v557 = vunpack.c.h.b16 %v516
  %v558 = vunpack.c.l.b16 %v517
  %v559 = vunpack.c.h.b16 %v517
  %v560 = vunpack.c.l.b16 %v518
  %v561 = vunpack.c.h.b16 %v518
  %v562 = vunpack.c.l.b16 %v519
  %v563 = vunpack.c.h.b16 %v519
  %v564 = vunpack.c.l.b16 %v520
  %v565 = vunpack.c.h.b16 %v520
  %v566 = vunpack.c.l.b16 %v521
  %v567 = vunpack.c.h.b16 %v521
  %v568 = vunpack.c.l.b16 %v522
  %v569 = vunpack.c.h.b16 %v522
  %v570 = vunpack.c.l.b16 %v523
  %v571 = vunpack.c.h.b16 %v523
  %v572 = vunpack.c.l.b16 %v524
  %v573 = vunpack.c.h.b16 %v524
  %v574 = vunpack.c.l.b16 %v525
  %v575 = vunpack.c.h.b16 %v525
  %v576 = vpack.c.b16 %v546, %v544
  %v577 = vpack.c.b16 %v547, %v545
  %v578 = vpack.c.b16 %v550, %v548
  %v579 = vpack.c.b16 %v551, %v549
  %v580 = vpack.c.b16 %v554, %v552
  %v581 = vpack.c.b16 %v555, %v553
  %v582 = vpack.c.b16 %v558, %v556
  %v583 = vpack.c.b16 %v559, %v557
  %v584 = vpack.c.b16 %v562, %v560
  %v585 = vpack.c.b16 %v563, %v561
  %v586 = vpack.c.b16 %v566, %v564
  %v587 = vpack.c.b16 %v567, %v565
  %v588 = vpack.c.b16 %v570, %v568
  %v589 = vpack.c.b16 %v571, %v569
  %v590 = vpack.c.b16 %v574, %v572
  %v591 = vpack.c.b16 %v575, %v573
  %608 = vmatpush.bf16.msra.mxu0 %v590
  %609 = vmatpush.bf16.msra.mxu0 %v588
  %610 = vmatpush.bf16.msra.mxu0 %v586
  %611 = vmatpush.bf16.msra.mxu0 %v584
  %612 = vmatpush.bf16.msra.mxu0 %v582
  %613 = vmatpush.bf16.msra.mxu0 %v580
  %614 = vmatpush.bf16.msra.mxu0 %v578
  %615 = vmatpush.bf16.msra.mxu0 %v576
  %616 = vmatmul.bf16.gmra.mxu0 %v478
  %v617 = vpop.f32.mrf.mxu0
  %v618 = vadd.f32 %v526, %v617
  %v619 = vpop.f32.mrf.mxu0
  %v620 = vadd.f32 %v526, %v619
  %621 = vmatmul.bf16.gmra.mxu0 %v479
  %v622 = vpop.f32.mrf.mxu0
  %v623 = vadd.f32 %v526, %v622
  %v624 = vpop.f32.mrf.mxu0
  %v625 = vadd.f32 %v526, %v624
  %626 = vmatmul.bf16.gmra.mxu0 %v480
  %v627 = vpop.f32.mrf.mxu0
  %v628 = vadd.f32 %v526, %v627
  %v629 = vpop.f32.mrf.mxu0
  %v630 = vadd.f32 %v526, %v629
  %631 = vmatmul.bf16.gmra.mxu0 %v481
  %v632 = vpop.f32.mrf.mxu0
  %v633 = vadd.f32 %v526, %v632
  %v634 = vpop.f32.mrf.mxu0
  %v635 = vadd.f32 %v526, %v634
  %636 = vmatmul.bf16.gmra.mxu0 %v482
  %v637 = vpop.f32.mrf.mxu0
  %v638 = vadd.f32 %v526, %v637
  %v639 = vpop.f32.mrf.mxu0
  %v640 = vadd.f32 %v526, %v639
  %641 = vmatmul.bf16.gmra.mxu0 %v483
  %v642 = vpop.f32.mrf.mxu0
  %v643 = vadd.f32 %v526, %v642
  %v644 = vpop.f32.mrf.mxu0
  %v645 = vadd.f32 %v526, %v644
  %646 = vmatmul.bf16.gmra.mxu0 %v484
  %v647 = vpop.f32.mrf.mxu0
  %v648 = vadd.f32 %v526, %v647
  %v649 = vpop.f32.mrf.mxu0
  %v650 = vadd.f32 %v526, %v649
  %651 = vmatmul.bf16.gmra.mxu0 %v485
  %v652 = vpop.f32.mrf.mxu0
  %v653 = vadd.f32 %v526, %v652
  %v654 = vpop.f32.mrf.mxu0
  %v655 = vadd.f32 %v526, %v654
  %656 = vmatmul.bf16.gmra.mxu0 %v486
  %v657 = vpop.f32.mrf.mxu0
  %v658 = vadd.f32 %v526, %v657
  %v659 = vpop.f32.mrf.mxu0
  %v660 = vadd.f32 %v526, %v659
  %661 = vmatmul.bf16.gmra.mxu0 %v487
  %v662 = vpop.f32.mrf.mxu0
  %v663 = vadd.f32 %v526, %v662
  %v664 = vpop.f32.mrf.mxu0
  %v665 = vadd.f32 %v526, %v664
  %666 = vmatmul.bf16.gmra.mxu0 %v488
  %v667 = vpop.f32.mrf.mxu0
  %v668 = vadd.f32 %v526, %v667
  %v669 = vpop.f32.mrf.mxu0
  %v670 = vadd.f32 %v526, %v669
  %671 = vmatmul.bf16.gmra.mxu0 %v489
  %v672 = vpop.f32.mrf.mxu0
  %v673 = vadd.f32 %v526, %v672
  %v674 = vpop.f32.mrf.mxu0
  %v675 = vadd.f32 %v526, %v674
  %676 = vmatmul.bf16.gmra.mxu0 %v490
  %v677 = vpop.f32.mrf.mxu0
  %v678 = vadd.f32 %v526, %v677
  %v679 = vpop.f32.mrf.mxu0
  %v680 = vadd.f32 %v526, %v679
  %681 = vmatmul.bf16.gmra.mxu0 %v491
  %v682 = vpop.f32.mrf.mxu0
  %v683 = vadd.f32 %v526, %v682
  %v684 = vpop.f32.mrf.mxu0
  %v685 = vadd.f32 %v526, %v684
  %686 = vmatmul.bf16.gmra.mxu0 %v492
  %v687 = vpop.f32.mrf.mxu0
  %v688 = vadd.f32 %v526, %v687
  %v689 = vpop.f32.mrf.mxu0
  %v690 = vadd.f32 %v526, %v689
  %691 = vmatmul.bf16.gmra.mxu0 %v493
  %v692 = vpop.f32.mrf.mxu0
  %v693 = vadd.f32 %v526, %v692
  %v694 = vpop.f32.mrf.mxu0
  %v695 = vadd.f32 %v526, %v694
  %696 = vmatmul.bf16.gmra.mxu0 %v494
  %v697 = vpop.f32.mrf.mxu0
  %v698 = vadd.f32 %v526, %v697
  %v699 = vpop.f32.mrf.mxu0
  %v700 = vadd.f32 %v526, %v699
  %701 = vmatmul.bf16.gmra.mxu0 %v495
  %v702 = vpop.f32.mrf.mxu0
  %v703 = vadd.f32 %v526, %v702
  %v704 = vpop.f32.mrf.mxu0
  %v705 = vadd.f32 %v526, %v704
  %706 = vmatmul.bf16.gmra.mxu0 %v496
  %v707 = vpop.f32.mrf.mxu0
  %v708 = vadd.f32 %v526, %v707
  %v709 = vpop.f32.mrf.mxu0
  %v710 = vadd.f32 %v526, %v709
  %711 = vmatmul.bf16.gmra.mxu0 %v497
  %v712 = vpop.f32.mrf.mxu0
  %v713 = vadd.f32 %v526, %v712
  %v714 = vpop.f32.mrf.mxu0
  %v715 = vadd.f32 %v526, %v714
  %716 = vmatmul.bf16.gmra.mxu0 %v498
  %v717 = vpop.f32.mrf.mxu0
  %v718 = vadd.f32 %v526, %v717
  %v719 = vpop.f32.mrf.mxu0
  %v720 = vadd.f32 %v526, %v719
  %721 = vmatmul.bf16.gmra.mxu0 %v499
  %v722 = vpop.f32.mrf.mxu0
  %v723 = vadd.f32 %v526, %v722
  %v724 = vpop.f32.mrf.mxu0
  %v725 = vadd.f32 %v526, %v724
  %726 = vmatmul.bf16.gmra.mxu0 %v500
  %v727 = vpop.f32.mrf.mxu0
  %v728 = vadd.f32 %v526, %v727
  %v729 = vpop.f32.mrf.mxu0
  %v730 = vadd.f32 %v526, %v729
  %731 = vmatmul.bf16.gmra.mxu0 %v501
  %v732 = vpop.f32.mrf.mxu0
  %v733 = vadd.f32 %v526, %v732
  %v734 = vpop.f32.mrf.mxu0
  %v735 = vadd.f32 %v526, %v734
  %736 = vmatmul.bf16.gmra.mxu0 %v502
  %v737 = vpop.f32.mrf.mxu0
  %v738 = vadd.f32 %v526, %v737
  %v739 = vpop.f32.mrf.mxu0
  %v740 = vadd.f32 %v526, %v739
  %741 = vmatmul.bf16.gmra.mxu0 %v503
  %v742 = vpop.f32.mrf.mxu0
  %v743 = vadd.f32 %v526, %v742
  %v744 = vpop.f32.mrf.mxu0
  %v745 = vadd.f32 %v526, %v744
  %746 = vmatmul.bf16.gmra.mxu0 %v504
  %v747 = vpop.f32.mrf.mxu0
  %v748 = vadd.f32 %v526, %v747
  %v749 = vpop.f32.mrf.mxu0
  %v750 = vadd.f32 %v526, %v749
  %751 = vmatmul.bf16.gmra.mxu0 %v505
  %v752 = vpop.f32.mrf.mxu0
  %v753 = vadd.f32 %v526, %v752
  %v754 = vpop.f32.mrf.mxu0
  %v755 = vadd.f32 %v526, %v754
  %756 = vmatmul.bf16.gmra.mxu0 %v506
  %v757 = vpop.f32.mrf.mxu0
  %v758 = vadd.f32 %v526, %v757
  %v759 = vpop.f32.mrf.mxu0
  %v760 = vadd.f32 %v526, %v759
  %761 = vmatmul.bf16.gmra.mxu0 %v507
  %v762 = vpop.f32.mrf.mxu0
  %v763 = vadd.f32 %v526, %v762
  %v764 = vpop.f32.mrf.mxu0
  %v765 = vadd.f32 %v526, %v764
  %766 = vmatmul.bf16.gmra.mxu0 %v508
  %v767 = vpop.f32.mrf.mxu0
  %v768 = vadd.f32 %v526, %v767
  %v769 = vpop.f32.mrf.mxu0
  %v770 = vadd.f32 %v526, %v769
  %771 = vmatmul.bf16.gmra.mxu0 %v509
  %v772 = vpop.f32.mrf.mxu0
  %v773 = vadd.f32 %v526, %v772
  %v774 = vpop.f32.mrf.mxu0
  %v775 = vadd.f32 %v526, %v774
  %776 = vdwg.mxu0
  %777 = vmatpush.bf16.msra.mxu0 %v591
  %778 = vmatpush.bf16.msra.mxu0 %v589
  %779 = vmatpush.bf16.msra.mxu0 %v587
  %780 = vmatpush.bf16.msra.mxu0 %v585
  %781 = vmatpush.bf16.msra.mxu0 %v583
  %782 = vmatpush.bf16.msra.mxu0 %v581
  %783 = vmatpush.bf16.msra.mxu0 %v579
  %784 = vmatpush.bf16.msra.mxu0 %v577
  %785 = vmatmul.bf16.gmra.mxu0 %v478
  %v786 = vpop.f32.mrf.mxu0
  %v787 = vadd.f32 %v527, %v786
  %v788 = vpop.f32.mrf.mxu0
  %v789 = vadd.f32 %v527, %v788
  %790 = vmatmul.bf16.gmra.mxu0 %v479
  %v791 = vpop.f32.mrf.mxu0
  %v792 = vadd.f32 %v527, %v791
  %v793 = vpop.f32.mrf.mxu0
  %v794 = vadd.f32 %v527, %v793
  %795 = vmatmul.bf16.gmra.mxu0 %v480
  %v796 = vpop.f32.mrf.mxu0
  %v797 = vadd.f32 %v527, %v796
  %v798 = vpop.f32.mrf.mxu0
  %v799 = vadd.f32 %v527, %v798
  %800 = vmatmul.bf16.gmra.mxu0 %v481
  %v801 = vpop.f32.mrf.mxu0
  %v802 = vadd.f32 %v527, %v801
  %v803 = vpop.f32.mrf.mxu0
  %v804 = vadd.f32 %v527, %v803
  %805 = vmatmul.bf16.gmra.mxu0 %v482
  %v806 = vpop.f32.mrf.mxu0
  %v807 = vadd.f32 %v527, %v806
  %v808 = vpop.f32.mrf.mxu0
  %v809 = vadd.f32 %v527, %v808
  %810 = vmatmul.bf16.gmra.mxu0 %v483
  %v811 = vpop.f32.mrf.mxu0
  %v812 = vadd.f32 %v527, %v811
  %v813 = vpop.f32.mrf.mxu0
  %v814 = vadd.f32 %v527, %v813
  %815 = vmatmul.bf16.gmra.mxu0 %v484
  %v816 = vpop.f32.mrf.mxu0
  %v817 = vadd.f32 %v527, %v816
  %v818 = vpop.f32.mrf.mxu0
  %v819 = vadd.f32 %v527, %v818
  %820 = vmatmul.bf16.gmra.mxu0 %v485
  %v821 = vpop.f32.mrf.mxu0
  %v822 = vadd.f32 %v527, %v821
  %v823 = vpop.f32.mrf.mxu0
  %v824 = vadd.f32 %v527, %v823
  %825 = vmatmul.bf16.gmra.mxu0 %v486
  %v826 = vpop.f32.mrf.mxu0
  %v827 = vadd.f32 %v527, %v826
  %v828 = vpop.f32.mrf.mxu0
  %v829 = vadd.f32 %v527, %v828
  %830 = vmatmul.bf16.gmra.mxu0 %v487
  %v831 = vpop.f32.mrf.mxu0
  %v832 = vadd.f32 %v527, %v831
  %v833 = vpop.f32.mrf.mxu0
  %v834 = vadd.f32 %v527, %v833
  %835 = vmatmul.bf16.gmra.mxu0 %v488
  %v836 = vpop.f32.mrf.mxu0
  %v837 = vadd.f32 %v527, %v836
  %v838 = vpop.f32.mrf.mxu0
  %v839 = vadd.f32 %v527, %v838
  %840 = vmatmul.bf16.gmra.mxu0 %v489
  %v841 = vpop.f32.mrf.mxu0
  %v842 = vadd.f32 %v527, %v841
  %v843 = vpop.f32.mrf.mxu0
  %v844 = vadd.f32 %v527, %v843
  %845 = vmatmul.bf16.gmra.mxu0 %v490
  %v846 = vpop.f32.mrf.mxu0
  %v847 = vadd.f32 %v527, %v846
  %v848 = vpop.f32.mrf.mxu0
  %v849 = vadd.f32 %v527, %v848
  %850 = vmatmul.bf16.gmra.mxu0 %v491
  %v851 = vpop.f32.mrf.mxu0
  %v852 = vadd.f32 %v527, %v851
  %v853 = vpop.f32.mrf.mxu0
  %v854 = vadd.f32 %v527, %v853
  %855 = vmatmul.bf16.gmra.mxu0 %v492
  %v856 = vpop.f32.mrf.mxu0
  %v857 = vadd.f32 %v527, %v856
  %v858 = vpop.f32.mrf.mxu0
  %v859 = vadd.f32 %v527, %v858
  %860 = vmatmul.bf16.gmra.mxu0 %v493
  %v861 = vpop.f32.mrf.mxu0
  %v862 = vadd.f32 %v527, %v861
  %v863 = vpop.f32.mrf.mxu0
  %v864 = vadd.f32 %v527, %v863
  %865 = vmatmul.bf16.gmra.mxu0 %v494
  %v866 = vpop.f32.mrf.mxu0
  %v867 = vadd.f32 %v527, %v866
  %v868 = vpop.f32.mrf.mxu0
  %v869 = vadd.f32 %v527, %v868
  %870 = vmatmul.bf16.gmra.mxu0 %v495
  %v871 = vpop.f32.mrf.mxu0
  %v872 = vadd.f32 %v527, %v871
  %v873 = vpop.f32.mrf.mxu0
  %v874 = vadd.f32 %v527, %v873
  %875 = vmatmul.bf16.gmra.mxu0 %v496
  %v876 = vpop.f32.mrf.mxu0
  %v877 = vadd.f32 %v527, %v876
  %v878 = vpop.f32.mrf.mxu0
  %v879 = vadd.f32 %v527, %v878
  %880 = vmatmul.bf16.gmra.mxu0 %v497
  %v881 = vpop.f32.mrf.mxu0
  %v882 = vadd.f32 %v527, %v881
  %v883 = vpop.f32.mrf.mxu0
  %v884 = vadd.f32 %v527, %v883
  %885 = vmatmul.bf16.gmra.mxu0 %v498
  %v886 = vpop.f32.mrf.mxu0
  %v887 = vadd.f32 %v527, %v886
  %v888 = vpop.f32.mrf.mxu0
  %v889 = vadd.f32 %v527, %v888
  %890 = vmatmul.bf16.gmra.mxu0 %v499
  %v891 = vpop.f32.mrf.mxu0
  %v892 = vadd.f32 %v527, %v891
  %v893 = vpop.f32.mrf.mxu0
  %v894 = vadd.f32 %v527, %v893
  %895 = vmatmul.bf16.gmra.mxu0 %v500
  %v896 = vpop.f32.mrf.mxu0
  %v897 = vadd.f32 %v527, %v896
  %v898 = vpop.f32.mrf.mxu0
  %v899 = vadd.f32 %v527, %v898
  %900 = vmatmul.bf16.gmra.mxu0 %v501
  %v901 = vpop.f32.mrf.mxu0
  %v902 = vadd.f32 %v527, %v901
  %v903 = vpop.f32.mrf.mxu0
  %v904 = vadd.f32 %v527, %v903
  %905 = vmatmul.bf16.gmra.mxu0 %v502
  %v906 = vpop.f32.mrf.mxu0
  %v907 = vadd.f32 %v527, %v906
  %v908 = vpop.f32.mrf.mxu0
  %v909 = vadd.f32 %v527, %v908
  %910 = vmatmul.bf16.gmra.mxu0 %v503
  %v911 = vpop.f32.mrf.mxu0
  %v912 = vadd.f32 %v527, %v911
  %v913 = vpop.f32.mrf.mxu0
  %v914 = vadd.f32 %v527, %v913
  %915 = vmatmul.bf16.gmra.mxu0 %v504
  %v916 = vpop.f32.mrf.mxu0
  %v917 = vadd.f32 %v527, %v916
  %v918 = vpop.f32.mrf.mxu0
  %v919 = vadd.f32 %v527, %v918
  %920 = vmatmul.bf16.gmra.mxu0 %v505
  %v921 = vpop.f32.mrf.mxu0
  %v922 = vadd.f32 %v527, %v921
  %v923 = vpop.f32.mrf.mxu0
  %v924 = vadd.f32 %v527, %v923
  %925 = vmatmul.bf16.gmra.mxu0 %v506
  %v926 = vpop.f32.mrf.mxu0
  %v927 = vadd.f32 %v527, %v926
  %v928 = vpop.f32.mrf.mxu0
  %v929 = vadd.f32 %v527, %v928
  %930 = vmatmul.bf16.gmra.mxu0 %v507
  %v931 = vpop.f32.mrf.mxu0
  %v932 = vadd.f32 %v527, %v931
  %v933 = vpop.f32.mrf.mxu0
  %v934 = vadd.f32 %v527, %v933
  %935 = vmatmul.bf16.gmra.mxu0 %v508
  %v936 = vpop.f32.mrf.mxu0
  %v937 = vadd.f32 %v527, %v936
  %v938 = vpop.f32.mrf.mxu0
  %v939 = vadd.f32 %v527, %v938
  %940 = vmatmul.bf16.gmra.mxu0 %v509
  %v941 = vpop.f32.mrf.mxu0
  %v942 = vadd.f32 %v527, %v941
  %v943 = vpop.f32.mrf.mxu0
  %v944 = vadd.f32 %v527, %v943
  %945 = vdwg.mxu0
  %v946 = vld [vmem:[%s22] sm:$0xff]
  %v947 = vld [vmem:[%s22 + $0x8] sm:$0xff]
  %v948 = vld [vmem:[%s22 + $0x10] sm:$0xff]
  %v949 = vld [vmem:[%s22 + $0x18] sm:$0xff]
  %v950 = vld [vmem:[%s22 + $0x20] sm:$0xff]
  %v951 = vld [vmem:[%s22 + $0x28] sm:$0xff]
  %v952 = vld [vmem:[%s22 + $0x30] sm:$0xff]
  %v953 = vld [vmem:[%s22 + $0x38] sm:$0xff]
  %v954 = vld [vmem:[%s22 + $0x40] sm:$0xff]
  %v955 = vld [vmem:[%s22 + $0x48] sm:$0xff]
  %v956 = vld [vmem:[%s22 + $0x50] sm:$0xff]
  %v957 = vld [vmem:[%s22 + $0x58] sm:$0xff]
  %v958 = vld [vmem:[%s22 + $0x60] sm:$0xff]
  %v959 = vld [vmem:[%s22 + $0x68] sm:$0xff]
  %v960 = vld [vmem:[%s22 + $0x70] sm:$0xff]
  %v961 = vld [vmem:[%s22 + $0x78] sm:$0xff]
  %v962 = vld [vmem:[%s22 + $0x80] sm:$0xff]
  %v963 = vld [vmem:[%s22 + $0x88] sm:$0xff]
  %v964 = vld [vmem:[%s22 + $0x90] sm:$0xff]
  %v965 = vld [vmem:[%s22 + $0x98] sm:$0xff]
  %v966 = vld [vmem:[%s22 + $0xa0] sm:$0xff]
  %v967 = vld [vmem:[%s22 + $0xa8] sm:$0xff]
  %v968 = vld [vmem:[%s22 + $0xb0] sm:$0xff]
  %v969 = vld [vmem:[%s22 + $0xb8] sm:$0xff]
  %v970 = vld [vmem:[%s22 + $0xc0] sm:$0xff]
  %v971 = vld [vmem:[%s22 + $0xc8] sm:$0xff]
  %v972 = vld [vmem:[%s22 + $0xd0] sm:$0xff]
  %v973 = vld [vmem:[%s22 + $0xd8] sm:$0xff]
  %v974 = vld [vmem:[%s22 + $0xe0] sm:$0xff]
  %v975 = vld [vmem:[%s22 + $0xe8] sm:$0xff]
  %v976 = vld [vmem:[%s22 + $0xf0] sm:$0xff]
  %v977 = vld [vmem:[%s22 + $0xf8] sm:$0xff]
  %v978 = vld [vmem:[%s22 + $0x100] sm:$0xff]
  %v979 = vld [vmem:[%s22 + $0x108] sm:$0xff]
  %v980 = vld [vmem:[%s22 + $0x110] sm:$0xff]
  %v981 = vld [vmem:[%s22 + $0x118] sm:$0xff]
  %v982 = vld [vmem:[%s22 + $0x120] sm:$0xff]
  %v983 = vld [vmem:[%s22 + $0x128] sm:$0xff]
  %v984 = vld [vmem:[%s22 + $0x130] sm:$0xff]
  %v985 = vld [vmem:[%s22 + $0x138] sm:$0xff]
  %v986 = vld [vmem:[%s22 + $0x140] sm:$0xff]
  %v987 = vld [vmem:[%s22 + $0x148] sm:$0xff]
  %v988 = vld [vmem:[%s22 + $0x150] sm:$0xff]
  %v989 = vld [vmem:[%s22 + $0x158] sm:$0xff]
  %v990 = vld [vmem:[%s22 + $0x160] sm:$0xff]
  %v991 = vld [vmem:[%s22 + $0x168] sm:$0xff]
  %v992 = vld [vmem:[%s22 + $0x170] sm:$0xff]
  %v993 = vld [vmem:[%s22 + $0x178] sm:$0xff]
  %v994 = vld [vmem:[%s22 + $0x180] sm:$0xff]
  %v995 = vld [vmem:[%s22 + $0x188] sm:$0xff]
  %v996 = vld [vmem:[%s22 + $0x190] sm:$0xff]
  %v997 = vld [vmem:[%s22 + $0x198] sm:$0xff]
  %v998 = vld [vmem:[%s22 + $0x1a0] sm:$0xff]
  %v999 = vld [vmem:[%s22 + $0x1a8] sm:$0xff]
  %v1000 = vld [vmem:[%s22 + $0x1b0] sm:$0xff]
  %v1001 = vld [vmem:[%s22 + $0x1b8] sm:$0xff]
  %v1002 = vld [vmem:[%s22 + $0x1c0] sm:$0xff]
  %v1003 = vld [vmem:[%s22 + $0x1c8] sm:$0xff]
  %v1004 = vld [vmem:[%s22 + $0x1d0] sm:$0xff]
  %v1005 = vld [vmem:[%s22 + $0x1d8] sm:$0xff]
  %v1006 = vld [vmem:[%s22 + $0x1e0] sm:$0xff]
  %v1007 = vld [vmem:[%s22 + $0x1e8] sm:$0xff]
  %v1008 = vld [vmem:[%s22 + $0x1f0] sm:$0xff]
  %v1009 = vld [vmem:[%s22 + $0x1f8] sm:$0xff]
  %v1010 = vunpack.c.l.bf16 %v946
  %v1011 = vunpack.c.h.bf16 %v946
  %v1012 = vunpack.c.l.bf16 %v947
  %v1013 = vunpack.c.h.bf16 %v947
  %v1014 = vunpack.c.l.bf16 %v948
  %v1015 = vunpack.c.h.bf16 %v948
  %v1016 = vunpack.c.l.bf16 %v949
  %v1017 = vunpack.c.h.bf16 %v949
  %v1018 = vunpack.c.l.bf16 %v950
  %v1019 = vunpack.c.h.bf16 %v950
  %v1020 = vunpack.c.l.bf16 %v951
  %v1021 = vunpack.c.h.bf16 %v951
  %v1022 = vunpack.c.l.bf16 %v952
  %v1023 = vunpack.c.h.bf16 %v952
  %v1024 = vunpack.c.l.bf16 %v953
  %v1025 = vunpack.c.h.bf16 %v953
  %v1026 = vunpack.c.l.bf16 %v954
  %v1027 = vunpack.c.h.bf16 %v954
  %v1028 = vunpack.c.l.bf16 %v955
  %v1029 = vunpack.c.h.bf16 %v955
  %v1030 = vunpack.c.l.bf16 %v956
  %v1031 = vunpack.c.h.bf16 %v956
  %v1032 = vunpack.c.l.bf16 %v957
  %v1033 = vunpack.c.h.bf16 %v957
  %v1034 = vunpack.c.l.bf16 %v958
  %v1035 = vunpack.c.h.bf16 %v958
  %v1036 = vunpack.c.l.bf16 %v959
  %v1037 = vunpack.c.h.bf16 %v959
  %v1038 = vunpack.c.l.bf16 %v960
  %v1039 = vunpack.c.h.bf16 %v960
  %v1040 = vunpack.c.l.bf16 %v961
  %v1041 = vunpack.c.h.bf16 %v961
  %v1042 = vunpack.c.l.bf16 %v962
  %v1043 = vunpack.c.h.bf16 %v962
  %v1044 = vunpack.c.l.bf16 %v963
  %v1045 = vunpack.c.h.bf16 %v963
  %v1046 = vunpack.c.l.bf16 %v964
  %v1047 = vunpack.c.h.bf16 %v964
  %v1048 = vunpack.c.l.bf16 %v965
  %v1049 = vunpack.c.h.bf16 %v965
  %v1050 = vunpack.c.l.bf16 %v966
  %v1051 = vunpack.c.h.bf16 %v966
  %v1052 = vunpack.c.l.bf16 %v967
  %v1053 = vunpack.c.h.bf16 %v967
  %v1054 = vunpack.c.l.bf16 %v968
  %v1055 = vunpack.c.h.bf16 %v968
  %v1056 = vunpack.c.l.bf16 %v969
  %v1057 = vunpack.c.h.bf16 %v969
  %v1058 = vunpack.c.l.bf16 %v970
  %v1059 = vunpack.c.h.bf16 %v970
  %v1060 = vunpack.c.l.bf16 %v971
  %v1061 = vunpack.c.h.bf16 %v971
  %v1062 = vunpack.c.l.bf16 %v972
  %v1063 = vunpack.c.h.bf16 %v972
  %v1064 = vunpack.c.l.bf16 %v973
  %v1065 = vunpack.c.h.bf16 %v973
  %v1066 = vunpack.c.l.bf16 %v974
  %v1067 = vunpack.c.h.bf16 %v974
  %v1068 = vunpack.c.l.bf16 %v975
  %v1069 = vunpack.c.h.bf16 %v975
  %v1070 = vunpack.c.l.bf16 %v976
  %v1071 = vunpack.c.h.bf16 %v976
  %v1072 = vunpack.c.l.bf16 %v977
  %v1073 = vunpack.c.h.bf16 %v977
  %v1074 = vunpack.c.l.bf16 %v978
  %v1075 = vunpack.c.h.bf16 %v978
  %v1076 = vunpack.c.l.bf16 %v979
  %v1077 = vunpack.c.h.bf16 %v979
  %v1078 = vunpack.c.l.bf16 %v980
  %v1079 = vunpack.c.h.bf16 %v980
  %v1080 = vunpack.c.l.bf16 %v981
  %v1081 = vunpack.c.h.bf16 %v981
  %v1082 = vunpack.c.l.bf16 %v982
  %v1083 = vunpack.c.h.bf16 %v982
  %v1084 = vunpack.c.l.bf16 %v983
  %v1085 = vunpack.c.h.bf16 %v983
  %v1086 = vunpack.c.l.bf16 %v984
  %v1087 = vunpack.c.h.bf16 %v984
  %v1088 = vunpack.c.l.bf16 %v985
  %v1089 = vunpack.c.h.bf16 %v985
  %v1090 = vunpack.c.l.bf16 %v986
  %v1091 = vunpack.c.h.bf16 %v986
  %v1092 = vunpack.c.l.bf16 %v987
  %v1093 = vunpack.c.h.bf16 %v987
  %v1094 = vunpack.c.l.bf16 %v988
  %v1095 = vunpack.c.h.bf16 %v988
  %v1096 = vunpack.c.l.bf16 %v989
  %v1097 = vunpack.c.h.bf16 %v989
  %v1098 = vunpack.c.l.bf16 %v990
  %v1099 = vunpack.c.h.bf16 %v990
  %v1100 = vunpack.c.l.bf16 %v991
  %v1101 = vunpack.c.h.bf16 %v991
  %v1102 = vunpack.c.l.bf16 %v992
  %v1103 = vunpack.c.h.bf16 %v992
  %v1104 = vunpack.c.l.bf16 %v993
  %v1105 = vunpack.c.h.bf16 %v993
  %v1106 = vunpack.c.l.bf16 %v994
  %v1107 = vunpack.c.h.bf16 %v994
  %v1108 = vunpack.c.l.bf16 %v995
  %v1109 = vunpack.c.h.bf16 %v995
  %v1110 = vunpack.c.l.bf16 %v996
  %v1111 = vunpack.c.h.bf16 %v996
  %v1112 = vunpack.c.l.bf16 %v997
  %v1113 = vunpack.c.h.bf16 %v997
  %v1114 = vunpack.c.l.bf16 %v998
  %v1115 = vunpack.c.h.bf16 %v998
  %v1116 = vunpack.c.l.bf16 %v999
  %v1117 = vunpack.c.h.bf16 %v999
  %v1118 = vunpack.c.l.bf16 %v1000
  %v1119 = vunpack.c.h.bf16 %v1000
  %v1120 = vunpack.c.l.bf16 %v1001
  %v1121 = vunpack.c.h.bf16 %v1001
  %v1122 = vunpack.c.l.bf16 %v1002
  %v1123 = vunpack.c.h.bf16 %v1002
  %v1124 = vunpack.c.l.bf16 %v1003
  %v1125 = vunpack.c.h.bf16 %v1003
  %v1126 = vunpack.c.l.bf16 %v1004
  %v1127 = vunpack.c.h.bf16 %v1004
  %v1128 = vunpack.c.l.bf16 %v1005
  %v1129 = vunpack.c.h.bf16 %v1005
  %v1130 = vunpack.c.l.bf16 %v1006
  %v1131 = vunpack.c.h.bf16 %v1006
  %v1132 = vunpack.c.l.bf16 %v1007
  %v1133 = vunpack.c.h.bf16 %v1007
  %v1134 = vunpack.c.l.bf16 %v1008
  %v1135 = vunpack.c.h.bf16 %v1008
  %v1136 = vunpack.c.l.bf16 %v1009
  %v1137 = vunpack.c.h.bf16 %v1009
  %v1138 = vperm.slane %v24, 0
  %v1139 = vperm.slane %v25, 0
  %v1140 = vsub.f32 %v1010, %v1138
  %v1141 = vsub.f32 %v1011, %v1139
  %v1142 = vsub.f32 %v1012, %v1138
  %v1143 = vsub.f32 %v1013, %v1139
  %v1144 = vsub.f32 %v1014, %v1138
  %v1145 = vsub.f32 %v1015, %v1139
  %v1146 = vsub.f32 %v1016, %v1138
  %v1147 = vsub.f32 %v1017, %v1139
  %v1148 = vsub.f32 %v1018, %v1138
  %v1149 = vsub.f32 %v1019, %v1139
  %v1150 = vsub.f32 %v1020, %v1138
  %v1151 = vsub.f32 %v1021, %v1139
  %v1152 = vsub.f32 %v1022, %v1138
  %v1153 = vsub.f32 %v1023, %v1139
  %v1154 = vsub.f32 %v1024, %v1138
  %v1155 = vsub.f32 %v1025, %v1139
  %v1156 = vsub.f32 %v1026, %v1138
  %v1157 = vsub.f32 %v1027, %v1139
  %v1158 = vsub.f32 %v1028, %v1138
  %v1159 = vsub.f32 %v1029, %v1139
  %v1160 = vsub.f32 %v1030, %v1138
  %v1161 = vsub.f32 %v1031, %v1139
  %v1162 = vsub.f32 %v1032, %v1138
  %v1163 = vsub.f32 %v1033, %v1139
  %v1164 = vsub.f32 %v1034, %v1138
  %v1165 = vsub.f32 %v1035, %v1139
  %v1166 = vsub.f32 %v1036, %v1138
  %v1167 = vsub.f32 %v1037, %v1139
  %v1168 = vsub.f32 %v1038, %v1138
  %v1169 = vsub.f32 %v1039, %v1139
  %v1170 = vsub.f32 %v1040, %v1138
  %v1171 = vsub.f32 %v1041, %v1139
  %v1172 = vsub.f32 %v1042, %v1138
  %v1173 = vsub.f32 %v1043, %v1139
  %v1174 = vsub.f32 %v1044, %v1138
  %v1175 = vsub.f32 %v1045, %v1139
  %v1176 = vsub.f32 %v1046, %v1138
  %v1177 = vsub.f32 %v1047, %v1139
  %v1178 = vsub.f32 %v1048, %v1138
  %v1179 = vsub.f32 %v1049, %v1139
  %v1180 = vsub.f32 %v1050, %v1138
  %v1181 = vsub.f32 %v1051, %v1139
  %v1182 = vsub.f32 %v1052, %v1138
  %v1183 = vsub.f32 %v1053, %v1139
  %v1184 = vsub.f32 %v1054, %v1138
  %v1185 = vsub.f32 %v1055, %v1139
  %v1186 = vsub.f32 %v1056, %v1138
  %v1187 = vsub.f32 %v1057, %v1139
  %v1188 = vsub.f32 %v1058, %v1138
  %v1189 = vsub.f32 %v1059, %v1139
  %v1190 = vsub.f32 %v1060, %v1138
  %v1191 = vsub.f32 %v1061, %v1139
  %v1192 = vsub.f32 %v1062, %v1138
  %v1193 = vsub.f32 %v1063, %v1139
  %v1194 = vsub.f32 %v1064, %v1138
  %v1195 = vsub.f32 %v1065, %v1139
  %v1196 = vsub.f32 %v1066, %v1138
  %v1197 = vsub.f32 %v1067, %v1139
  %v1198 = vsub.f32 %v1068, %v1138
  %v1199 = vsub.f32 %v1069, %v1139
  %v1200 = vsub.f32 %v1070, %v1138
  %v1201 = vsub.f32 %v1071, %v1139
  %v1202 = vsub.f32 %v1072, %v1138
  %v1203 = vsub.f32 %v1073, %v1139
  %v1204 = vsub.f32 %v1074, %v1138
  %v1205 = vsub.f32 %v1075, %v1139
  %v1206 = vsub.f32 %v1076, %v1138
  %v1207 = vsub.f32 %v1077, %v1139
  %v1208 = vsub.f32 %v1078, %v1138
  %v1209 = vsub.f32 %v1079, %v1139
  %v1210 = vsub.f32 %v1080, %v1138
  %v1211 = vsub.f32 %v1081, %v1139
  %v1212 = vsub.f32 %v1082, %v1138
  %v1213 = vsub.f32 %v1083, %v1139
  %v1214 = vsub.f32 %v1084, %v1138
  %v1215 = vsub.f32 %v1085, %v1139
  %v1216 = vsub.f32 %v1086, %v1138
  %v1217 = vsub.f32 %v1087, %v1139
  %v1218 = vsub.f32 %v1088, %v1138
  %v1219 = vsub.f32 %v1089, %v1139
  %v1220 = vsub.f32 %v1090, %v1138
  %v1221 = vsub.f32 %v1091, %v1139
  %v1222 = vsub.f32 %v1092, %v1138
  %v1223 = vsub.f32 %v1093, %v1139
  %v1224 = vsub.f32 %v1094, %v1138
  %v1225 = vsub.f32 %v1095, %v1139
  %v1226 = vsub.f32 %v1096, %v1138
  %v1227 = vsub.f32 %v1097, %v1139
  %v1228 = vsub.f32 %v1098, %v1138
  %v1229 = vsub.f32 %v1099, %v1139
  %v1230 = vsub.f32 %v1100, %v1138
  %v1231 = vsub.f32 %v1101, %v1139
  %v1232 = vsub.f32 %v1102, %v1138
  %v1233 = vsub.f32 %v1103, %v1139
  %v1234 = vsub.f32 %v1104, %v1138
  %v1235 = vsub.f32 %v1105, %v1139
  %v1236 = vsub.f32 %v1106, %v1138
  %v1237 = vsub.f32 %v1107, %v1139
  %v1238 = vsub.f32 %v1108, %v1138
  %v1239 = vsub.f32 %v1109, %v1139
  %v1240 = vsub.f32 %v1110, %v1138
  %v1241 = vsub.f32 %v1111, %v1139
  %v1242 = vsub.f32 %v1112, %v1138
  %v1243 = vsub.f32 %v1113, %v1139
  %v1244 = vsub.f32 %v1114, %v1138
  %v1245 = vsub.f32 %v1115, %v1139
  %v1246 = vsub.f32 %v1116, %v1138
  %v1247 = vsub.f32 %v1117, %v1139
  %v1248 = vsub.f32 %v1118, %v1138
  %v1249 = vsub.f32 %v1119, %v1139
  %v1250 = vsub.f32 %v1120, %v1138
  %v1251 = vsub.f32 %v1121, %v1139
  %v1252 = vsub.f32 %v1122, %v1138
  %v1253 = vsub.f32 %v1123, %v1139
  %v1254 = vsub.f32 %v1124, %v1138
  %v1255 = vsub.f32 %v1125, %v1139
  %v1256 = vsub.f32 %v1126, %v1138
  %v1257 = vsub.f32 %v1127, %v1139
  %v1258 = vsub.f32 %v1128, %v1138
  %v1259 = vsub.f32 %v1129, %v1139
  %v1260 = vsub.f32 %v1130, %v1138
  %v1261 = vsub.f32 %v1131, %v1139
  %v1262 = vsub.f32 %v1132, %v1138
  %v1263 = vsub.f32 %v1133, %v1139
  %v1264 = vsub.f32 %v1134, %v1138
  %v1265 = vsub.f32 %v1135, %v1139
  %v1266 = vsub.f32 %v1136, %v1138
  %v1267 = vsub.f32 %v1137, %v1139
  %v1268 = vperm.slane %v24, 1
  %v1269 = vperm.slane %v25, 1
  %v1270 = vmul.f32 %v1140, %v1268
  %v1271 = vmul.f32 %v1141, %v1269
  %v1272 = vmul.f32 %v1142, %v1268
  %v1273 = vmul.f32 %v1143, %v1269
  %v1274 = vmul.f32 %v1144, %v1268
  %v1275 = vmul.f32 %v1145, %v1269
  %v1276 = vmul.f32 %v1146, %v1268
  %v1277 = vmul.f32 %v1147, %v1269
  %v1278 = vmul.f32 %v1148, %v1268
  %v1279 = vmul.f32 %v1149, %v1269
  %v1280 = vmul.f32 %v1150, %v1268
  %v1281 = vmul.f32 %v1151, %v1269
  %v1282 = vmul.f32 %v1152, %v1268
  %v1283 = vmul.f32 %v1153, %v1269
  %v1284 = vmul.f32 %v1154, %v1268
  %v1285 = vmul.f32 %v1155, %v1269
  %v1286 = vmul.f32 %v1156, %v1268
  %v1287 = vmul.f32 %v1157, %v1269
  %v1288 = vmul.f32 %v1158, %v1268
  %v1289 = vmul.f32 %v1159, %v1269
  %v1290 = vmul.f32 %v1160, %v1268
  %v1291 = vmul.f32 %v1161, %v1269
  %v1292 = vmul.f32 %v1162, %v1268
  %v1293 = vmul.f32 %v1163, %v1269
  %v1294 = vmul.f32 %v1164, %v1268
  %v1295 = vmul.f32 %v1165, %v1269
  %v1296 = vmul.f32 %v1166, %v1268
  %v1297 = vmul.f32 %v1167, %v1269
  %v1298 = vmul.f32 %v1168, %v1268
  %v1299 = vmul.f32 %v1169, %v1269
  %v1300 = vmul.f32 %v1170, %v1268
  %v1301 = vmul.f32 %v1171, %v1269
  %v1302 = vmul.f32 %v1172, %v1268
  %v1303 = vmul.f32 %v1173, %v1269
  %v1304 = vmul.f32 %v1174, %v1268
  %v1305 = vmul.f32 %v1175, %v1269
  %v1306 = vmul.f32 %v1176, %v1268
  %v1307 = vmul.f32 %v1177, %v1269
  %v1308 = vmul.f32 %v1178, %v1268
  %v1309 = vmul.f32 %v1179, %v1269
  %v1310 = vmul.f32 %v1180, %v1268
  %v1311 = vmul.f32 %v1181, %v1269
  %v1312 = vmul.f32 %v1182, %v1268
  %v1313 = vmul.f32 %v1183, %v1269
  %v1314 = vmul.f32 %v1184, %v1268
  %v1315 = vmul.f32 %v1185, %v1269
  %v1316 = vmul.f32 %v1186, %v1268
  %v1317 = vmul.f32 %v1187, %v1269
  %v1318 = vmul.f32 %v1188, %v1268
  %v1319 = vmul.f32 %v1189, %v1269
  %v1320 = vmul.f32 %v1190, %v1268
  %v1321 = vmul.f32 %v1191, %v1269
  %v1322 = vmul.f32 %v1192, %v1268
  %v1323 = vmul.f32 %v1193, %v1269
  %v1324 = vmul.f32 %v1194, %v1268
  %v1325 = vmul.f32 %v1195, %v1269
  %v1326 = vmul.f32 %v1196, %v1268
  %v1327 = vmul.f32 %v1197, %v1269
  %v1328 = vmul.f32 %v1198, %v1268
  %v1329 = vmul.f32 %v1199, %v1269
  %v1330 = vmul.f32 %v1200, %v1268
  %v1331 = vmul.f32 %v1201, %v1269
  %v1332 = vmul.f32 %v1202, %v1268
  %v1333 = vmul.f32 %v1203, %v1269
  %v1334 = vmul.f32 %v1204, %v1268
  %v1335 = vmul.f32 %v1205, %v1269
  %v1336 = vmul.f32 %v1206, %v1268
  %v1337 = vmul.f32 %v1207, %v1269
  %v1338 = vmul.f32 %v1208, %v1268
  %v1339 = vmul.f32 %v1209, %v1269
  %v1340 = vmul.f32 %v1210, %v1268
  %v1341 = vmul.f32 %v1211, %v1269
  %v1342 = vmul.f32 %v1212, %v1268
  %v1343 = vmul.f32 %v1213, %v1269
  %v1344 = vmul.f32 %v1214, %v1268
  %v1345 = vmul.f32 %v1215, %v1269
  %v1346 = vmul.f32 %v1216, %v1268
  %v1347 = vmul.f32 %v1217, %v1269
  %v1348 = vmul.f32 %v1218, %v1268
  %v1349 = vmul.f32 %v1219, %v1269
  %v1350 = vmul.f32 %v1220, %v1268
  %v1351 = vmul.f32 %v1221, %v1269
  %v1352 = vmul.f32 %v1222, %v1268
  %v1353 = vmul.f32 %v1223, %v1269
  %v1354 = vmul.f32 %v1224, %v1268
  %v1355 = vmul.f32 %v1225, %v1269
  %v1356 = vmul.f32 %v1226, %v1268
  %v1357 = vmul.f32 %v1227, %v1269
  %v1358 = vmul.f32 %v1228, %v1268
  %v1359 = vmul.f32 %v1229, %v1269
  %v1360 = vmul.f32 %v1230, %v1268
  %v1361 = vmul.f32 %v1231, %v1269
  %v1362 = vmul.f32 %v1232, %v1268
  %v1363 = vmul.f32 %v1233, %v1269
  %v1364 = vmul.f32 %v1234, %v1268
  %v1365 = vmul.f32 %v1235, %v1269
  %v1366 = vmul.f32 %v1236, %v1268
  %v1367 = vmul.f32 %v1237, %v1269
  %v1368 = vmul.f32 %v1238, %v1268
  %v1369 = vmul.f32 %v1239, %v1269
  %v1370 = vmul.f32 %v1240, %v1268
  %v1371 = vmul.f32 %v1241, %v1269
  %v1372 = vmul.f32 %v1242, %v1268
  %v1373 = vmul.f32 %v1243, %v1269
  %v1374 = vmul.f32 %v1244, %v1268
  %v1375 = vmul.f32 %v1245, %v1269
  %v1376 = vmul.f32 %v1246, %v1268
  %v1377 = vmul.f32 %v1247, %v1269
  %v1378 = vmul.f32 %v1248, %v1268
  %v1379 = vmul.f32 %v1249, %v1269
  %v1380 = vmul.f32 %v1250, %v1268
  %v1381 = vmul.f32 %v1251, %v1269
  %v1382 = vmul.f32 %v1252, %v1268
  %v1383 = vmul.f32 %v1253, %v1269
  %v1384 = vmul.f32 %v1254, %v1268
  %v1385 = vmul.f32 %v1255, %v1269
  %v1386 = vmul.f32 %v1256, %v1268
  %v1387 = vmul.f32 %v1257, %v1269
  %v1388 = vmul.f32 %v1258, %v1268
  %v1389 = vmul.f32 %v1259, %v1269
  %v1390 = vmul.f32 %v1260, %v1268
  %v1391 = vmul.f32 %v1261, %v1269
  %v1392 = vmul.f32 %v1262, %v1268
  %v1393 = vmul.f32 %v1263, %v1269
  %v1394 = vmul.f32 %v1264, %v1268
  %v1395 = vmul.f32 %v1265, %v1269
  %v1396 = vmul.f32 %v1266, %v1268
  %v1397 = vmul.f32 %v1267, %v1269
  %v1398 = vperm.slane %v24, 2
  %v1399 = vperm.slane %v25, 2
  %v1400 = vmul.f32 %v1270, %v1398
  %v1401 = vmul.f32 %v1271, %v1399
  %v1402 = vmul.f32 %v1272, %v1398
  %v1403 = vmul.f32 %v1273, %v1399
  %v1404 = vmul.f32 %v1274, %v1398
  %v1405 = vmul.f32 %v1275, %v1399
  %v1406 = vmul.f32 %v1276, %v1398
  %v1407 = vmul.f32 %v1277, %v1399
  %v1408 = vmul.f32 %v1278, %v1398
  %v1409 = vmul.f32 %v1279, %v1399
  %v1410 = vmul.f32 %v1280, %v1398
  %v1411 = vmul.f32 %v1281, %v1399
  %v1412 = vmul.f32 %v1282, %v1398
  %v1413 = vmul.f32 %v1283, %v1399
  %v1414 = vmul.f32 %v1284, %v1398
  %v1415 = vmul.f32 %v1285, %v1399
  %v1416 = vmul.f32 %v1286, %v1398
  %v1417 = vmul.f32 %v1287, %v1399
  %v1418 = vmul.f32 %v1288, %v1398
  %v1419 = vmul.f32 %v1289, %v1399
  %v1420 = vmul.f32 %v1290, %v1398
  %v1421 = vmul.f32 %v1291, %v1399
  %v1422 = vmul.f32 %v1292, %v1398
  %v1423 = vmul.f32 %v1293, %v1399
  %v1424 = vmul.f32 %v1294, %v1398
  %v1425 = vmul.f32 %v1295, %v1399
  %v1426 = vmul.f32 %v1296, %v1398
  %v1427 = vmul.f32 %v1297, %v1399
  %v1428 = vmul.f32 %v1298, %v1398
  %v1429 = vmul.f32 %v1299, %v1399
  %v1430 = vmul.f32 %v1300, %v1398
  %v1431 = vmul.f32 %v1301, %v1399
  %v1432 = vmul.f32 %v1302, %v1398
  %v1433 = vmul.f32 %v1303, %v1399
  %v1434 = vmul.f32 %v1304, %v1398
  %v1435 = vmul.f32 %v1305, %v1399
  %v1436 = vmul.f32 %v1306, %v1398
  %v1437 = vmul.f32 %v1307, %v1399
  %v1438 = vmul.f32 %v1308, %v1398
  %v1439 = vmul.f32 %v1309, %v1399
  %v1440 = vmul.f32 %v1310, %v1398
  %v1441 = vmul.f32 %v1311, %v1399
  %v1442 = vmul.f32 %v1312, %v1398
  %v1443 = vmul.f32 %v1313, %v1399
  %v1444 = vmul.f32 %v1314, %v1398
  %v1445 = vmul.f32 %v1315, %v1399
  %v1446 = vmul.f32 %v1316, %v1398
  %v1447 = vmul.f32 %v1317, %v1399
  %v1448 = vmul.f32 %v1318, %v1398
  %v1449 = vmul.f32 %v1319, %v1399
  %v1450 = vmul.f32 %v1320, %v1398
  %v1451 = vmul.f32 %v1321, %v1399
  %v1452 = vmul.f32 %v1322, %v1398
  %v1453 = vmul.f32 %v1323, %v1399
  %v1454 = vmul.f32 %v1324, %v1398
  %v1455 = vmul.f32 %v1325, %v1399
  %v1456 = vmul.f32 %v1326, %v1398
  %v1457 = vmul.f32 %v1327, %v1399
  %v1458 = vmul.f32 %v1328, %v1398
  %v1459 = vmul.f32 %v1329, %v1399
  %v1460 = vmul.f32 %v1330, %v1398
  %v1461 = vmul.f32 %v1331, %v1399
  %v1462 = vmul.f32 %v1332, %v1398
  %v1463 = vmul.f32 %v1333, %v1399
  %v1464 = vmul.f32 %v1334, %v1398
  %v1465 = vmul.f32 %v1335, %v1399
  %v1466 = vmul.f32 %v1336, %v1398
  %v1467 = vmul.f32 %v1337, %v1399
  %v1468 = vmul.f32 %v1338, %v1398
  %v1469 = vmul.f32 %v1339, %v1399
  %v1470 = vmul.f32 %v1340, %v1398
  %v1471 = vmul.f32 %v1341, %v1399
  %v1472 = vmul.f32 %v1342, %v1398
  %v1473 = vmul.f32 %v1343, %v1399
  %v1474 = vmul.f32 %v1344, %v1398
  %v1475 = vmul.f32 %v1345, %v1399
  %v1476 = vmul.f32 %v1346, %v1398
  %v1477 = vmul.f32 %v1347, %v1399
  %v1478 = vmul.f32 %v1348, %v1398
  %v1479 = vmul.f32 %v1349, %v1399
  %v1480 = vmul.f32 %v1350, %v1398
  %v1481 = vmul.f32 %v1351, %v1399
  %v1482 = vmul.f32 %v1352, %v1398
  %v1483 = vmul.f32 %v1353, %v1399
  %v1484 = vmul.f32 %v1354, %v1398
  %v1485 = vmul.f32 %v1355, %v1399
  %v1486 = vmul.f32 %v1356, %v1398
  %v1487 = vmul.f32 %v1357, %v1399
  %v1488 = vmul.f32 %v1358, %v1398
  %v1489 = vmul.f32 %v1359, %v1399
  %v1490 = vmul.f32 %v1360, %v1398
  %v1491 = vmul.f32 %v1361, %v1399
  %v1492 = vmul.f32 %v1362, %v1398
  %v1493 = vmul.f32 %v1363, %v1399
  %v1494 = vmul.f32 %v1364, %v1398
  %v1495 = vmul.f32 %v1365, %v1399
  %v1496 = vmul.f32 %v1366, %v1398
  %v1497 = vmul.f32 %v1367, %v1399
  %v1498 = vmul.f32 %v1368, %v1398
  %v1499 = vmul.f32 %v1369, %v1399
  %v1500 = vmul.f32 %v1370, %v1398
  %v1501 = vmul.f32 %v1371, %v1399
  %v1502 = vmul.f32 %v1372, %v1398
  %v1503 = vmul.f32 %v1373, %v1399
  %v1504 = vmul.f32 %v1374, %v1398
  %v1505 = vmul.f32 %v1375, %v1399
  %v1506 = vmul.f32 %v1376, %v1398
  %v1507 = vmul.f32 %v1377, %v1399
  %v1508 = vmul.f32 %v1378, %v1398
  %v1509 = vmul.f32 %v1379, %v1399
  %v1510 = vmul.f32 %v1380, %v1398
  %v1511 = vmul.f32 %v1381, %v1399
  %v1512 = vmul.f32 %v1382, %v1398
  %v1513 = vmul.f32 %v1383, %v1399
  %v1514 = vmul.f32 %v1384, %v1398
  %v1515 = vmul.f32 %v1385, %v1399
  %v1516 = vmul.f32 %v1386, %v1398
  %v1517 = vmul.f32 %v1387, %v1399
  %v1518 = vmul.f32 %v1388, %v1398
  %v1519 = vmul.f32 %v1389, %v1399
  %v1520 = vmul.f32 %v1390, %v1398
  %v1521 = vmul.f32 %v1391, %v1399
  %v1522 = vmul.f32 %v1392, %v1398
  %v1523 = vmul.f32 %v1393, %v1399
  %v1524 = vmul.f32 %v1394, %v1398
  %v1525 = vmul.f32 %v1395, %v1399
  %v1526 = vmul.f32 %v1396, %v1398
  %v1527 = vmul.f32 %v1397, %v1399
  %v1528 = vperm.slane %v24, 3
  %v1529 = vperm.slane %v25, 3
  %v1530 = vadd.f32 %v1400, %v1528
  %v1531 = vadd.f32 %v1401, %v1529
  %v1532 = vadd.f32 %v1402, %v1528
  %v1533 = vadd.f32 %v1403, %v1529
  %v1534 = vadd.f32 %v1404, %v1528
  %v1535 = vadd.f32 %v1405, %v1529
  %v1536 = vadd.f32 %v1406, %v1528
  %v1537 = vadd.f32 %v1407, %v1529
  %v1538 = vadd.f32 %v1408, %v1528
  %v1539 = vadd.f32 %v1409, %v1529
  %v1540 = vadd.f32 %v1410, %v1528
  %v1541 = vadd.f32 %v1411, %v1529
  %v1542 = vadd.f32 %v1412, %v1528
  %v1543 = vadd.f32 %v1413, %v1529
  %v1544 = vadd.f32 %v1414, %v1528
  %v1545 = vadd.f32 %v1415, %v1529
  %v1546 = vadd.f32 %v1416, %v1528
  %v1547 = vadd.f32 %v1417, %v1529
  %v1548 = vadd.f32 %v1418, %v1528
  %v1549 = vadd.f32 %v1419, %v1529
  %v1550 = vadd.f32 %v1420, %v1528
  %v1551 = vadd.f32 %v1421, %v1529
  %v1552 = vadd.f32 %v1422, %v1528
  %v1553 = vadd.f32 %v1423, %v1529
  %v1554 = vadd.f32 %v1424, %v1528
  %v1555 = vadd.f32 %v1425, %v1529
  %v1556 = vadd.f32 %v1426, %v1528
  %v1557 = vadd.f32 %v1427, %v1529
  %v1558 = vadd.f32 %v1428, %v1528
  %v1559 = vadd.f32 %v1429, %v1529
  %v1560 = vadd.f32 %v1430, %v1528
  %v1561 = vadd.f32 %v1431, %v1529
  %v1562 = vadd.f32 %v1432, %v1528
  %v1563 = vadd.f32 %v1433, %v1529
  %v1564 = vadd.f32 %v1434, %v1528
  %v1565 = vadd.f32 %v1435, %v1529
  %v1566 = vadd.f32 %v1436, %v1528
  %v1567 = vadd.f32 %v1437, %v1529
  %v1568 = vadd.f32 %v1438, %v1528
  %v1569 = vadd.f32 %v1439, %v1529
  %v1570 = vadd.f32 %v1440, %v1528
  %v1571 = vadd.f32 %v1441, %v1529
  %v1572 = vadd.f32 %v1442, %v1528
  %v1573 = vadd.f32 %v1443, %v1529
  %v1574 = vadd.f32 %v1444, %v1528
  %v1575 = vadd.f32 %v1445, %v1529
  %v1576 = vadd.f32 %v1446, %v1528
  %v1577 = vadd.f32 %v1447, %v1529
  %v1578 = vadd.f32 %v1448, %v1528
  %v1579 = vadd.f32 %v1449, %v1529
  %v1580 = vadd.f32 %v1450, %v1528
  %v1581 = vadd.f32 %v1451, %v1529
  %v1582 = vadd.f32 %v1452, %v1528
  %v1583 = vadd.f32 %v1453, %v1529
  %v1584 = vadd.f32 %v1454, %v1528
  %v1585 = vadd.f32 %v1455, %v1529
  %v1586 = vadd.f32 %v1456, %v1528
  %v1587 = vadd.f32 %v1457, %v1529
  %v1588 = vadd.f32 %v1458, %v1528
  %v1589 = vadd.f32 %v1459, %v1529
  %v1590 = vadd.f32 %v1460, %v1528
  %v1591 = vadd.f32 %v1461, %v1529
  %v1592 = vadd.f32 %v1462, %v1528
  %v1593 = vadd.f32 %v1463, %v1529
  %v1594 = vadd.f32 %v1464, %v1528
  %v1595 = vadd.f32 %v1465, %v1529
  %v1596 = vadd.f32 %v1466, %v1528
  %v1597 = vadd.f32 %v1467, %v1529
  %v1598 = vadd.f32 %v1468, %v1528
  %v1599 = vadd.f32 %v1469, %v1529
  %v1600 = vadd.f32 %v1470, %v1528
  %v1601 = vadd.f32 %v1471, %v1529
  %v1602 = vadd.f32 %v1472, %v1528
  %v1603 = vadd.f32 %v1473, %v1529
  %v1604 = vadd.f32 %v1474, %v1528
  %v1605 = vadd.f32 %v1475, %v1529
  %v1606 = vadd.f32 %v1476, %v1528
  %v1607 = vadd.f32 %v1477, %v1529
  %v1608 = vadd.f32 %v1478, %v1528
  %v1609 = vadd.f32 %v1479, %v1529
  %v1610 = vadd.f32 %v1480, %v1528
  %v1611 = vadd.f32 %v1481, %v1529
  %v1612 = vadd.f32 %v1482, %v1528
  %v1613 = vadd.f32 %v1483, %v1529
  %v1614 = vadd.f32 %v1484, %v1528
  %v1615 = vadd.f32 %v1485, %v1529
  %v1616 = vadd.f32 %v1486, %v1528
  %v1617 = vadd.f32 %v1487, %v1529
  %v1618 = vadd.f32 %v1488, %v1528
  %v1619 = vadd.f32 %v1489, %v1529
  %v1620 = vadd.f32 %v1490, %v1528
  %v1621 = vadd.f32 %v1491, %v1529
  %v1622 = vadd.f32 %v1492, %v1528
  %v1623 = vadd.f32 %v1493, %v1529
  %v1624 = vadd.f32 %v1494, %v1528
  %v1625 = vadd.f32 %v1495, %v1529
  %v1626 = vadd.f32 %v1496, %v1528
  %v1627 = vadd.f32 %v1497, %v1529
  %v1628 = vadd.f32 %v1498, %v1528
  %v1629 = vadd.f32 %v1499, %v1529
  %v1630 = vadd.f32 %v1500, %v1528
  %v1631 = vadd.f32 %v1501, %v1529
  %v1632 = vadd.f32 %v1502, %v1528
  %v1633 = vadd.f32 %v1503, %v1529
  %v1634 = vadd.f32 %v1504, %v1528
  %v1635 = vadd.f32 %v1505, %v1529
  %v1636 = vadd.f32 %v1506, %v1528
  %v1637 = vadd.f32 %v1507, %v1529
  %v1638 = vadd.f32 %v1508, %v1528
  %v1639 = vadd.f32 %v1509, %v1529
  %v1640 = vadd.f32 %v1510, %v1528
  %v1641 = vadd.f32 %v1511, %v1529
  %v1642 = vadd.f32 %v1512, %v1528
  %v1643 = vadd.f32 %v1513, %v1529
  %v1644 = vadd.f32 %v1514, %v1528
  %v1645 = vadd.f32 %v1515, %v1529
  %v1646 = vadd.f32 %v1516, %v1528
  %v1647 = vadd.f32 %v1517, %v1529
  %v1648 = vadd.f32 %v1518, %v1528
  %v1649 = vadd.f32 %v1519, %v1529
  %v1650 = vadd.f32 %v1520, %v1528
  %v1651 = vadd.f32 %v1521, %v1529
  %v1652 = vadd.f32 %v1522, %v1528
  %v1653 = vadd.f32 %v1523, %v1529
  %v1654 = vadd.f32 %v1524, %v1528
  %v1655 = vadd.f32 %v1525, %v1529
  %v1656 = vadd.f32 %v1526, %v1528
  %v1657 = vadd.f32 %v1527, %v1529
  %v1658 = vmax.f32 %v1530, 0.0
  %v1659 = vmax.f32 %v1531, 0.0
  %v1660 = vmax.f32 %v1532, 0.0
  %v1661 = vmax.f32 %v1533, 0.0
  %v1662 = vmax.f32 %v1534, 0.0
  %v1663 = vmax.f32 %v1535, 0.0
  %v1664 = vmax.f32 %v1536, 0.0
  %v1665 = vmax.f32 %v1537, 0.0
  %v1666 = vmax.f32 %v1538, 0.0
  %v1667 = vmax.f32 %v1539, 0.0
  %v1668 = vmax.f32 %v1540, 0.0
  %v1669 = vmax.f32 %v1541, 0.0
  %v1670 = vmax.f32 %v1542, 0.0
  %v1671 = vmax.f32 %v1543, 0.0
  %v1672 = vmax.f32 %v1544, 0.0
  %v1673 = vmax.f32 %v1545, 0.0
  %v1674 = vmax.f32 %v1546, 0.0
  %v1675 = vmax.f32 %v1547, 0.0
  %v1676 = vmax.f32 %v1548, 0.0
  %v1677 = vmax.f32 %v1549, 0.0
  %v1678 = vmax.f32 %v1550, 0.0
  %v1679 = vmax.f32 %v1551, 0.0
  %v1680 = vmax.f32 %v1552, 0.0
  %v1681 = vmax.f32 %v1553, 0.0
  %v1682 = vmax.f32 %v1554, 0.0
  %v1683 = vmax.f32 %v1555, 0.0
  %v1684 = vmax.f32 %v1556, 0.0
  %v1685 = vmax.f32 %v1557, 0.0
  %v1686 = vmax.f32 %v1558, 0.0
  %v1687 = vmax.f32 %v1559, 0.0
  %v1688 = vmax.f32 %v1560, 0.0
  %v1689 = vmax.f32 %v1561, 0.0
  %v1690 = vmax.f32 %v1562, 0.0
  %v1691 = vmax.f32 %v1563, 0.0
  %v1692 = vmax.f32 %v1564, 0.0
  %v1693 = vmax.f32 %v1565, 0.0
  %v1694 = vmax.f32 %v1566, 0.0
  %v1695 = vmax.f32 %v1567, 0.0
  %v1696 = vmax.f32 %v1568, 0.0
  %v1697 = vmax.f32 %v1569, 0.0
  %v1698 = vmax.f32 %v1570, 0.0
  %v1699 = vmax.f32 %v1571, 0.0
  %v1700 = vmax.f32 %v1572, 0.0
  %v1701 = vmax.f32 %v1573, 0.0
  %v1702 = vmax.f32 %v1574, 0.0
  %v1703 = vmax.f32 %v1575, 0.0
  %v1704 = vmax.f32 %v1576, 0.0
  %v1705 = vmax.f32 %v1577, 0.0
  %v1706 = vmax.f32 %v1578, 0.0
  %v1707 = vmax.f32 %v1579, 0.0
  %v1708 = vmax.f32 %v1580, 0.0
  %v1709 = vmax.f32 %v1581, 0.0
  %v1710 = vmax.f32 %v1582, 0.0
  %v1711 = vmax.f32 %v1583, 0.0
  %v1712 = vmax.f32 %v1584, 0.0
  %v1713 = vmax.f32 %v1585, 0.0
  %v1714 = vmax.f32 %v1586, 0.0
  %v1715 = vmax.f32 %v1587, 0.0
  %v1716 = vmax.f32 %v1588, 0.0
  %v1717 = vmax.f32 %v1589, 0.0
  %v1718 = vmax.f32 %v1590, 0.0
  %v1719 = vmax.f32 %v1591, 0.0
  %v1720 = vmax.f32 %v1592, 0.0
  %v1721 = vmax.f32 %v1593, 0.0
  %v1722 = vmax.f32 %v1594, 0.0
  %v1723 = vmax.f32 %v1595, 0.0
  %v1724 = vmax.f32 %v1596, 0.0
  %v1725 = vmax.f32 %v1597, 0.0
  %v1726 = vmax.f32 %v1598, 0.0
  %v1727 = vmax.f32 %v1599, 0.0
  %v1728 = vmax.f32 %v1600, 0.0
  %v1729 = vmax.f32 %v1601, 0.0
  %v1730 = vmax.f32 %v1602, 0.0
  %v1731 = vmax.f32 %v1603, 0.0
  %v1732 = vmax.f32 %v1604, 0.0
  %v1733 = vmax.f32 %v1605, 0.0
  %v1734 = vmax.f32 %v1606, 0.0
  %v1735 = vmax.f32 %v1607, 0.0
  %v1736 = vmax.f32 %v1608, 0.0
  %v1737 = vmax.f32 %v1609, 0.0
  %v1738 = vmax.f32 %v1610, 0.0
  %v1739 = vmax.f32 %v1611, 0.0
  %v1740 = vmax.f32 %v1612, 0.0
  %v1741 = vmax.f32 %v1613, 0.0
  %v1742 = vmax.f32 %v1614, 0.0
  %v1743 = vmax.f32 %v1615, 0.0
  %v1744 = vmax.f32 %v1616, 0.0
  %v1745 = vmax.f32 %v1617, 0.0
  %v1746 = vmax.f32 %v1618, 0.0
  %v1747 = vmax.f32 %v1619, 0.0
  %v1748 = vmax.f32 %v1620, 0.0
  %v1749 = vmax.f32 %v1621, 0.0
  %v1750 = vmax.f32 %v1622, 0.0
  %v1751 = vmax.f32 %v1623, 0.0
  %v1752 = vmax.f32 %v1624, 0.0
  %v1753 = vmax.f32 %v1625, 0.0
  %v1754 = vmax.f32 %v1626, 0.0
  %v1755 = vmax.f32 %v1627, 0.0
  %v1756 = vmax.f32 %v1628, 0.0
  %v1757 = vmax.f32 %v1629, 0.0
  %v1758 = vmax.f32 %v1630, 0.0
  %v1759 = vmax.f32 %v1631, 0.0
  %v1760 = vmax.f32 %v1632, 0.0
  %v1761 = vmax.f32 %v1633, 0.0
  %v1762 = vmax.f32 %v1634, 0.0
  %v1763 = vmax.f32 %v1635, 0.0
  %v1764 = vmax.f32 %v1636, 0.0
  %v1765 = vmax.f32 %v1637, 0.0
  %v1766 = vmax.f32 %v1638, 0.0
  %v1767 = vmax.f32 %v1639, 0.0
  %v1768 = vmax.f32 %v1640, 0.0
  %v1769 = vmax.f32 %v1641, 0.0
  %v1770 = vmax.f32 %v1642, 0.0
  %v1771 = vmax.f32 %v1643, 0.0
  %v1772 = vmax.f32 %v1644, 0.0
  %v1773 = vmax.f32 %v1645, 0.0
  %v1774 = vmax.f32 %v1646, 0.0
  %v1775 = vmax.f32 %v1647, 0.0
  %v1776 = vmax.f32 %v1648, 0.0
  %v1777 = vmax.f32 %v1649, 0.0
  %v1778 = vmax.f32 %v1650, 0.0
  %v1779 = vmax.f32 %v1651, 0.0
  %v1780 = vmax.f32 %v1652, 0.0
  %v1781 = vmax.f32 %v1653, 0.0
  %v1782 = vmax.f32 %v1654, 0.0
  %v1783 = vmax.f32 %v1655, 0.0
  %v1784 = vmax.f32 %v1656, 0.0
  %v1785 = vmax.f32 %v1657, 0.0
  %v1786 = vperm.slane %v24, 4
  %v1787 = vperm.slane %v25, 4
  %v1788 = vsub.f32 %v1658, %v1786
  %v1789 = vsub.f32 %v1659, %v1787
  %v1790 = vsub.f32 %v1660, %v1786
  %v1791 = vsub.f32 %v1661, %v1787
  %v1792 = vsub.f32 %v1662, %v1786
  %v1793 = vsub.f32 %v1663, %v1787
  %v1794 = vsub.f32 %v1664, %v1786
  %v1795 = vsub.f32 %v1665, %v1787
  %v1796 = vsub.f32 %v1666, %v1786
  %v1797 = vsub.f32 %v1667, %v1787
  %v1798 = vsub.f32 %v1668, %v1786
  %v1799 = vsub.f32 %v1669, %v1787
  %v1800 = vsub.f32 %v1670, %v1786
  %v1801 = vsub.f32 %v1671, %v1787
  %v1802 = vsub.f32 %v1672, %v1786
  %v1803 = vsub.f32 %v1673, %v1787
  %v1804 = vsub.f32 %v1674, %v1786
  %v1805 = vsub.f32 %v1675, %v1787
  %v1806 = vsub.f32 %v1676, %v1786
  %v1807 = vsub.f32 %v1677, %v1787
  %v1808 = vsub.f32 %v1678, %v1786
  %v1809 = vsub.f32 %v1679, %v1787
  %v1810 = vsub.f32 %v1680, %v1786
  %v1811 = vsub.f32 %v1681, %v1787
  %v1812 = vsub.f32 %v1682, %v1786
  %v1813 = vsub.f32 %v1683, %v1787
  %v1814 = vsub.f32 %v1684, %v1786
  %v1815 = vsub.f32 %v1685, %v1787
  %v1816 = vsub.f32 %v1686, %v1786
  %v1817 = vsub.f32 %v1687, %v1787
  %v1818 = vsub.f32 %v1688, %v1786
  %v1819 = vsub.f32 %v1689, %v1787
  %v1820 = vsub.f32 %v1690, %v1786
  %v1821 = vsub.f32 %v1691, %v1787
  %v1822 = vsub.f32 %v1692, %v1786
  %v1823 = vsub.f32 %v1693, %v1787
  %v1824 = vsub.f32 %v1694, %v1786
  %v1825 = vsub.f32 %v1695, %v1787
  %v1826 = vsub.f32 %v1696, %v1786
  %v1827 = vsub.f32 %v1697, %v1787
  %v1828 = vsub.f32 %v1698, %v1786
  %v1829 = vsub.f32 %v1699, %v1787
  %v1830 = vsub.f32 %v1700, %v1786
  %v1831 = vsub.f32 %v1701, %v1787
  %v1832 = vsub.f32 %v1702, %v1786
  %v1833 = vsub.f32 %v1703, %v1787
  %v1834 = vsub.f32 %v1704, %v1786
  %v1835 = vsub.f32 %v1705, %v1787
  %v1836 = vsub.f32 %v1706, %v1786
  %v1837 = vsub.f32 %v1707, %v1787
  %v1838 = vsub.f32 %v1708, %v1786
  %v1839 = vsub.f32 %v1709, %v1787
  %v1840 = vsub.f32 %v1710, %v1786
  %v1841 = vsub.f32 %v1711, %v1787
  %v1842 = vsub.f32 %v1712, %v1786
  %v1843 = vsub.f32 %v1713, %v1787
  %v1844 = vsub.f32 %v1714, %v1786
  %v1845 = vsub.f32 %v1715, %v1787
  %v1846 = vsub.f32 %v1716, %v1786
  %v1847 = vsub.f32 %v1717, %v1787
  %v1848 = vsub.f32 %v1718, %v1786
  %v1849 = vsub.f32 %v1719, %v1787
  %v1850 = vsub.f32 %v1720, %v1786
  %v1851 = vsub.f32 %v1721, %v1787
  %v1852 = vsub.f32 %v1722, %v1786
  %v1853 = vsub.f32 %v1723, %v1787
  %v1854 = vsub.f32 %v1724, %v1786
  %v1855 = vsub.f32 %v1725, %v1787
  %v1856 = vsub.f32 %v1726, %v1786
  %v1857 = vsub.f32 %v1727, %v1787
  %v1858 = vsub.f32 %v1728, %v1786
  %v1859 = vsub.f32 %v1729, %v1787
  %v1860 = vsub.f32 %v1730, %v1786
  %v1861 = vsub.f32 %v1731, %v1787
  %v1862 = vsub.f32 %v1732, %v1786
  %v1863 = vsub.f32 %v1733, %v1787
  %v1864 = vsub.f32 %v1734, %v1786
  %v1865 = vsub.f32 %v1735, %v1787
  %v1866 = vsub.f32 %v1736, %v1786
  %v1867 = vsub.f32 %v1737, %v1787
  %v1868 = vsub.f32 %v1738, %v1786
  %v1869 = vsub.f32 %v1739, %v1787
  %v1870 = vsub.f32 %v1740, %v1786
  %v1871 = vsub.f32 %v1741, %v1787
  %v1872 = vsub.f32 %v1742, %v1786
  %v1873 = vsub.f32 %v1743, %v1787
  %v1874 = vsub.f32 %v1744, %v1786
  %v1875 = vsub.f32 %v1745, %v1787
  %v1876 = vsub.f32 %v1746, %v1786
  %v1877 = vsub.f32 %v1747, %v1787
  %v1878 = vsub.f32 %v1748, %v1786
  %v1879 = vsub.f32 %v1749, %v1787
  %v1880 = vsub.f32 %v1750, %v1786
  %v1881 = vsub.f32 %v1751, %v1787
  %v1882 = vsub.f32 %v1752, %v1786
  %v1883 = vsub.f32 %v1753, %v1787
  %v1884 = vsub.f32 %v1754, %v1786
  %v1885 = vsub.f32 %v1755, %v1787
  %v1886 = vsub.f32 %v1756, %v1786
  %v1887 = vsub.f32 %v1757, %v1787
  %v1888 = vsub.f32 %v1758, %v1786
  %v1889 = vsub.f32 %v1759, %v1787
  %v1890 = vsub.f32 %v1760, %v1786
  %v1891 = vsub.f32 %v1761, %v1787
  %v1892 = vsub.f32 %v1762, %v1786
  %v1893 = vsub.f32 %v1763, %v1787
  %v1894 = vsub.f32 %v1764, %v1786
  %v1895 = vsub.f32 %v1765, %v1787
  %v1896 = vsub.f32 %v1766, %v1786
  %v1897 = vsub.f32 %v1767, %v1787
  %v1898 = vsub.f32 %v1768, %v1786
  %v1899 = vsub.f32 %v1769, %v1787
  %v1900 = vsub.f32 %v1770, %v1786
  %v1901 = vsub.f32 %v1771, %v1787
  %v1902 = vsub.f32 %v1772, %v1786
  %v1903 = vsub.f32 %v1773, %v1787
  %v1904 = vsub.f32 %v1774, %v1786
  %v1905 = vsub.f32 %v1775, %v1787
  %v1906 = vsub.f32 %v1776, %v1786
  %v1907 = vsub.f32 %v1777, %v1787
  %v1908 = vsub.f32 %v1778, %v1786
  %v1909 = vsub.f32 %v1779, %v1787
  %v1910 = vsub.f32 %v1780, %v1786
  %v1911 = vsub.f32 %v1781, %v1787
  %v1912 = vsub.f32 %v1782, %v1786
  %v1913 = vsub.f32 %v1783, %v1787
  %v1914 = vsub.f32 %v1784, %v1786
  %v1915 = vsub.f32 %v1785, %v1787
  %v1916 = vperm.slane %v24, 5
  %v1917 = vperm.slane %v25, 5
  %v1918 = vmul.f32 %v1788, %v1916
  %v1919 = vmul.f32 %v1789, %v1917
  %v1920 = vmul.f32 %v1790, %v1916
  %v1921 = vmul.f32 %v1791, %v1917
  %v1922 = vmul.f32 %v1792, %v1916
  %v1923 = vmul.f32 %v1793, %v1917
  %v1924 = vmul.f32 %v1794, %v1916
  %v1925 = vmul.f32 %v1795, %v1917
  %v1926 = vmul.f32 %v1796, %v1916
  %v1927 = vmul.f32 %v1797, %v1917
  %v1928 = vmul.f32 %v1798, %v1916
  %v1929 = vmul.f32 %v1799, %v1917
  %v1930 = vmul.f32 %v1800, %v1916
  %v1931 = vmul.f32 %v1801, %v1917
  %v1932 = vmul.f32 %v1802, %v1916
  %v1933 = vmul.f32 %v1803, %v1917
  %v1934 = vmul.f32 %v1804, %v1916
  %v1935 = vmul.f32 %v1805, %v1917
  %v1936 = vmul.f32 %v1806, %v1916
  %v1937 = vmul.f32 %v1807, %v1917
  %v1938 = vmul.f32 %v1808, %v1916
  %v1939 = vmul.f32 %v1809, %v1917
  %v1940 = vmul.f32 %v1810, %v1916
  %v1941 = vmul.f32 %v1811, %v1917
  %v1942 = vmul.f32 %v1812, %v1916
  %v1943 = vmul.f32 %v1813, %v1917
  %v1944 = vmul.f32 %v1814, %v1916
  %v1945 = vmul.f32 %v1815, %v1917
  %v1946 = vmul.f32 %v1816, %v1916
  %v1947 = vmul.f32 %v1817, %v1917
  %v1948 = vmul.f32 %v1818, %v1916
  %v1949 = vmul.f32 %v1819, %v1917
  %v1950 = vmul.f32 %v1820, %v1916
  %v1951 = vmul.f32 %v1821, %v1917
  %v1952 = vmul.f32 %v1822, %v1916
  %v1953 = vmul.f32 %v1823, %v1917
  %v1954 = vmul.f32 %v1824, %v1916
  %v1955 = vmul.f32 %v1825, %v1917
  %v1956 = vmul.f32 %v1826, %v1916
  %v1957 = vmul.f32 %v1827, %v1917
  %v1958 = vmul.f32 %v1828, %v1916
  %v1959 = vmul.f32 %v1829, %v1917
  %v1960 = vmul.f32 %v1830, %v1916
  %v1961 = vmul.f32 %v1831, %v1917
  %v1962 = vmul.f32 %v1832, %v1916
  %v1963 = vmul.f32 %v1833, %v1917
  %v1964 = vmul.f32 %v1834, %v1916
  %v1965 = vmul.f32 %v1835, %v1917
  %v1966 = vmul.f32 %v1836, %v1916
  %v1967 = vmul.f32 %v1837, %v1917
  %v1968 = vmul.f32 %v1838, %v1916
  %v1969 = vmul.f32 %v1839, %v1917
  %v1970 = vmul.f32 %v1840, %v1916
  %v1971 = vmul.f32 %v1841, %v1917
  %v1972 = vmul.f32 %v1842, %v1916
  %v1973 = vmul.f32 %v1843, %v1917
  %v1974 = vmul.f32 %v1844, %v1916
  %v1975 = vmul.f32 %v1845, %v1917
  %v1976 = vmul.f32 %v1846, %v1916
  %v1977 = vmul.f32 %v1847, %v1917
  %v1978 = vmul.f32 %v1848, %v1916
  %v1979 = vmul.f32 %v1849, %v1917
  %v1980 = vmul.f32 %v1850, %v1916
  %v1981 = vmul.f32 %v1851, %v1917
  %v1982 = vmul.f32 %v1852, %v1916
  %v1983 = vmul.f32 %v1853, %v1917
  %v1984 = vmul.f32 %v1854, %v1916
  %v1985 = vmul.f32 %v1855, %v1917
  %v1986 = vmul.f32 %v1856, %v1916
  %v1987 = vmul.f32 %v1857, %v1917
  %v1988 = vmul.f32 %v1858, %v1916
  %v1989 = vmul.f32 %v1859, %v1917
  %v1990 = vmul.f32 %v1860, %v1916
  %v1991 = vmul.f32 %v1861, %v1917
  %v1992 = vmul.f32 %v1862, %v1916
  %v1993 = vmul.f32 %v1863, %v1917
  %v1994 = vmul.f32 %v1864, %v1916
  %v1995 = vmul.f32 %v1865, %v1917
  %v1996 = vmul.f32 %v1866, %v1916
  %v1997 = vmul.f32 %v1867, %v1917
  %v1998 = vmul.f32 %v1868, %v1916
  %v1999 = vmul.f32 %v1869, %v1917
  %v2000 = vmul.f32 %v1870, %v1916
  %v2001 = vmul.f32 %v1871, %v1917
  %v2002 = vmul.f32 %v1872, %v1916
  %v2003 = vmul.f32 %v1873, %v1917
  %v2004 = vmul.f32 %v1874, %v1916
  %v2005 = vmul.f32 %v1875, %v1917
  %v2006 = vmul.f32 %v1876, %v1916
  %v2007 = vmul.f32 %v1877, %v1917
  %v2008 = vmul.f32 %v1878, %v1916
  %v2009 = vmul.f32 %v1879, %v1917
  %v2010 = vmul.f32 %v1880, %v1916
  %v2011 = vmul.f32 %v1881, %v1917
  %v2012 = vmul.f32 %v1882, %v1916
  %v2013 = vmul.f32 %v1883, %v1917
  %v2014 = vmul.f32 %v1884, %v1916
  %v2015 = vmul.f32 %v1885, %v1917
  %v2016 = vmul.f32 %v1886, %v1916
  %v2017 = vmul.f32 %v1887, %v1917
  %v2018 = vmul.f32 %v1888, %v1916
  %v2019 = vmul.f32 %v1889, %v1917
  %v2020 = vmul.f32 %v1890, %v1916
  %v2021 = vmul.f32 %v1891, %v1917
  %v2022 = vmul.f32 %v1892, %v1916
  %v2023 = vmul.f32 %v1893, %v1917
  %v2024 = vmul.f32 %v1894, %v1916
  %v2025 = vmul.f32 %v1895, %v1917
  %v2026 = vmul.f32 %v1896, %v1916
  %v2027 = vmul.f32 %v1897, %v1917
  %v2028 = vmul.f32 %v1898, %v1916
  %v2029 = vmul.f32 %v1899, %v1917
  %v2030 = vmul.f32 %v1900, %v1916
  %v2031 = vmul.f32 %v1901, %v1917
  %v2032 = vmul.f32 %v1902, %v1916
  %v2033 = vmul.f32 %v1903, %v1917
  %v2034 = vmul.f32 %v1904, %v1916
  %v2035 = vmul.f32 %v1905, %v1917
  %v2036 = vmul.f32 %v1906, %v1916
  %v2037 = vmul.f32 %v1907, %v1917
  %v2038 = vmul.f32 %v1908, %v1916
  %v2039 = vmul.f32 %v1909, %v1917
  %v2040 = vmul.f32 %v1910, %v1916
  %v2041 = vmul.f32 %v1911, %v1917
  %v2042 = vmul.f32 %v1912, %v1916
  %v2043 = vmul.f32 %v1913, %v1917
  %v2044 = vmul.f32 %v1914, %v1916
  %v2045 = vmul.f32 %v1915, %v1917
  %v2046 = vmul.f32 %v618, %v1918
  %v2047 = vmul.f32 %v787, %v1919
  %v2048 = vmul.f32 %v620, %v1920
  %v2049 = vmul.f32 %v789, %v1921
  %v2050 = vmul.f32 %v623, %v1922
  %v2051 = vmul.f32 %v792, %v1923
  %v2052 = vmul.f32 %v625, %v1924
  %v2053 = vmul.f32 %v794, %v1925
  %v2054 = vmul.f32 %v628, %v1926
  %v2055 = vmul.f32 %v797, %v1927
  %v2056 = vmul.f32 %v630, %v1928
  %v2057 = vmul.f32 %v799, %v1929
  %v2058 = vmul.f32 %v633, %v1930
  %v2059 = vmul.f32 %v802, %v1931
  %v2060 = vmul.f32 %v635, %v1932
  %v2061 = vmul.f32 %v804, %v1933
  %v2062 = vmul.f32 %v638, %v1934
  %v2063 = vmul.f32 %v807, %v1935
  %v2064 = vmul.f32 %v640, %v1936
  %v2065 = vmul.f32 %v809, %v1937
  %v2066 = vmul.f32 %v643, %v1938
  %v2067 = vmul.f32 %v812, %v1939
  %v2068 = vmul.f32 %v645, %v1940
  %v2069 = vmul.f32 %v814, %v1941
  %v2070 = vmul.f32 %v648, %v1942
  %v2071 = vmul.f32 %v817, %v1943
  %v2072 = vmul.f32 %v650, %v1944
  %v2073 = vmul.f32 %v819, %v1945
  %v2074 = vmul.f32 %v653, %v1946
  %v2075 = vmul.f32 %v822, %v1947
  %v2076 = vmul.f32 %v655, %v1948
  %v2077 = vmul.f32 %v824, %v1949
  %v2078 = vmul.f32 %v658, %v1950
  %v2079 = vmul.f32 %v827, %v1951
  %v2080 = vmul.f32 %v660, %v1952
  %v2081 = vmul.f32 %v829, %v1953
  %v2082 = vmul.f32 %v663, %v1954
  %v2083 = vmul.f32 %v832, %v1955
  %v2084 = vmul.f32 %v665, %v1956
  %v2085 = vmul.f32 %v834, %v1957
  %v2086 = vmul.f32 %v668, %v1958
  %v2087 = vmul.f32 %v837, %v1959
  %v2088 = vmul.f32 %v670, %v1960
  %v2089 = vmul.f32 %v839, %v1961
  %v2090 = vmul.f32 %v673, %v1962
  %v2091 = vmul.f32 %v842, %v1963
  %v2092 = vmul.f32 %v675, %v1964
  %v2093 = vmul.f32 %v844, %v1965
  %v2094 = vmul.f32 %v678, %v1966
  %v2095 = vmul.f32 %v847, %v1967
  %v2096 = vmul.f32 %v680, %v1968
  %v2097 = vmul.f32 %v849, %v1969
  %v2098 = vmul.f32 %v683, %v1970
  %v2099 = vmul.f32 %v852, %v1971
  %v2100 = vmul.f32 %v685, %v1972
  %v2101 = vmul.f32 %v854, %v1973
  %v2102 = vmul.f32 %v688, %v1974
  %v2103 = vmul.f32 %v857, %v1975
  %v2104 = vmul.f32 %v690, %v1976
  %v2105 = vmul.f32 %v859, %v1977
  %v2106 = vmul.f32 %v693, %v1978
  %v2107 = vmul.f32 %v862, %v1979
  %v2108 = vmul.f32 %v695, %v1980
  %v2109 = vmul.f32 %v864, %v1981
  %v2110 = vmul.f32 %v698, %v1982
  %v2111 = vmul.f32 %v867, %v1983
  %v2112 = vmul.f32 %v700, %v1984
  %v2113 = vmul.f32 %v869, %v1985
  %v2114 = vmul.f32 %v703, %v1986
  %v2115 = vmul.f32 %v872, %v1987
  %v2116 = vmul.f32 %v705, %v1988
  %v2117 = vmul.f32 %v874, %v1989
  %v2118 = vmul.f32 %v708, %v1990
  %v2119 = vmul.f32 %v877, %v1991
  %v2120 = vmul.f32 %v710, %v1992
  %v2121 = vmul.f32 %v879, %v1993
  %v2122 = vmul.f32 %v713, %v1994
  %v2123 = vmul.f32 %v882, %v1995
  %v2124 = vmul.f32 %v715, %v1996
  %v2125 = vmul.f32 %v884, %v1997
  %v2126 = vmul.f32 %v718, %v1998
  %v2127 = vmul.f32 %v887, %v1999
  %v2128 = vmul.f32 %v720, %v2000
  %v2129 = vmul.f32 %v889, %v2001
  %v2130 = vmul.f32 %v723, %v2002
  %v2131 = vmul.f32 %v892, %v2003
  %v2132 = vmul.f32 %v725, %v2004
  %v2133 = vmul.f32 %v894, %v2005
  %v2134 = vmul.f32 %v728, %v2006
  %v2135 = vmul.f32 %v897, %v2007
  %v2136 = vmul.f32 %v730, %v2008
  %v2137 = vmul.f32 %v899, %v2009
  %v2138 = vmul.f32 %v733, %v2010
  %v2139 = vmul.f32 %v902, %v2011
  %v2140 = vmul.f32 %v735, %v2012
  %v2141 = vmul.f32 %v904, %v2013
  %v2142 = vmul.f32 %v738, %v2014
  %v2143 = vmul.f32 %v907, %v2015
  %v2144 = vmul.f32 %v740, %v2016
  %v2145 = vmul.f32 %v909, %v2017
  %v2146 = vmul.f32 %v743, %v2018
  %v2147 = vmul.f32 %v912, %v2019
  %v2148 = vmul.f32 %v745, %v2020
  %v2149 = vmul.f32 %v914, %v2021
  %v2150 = vmul.f32 %v748, %v2022
  %v2151 = vmul.f32 %v917, %v2023
  %v2152 = vmul.f32 %v750, %v2024
  %v2153 = vmul.f32 %v919, %v2025
  %v2154 = vmul.f32 %v753, %v2026
  %v2155 = vmul.f32 %v922, %v2027
  %v2156 = vmul.f32 %v755, %v2028
  %v2157 = vmul.f32 %v924, %v2029
  %v2158 = vmul.f32 %v758, %v2030
  %v2159 = vmul.f32 %v927, %v2031
  %v2160 = vmul.f32 %v760, %v2032
  %v2161 = vmul.f32 %v929, %v2033
  %v2162 = vmul.f32 %v763, %v2034
  %v2163 = vmul.f32 %v932, %v2035
  %v2164 = vmul.f32 %v765, %v2036
  %v2165 = vmul.f32 %v934, %v2037
  %v2166 = vmul.f32 %v768, %v2038
  %v2167 = vmul.f32 %v937, %v2039
  %v2168 = vmul.f32 %v770, %v2040
  %v2169 = vmul.f32 %v939, %v2041
  %v2170 = vmul.f32 %v773, %v2042
  %v2171 = vmul.f32 %v942, %v2043
  %v2172 = vmul.f32 %v775, %v2044
  %v2173 = vmul.f32 %v944, %v2045
  %v2174 = vadd.f32 %v2046, %v2047
  %2175 = vadd.xlane.f32.xlu0 %v2174
  %v2176 = vpop.xlane.xlu0 %2175
  %v2177 = vadd.f32 %v2048, %v2049
  %2178 = vadd.xlane.f32.xlu0 %v2177
  %v2179 = vpop.xlane.xlu0 %2178
  %v2180 = vadd.f32 %v2050, %v2051
  %2181 = vadd.xlane.f32.xlu0 %v2180
  %v2182 = vpop.xlane.xlu0 %2181
  %v2183 = vadd.f32 %v2052, %v2053
  %2184 = vadd.xlane.f32.xlu0 %v2183
  %v2185 = vpop.xlane.xlu0 %2184
  %v2186 = vadd.f32 %v2054, %v2055
  %2187 = vadd.xlane.f32.xlu0 %v2186
  %v2188 = vpop.xlane.xlu0 %2187
  %v2189 = vadd.f32 %v2056, %v2057
  %2190 = vadd.xlane.f32.xlu0 %v2189
  %v2191 = vpop.xlane.xlu0 %2190
  %v2192 = vadd.f32 %v2058, %v2059
  %2193 = vadd.xlane.f32.xlu0 %v2192
  %v2194 = vpop.xlane.xlu0 %2193
  %v2195 = vadd.f32 %v2060, %v2061
  %2196 = vadd.xlane.f32.xlu0 %v2195
  %v2197 = vpop.xlane.xlu0 %2196
  %v2198 = vadd.f32 %v2062, %v2063
  %2199 = vadd.xlane.f32.xlu0 %v2198
  %v2200 = vpop.xlane.xlu0 %2199
  %v2201 = vadd.f32 %v2064, %v2065
  %2202 = vadd.xlane.f32.xlu0 %v2201
  %v2203 = vpop.xlane.xlu0 %2202
  %v2204 = vadd.f32 %v2066, %v2067
  %2205 = vadd.xlane.f32.xlu0 %v2204
  %v2206 = vpop.xlane.xlu0 %2205
  %v2207 = vadd.f32 %v2068, %v2069
  %2208 = vadd.xlane.f32.xlu0 %v2207
  %v2209 = vpop.xlane.xlu0 %2208
  %v2210 = vadd.f32 %v2070, %v2071
  %2211 = vadd.xlane.f32.xlu0 %v2210
  %v2212 = vpop.xlane.xlu0 %2211
  %v2213 = vadd.f32 %v2072, %v2073
  %2214 = vadd.xlane.f32.xlu0 %v2213
  %v2215 = vpop.xlane.xlu0 %2214
  %v2216 = vadd.f32 %v2074, %v2075
  %2217 = vadd.xlane.f32.xlu0 %v2216
  %v2218 = vpop.xlane.xlu0 %2217
  %v2219 = vadd.f32 %v2076, %v2077
  %2220 = vadd.xlane.f32.xlu0 %v2219
  %v2221 = vpop.xlane.xlu0 %2220
  %v2222 = vadd.f32 %v2078, %v2079
  %2223 = vadd.xlane.f32.xlu0 %v2222
  %v2224 = vpop.xlane.xlu0 %2223
  %v2225 = vadd.f32 %v2080, %v2081
  %2226 = vadd.xlane.f32.xlu0 %v2225
  %v2227 = vpop.xlane.xlu0 %2226
  %v2228 = vadd.f32 %v2082, %v2083
  %2229 = vadd.xlane.f32.xlu0 %v2228
  %v2230 = vpop.xlane.xlu0 %2229
  %v2231 = vadd.f32 %v2084, %v2085
  %2232 = vadd.xlane.f32.xlu0 %v2231
  %v2233 = vpop.xlane.xlu0 %2232
  %v2234 = vadd.f32 %v2086, %v2087
  %2235 = vadd.xlane.f32.xlu0 %v2234
  %v2236 = vpop.xlane.xlu0 %2235
  %v2237 = vadd.f32 %v2088, %v2089
  %2238 = vadd.xlane.f32.xlu0 %v2237
  %v2239 = vpop.xlane.xlu0 %2238
  %v2240 = vadd.f32 %v2090, %v2091
  %2241 = vadd.xlane.f32.xlu0 %v2240
  %v2242 = vpop.xlane.xlu0 %2241
  %v2243 = vadd.f32 %v2092, %v2093
  %2244 = vadd.xlane.f32.xlu0 %v2243
  %v2245 = vpop.xlane.xlu0 %2244
  %v2246 = vadd.f32 %v2094, %v2095
  %2247 = vadd.xlane.f32.xlu0 %v2246
  %v2248 = vpop.xlane.xlu0 %2247
  %v2249 = vadd.f32 %v2096, %v2097
  %2250 = vadd.xlane.f32.xlu0 %v2249
  %v2251 = vpop.xlane.xlu0 %2250
  %v2252 = vadd.f32 %v2098, %v2099
  %2253 = vadd.xlane.f32.xlu0 %v2252
  %v2254 = vpop.xlane.xlu0 %2253
  %v2255 = vadd.f32 %v2100, %v2101
  %2256 = vadd.xlane.f32.xlu0 %v2255
  %v2257 = vpop.xlane.xlu0 %2256
  %v2258 = vadd.f32 %v2102, %v2103
  %2259 = vadd.xlane.f32.xlu0 %v2258
  %v2260 = vpop.xlane.xlu0 %2259
  %v2261 = vadd.f32 %v2104, %v2105
  %2262 = vadd.xlane.f32.xlu0 %v2261
  %v2263 = vpop.xlane.xlu0 %2262
  %v2264 = vadd.f32 %v2106, %v2107
  %2265 = vadd.xlane.f32.xlu0 %v2264
  %v2266 = vpop.xlane.xlu0 %2265
  %v2267 = vadd.f32 %v2108, %v2109
  %2268 = vadd.xlane.f32.xlu0 %v2267
  %v2269 = vpop.xlane.xlu0 %2268
  %v2270 = vadd.f32 %v2110, %v2111
  %2271 = vadd.xlane.f32.xlu0 %v2270
  %v2272 = vpop.xlane.xlu0 %2271
  %v2273 = vadd.f32 %v2112, %v2113
  %2274 = vadd.xlane.f32.xlu0 %v2273
  %v2275 = vpop.xlane.xlu0 %2274
  %v2276 = vadd.f32 %v2114, %v2115
  %2277 = vadd.xlane.f32.xlu0 %v2276
  %v2278 = vpop.xlane.xlu0 %2277
  %v2279 = vadd.f32 %v2116, %v2117
  %2280 = vadd.xlane.f32.xlu0 %v2279
  %v2281 = vpop.xlane.xlu0 %2280
  %v2282 = vadd.f32 %v2118, %v2119
  %2283 = vadd.xlane.f32.xlu0 %v2282
  %v2284 = vpop.xlane.xlu0 %2283
  %v2285 = vadd.f32 %v2120, %v2121
  %2286 = vadd.xlane.f32.xlu0 %v2285
  %v2287 = vpop.xlane.xlu0 %2286
  %v2288 = vadd.f32 %v2122, %v2123
  %2289 = vadd.xlane.f32.xlu0 %v2288
  %v2290 = vpop.xlane.xlu0 %2289
  %v2291 = vadd.f32 %v2124, %v2125
  %2292 = vadd.xlane.f32.xlu0 %v2291
  %v2293 = vpop.xlane.xlu0 %2292
  %v2294 = vadd.f32 %v2126, %v2127
  %2295 = vadd.xlane.f32.xlu0 %v2294
  %v2296 = vpop.xlane.xlu0 %2295
  %v2297 = vadd.f32 %v2128, %v2129
  %2298 = vadd.xlane.f32.xlu0 %v2297
  %v2299 = vpop.xlane.xlu0 %2298
  %v2300 = vadd.f32 %v2130, %v2131
  %2301 = vadd.xlane.f32.xlu0 %v2300
  %v2302 = vpop.xlane.xlu0 %2301
  %v2303 = vadd.f32 %v2132, %v2133
  %2304 = vadd.xlane.f32.xlu0 %v2303
  %v2305 = vpop.xlane.xlu0 %2304
  %v2306 = vadd.f32 %v2134, %v2135
  %2307 = vadd.xlane.f32.xlu0 %v2306
  %v2308 = vpop.xlane.xlu0 %2307
  %v2309 = vadd.f32 %v2136, %v2137
  %2310 = vadd.xlane.f32.xlu0 %v2309
  %v2311 = vpop.xlane.xlu0 %2310
  %v2312 = vadd.f32 %v2138, %v2139
  %2313 = vadd.xlane.f32.xlu0 %v2312
  %v2314 = vpop.xlane.xlu0 %2313
  %v2315 = vadd.f32 %v2140, %v2141
  %2316 = vadd.xlane.f32.xlu0 %v2315
  %v2317 = vpop.xlane.xlu0 %2316
  %v2318 = vadd.f32 %v2142, %v2143
  %2319 = vadd.xlane.f32.xlu0 %v2318
  %v2320 = vpop.xlane.xlu0 %2319
  %v2321 = vadd.f32 %v2144, %v2145
  %2322 = vadd.xlane.f32.xlu0 %v2321
  %v2323 = vpop.xlane.xlu0 %2322
  %v2324 = vadd.f32 %v2146, %v2147
  %2325 = vadd.xlane.f32.xlu0 %v2324
  %v2326 = vpop.xlane.xlu0 %2325
  %v2327 = vadd.f32 %v2148, %v2149
  %2328 = vadd.xlane.f32.xlu0 %v2327
  %v2329 = vpop.xlane.xlu0 %2328
  %v2330 = vadd.f32 %v2150, %v2151
  %2331 = vadd.xlane.f32.xlu0 %v2330
  %v2332 = vpop.xlane.xlu0 %2331
  %v2333 = vadd.f32 %v2152, %v2153
  %2334 = vadd.xlane.f32.xlu0 %v2333
  %v2335 = vpop.xlane.xlu0 %2334
  %v2336 = vadd.f32 %v2154, %v2155
  %2337 = vadd.xlane.f32.xlu0 %v2336
  %v2338 = vpop.xlane.xlu0 %2337
  %v2339 = vadd.f32 %v2156, %v2157
  %2340 = vadd.xlane.f32.xlu0 %v2339
  %v2341 = vpop.xlane.xlu0 %2340
  %v2342 = vadd.f32 %v2158, %v2159
  %2343 = vadd.xlane.f32.xlu0 %v2342
  %v2344 = vpop.xlane.xlu0 %2343
  %v2345 = vadd.f32 %v2160, %v2161
  %2346 = vadd.xlane.f32.xlu0 %v2345
  %v2347 = vpop.xlane.xlu0 %2346
  %v2348 = vadd.f32 %v2162, %v2163
  %2349 = vadd.xlane.f32.xlu0 %v2348
  %v2350 = vpop.xlane.xlu0 %2349
  %v2351 = vadd.f32 %v2164, %v2165
  %2352 = vadd.xlane.f32.xlu0 %v2351
  %v2353 = vpop.xlane.xlu0 %2352
  %v2354 = vadd.f32 %v2166, %v2167
  %2355 = vadd.xlane.f32.xlu0 %v2354
  %v2356 = vpop.xlane.xlu0 %2355
  %v2357 = vadd.f32 %v2168, %v2169
  %2358 = vadd.xlane.f32.xlu0 %v2357
  %v2359 = vpop.xlane.xlu0 %2358
  %v2360 = vadd.f32 %v2170, %v2171
  %2361 = vadd.xlane.f32.xlu0 %v2360
  %v2362 = vpop.xlane.xlu0 %2361
  %v2363 = vadd.f32 %v2172, %v2173
  %2364 = vadd.xlane.f32.xlu0 %v2363
  %v2365 = vpop.xlane.xlu0 %2364
  %v2366 = vmul.f32 %v618, %v618
  %v2367 = vmul.f32 %v787, %v787
  %v2368 = vmul.f32 %v620, %v620
  %v2369 = vmul.f32 %v789, %v789
  %v2370 = vmul.f32 %v623, %v623
  %v2371 = vmul.f32 %v792, %v792
  %v2372 = vmul.f32 %v625, %v625
  %v2373 = vmul.f32 %v794, %v794
  %v2374 = vmul.f32 %v628, %v628
  %v2375 = vmul.f32 %v797, %v797
  %v2376 = vmul.f32 %v630, %v630
  %v2377 = vmul.f32 %v799, %v799
  %v2378 = vmul.f32 %v633, %v633
  %v2379 = vmul.f32 %v802, %v802
  %v2380 = vmul.f32 %v635, %v635
  %v2381 = vmul.f32 %v804, %v804
  %v2382 = vmul.f32 %v638, %v638
  %v2383 = vmul.f32 %v807, %v807
  %v2384 = vmul.f32 %v640, %v640
  %v2385 = vmul.f32 %v809, %v809
  %v2386 = vmul.f32 %v643, %v643
  %v2387 = vmul.f32 %v812, %v812
  %v2388 = vmul.f32 %v645, %v645
  %v2389 = vmul.f32 %v814, %v814
  %v2390 = vmul.f32 %v648, %v648
  %v2391 = vmul.f32 %v817, %v817
  %v2392 = vmul.f32 %v650, %v650
  %v2393 = vmul.f32 %v819, %v819
  %v2394 = vmul.f32 %v653, %v653
  %v2395 = vmul.f32 %v822, %v822
  %v2396 = vmul.f32 %v655, %v655
  %v2397 = vmul.f32 %v824, %v824
  %v2398 = vmul.f32 %v658, %v658
  %v2399 = vmul.f32 %v827, %v827
  %v2400 = vmul.f32 %v660, %v660
  %v2401 = vmul.f32 %v829, %v829
  %v2402 = vmul.f32 %v663, %v663
  %v2403 = vmul.f32 %v832, %v832
  %v2404 = vmul.f32 %v665, %v665
  %v2405 = vmul.f32 %v834, %v834
  %v2406 = vmul.f32 %v668, %v668
  %v2407 = vmul.f32 %v837, %v837
  %v2408 = vmul.f32 %v670, %v670
  %v2409 = vmul.f32 %v839, %v839
  %v2410 = vmul.f32 %v673, %v673
  %v2411 = vmul.f32 %v842, %v842
  %v2412 = vmul.f32 %v675, %v675
  %v2413 = vmul.f32 %v844, %v844
  %v2414 = vmul.f32 %v678, %v678
  %v2415 = vmul.f32 %v847, %v847
  %v2416 = vmul.f32 %v680, %v680
  %v2417 = vmul.f32 %v849, %v849
  %v2418 = vmul.f32 %v683, %v683
  %v2419 = vmul.f32 %v852, %v852
  %v2420 = vmul.f32 %v685, %v685
  %v2421 = vmul.f32 %v854, %v854
  %v2422 = vmul.f32 %v688, %v688
  %v2423 = vmul.f32 %v857, %v857
  %v2424 = vmul.f32 %v690, %v690
  %v2425 = vmul.f32 %v859, %v859
  %v2426 = vmul.f32 %v693, %v693
  %v2427 = vmul.f32 %v862, %v862
  %v2428 = vmul.f32 %v695, %v695
  %v2429 = vmul.f32 %v864, %v864
  %v2430 = vmul.f32 %v698, %v698
  %v2431 = vmul.f32 %v867, %v867
  %v2432 = vmul.f32 %v700, %v700
  %v2433 = vmul.f32 %v869, %v869
  %v2434 = vmul.f32 %v703, %v703
  %v2435 = vmul.f32 %v872, %v872
  %v2436 = vmul.f32 %v705, %v705
  %v2437 = vmul.f32 %v874, %v874
  %v2438 = vmul.f32 %v708, %v708
  %v2439 = vmul.f32 %v877, %v877
  %v2440 = vmul.f32 %v710, %v710
  %v2441 = vmul.f32 %v879, %v879
  %v2442 = vmul.f32 %v713, %v713
  %v2443 = vmul.f32 %v882, %v882
  %v2444 = vmul.f32 %v715, %v715
  %v2445 = vmul.f32 %v884, %v884
  %v2446 = vmul.f32 %v718, %v718
  %v2447 = vmul.f32 %v887, %v887
  %v2448 = vmul.f32 %v720, %v720
  %v2449 = vmul.f32 %v889, %v889
  %v2450 = vmul.f32 %v723, %v723
  %v2451 = vmul.f32 %v892, %v892
  %v2452 = vmul.f32 %v725, %v725
  %v2453 = vmul.f32 %v894, %v894
  %v2454 = vmul.f32 %v728, %v728
  %v2455 = vmul.f32 %v897, %v897
  %v2456 = vmul.f32 %v730, %v730
  %v2457 = vmul.f32 %v899, %v899
  %v2458 = vmul.f32 %v733, %v733
  %v2459 = vmul.f32 %v902, %v902
  %v2460 = vmul.f32 %v735, %v735
  %v2461 = vmul.f32 %v904, %v904
  %v2462 = vmul.f32 %v738, %v738
  %v2463 = vmul.f32 %v907, %v907
  %v2464 = vmul.f32 %v740, %v740
  %v2465 = vmul.f32 %v909, %v909
  %v2466 = vmul.f32 %v743, %v743
  %v2467 = vmul.f32 %v912, %v912
  %v2468 = vmul.f32 %v745, %v745
  %v2469 = vmul.f32 %v914, %v914
  %v2470 = vmul.f32 %v748, %v748
  %v2471 = vmul.f32 %v917, %v917
  %v2472 = vmul.f32 %v750, %v750
  %v2473 = vmul.f32 %v919, %v919
  %v2474 = vmul.f32 %v753, %v753
  %v2475 = vmul.f32 %v922, %v922
  %v2476 = vmul.f32 %v755, %v755
  %v2477 = vmul.f32 %v924, %v924
  %v2478 = vmul.f32 %v758, %v758
  %v2479 = vmul.f32 %v927, %v927
  %v2480 = vmul.f32 %v760, %v760
  %v2481 = vmul.f32 %v929, %v929
  %v2482 = vmul.f32 %v763, %v763
  %v2483 = vmul.f32 %v932, %v932
  %v2484 = vmul.f32 %v765, %v765
  %v2485 = vmul.f32 %v934, %v934
  %v2486 = vmul.f32 %v768, %v768
  %v2487 = vmul.f32 %v937, %v937
  %v2488 = vmul.f32 %v770, %v770
  %v2489 = vmul.f32 %v939, %v939
  %v2490 = vmul.f32 %v773, %v773
  %v2491 = vmul.f32 %v942, %v942
  %v2492 = vmul.f32 %v775, %v775
  %v2493 = vmul.f32 %v944, %v944
  %v2494 = vadd.f32 %v2366, %v2367
  %2495 = vadd.xlane.f32.xlu0 %v2494
  %v2496 = vpop.xlane.xlu0 %2495
  %v2497 = vadd.f32 %v2368, %v2369
  %2498 = vadd.xlane.f32.xlu0 %v2497
  %v2499 = vpop.xlane.xlu0 %2498
  %v2500 = vadd.f32 %v2370, %v2371
  %2501 = vadd.xlane.f32.xlu0 %v2500
  %v2502 = vpop.xlane.xlu0 %2501
  %v2503 = vadd.f32 %v2372, %v2373
  %2504 = vadd.xlane.f32.xlu0 %v2503
  %v2505 = vpop.xlane.xlu0 %2504
  %v2506 = vadd.f32 %v2374, %v2375
  %2507 = vadd.xlane.f32.xlu0 %v2506
  %v2508 = vpop.xlane.xlu0 %2507
  %v2509 = vadd.f32 %v2376, %v2377
  %2510 = vadd.xlane.f32.xlu0 %v2509
  %v2511 = vpop.xlane.xlu0 %2510
  %v2512 = vadd.f32 %v2378, %v2379
  %2513 = vadd.xlane.f32.xlu0 %v2512
  %v2514 = vpop.xlane.xlu0 %2513
  %v2515 = vadd.f32 %v2380, %v2381
  %2516 = vadd.xlane.f32.xlu0 %v2515
  %v2517 = vpop.xlane.xlu0 %2516
  %v2518 = vadd.f32 %v2382, %v2383
  %2519 = vadd.xlane.f32.xlu0 %v2518
  %v2520 = vpop.xlane.xlu0 %2519
  %v2521 = vadd.f32 %v2384, %v2385
  %2522 = vadd.xlane.f32.xlu0 %v2521
  %v2523 = vpop.xlane.xlu0 %2522
  %v2524 = vadd.f32 %v2386, %v2387
  %2525 = vadd.xlane.f32.xlu0 %v2524
  %v2526 = vpop.xlane.xlu0 %2525
  %v2527 = vadd.f32 %v2388, %v2389
  %2528 = vadd.xlane.f32.xlu0 %v2527
  %v2529 = vpop.xlane.xlu0 %2528
  %v2530 = vadd.f32 %v2390, %v2391
  %2531 = vadd.xlane.f32.xlu0 %v2530
  %v2532 = vpop.xlane.xlu0 %2531
  %v2533 = vadd.f32 %v2392, %v2393
  %2534 = vadd.xlane.f32.xlu0 %v2533
  %v2535 = vpop.xlane.xlu0 %2534
  %v2536 = vadd.f32 %v2394, %v2395
  %2537 = vadd.xlane.f32.xlu0 %v2536
  %v2538 = vpop.xlane.xlu0 %2537
  %v2539 = vadd.f32 %v2396, %v2397
  %2540 = vadd.xlane.f32.xlu0 %v2539
  %v2541 = vpop.xlane.xlu0 %2540
  %v2542 = vadd.f32 %v2398, %v2399
  %2543 = vadd.xlane.f32.xlu0 %v2542
  %v2544 = vpop.xlane.xlu0 %2543
  %v2545 = vadd.f32 %v2400, %v2401
  %2546 = vadd.xlane.f32.xlu0 %v2545
  %v2547 = vpop.xlane.xlu0 %2546
  %v2548 = vadd.f32 %v2402, %v2403
  %2549 = vadd.xlane.f32.xlu0 %v2548
  %v2550 = vpop.xlane.xlu0 %2549
  %v2551 = vadd.f32 %v2404, %v2405
  %2552 = vadd.xlane.f32.xlu0 %v2551
  %v2553 = vpop.xlane.xlu0 %2552
  %v2554 = vadd.f32 %v2406, %v2407
  %2555 = vadd.xlane.f32.xlu0 %v2554
  %v2556 = vpop.xlane.xlu0 %2555
  %v2557 = vadd.f32 %v2408, %v2409
  %2558 = vadd.xlane.f32.xlu0 %v2557
  %v2559 = vpop.xlane.xlu0 %2558
  %v2560 = vadd.f32 %v2410, %v2411
  %2561 = vadd.xlane.f32.xlu0 %v2560
  %v2562 = vpop.xlane.xlu0 %2561
  %v2563 = vadd.f32 %v2412, %v2413
  %2564 = vadd.xlane.f32.xlu0 %v2563
  %v2565 = vpop.xlane.xlu0 %2564
  %v2566 = vadd.f32 %v2414, %v2415
  %2567 = vadd.xlane.f32.xlu0 %v2566
  %v2568 = vpop.xlane.xlu0 %2567
  %v2569 = vadd.f32 %v2416, %v2417
  %2570 = vadd.xlane.f32.xlu0 %v2569
  %v2571 = vpop.xlane.xlu0 %2570
  %v2572 = vadd.f32 %v2418, %v2419
  %2573 = vadd.xlane.f32.xlu0 %v2572
  %v2574 = vpop.xlane.xlu0 %2573
  %v2575 = vadd.f32 %v2420, %v2421
  %2576 = vadd.xlane.f32.xlu0 %v2575
  %v2577 = vpop.xlane.xlu0 %2576
  %v2578 = vadd.f32 %v2422, %v2423
  %2579 = vadd.xlane.f32.xlu0 %v2578
  %v2580 = vpop.xlane.xlu0 %2579
  %v2581 = vadd.f32 %v2424, %v2425
  %2582 = vadd.xlane.f32.xlu0 %v2581
  %v2583 = vpop.xlane.xlu0 %2582
  %v2584 = vadd.f32 %v2426, %v2427
  %2585 = vadd.xlane.f32.xlu0 %v2584
  %v2586 = vpop.xlane.xlu0 %2585
  %v2587 = vadd.f32 %v2428, %v2429
  %2588 = vadd.xlane.f32.xlu0 %v2587
  %v2589 = vpop.xlane.xlu0 %2588
  %v2590 = vadd.f32 %v2430, %v2431
  %2591 = vadd.xlane.f32.xlu0 %v2590
  %v2592 = vpop.xlane.xlu0 %2591
  %v2593 = vadd.f32 %v2432, %v2433
  %2594 = vadd.xlane.f32.xlu0 %v2593
  %v2595 = vpop.xlane.xlu0 %2594
  %v2596 = vadd.f32 %v2434, %v2435
  %2597 = vadd.xlane.f32.xlu0 %v2596
  %v2598 = vpop.xlane.xlu0 %2597
  %v2599 = vadd.f32 %v2436, %v2437
  %2600 = vadd.xlane.f32.xlu0 %v2599
  %v2601 = vpop.xlane.xlu0 %2600
  %v2602 = vadd.f32 %v2438, %v2439
  %2603 = vadd.xlane.f32.xlu0 %v2602
  %v2604 = vpop.xlane.xlu0 %2603
  %v2605 = vadd.f32 %v2440, %v2441
  %2606 = vadd.xlane.f32.xlu0 %v2605
  %v2607 = vpop.xlane.xlu0 %2606
  %v2608 = vadd.f32 %v2442, %v2443
  %2609 = vadd.xlane.f32.xlu0 %v2608
  %v2610 = vpop.xlane.xlu0 %2609
  %v2611 = vadd.f32 %v2444, %v2445
  %2612 = vadd.xlane.f32.xlu0 %v2611
  %v2613 = vpop.xlane.xlu0 %2612
  %v2614 = vadd.f32 %v2446, %v2447
  %2615 = vadd.xlane.f32.xlu0 %v2614
  %v2616 = vpop.xlane.xlu0 %2615
  %v2617 = vadd.f32 %v2448, %v2449
  %2618 = vadd.xlane.f32.xlu0 %v2617
  %v2619 = vpop.xlane.xlu0 %2618
  %v2620 = vadd.f32 %v2450, %v2451
  %2621 = vadd.xlane.f32.xlu0 %v2620
  %v2622 = vpop.xlane.xlu0 %2621
  %v2623 = vadd.f32 %v2452, %v2453
  %2624 = vadd.xlane.f32.xlu0 %v2623
  %v2625 = vpop.xlane.xlu0 %2624
  %v2626 = vadd.f32 %v2454, %v2455
  %2627 = vadd.xlane.f32.xlu0 %v2626
  %v2628 = vpop.xlane.xlu0 %2627
  %v2629 = vadd.f32 %v2456, %v2457
  %2630 = vadd.xlane.f32.xlu0 %v2629
  %v2631 = vpop.xlane.xlu0 %2630
  %v2632 = vadd.f32 %v2458, %v2459
  %2633 = vadd.xlane.f32.xlu0 %v2632
  %v2634 = vpop.xlane.xlu0 %2633
  %v2635 = vadd.f32 %v2460, %v2461
  %2636 = vadd.xlane.f32.xlu0 %v2635
  %v2637 = vpop.xlane.xlu0 %2636
  %v2638 = vadd.f32 %v2462, %v2463
  %2639 = vadd.xlane.f32.xlu0 %v2638
  %v2640 = vpop.xlane.xlu0 %2639
  %v2641 = vadd.f32 %v2464, %v2465
  %2642 = vadd.xlane.f32.xlu0 %v2641
  %v2643 = vpop.xlane.xlu0 %2642
  %v2644 = vadd.f32 %v2466, %v2467
  %2645 = vadd.xlane.f32.xlu0 %v2644
  %v2646 = vpop.xlane.xlu0 %2645
  %v2647 = vadd.f32 %v2468, %v2469
  %2648 = vadd.xlane.f32.xlu0 %v2647
  %v2649 = vpop.xlane.xlu0 %2648
  %v2650 = vadd.f32 %v2470, %v2471
  %2651 = vadd.xlane.f32.xlu0 %v2650
  %v2652 = vpop.xlane.xlu0 %2651
  %v2653 = vadd.f32 %v2472, %v2473
  %2654 = vadd.xlane.f32.xlu0 %v2653
  %v2655 = vpop.xlane.xlu0 %2654
  %v2656 = vadd.f32 %v2474, %v2475
  %2657 = vadd.xlane.f32.xlu0 %v2656
  %v2658 = vpop.xlane.xlu0 %2657
  %v2659 = vadd.f32 %v2476, %v2477
  %2660 = vadd.xlane.f32.xlu0 %v2659
  %v2661 = vpop.xlane.xlu0 %2660
  %v2662 = vadd.f32 %v2478, %v2479
  %2663 = vadd.xlane.f32.xlu0 %v2662
  %v2664 = vpop.xlane.xlu0 %2663
  %v2665 = vadd.f32 %v2480, %v2481
  %2666 = vadd.xlane.f32.xlu0 %v2665
  %v2667 = vpop.xlane.xlu0 %2666
  %v2668 = vadd.f32 %v2482, %v2483
  %2669 = vadd.xlane.f32.xlu0 %v2668
  %v2670 = vpop.xlane.xlu0 %2669
  %v2671 = vadd.f32 %v2484, %v2485
  %2672 = vadd.xlane.f32.xlu0 %v2671
  %v2673 = vpop.xlane.xlu0 %2672
  %v2674 = vadd.f32 %v2486, %v2487
  %2675 = vadd.xlane.f32.xlu0 %v2674
  %v2676 = vpop.xlane.xlu0 %2675
  %v2677 = vadd.f32 %v2488, %v2489
  %2678 = vadd.xlane.f32.xlu0 %v2677
  %v2679 = vpop.xlane.xlu0 %2678
  %v2680 = vadd.f32 %v2490, %v2491
  %2681 = vadd.xlane.f32.xlu0 %v2680
  %v2682 = vpop.xlane.xlu0 %2681
  %v2683 = vadd.f32 %v2492, %v2493
  %2684 = vadd.xlane.f32.xlu0 %v2683
  %v2685 = vpop.xlane.xlu0 %2684
  %v2686 = vmul.f32 %v1918, %v1918
  %v2687 = vmul.f32 %v1919, %v1919
  %v2688 = vmul.f32 %v1920, %v1920
  %v2689 = vmul.f32 %v1921, %v1921
  %v2690 = vmul.f32 %v1922, %v1922
  %v2691 = vmul.f32 %v1923, %v1923
  %v2692 = vmul.f32 %v1924, %v1924
  %v2693 = vmul.f32 %v1925, %v1925
  %v2694 = vmul.f32 %v1926, %v1926
  %v2695 = vmul.f32 %v1927, %v1927
  %v2696 = vmul.f32 %v1928, %v1928
  %v2697 = vmul.f32 %v1929, %v1929
  %v2698 = vmul.f32 %v1930, %v1930
  %v2699 = vmul.f32 %v1931, %v1931
  %v2700 = vmul.f32 %v1932, %v1932
  %v2701 = vmul.f32 %v1933, %v1933
  %v2702 = vmul.f32 %v1934, %v1934
  %v2703 = vmul.f32 %v1935, %v1935
  %v2704 = vmul.f32 %v1936, %v1936
  %v2705 = vmul.f32 %v1937, %v1937
  %v2706 = vmul.f32 %v1938, %v1938
  %v2707 = vmul.f32 %v1939, %v1939
  %v2708 = vmul.f32 %v1940, %v1940
  %v2709 = vmul.f32 %v1941, %v1941
  %v2710 = vmul.f32 %v1942, %v1942
  %v2711 = vmul.f32 %v1943, %v1943
  %v2712 = vmul.f32 %v1944, %v1944
  %v2713 = vmul.f32 %v1945, %v1945
  %v2714 = vmul.f32 %v1946, %v1946
  %v2715 = vmul.f32 %v1947, %v1947
  %v2716 = vmul.f32 %v1948, %v1948
  %v2717 = vmul.f32 %v1949, %v1949
  %v2718 = vmul.f32 %v1950, %v1950
  %v2719 = vmul.f32 %v1951, %v1951
  %v2720 = vmul.f32 %v1952, %v1952
  %v2721 = vmul.f32 %v1953, %v1953
  %v2722 = vmul.f32 %v1954, %v1954
  %v2723 = vmul.f32 %v1955, %v1955
  %v2724 = vmul.f32 %v1956, %v1956
  %v2725 = vmul.f32 %v1957, %v1957
  %v2726 = vmul.f32 %v1958, %v1958
  %v2727 = vmul.f32 %v1959, %v1959
  %v2728 = vmul.f32 %v1960, %v1960
  %v2729 = vmul.f32 %v1961, %v1961
  %v2730 = vmul.f32 %v1962, %v1962
  %v2731 = vmul.f32 %v1963, %v1963
  %v2732 = vmul.f32 %v1964, %v1964
  %v2733 = vmul.f32 %v1965, %v1965
  %v2734 = vmul.f32 %v1966, %v1966
  %v2735 = vmul.f32 %v1967, %v1967
  %v2736 = vmul.f32 %v1968, %v1968
  %v2737 = vmul.f32 %v1969, %v1969
  %v2738 = vmul.f32 %v1970, %v1970
  %v2739 = vmul.f32 %v1971, %v1971
  %v2740 = vmul.f32 %v1972, %v1972
  %v2741 = vmul.f32 %v1973, %v1973
  %v2742 = vmul.f32 %v1974, %v1974
  %v2743 = vmul.f32 %v1975, %v1975
  %v2744 = vmul.f32 %v1976, %v1976
  %v2745 = vmul.f32 %v1977, %v1977
  %v2746 = vmul.f32 %v1978, %v1978
  %v2747 = vmul.f32 %v1979, %v1979
  %v2748 = vmul.f32 %v1980, %v1980
  %v2749 = vmul.f32 %v1981, %v1981
  %v2750 = vmul.f32 %v1982, %v1982
  %v2751 = vmul.f32 %v1983, %v1983
  %v2752 = vmul.f32 %v1984, %v1984
  %v2753 = vmul.f32 %v1985, %v1985
  %v2754 = vmul.f32 %v1986, %v1986
  %v2755 = vmul.f32 %v1987, %v1987
  %v2756 = vmul.f32 %v1988, %v1988
  %v2757 = vmul.f32 %v1989, %v1989
  %v2758 = vmul.f32 %v1990, %v1990
  %v2759 = vmul.f32 %v1991, %v1991
  %v2760 = vmul.f32 %v1992, %v1992
  %v2761 = vmul.f32 %v1993, %v1993
  %v2762 = vmul.f32 %v1994, %v1994
  %v2763 = vmul.f32 %v1995, %v1995
  %v2764 = vmul.f32 %v1996, %v1996
  %v2765 = vmul.f32 %v1997, %v1997
  %v2766 = vmul.f32 %v1998, %v1998
  %v2767 = vmul.f32 %v1999, %v1999
  %v2768 = vmul.f32 %v2000, %v2000
  %v2769 = vmul.f32 %v2001, %v2001
  %v2770 = vmul.f32 %v2002, %v2002
  %v2771 = vmul.f32 %v2003, %v2003
  %v2772 = vmul.f32 %v2004, %v2004
  %v2773 = vmul.f32 %v2005, %v2005
  %v2774 = vmul.f32 %v2006, %v2006
  %v2775 = vmul.f32 %v2007, %v2007
  %v2776 = vmul.f32 %v2008, %v2008
  %v2777 = vmul.f32 %v2009, %v2009
  %v2778 = vmul.f32 %v2010, %v2010
  %v2779 = vmul.f32 %v2011, %v2011
  %v2780 = vmul.f32 %v2012, %v2012
  %v2781 = vmul.f32 %v2013, %v2013
  %v2782 = vmul.f32 %v2014, %v2014
  %v2783 = vmul.f32 %v2015, %v2015
  %v2784 = vmul.f32 %v2016, %v2016
  %v2785 = vmul.f32 %v2017, %v2017
  %v2786 = vmul.f32 %v2018, %v2018
  %v2787 = vmul.f32 %v2019, %v2019
  %v2788 = vmul.f32 %v2020, %v2020
  %v2789 = vmul.f32 %v2021, %v2021
  %v2790 = vmul.f32 %v2022, %v2022
  %v2791 = vmul.f32 %v2023, %v2023
  %v2792 = vmul.f32 %v2024, %v2024
  %v2793 = vmul.f32 %v2025, %v2025
  %v2794 = vmul.f32 %v2026, %v2026
  %v2795 = vmul.f32 %v2027, %v2027
  %v2796 = vmul.f32 %v2028, %v2028
  %v2797 = vmul.f32 %v2029, %v2029
  %v2798 = vmul.f32 %v2030, %v2030
  %v2799 = vmul.f32 %v2031, %v2031
  %v2800 = vmul.f32 %v2032, %v2032
  %v2801 = vmul.f32 %v2033, %v2033
  %v2802 = vmul.f32 %v2034, %v2034
  %v2803 = vmul.f32 %v2035, %v2035
  %v2804 = vmul.f32 %v2036, %v2036
  %v2805 = vmul.f32 %v2037, %v2037
  %v2806 = vmul.f32 %v2038, %v2038
  %v2807 = vmul.f32 %v2039, %v2039
  %v2808 = vmul.f32 %v2040, %v2040
  %v2809 = vmul.f32 %v2041, %v2041
  %v2810 = vmul.f32 %v2042, %v2042
  %v2811 = vmul.f32 %v2043, %v2043
  %v2812 = vmul.f32 %v2044, %v2044
  %v2813 = vmul.f32 %v2045, %v2045
  %v2814 = vadd.f32 %v2686, %v2687
  %2815 = vadd.xlane.f32.xlu0 %v2814
  %v2816 = vpop.xlane.xlu0 %2815
  %v2817 = vadd.f32 %v2688, %v2689
  %2818 = vadd.xlane.f32.xlu0 %v2817
  %v2819 = vpop.xlane.xlu0 %2818
  %v2820 = vadd.f32 %v2690, %v2691
  %2821 = vadd.xlane.f32.xlu0 %v2820
  %v2822 = vpop.xlane.xlu0 %2821
  %v2823 = vadd.f32 %v2692, %v2693
  %2824 = vadd.xlane.f32.xlu0 %v2823
  %v2825 = vpop.xlane.xlu0 %2824
  %v2826 = vadd.f32 %v2694, %v2695
  %2827 = vadd.xlane.f32.xlu0 %v2826
  %v2828 = vpop.xlane.xlu0 %2827
  %v2829 = vadd.f32 %v2696, %v2697
  %2830 = vadd.xlane.f32.xlu0 %v2829
  %v2831 = vpop.xlane.xlu0 %2830
  %v2832 = vadd.f32 %v2698, %v2699
  %2833 = vadd.xlane.f32.xlu0 %v2832
  %v2834 = vpop.xlane.xlu0 %2833
  %v2835 = vadd.f32 %v2700, %v2701
  %2836 = vadd.xlane.f32.xlu0 %v2835
  %v2837 = vpop.xlane.xlu0 %2836
  %v2838 = vadd.f32 %v2702, %v2703
  %2839 = vadd.xlane.f32.xlu0 %v2838
  %v2840 = vpop.xlane.xlu0 %2839
  %v2841 = vadd.f32 %v2704, %v2705
  %2842 = vadd.xlane.f32.xlu0 %v2841
  %v2843 = vpop.xlane.xlu0 %2842
  %v2844 = vadd.f32 %v2706, %v2707
  %2845 = vadd.xlane.f32.xlu0 %v2844
  %v2846 = vpop.xlane.xlu0 %2845
  %v2847 = vadd.f32 %v2708, %v2709
  %2848 = vadd.xlane.f32.xlu0 %v2847
  %v2849 = vpop.xlane.xlu0 %2848
  %v2850 = vadd.f32 %v2710, %v2711
  %2851 = vadd.xlane.f32.xlu0 %v2850
  %v2852 = vpop.xlane.xlu0 %2851
  %v2853 = vadd.f32 %v2712, %v2713
  %2854 = vadd.xlane.f32.xlu0 %v2853
  %v2855 = vpop.xlane.xlu0 %2854
  %v2856 = vadd.f32 %v2714, %v2715
  %2857 = vadd.xlane.f32.xlu0 %v2856
  %v2858 = vpop.xlane.xlu0 %2857
  %v2859 = vadd.f32 %v2716, %v2717
  %2860 = vadd.xlane.f32.xlu0 %v2859
  %v2861 = vpop.xlane.xlu0 %2860
  %v2862 = vadd.f32 %v2718, %v2719
  %2863 = vadd.xlane.f32.xlu0 %v2862
  %v2864 = vpop.xlane.xlu0 %2863
  %v2865 = vadd.f32 %v2720, %v2721
  %2866 = vadd.xlane.f32.xlu0 %v2865
  %v2867 = vpop.xlane.xlu0 %2866
  %v2868 = vadd.f32 %v2722, %v2723
  %2869 = vadd.xlane.f32.xlu0 %v2868
  %v2870 = vpop.xlane.xlu0 %2869
  %v2871 = vadd.f32 %v2724, %v2725
  %2872 = vadd.xlane.f32.xlu0 %v2871
  %v2873 = vpop.xlane.xlu0 %2872
  %v2874 = vadd.f32 %v2726, %v2727
  %2875 = vadd.xlane.f32.xlu0 %v2874
  %v2876 = vpop.xlane.xlu0 %2875
  %v2877 = vadd.f32 %v2728, %v2729
  %2878 = vadd.xlane.f32.xlu0 %v2877
  %v2879 = vpop.xlane.xlu0 %2878
  %v2880 = vadd.f32 %v2730, %v2731
  %2881 = vadd.xlane.f32.xlu0 %v2880
  %v2882 = vpop.xlane.xlu0 %2881
  %v2883 = vadd.f32 %v2732, %v2733
  %2884 = vadd.xlane.f32.xlu0 %v2883
  %v2885 = vpop.xlane.xlu0 %2884
  %v2886 = vadd.f32 %v2734, %v2735
  %2887 = vadd.xlane.f32.xlu0 %v2886
  %v2888 = vpop.xlane.xlu0 %2887
  %v2889 = vadd.f32 %v2736, %v2737
  %2890 = vadd.xlane.f32.xlu0 %v2889
  %v2891 = vpop.xlane.xlu0 %2890
  %v2892 = vadd.f32 %v2738, %v2739
  %2893 = vadd.xlane.f32.xlu0 %v2892
  %v2894 = vpop.xlane.xlu0 %2893
  %v2895 = vadd.f32 %v2740, %v2741
  %2896 = vadd.xlane.f32.xlu0 %v2895
  %v2897 = vpop.xlane.xlu0 %2896
  %v2898 = vadd.f32 %v2742, %v2743
  %2899 = vadd.xlane.f32.xlu0 %v2898
  %v2900 = vpop.xlane.xlu0 %2899
  %v2901 = vadd.f32 %v2744, %v2745
  %2902 = vadd.xlane.f32.xlu0 %v2901
  %v2903 = vpop.xlane.xlu0 %2902
  %v2904 = vadd.f32 %v2746, %v2747
  %2905 = vadd.xlane.f32.xlu0 %v2904
  %v2906 = vpop.xlane.xlu0 %2905
  %v2907 = vadd.f32 %v2748, %v2749
  %2908 = vadd.xlane.f32.xlu0 %v2907
  %v2909 = vpop.xlane.xlu0 %2908
  %v2910 = vadd.f32 %v2750, %v2751
  %2911 = vadd.xlane.f32.xlu0 %v2910
  %v2912 = vpop.xlane.xlu0 %2911
  %v2913 = vadd.f32 %v2752, %v2753
  %2914 = vadd.xlane.f32.xlu0 %v2913
  %v2915 = vpop.xlane.xlu0 %2914
  %v2916 = vadd.f32 %v2754, %v2755
  %2917 = vadd.xlane.f32.xlu0 %v2916
  %v2918 = vpop.xlane.xlu0 %2917
  %v2919 = vadd.f32 %v2756, %v2757
  %2920 = vadd.xlane.f32.xlu0 %v2919
  %v2921 = vpop.xlane.xlu0 %2920
  %v2922 = vadd.f32 %v2758, %v2759
  %2923 = vadd.xlane.f32.xlu0 %v2922
  %v2924 = vpop.xlane.xlu0 %2923
  %v2925 = vadd.f32 %v2760, %v2761
  %2926 = vadd.xlane.f32.xlu0 %v2925
  %v2927 = vpop.xlane.xlu0 %2926
  %v2928 = vadd.f32 %v2762, %v2763
  %2929 = vadd.xlane.f32.xlu0 %v2928
  %v2930 = vpop.xlane.xlu0 %2929
  %v2931 = vadd.f32 %v2764, %v2765
  %2932 = vadd.xlane.f32.xlu0 %v2931
  %v2933 = vpop.xlane.xlu0 %2932
  %v2934 = vadd.f32 %v2766, %v2767
  %2935 = vadd.xlane.f32.xlu0 %v2934
  %v2936 = vpop.xlane.xlu0 %2935
  %v2937 = vadd.f32 %v2768, %v2769
  %2938 = vadd.xlane.f32.xlu0 %v2937
  %v2939 = vpop.xlane.xlu0 %2938
  %v2940 = vadd.f32 %v2770, %v2771
  %2941 = vadd.xlane.f32.xlu0 %v2940
  %v2942 = vpop.xlane.xlu0 %2941
  %v2943 = vadd.f32 %v2772, %v2773
  %2944 = vadd.xlane.f32.xlu0 %v2943
  %v2945 = vpop.xlane.xlu0 %2944
  %v2946 = vadd.f32 %v2774, %v2775
  %2947 = vadd.xlane.f32.xlu0 %v2946
  %v2948 = vpop.xlane.xlu0 %2947
  %v2949 = vadd.f32 %v2776, %v2777
  %2950 = vadd.xlane.f32.xlu0 %v2949
  %v2951 = vpop.xlane.xlu0 %2950
  %v2952 = vadd.f32 %v2778, %v2779
  %2953 = vadd.xlane.f32.xlu0 %v2952
  %v2954 = vpop.xlane.xlu0 %2953
  %v2955 = vadd.f32 %v2780, %v2781
  %2956 = vadd.xlane.f32.xlu0 %v2955
  %v2957 = vpop.xlane.xlu0 %2956
  %v2958 = vadd.f32 %v2782, %v2783
  %2959 = vadd.xlane.f32.xlu0 %v2958
  %v2960 = vpop.xlane.xlu0 %2959
  %v2961 = vadd.f32 %v2784, %v2785
  %2962 = vadd.xlane.f32.xlu0 %v2961
  %v2963 = vpop.xlane.xlu0 %2962
  %v2964 = vadd.f32 %v2786, %v2787
  %2965 = vadd.xlane.f32.xlu0 %v2964
  %v2966 = vpop.xlane.xlu0 %2965
  %v2967 = vadd.f32 %v2788, %v2789
  %2968 = vadd.xlane.f32.xlu0 %v2967
  %v2969 = vpop.xlane.xlu0 %2968
  %v2970 = vadd.f32 %v2790, %v2791
  %2971 = vadd.xlane.f32.xlu0 %v2970
  %v2972 = vpop.xlane.xlu0 %2971
  %v2973 = vadd.f32 %v2792, %v2793
  %2974 = vadd.xlane.f32.xlu0 %v2973
  %v2975 = vpop.xlane.xlu0 %2974
  %v2976 = vadd.f32 %v2794, %v2795
  %2977 = vadd.xlane.f32.xlu0 %v2976
  %v2978 = vpop.xlane.xlu0 %2977
  %v2979 = vadd.f32 %v2796, %v2797
  %2980 = vadd.xlane.f32.xlu0 %v2979
  %v2981 = vpop.xlane.xlu0 %2980
  %v2982 = vadd.f32 %v2798, %v2799
  %2983 = vadd.xlane.f32.xlu0 %v2982
  %v2984 = vpop.xlane.xlu0 %2983
  %v2985 = vadd.f32 %v2800, %v2801
  %2986 = vadd.xlane.f32.xlu0 %v2985
  %v2987 = vpop.xlane.xlu0 %2986
  %v2988 = vadd.f32 %v2802, %v2803
  %2989 = vadd.xlane.f32.xlu0 %v2988
  %v2990 = vpop.xlane.xlu0 %2989
  %v2991 = vadd.f32 %v2804, %v2805
  %2992 = vadd.xlane.f32.xlu0 %v2991
  %v2993 = vpop.xlane.xlu0 %2992
  %v2994 = vadd.f32 %v2806, %v2807
  %2995 = vadd.xlane.f32.xlu0 %v2994
  %v2996 = vpop.xlane.xlu0 %2995
  %v2997 = vadd.f32 %v2808, %v2809
  %2998 = vadd.xlane.f32.xlu0 %v2997
  %v2999 = vpop.xlane.xlu0 %2998
  %v3000 = vadd.f32 %v2810, %v2811
  %3001 = vadd.xlane.f32.xlu0 %v3000
  %v3002 = vpop.xlane.xlu0 %3001
  %v3003 = vadd.f32 %v2812, %v2813
  %3004 = vadd.xlane.f32.xlu0 %v3003
  %v3005 = vpop.xlane.xlu0 %3004
  %v3006 = vmul.f32 %v2496, %v2816
  %v3007 = vmul.f32 %v2499, %v2819
  %v3008 = vmul.f32 %v2502, %v2822
  %v3009 = vmul.f32 %v2505, %v2825
  %v3010 = vmul.f32 %v2508, %v2828
  %v3011 = vmul.f32 %v2511, %v2831
  %v3012 = vmul.f32 %v2514, %v2834
  %v3013 = vmul.f32 %v2517, %v2837
  %v3014 = vmul.f32 %v2520, %v2840
  %v3015 = vmul.f32 %v2523, %v2843
  %v3016 = vmul.f32 %v2526, %v2846
  %v3017 = vmul.f32 %v2529, %v2849
  %v3018 = vmul.f32 %v2532, %v2852
  %v3019 = vmul.f32 %v2535, %v2855
  %v3020 = vmul.f32 %v2538, %v2858
  %v3021 = vmul.f32 %v2541, %v2861
  %v3022 = vmul.f32 %v2544, %v2864
  %v3023 = vmul.f32 %v2547, %v2867
  %v3024 = vmul.f32 %v2550, %v2870
  %v3025 = vmul.f32 %v2553, %v2873
  %v3026 = vmul.f32 %v2556, %v2876
  %v3027 = vmul.f32 %v2559, %v2879
  %v3028 = vmul.f32 %v2562, %v2882
  %v3029 = vmul.f32 %v2565, %v2885
  %v3030 = vmul.f32 %v2568, %v2888
  %v3031 = vmul.f32 %v2571, %v2891
  %v3032 = vmul.f32 %v2574, %v2894
  %v3033 = vmul.f32 %v2577, %v2897
  %v3034 = vmul.f32 %v2580, %v2900
  %v3035 = vmul.f32 %v2583, %v2903
  %v3036 = vmul.f32 %v2586, %v2906
  %v3037 = vmul.f32 %v2589, %v2909
  %v3038 = vmul.f32 %v2592, %v2912
  %v3039 = vmul.f32 %v2595, %v2915
  %v3040 = vmul.f32 %v2598, %v2918
  %v3041 = vmul.f32 %v2601, %v2921
  %v3042 = vmul.f32 %v2604, %v2924
  %v3043 = vmul.f32 %v2607, %v2927
  %v3044 = vmul.f32 %v2610, %v2930
  %v3045 = vmul.f32 %v2613, %v2933
  %v3046 = vmul.f32 %v2616, %v2936
  %v3047 = vmul.f32 %v2619, %v2939
  %v3048 = vmul.f32 %v2622, %v2942
  %v3049 = vmul.f32 %v2625, %v2945
  %v3050 = vmul.f32 %v2628, %v2948
  %v3051 = vmul.f32 %v2631, %v2951
  %v3052 = vmul.f32 %v2634, %v2954
  %v3053 = vmul.f32 %v2637, %v2957
  %v3054 = vmul.f32 %v2640, %v2960
  %v3055 = vmul.f32 %v2643, %v2963
  %v3056 = vmul.f32 %v2646, %v2966
  %v3057 = vmul.f32 %v2649, %v2969
  %v3058 = vmul.f32 %v2652, %v2972
  %v3059 = vmul.f32 %v2655, %v2975
  %v3060 = vmul.f32 %v2658, %v2978
  %v3061 = vmul.f32 %v2661, %v2981
  %v3062 = vmul.f32 %v2664, %v2984
  %v3063 = vmul.f32 %v2667, %v2987
  %v3064 = vmul.f32 %v2670, %v2990
  %v3065 = vmul.f32 %v2673, %v2993
  %v3066 = vmul.f32 %v2676, %v2996
  %v3067 = vmul.f32 %v2679, %v2999
  %v3068 = vmul.f32 %v2682, %v3002
  %v3069 = vmul.f32 %v2685, %v3005
  %v3070 = vmax.f32 %v3006, 1e-16
  %v3071 = vmax.f32 %v3007, 1e-16
  %v3072 = vmax.f32 %v3008, 1e-16
  %v3073 = vmax.f32 %v3009, 1e-16
  %v3074 = vmax.f32 %v3010, 1e-16
  %v3075 = vmax.f32 %v3011, 1e-16
  %v3076 = vmax.f32 %v3012, 1e-16
  %v3077 = vmax.f32 %v3013, 1e-16
  %v3078 = vmax.f32 %v3014, 1e-16
  %v3079 = vmax.f32 %v3015, 1e-16
  %v3080 = vmax.f32 %v3016, 1e-16
  %v3081 = vmax.f32 %v3017, 1e-16
  %v3082 = vmax.f32 %v3018, 1e-16
  %v3083 = vmax.f32 %v3019, 1e-16
  %v3084 = vmax.f32 %v3020, 1e-16
  %v3085 = vmax.f32 %v3021, 1e-16
  %v3086 = vmax.f32 %v3022, 1e-16
  %v3087 = vmax.f32 %v3023, 1e-16
  %v3088 = vmax.f32 %v3024, 1e-16
  %v3089 = vmax.f32 %v3025, 1e-16
  %v3090 = vmax.f32 %v3026, 1e-16
  %v3091 = vmax.f32 %v3027, 1e-16
  %v3092 = vmax.f32 %v3028, 1e-16
  %v3093 = vmax.f32 %v3029, 1e-16
  %v3094 = vmax.f32 %v3030, 1e-16
  %v3095 = vmax.f32 %v3031, 1e-16
  %v3096 = vmax.f32 %v3032, 1e-16
  %v3097 = vmax.f32 %v3033, 1e-16
  %v3098 = vmax.f32 %v3034, 1e-16
  %v3099 = vmax.f32 %v3035, 1e-16
  %v3100 = vmax.f32 %v3036, 1e-16
  %v3101 = vmax.f32 %v3037, 1e-16
  %v3102 = vmax.f32 %v3038, 1e-16
  %v3103 = vmax.f32 %v3039, 1e-16
  %v3104 = vmax.f32 %v3040, 1e-16
  %v3105 = vmax.f32 %v3041, 1e-16
  %v3106 = vmax.f32 %v3042, 1e-16
  %v3107 = vmax.f32 %v3043, 1e-16
  %v3108 = vmax.f32 %v3044, 1e-16
  %v3109 = vmax.f32 %v3045, 1e-16
  %v3110 = vmax.f32 %v3046, 1e-16
  %v3111 = vmax.f32 %v3047, 1e-16
  %v3112 = vmax.f32 %v3048, 1e-16
  %v3113 = vmax.f32 %v3049, 1e-16
  %v3114 = vmax.f32 %v3050, 1e-16
  %v3115 = vmax.f32 %v3051, 1e-16
  %v3116 = vmax.f32 %v3052, 1e-16
  %v3117 = vmax.f32 %v3053, 1e-16
  %v3118 = vmax.f32 %v3054, 1e-16
  %v3119 = vmax.f32 %v3055, 1e-16
  %v3120 = vmax.f32 %v3056, 1e-16
  %v3121 = vmax.f32 %v3057, 1e-16
  %v3122 = vmax.f32 %v3058, 1e-16
  %v3123 = vmax.f32 %v3059, 1e-16
  %v3124 = vmax.f32 %v3060, 1e-16
  %v3125 = vmax.f32 %v3061, 1e-16
  %v3126 = vmax.f32 %v3062, 1e-16
  %v3127 = vmax.f32 %v3063, 1e-16
  %v3128 = vmax.f32 %v3064, 1e-16
  %v3129 = vmax.f32 %v3065, 1e-16
  %v3130 = vmax.f32 %v3066, 1e-16
  %v3131 = vmax.f32 %v3067, 1e-16
  %v3132 = vmax.f32 %v3068, 1e-16
  %v3133 = vmax.f32 %v3069, 1e-16
  %v3134 = vrsqrt.pop %v3070
  %v3135 = vmul.f32 %v3134, %v3070
  %v3136 = vmul.f32 %v3135, %v3134
  %v3137 = vmul.f32 0.5, %v3136
  %v3138 = vsub.f32 1.5, %v3137
  %v3139 = vmul.f32 %v3134, %v3138
  %vm3140 = vweird.f32 %v3070
  %vm3141 = vweird.f32 %v3134
  %vm3142 = vmor %vm3140, %vm3141
  %v3143 = vsel %vm3142, %v3134, %v3139
  %v3144 = vrsqrt.pop %v3071
  %v3145 = vmul.f32 %v3144, %v3071
  %v3146 = vmul.f32 %v3145, %v3144
  %v3147 = vmul.f32 0.5, %v3146
  %v3148 = vsub.f32 1.5, %v3147
  %v3149 = vmul.f32 %v3144, %v3148
  %vm3150 = vweird.f32 %v3071
  %vm3151 = vweird.f32 %v3144
  %vm3152 = vmor %vm3150, %vm3151
  %v3153 = vsel %vm3152, %v3144, %v3149
  %v3154 = vrsqrt.pop %v3072
  %v3155 = vmul.f32 %v3154, %v3072
  %v3156 = vmul.f32 %v3155, %v3154
  %v3157 = vmul.f32 0.5, %v3156
  %v3158 = vsub.f32 1.5, %v3157
  %v3159 = vmul.f32 %v3154, %v3158
  %vm3160 = vweird.f32 %v3072
  %vm3161 = vweird.f32 %v3154
  %vm3162 = vmor %vm3160, %vm3161
  %v3163 = vsel %vm3162, %v3154, %v3159
  %v3164 = vrsqrt.pop %v3073
  %v3165 = vmul.f32 %v3164, %v3073
  %v3166 = vmul.f32 %v3165, %v3164
  %v3167 = vmul.f32 0.5, %v3166
  %v3168 = vsub.f32 1.5, %v3167
  %v3169 = vmul.f32 %v3164, %v3168
  %vm3170 = vweird.f32 %v3073
  %vm3171 = vweird.f32 %v3164
  %vm3172 = vmor %vm3170, %vm3171
  %v3173 = vsel %vm3172, %v3164, %v3169
  %v3174 = vrsqrt.pop %v3074
  %v3175 = vmul.f32 %v3174, %v3074
  %v3176 = vmul.f32 %v3175, %v3174
  %v3177 = vmul.f32 0.5, %v3176
  %v3178 = vsub.f32 1.5, %v3177
  %v3179 = vmul.f32 %v3174, %v3178
  %vm3180 = vweird.f32 %v3074
  %vm3181 = vweird.f32 %v3174
  %vm3182 = vmor %vm3180, %vm3181
  %v3183 = vsel %vm3182, %v3174, %v3179
  %v3184 = vrsqrt.pop %v3075
  %v3185 = vmul.f32 %v3184, %v3075
  %v3186 = vmul.f32 %v3185, %v3184
  %v3187 = vmul.f32 0.5, %v3186
  %v3188 = vsub.f32 1.5, %v3187
  %v3189 = vmul.f32 %v3184, %v3188
  %vm3190 = vweird.f32 %v3075
  %vm3191 = vweird.f32 %v3184
  %vm3192 = vmor %vm3190, %vm3191
  %v3193 = vsel %vm3192, %v3184, %v3189
  %v3194 = vrsqrt.pop %v3076
  %v3195 = vmul.f32 %v3194, %v3076
  %v3196 = vmul.f32 %v3195, %v3194
  %v3197 = vmul.f32 0.5, %v3196
  %v3198 = vsub.f32 1.5, %v3197
  %v3199 = vmul.f32 %v3194, %v3198
  %vm3200 = vweird.f32 %v3076
  %vm3201 = vweird.f32 %v3194
  %vm3202 = vmor %vm3200, %vm3201
  %v3203 = vsel %vm3202, %v3194, %v3199
  %v3204 = vrsqrt.pop %v3077
  %v3205 = vmul.f32 %v3204, %v3077
  %v3206 = vmul.f32 %v3205, %v3204
  %v3207 = vmul.f32 0.5, %v3206
  %v3208 = vsub.f32 1.5, %v3207
  %v3209 = vmul.f32 %v3204, %v3208
  %vm3210 = vweird.f32 %v3077
  %vm3211 = vweird.f32 %v3204
  %vm3212 = vmor %vm3210, %vm3211
  %v3213 = vsel %vm3212, %v3204, %v3209
  %v3214 = vrsqrt.pop %v3078
  %v3215 = vmul.f32 %v3214, %v3078
  %v3216 = vmul.f32 %v3215, %v3214
  %v3217 = vmul.f32 0.5, %v3216
  %v3218 = vsub.f32 1.5, %v3217
  %v3219 = vmul.f32 %v3214, %v3218
  %vm3220 = vweird.f32 %v3078
  %vm3221 = vweird.f32 %v3214
  %vm3222 = vmor %vm3220, %vm3221
  %v3223 = vsel %vm3222, %v3214, %v3219
  %v3224 = vrsqrt.pop %v3079
  %v3225 = vmul.f32 %v3224, %v3079
  %v3226 = vmul.f32 %v3225, %v3224
  %v3227 = vmul.f32 0.5, %v3226
  %v3228 = vsub.f32 1.5, %v3227
  %v3229 = vmul.f32 %v3224, %v3228
  %vm3230 = vweird.f32 %v3079
  %vm3231 = vweird.f32 %v3224
  %vm3232 = vmor %vm3230, %vm3231
  %v3233 = vsel %vm3232, %v3224, %v3229
  %v3234 = vrsqrt.pop %v3080
  %v3235 = vmul.f32 %v3234, %v3080
  %v3236 = vmul.f32 %v3235, %v3234
  %v3237 = vmul.f32 0.5, %v3236
  %v3238 = vsub.f32 1.5, %v3237
  %v3239 = vmul.f32 %v3234, %v3238
  %vm3240 = vweird.f32 %v3080
  %vm3241 = vweird.f32 %v3234
  %vm3242 = vmor %vm3240, %vm3241
  %v3243 = vsel %vm3242, %v3234, %v3239
  %v3244 = vrsqrt.pop %v3081
  %v3245 = vmul.f32 %v3244, %v3081
  %v3246 = vmul.f32 %v3245, %v3244
  %v3247 = vmul.f32 0.5, %v3246
  %v3248 = vsub.f32 1.5, %v3247
  %v3249 = vmul.f32 %v3244, %v3248
  %vm3250 = vweird.f32 %v3081
  %vm3251 = vweird.f32 %v3244
  %vm3252 = vmor %vm3250, %vm3251
  %v3253 = vsel %vm3252, %v3244, %v3249
  %v3254 = vrsqrt.pop %v3082
  %v3255 = vmul.f32 %v3254, %v3082
  %v3256 = vmul.f32 %v3255, %v3254
  %v3257 = vmul.f32 0.5, %v3256
  %v3258 = vsub.f32 1.5, %v3257
  %v3259 = vmul.f32 %v3254, %v3258
  %vm3260 = vweird.f32 %v3082
  %vm3261 = vweird.f32 %v3254
  %vm3262 = vmor %vm3260, %vm3261
  %v3263 = vsel %vm3262, %v3254, %v3259
  %v3264 = vrsqrt.pop %v3083
  %v3265 = vmul.f32 %v3264, %v3083
  %v3266 = vmul.f32 %v3265, %v3264
  %v3267 = vmul.f32 0.5, %v3266
  %v3268 = vsub.f32 1.5, %v3267
  %v3269 = vmul.f32 %v3264, %v3268
  %vm3270 = vweird.f32 %v3083
  %vm3271 = vweird.f32 %v3264
  %vm3272 = vmor %vm3270, %vm3271
  %v3273 = vsel %vm3272, %v3264, %v3269
  %v3274 = vrsqrt.pop %v3084
  %v3275 = vmul.f32 %v3274, %v3084
  %v3276 = vmul.f32 %v3275, %v3274
  %v3277 = vmul.f32 0.5, %v3276
  %v3278 = vsub.f32 1.5, %v3277
  %v3279 = vmul.f32 %v3274, %v3278
  %vm3280 = vweird.f32 %v3084
  %vm3281 = vweird.f32 %v3274
  %vm3282 = vmor %vm3280, %vm3281
  %v3283 = vsel %vm3282, %v3274, %v3279
  %v3284 = vrsqrt.pop %v3085
  %v3285 = vmul.f32 %v3284, %v3085
  %v3286 = vmul.f32 %v3285, %v3284
  %v3287 = vmul.f32 0.5, %v3286
  %v3288 = vsub.f32 1.5, %v3287
  %v3289 = vmul.f32 %v3284, %v3288
  %vm3290 = vweird.f32 %v3085
  %vm3291 = vweird.f32 %v3284
  %vm3292 = vmor %vm3290, %vm3291
  %v3293 = vsel %vm3292, %v3284, %v3289
  %v3294 = vrsqrt.pop %v3086
  %v3295 = vmul.f32 %v3294, %v3086
  %v3296 = vmul.f32 %v3295, %v3294
  %v3297 = vmul.f32 0.5, %v3296
  %v3298 = vsub.f32 1.5, %v3297
  %v3299 = vmul.f32 %v3294, %v3298
  %vm3300 = vweird.f32 %v3086
  %vm3301 = vweird.f32 %v3294
  %vm3302 = vmor %vm3300, %vm3301
  %v3303 = vsel %vm3302, %v3294, %v3299
  %v3304 = vrsqrt.pop %v3087
  %v3305 = vmul.f32 %v3304, %v3087
  %v3306 = vmul.f32 %v3305, %v3304
  %v3307 = vmul.f32 0.5, %v3306
  %v3308 = vsub.f32 1.5, %v3307
  %v3309 = vmul.f32 %v3304, %v3308
  %vm3310 = vweird.f32 %v3087
  %vm3311 = vweird.f32 %v3304
  %vm3312 = vmor %vm3310, %vm3311
  %v3313 = vsel %vm3312, %v3304, %v3309
  %v3314 = vrsqrt.pop %v3088
  %v3315 = vmul.f32 %v3314, %v3088
  %v3316 = vmul.f32 %v3315, %v3314
  %v3317 = vmul.f32 0.5, %v3316
  %v3318 = vsub.f32 1.5, %v3317
  %v3319 = vmul.f32 %v3314, %v3318
  %vm3320 = vweird.f32 %v3088
  %vm3321 = vweird.f32 %v3314
  %vm3322 = vmor %vm3320, %vm3321
  %v3323 = vsel %vm3322, %v3314, %v3319
  %v3324 = vrsqrt.pop %v3089
  %v3325 = vmul.f32 %v3324, %v3089
  %v3326 = vmul.f32 %v3325, %v3324
  %v3327 = vmul.f32 0.5, %v3326
  %v3328 = vsub.f32 1.5, %v3327
  %v3329 = vmul.f32 %v3324, %v3328
  %vm3330 = vweird.f32 %v3089
  %vm3331 = vweird.f32 %v3324
  %vm3332 = vmor %vm3330, %vm3331
  %v3333 = vsel %vm3332, %v3324, %v3329
  %v3334 = vrsqrt.pop %v3090
  %v3335 = vmul.f32 %v3334, %v3090
  %v3336 = vmul.f32 %v3335, %v3334
  %v3337 = vmul.f32 0.5, %v3336
  %v3338 = vsub.f32 1.5, %v3337
  %v3339 = vmul.f32 %v3334, %v3338
  %vm3340 = vweird.f32 %v3090
  %vm3341 = vweird.f32 %v3334
  %vm3342 = vmor %vm3340, %vm3341
  %v3343 = vsel %vm3342, %v3334, %v3339
  %v3344 = vrsqrt.pop %v3091
  %v3345 = vmul.f32 %v3344, %v3091
  %v3346 = vmul.f32 %v3345, %v3344
  %v3347 = vmul.f32 0.5, %v3346
  %v3348 = vsub.f32 1.5, %v3347
  %v3349 = vmul.f32 %v3344, %v3348
  %vm3350 = vweird.f32 %v3091
  %vm3351 = vweird.f32 %v3344
  %vm3352 = vmor %vm3350, %vm3351
  %v3353 = vsel %vm3352, %v3344, %v3349
  %v3354 = vrsqrt.pop %v3092
  %v3355 = vmul.f32 %v3354, %v3092
  %v3356 = vmul.f32 %v3355, %v3354
  %v3357 = vmul.f32 0.5, %v3356
  %v3358 = vsub.f32 1.5, %v3357
  %v3359 = vmul.f32 %v3354, %v3358
  %vm3360 = vweird.f32 %v3092
  %vm3361 = vweird.f32 %v3354
  %vm3362 = vmor %vm3360, %vm3361
  %v3363 = vsel %vm3362, %v3354, %v3359
  %v3364 = vrsqrt.pop %v3093
  %v3365 = vmul.f32 %v3364, %v3093
  %v3366 = vmul.f32 %v3365, %v3364
  %v3367 = vmul.f32 0.5, %v3366
  %v3368 = vsub.f32 1.5, %v3367
  %v3369 = vmul.f32 %v3364, %v3368
  %vm3370 = vweird.f32 %v3093
  %vm3371 = vweird.f32 %v3364
  %vm3372 = vmor %vm3370, %vm3371
  %v3373 = vsel %vm3372, %v3364, %v3369
  %v3374 = vrsqrt.pop %v3094
  %v3375 = vmul.f32 %v3374, %v3094
  %v3376 = vmul.f32 %v3375, %v3374
  %v3377 = vmul.f32 0.5, %v3376
  %v3378 = vsub.f32 1.5, %v3377
  %v3379 = vmul.f32 %v3374, %v3378
  %vm3380 = vweird.f32 %v3094
  %vm3381 = vweird.f32 %v3374
  %vm3382 = vmor %vm3380, %vm3381
  %v3383 = vsel %vm3382, %v3374, %v3379
  %v3384 = vrsqrt.pop %v3095
  %v3385 = vmul.f32 %v3384, %v3095
  %v3386 = vmul.f32 %v3385, %v3384
  %v3387 = vmul.f32 0.5, %v3386
  %v3388 = vsub.f32 1.5, %v3387
  %v3389 = vmul.f32 %v3384, %v3388
  %vm3390 = vweird.f32 %v3095
  %vm3391 = vweird.f32 %v3384
  %vm3392 = vmor %vm3390, %vm3391
  %v3393 = vsel %vm3392, %v3384, %v3389
  %v3394 = vrsqrt.pop %v3096
  %v3395 = vmul.f32 %v3394, %v3096
  %v3396 = vmul.f32 %v3395, %v3394
  %v3397 = vmul.f32 0.5, %v3396
  %v3398 = vsub.f32 1.5, %v3397
  %v3399 = vmul.f32 %v3394, %v3398
  %vm3400 = vweird.f32 %v3096
  %vm3401 = vweird.f32 %v3394
  %vm3402 = vmor %vm3400, %vm3401
  %v3403 = vsel %vm3402, %v3394, %v3399
  %v3404 = vrsqrt.pop %v3097
  %v3405 = vmul.f32 %v3404, %v3097
  %v3406 = vmul.f32 %v3405, %v3404
  %v3407 = vmul.f32 0.5, %v3406
  %v3408 = vsub.f32 1.5, %v3407
  %v3409 = vmul.f32 %v3404, %v3408
  %vm3410 = vweird.f32 %v3097
  %vm3411 = vweird.f32 %v3404
  %vm3412 = vmor %vm3410, %vm3411
  %v3413 = vsel %vm3412, %v3404, %v3409
  %v3414 = vrsqrt.pop %v3098
  %v3415 = vmul.f32 %v3414, %v3098
  %v3416 = vmul.f32 %v3415, %v3414
  %v3417 = vmul.f32 0.5, %v3416
  %v3418 = vsub.f32 1.5, %v3417
  %v3419 = vmul.f32 %v3414, %v3418
  %vm3420 = vweird.f32 %v3098
  %vm3421 = vweird.f32 %v3414
  %vm3422 = vmor %vm3420, %vm3421
  %v3423 = vsel %vm3422, %v3414, %v3419
  %v3424 = vrsqrt.pop %v3099
  %v3425 = vmul.f32 %v3424, %v3099
  %v3426 = vmul.f32 %v3425, %v3424
  %v3427 = vmul.f32 0.5, %v3426
  %v3428 = vsub.f32 1.5, %v3427
  %v3429 = vmul.f32 %v3424, %v3428
  %vm3430 = vweird.f32 %v3099
  %vm3431 = vweird.f32 %v3424
  %vm3432 = vmor %vm3430, %vm3431
  %v3433 = vsel %vm3432, %v3424, %v3429
  %v3434 = vrsqrt.pop %v3100
  %v3435 = vmul.f32 %v3434, %v3100
  %v3436 = vmul.f32 %v3435, %v3434
  %v3437 = vmul.f32 0.5, %v3436
  %v3438 = vsub.f32 1.5, %v3437
  %v3439 = vmul.f32 %v3434, %v3438
  %vm3440 = vweird.f32 %v3100
  %vm3441 = vweird.f32 %v3434
  %vm3442 = vmor %vm3440, %vm3441
  %v3443 = vsel %vm3442, %v3434, %v3439
  %v3444 = vrsqrt.pop %v3101
  %v3445 = vmul.f32 %v3444, %v3101
  %v3446 = vmul.f32 %v3445, %v3444
  %v3447 = vmul.f32 0.5, %v3446
  %v3448 = vsub.f32 1.5, %v3447
  %v3449 = vmul.f32 %v3444, %v3448
  %vm3450 = vweird.f32 %v3101
  %vm3451 = vweird.f32 %v3444
  %vm3452 = vmor %vm3450, %vm3451
  %v3453 = vsel %vm3452, %v3444, %v3449
  %v3454 = vrsqrt.pop %v3102
  %v3455 = vmul.f32 %v3454, %v3102
  %v3456 = vmul.f32 %v3455, %v3454
  %v3457 = vmul.f32 0.5, %v3456
  %v3458 = vsub.f32 1.5, %v3457
  %v3459 = vmul.f32 %v3454, %v3458
  %vm3460 = vweird.f32 %v3102
  %vm3461 = vweird.f32 %v3454
  %vm3462 = vmor %vm3460, %vm3461
  %v3463 = vsel %vm3462, %v3454, %v3459
  %v3464 = vrsqrt.pop %v3103
  %v3465 = vmul.f32 %v3464, %v3103
  %v3466 = vmul.f32 %v3465, %v3464
  %v3467 = vmul.f32 0.5, %v3466
  %v3468 = vsub.f32 1.5, %v3467
  %v3469 = vmul.f32 %v3464, %v3468
  %vm3470 = vweird.f32 %v3103
  %vm3471 = vweird.f32 %v3464
  %vm3472 = vmor %vm3470, %vm3471
  %v3473 = vsel %vm3472, %v3464, %v3469
  %v3474 = vrsqrt.pop %v3104
  %v3475 = vmul.f32 %v3474, %v3104
  %v3476 = vmul.f32 %v3475, %v3474
  %v3477 = vmul.f32 0.5, %v3476
  %v3478 = vsub.f32 1.5, %v3477
  %v3479 = vmul.f32 %v3474, %v3478
  %vm3480 = vweird.f32 %v3104
  %vm3481 = vweird.f32 %v3474
  %vm3482 = vmor %vm3480, %vm3481
  %v3483 = vsel %vm3482, %v3474, %v3479
  %v3484 = vrsqrt.pop %v3105
  %v3485 = vmul.f32 %v3484, %v3105
  %v3486 = vmul.f32 %v3485, %v3484
  %v3487 = vmul.f32 0.5, %v3486
  %v3488 = vsub.f32 1.5, %v3487
  %v3489 = vmul.f32 %v3484, %v3488
  %vm3490 = vweird.f32 %v3105
  %vm3491 = vweird.f32 %v3484
  %vm3492 = vmor %vm3490, %vm3491
  %v3493 = vsel %vm3492, %v3484, %v3489
  %v3494 = vrsqrt.pop %v3106
  %v3495 = vmul.f32 %v3494, %v3106
  %v3496 = vmul.f32 %v3495, %v3494
  %v3497 = vmul.f32 0.5, %v3496
  %v3498 = vsub.f32 1.5, %v3497
  %v3499 = vmul.f32 %v3494, %v3498
  %vm3500 = vweird.f32 %v3106
  %vm3501 = vweird.f32 %v3494
  %vm3502 = vmor %vm3500, %vm3501
  %v3503 = vsel %vm3502, %v3494, %v3499
  %v3504 = vrsqrt.pop %v3107
  %v3505 = vmul.f32 %v3504, %v3107
  %v3506 = vmul.f32 %v3505, %v3504
  %v3507 = vmul.f32 0.5, %v3506
  %v3508 = vsub.f32 1.5, %v3507
  %v3509 = vmul.f32 %v3504, %v3508
  %vm3510 = vweird.f32 %v3107
  %vm3511 = vweird.f32 %v3504
  %vm3512 = vmor %vm3510, %vm3511
  %v3513 = vsel %vm3512, %v3504, %v3509
  %v3514 = vrsqrt.pop %v3108
  %v3515 = vmul.f32 %v3514, %v3108
  %v3516 = vmul.f32 %v3515, %v3514
  %v3517 = vmul.f32 0.5, %v3516
  %v3518 = vsub.f32 1.5, %v3517
  %v3519 = vmul.f32 %v3514, %v3518
  %vm3520 = vweird.f32 %v3108
  %vm3521 = vweird.f32 %v3514
  %vm3522 = vmor %vm3520, %vm3521
  %v3523 = vsel %vm3522, %v3514, %v3519
  %v3524 = vrsqrt.pop %v3109
  %v3525 = vmul.f32 %v3524, %v3109
  %v3526 = vmul.f32 %v3525, %v3524
  %v3527 = vmul.f32 0.5, %v3526
  %v3528 = vsub.f32 1.5, %v3527
  %v3529 = vmul.f32 %v3524, %v3528
  %vm3530 = vweird.f32 %v3109
  %vm3531 = vweird.f32 %v3524
  %vm3532 = vmor %vm3530, %vm3531
  %v3533 = vsel %vm3532, %v3524, %v3529
  %v3534 = vrsqrt.pop %v3110
  %v3535 = vmul.f32 %v3534, %v3110
  %v3536 = vmul.f32 %v3535, %v3534
  %v3537 = vmul.f32 0.5, %v3536
  %v3538 = vsub.f32 1.5, %v3537
  %v3539 = vmul.f32 %v3534, %v3538
  %vm3540 = vweird.f32 %v3110
  %vm3541 = vweird.f32 %v3534
  %vm3542 = vmor %vm3540, %vm3541
  %v3543 = vsel %vm3542, %v3534, %v3539
  %v3544 = vrsqrt.pop %v3111
  %v3545 = vmul.f32 %v3544, %v3111
  %v3546 = vmul.f32 %v3545, %v3544
  %v3547 = vmul.f32 0.5, %v3546
  %v3548 = vsub.f32 1.5, %v3547
  %v3549 = vmul.f32 %v3544, %v3548
  %vm3550 = vweird.f32 %v3111
  %vm3551 = vweird.f32 %v3544
  %vm3552 = vmor %vm3550, %vm3551
  %v3553 = vsel %vm3552, %v3544, %v3549
  %v3554 = vrsqrt.pop %v3112
  %v3555 = vmul.f32 %v3554, %v3112
  %v3556 = vmul.f32 %v3555, %v3554
  %v3557 = vmul.f32 0.5, %v3556
  %v3558 = vsub.f32 1.5, %v3557
  %v3559 = vmul.f32 %v3554, %v3558
  %vm3560 = vweird.f32 %v3112
  %vm3561 = vweird.f32 %v3554
  %vm3562 = vmor %vm3560, %vm3561
  %v3563 = vsel %vm3562, %v3554, %v3559
  %v3564 = vrsqrt.pop %v3113
  %v3565 = vmul.f32 %v3564, %v3113
  %v3566 = vmul.f32 %v3565, %v3564
  %v3567 = vmul.f32 0.5, %v3566
  %v3568 = vsub.f32 1.5, %v3567
  %v3569 = vmul.f32 %v3564, %v3568
  %vm3570 = vweird.f32 %v3113
  %vm3571 = vweird.f32 %v3564
  %vm3572 = vmor %vm3570, %vm3571
  %v3573 = vsel %vm3572, %v3564, %v3569
  %v3574 = vrsqrt.pop %v3114
  %v3575 = vmul.f32 %v3574, %v3114
  %v3576 = vmul.f32 %v3575, %v3574
  %v3577 = vmul.f32 0.5, %v3576
  %v3578 = vsub.f32 1.5, %v3577
  %v3579 = vmul.f32 %v3574, %v3578
  %vm3580 = vweird.f32 %v3114
  %vm3581 = vweird.f32 %v3574
  %vm3582 = vmor %vm3580, %vm3581
  %v3583 = vsel %vm3582, %v3574, %v3579
  %v3584 = vrsqrt.pop %v3115
  %v3585 = vmul.f32 %v3584, %v3115
  %v3586 = vmul.f32 %v3585, %v3584
  %v3587 = vmul.f32 0.5, %v3586
  %v3588 = vsub.f32 1.5, %v3587
  %v3589 = vmul.f32 %v3584, %v3588
  %vm3590 = vweird.f32 %v3115
  %vm3591 = vweird.f32 %v3584
  %vm3592 = vmor %vm3590, %vm3591
  %v3593 = vsel %vm3592, %v3584, %v3589
  %v3594 = vrsqrt.pop %v3116
  %v3595 = vmul.f32 %v3594, %v3116
  %v3596 = vmul.f32 %v3595, %v3594
  %v3597 = vmul.f32 0.5, %v3596
  %v3598 = vsub.f32 1.5, %v3597
  %v3599 = vmul.f32 %v3594, %v3598
  %vm3600 = vweird.f32 %v3116
  %vm3601 = vweird.f32 %v3594
  %vm3602 = vmor %vm3600, %vm3601
  %v3603 = vsel %vm3602, %v3594, %v3599
  %v3604 = vrsqrt.pop %v3117
  %v3605 = vmul.f32 %v3604, %v3117
  %v3606 = vmul.f32 %v3605, %v3604
  %v3607 = vmul.f32 0.5, %v3606
  %v3608 = vsub.f32 1.5, %v3607
  %v3609 = vmul.f32 %v3604, %v3608
  %vm3610 = vweird.f32 %v3117
  %vm3611 = vweird.f32 %v3604
  %vm3612 = vmor %vm3610, %vm3611
  %v3613 = vsel %vm3612, %v3604, %v3609
  %v3614 = vrsqrt.pop %v3118
  %v3615 = vmul.f32 %v3614, %v3118
  %v3616 = vmul.f32 %v3615, %v3614
  %v3617 = vmul.f32 0.5, %v3616
  %v3618 = vsub.f32 1.5, %v3617
  %v3619 = vmul.f32 %v3614, %v3618
  %vm3620 = vweird.f32 %v3118
  %vm3621 = vweird.f32 %v3614
  %vm3622 = vmor %vm3620, %vm3621
  %v3623 = vsel %vm3622, %v3614, %v3619
  %v3624 = vrsqrt.pop %v3119
  %v3625 = vmul.f32 %v3624, %v3119
  %v3626 = vmul.f32 %v3625, %v3624
  %v3627 = vmul.f32 0.5, %v3626
  %v3628 = vsub.f32 1.5, %v3627
  %v3629 = vmul.f32 %v3624, %v3628
  %vm3630 = vweird.f32 %v3119
  %vm3631 = vweird.f32 %v3624
  %vm3632 = vmor %vm3630, %vm3631
  %v3633 = vsel %vm3632, %v3624, %v3629
  %v3634 = vrsqrt.pop %v3120
  %v3635 = vmul.f32 %v3634, %v3120
  %v3636 = vmul.f32 %v3635, %v3634
  %v3637 = vmul.f32 0.5, %v3636
  %v3638 = vsub.f32 1.5, %v3637
  %v3639 = vmul.f32 %v3634, %v3638
  %vm3640 = vweird.f32 %v3120
  %vm3641 = vweird.f32 %v3634
  %vm3642 = vmor %vm3640, %vm3641
  %v3643 = vsel %vm3642, %v3634, %v3639
  %v3644 = vrsqrt.pop %v3121
  %v3645 = vmul.f32 %v3644, %v3121
  %v3646 = vmul.f32 %v3645, %v3644
  %v3647 = vmul.f32 0.5, %v3646
  %v3648 = vsub.f32 1.5, %v3647
  %v3649 = vmul.f32 %v3644, %v3648
  %vm3650 = vweird.f32 %v3121
  %vm3651 = vweird.f32 %v3644
  %vm3652 = vmor %vm3650, %vm3651
  %v3653 = vsel %vm3652, %v3644, %v3649
  %v3654 = vrsqrt.pop %v3122
  %v3655 = vmul.f32 %v3654, %v3122
  %v3656 = vmul.f32 %v3655, %v3654
  %v3657 = vmul.f32 0.5, %v3656
  %v3658 = vsub.f32 1.5, %v3657
  %v3659 = vmul.f32 %v3654, %v3658
  %vm3660 = vweird.f32 %v3122
  %vm3661 = vweird.f32 %v3654
  %vm3662 = vmor %vm3660, %vm3661
  %v3663 = vsel %vm3662, %v3654, %v3659
  %v3664 = vrsqrt.pop %v3123
  %v3665 = vmul.f32 %v3664, %v3123
  %v3666 = vmul.f32 %v3665, %v3664
  %v3667 = vmul.f32 0.5, %v3666
  %v3668 = vsub.f32 1.5, %v3667
  %v3669 = vmul.f32 %v3664, %v3668
  %vm3670 = vweird.f32 %v3123
  %vm3671 = vweird.f32 %v3664
  %vm3672 = vmor %vm3670, %vm3671
  %v3673 = vsel %vm3672, %v3664, %v3669
  %v3674 = vrsqrt.pop %v3124
  %v3675 = vmul.f32 %v3674, %v3124
  %v3676 = vmul.f32 %v3675, %v3674
  %v3677 = vmul.f32 0.5, %v3676
  %v3678 = vsub.f32 1.5, %v3677
  %v3679 = vmul.f32 %v3674, %v3678
  %vm3680 = vweird.f32 %v3124
  %vm3681 = vweird.f32 %v3674
  %vm3682 = vmor %vm3680, %vm3681
  %v3683 = vsel %vm3682, %v3674, %v3679
  %v3684 = vrsqrt.pop %v3125
  %v3685 = vmul.f32 %v3684, %v3125
  %v3686 = vmul.f32 %v3685, %v3684
  %v3687 = vmul.f32 0.5, %v3686
  %v3688 = vsub.f32 1.5, %v3687
  %v3689 = vmul.f32 %v3684, %v3688
  %vm3690 = vweird.f32 %v3125
  %vm3691 = vweird.f32 %v3684
  %vm3692 = vmor %vm3690, %vm3691
  %v3693 = vsel %vm3692, %v3684, %v3689
  %v3694 = vrsqrt.pop %v3126
  %v3695 = vmul.f32 %v3694, %v3126
  %v3696 = vmul.f32 %v3695, %v3694
  %v3697 = vmul.f32 0.5, %v3696
  %v3698 = vsub.f32 1.5, %v3697
  %v3699 = vmul.f32 %v3694, %v3698
  %vm3700 = vweird.f32 %v3126
  %vm3701 = vweird.f32 %v3694
  %vm3702 = vmor %vm3700, %vm3701
  %v3703 = vsel %vm3702, %v3694, %v3699
  %v3704 = vrsqrt.pop %v3127
  %v3705 = vmul.f32 %v3704, %v3127
  %v3706 = vmul.f32 %v3705, %v3704
  %v3707 = vmul.f32 0.5, %v3706
  %v3708 = vsub.f32 1.5, %v3707
  %v3709 = vmul.f32 %v3704, %v3708
  %vm3710 = vweird.f32 %v3127
  %vm3711 = vweird.f32 %v3704
  %vm3712 = vmor %vm3710, %vm3711
  %v3713 = vsel %vm3712, %v3704, %v3709
  %v3714 = vrsqrt.pop %v3128
  %v3715 = vmul.f32 %v3714, %v3128
  %v3716 = vmul.f32 %v3715, %v3714
  %v3717 = vmul.f32 0.5, %v3716
  %v3718 = vsub.f32 1.5, %v3717
  %v3719 = vmul.f32 %v3714, %v3718
  %vm3720 = vweird.f32 %v3128
  %vm3721 = vweird.f32 %v3714
  %vm3722 = vmor %vm3720, %vm3721
  %v3723 = vsel %vm3722, %v3714, %v3719
  %v3724 = vrsqrt.pop %v3129
  %v3725 = vmul.f32 %v3724, %v3129
  %v3726 = vmul.f32 %v3725, %v3724
  %v3727 = vmul.f32 0.5, %v3726
  %v3728 = vsub.f32 1.5, %v3727
  %v3729 = vmul.f32 %v3724, %v3728
  %vm3730 = vweird.f32 %v3129
  %vm3731 = vweird.f32 %v3724
  %vm3732 = vmor %vm3730, %vm3731
  %v3733 = vsel %vm3732, %v3724, %v3729
  %v3734 = vrsqrt.pop %v3130
  %v3735 = vmul.f32 %v3734, %v3130
  %v3736 = vmul.f32 %v3735, %v3734
  %v3737 = vmul.f32 0.5, %v3736
  %v3738 = vsub.f32 1.5, %v3737
  %v3739 = vmul.f32 %v3734, %v3738
  %vm3740 = vweird.f32 %v3130
  %vm3741 = vweird.f32 %v3734
  %vm3742 = vmor %vm3740, %vm3741
  %v3743 = vsel %vm3742, %v3734, %v3739
  %v3744 = vrsqrt.pop %v3131
  %v3745 = vmul.f32 %v3744, %v3131
  %v3746 = vmul.f32 %v3745, %v3744
  %v3747 = vmul.f32 0.5, %v3746
  %v3748 = vsub.f32 1.5, %v3747
  %v3749 = vmul.f32 %v3744, %v3748
  %vm3750 = vweird.f32 %v3131
  %vm3751 = vweird.f32 %v3744
  %vm3752 = vmor %vm3750, %vm3751
  %v3753 = vsel %vm3752, %v3744, %v3749
  %v3754 = vrsqrt.pop %v3132
  %v3755 = vmul.f32 %v3754, %v3132
  %v3756 = vmul.f32 %v3755, %v3754
  %v3757 = vmul.f32 0.5, %v3756
  %v3758 = vsub.f32 1.5, %v3757
  %v3759 = vmul.f32 %v3754, %v3758
  %vm3760 = vweird.f32 %v3132
  %vm3761 = vweird.f32 %v3754
  %vm3762 = vmor %vm3760, %vm3761
  %v3763 = vsel %vm3762, %v3754, %v3759
  %v3764 = vrsqrt.pop %v3133
  %v3765 = vmul.f32 %v3764, %v3133
  %v3766 = vmul.f32 %v3765, %v3764
  %v3767 = vmul.f32 0.5, %v3766
  %v3768 = vsub.f32 1.5, %v3767
  %v3769 = vmul.f32 %v3764, %v3768
  %vm3770 = vweird.f32 %v3133
  %vm3771 = vweird.f32 %v3764
  %vm3772 = vmor %vm3770, %vm3771
  %v3773 = vsel %vm3772, %v3764, %v3769
  %v3774 = vmul.f32 %v2176, %v3143
  %v3775 = vmul.f32 %v2179, %v3153
  %v3776 = vmul.f32 %v2182, %v3163
  %v3777 = vmul.f32 %v2185, %v3173
  %v3778 = vmul.f32 %v2188, %v3183
  %v3779 = vmul.f32 %v2191, %v3193
  %v3780 = vmul.f32 %v2194, %v3203
  %v3781 = vmul.f32 %v2197, %v3213
  %v3782 = vmul.f32 %v2200, %v3223
  %v3783 = vmul.f32 %v2203, %v3233
  %v3784 = vmul.f32 %v2206, %v3243
  %v3785 = vmul.f32 %v2209, %v3253
  %v3786 = vmul.f32 %v2212, %v3263
  %v3787 = vmul.f32 %v2215, %v3273
  %v3788 = vmul.f32 %v2218, %v3283
  %v3789 = vmul.f32 %v2221, %v3293
  %v3790 = vmul.f32 %v2224, %v3303
  %v3791 = vmul.f32 %v2227, %v3313
  %v3792 = vmul.f32 %v2230, %v3323
  %v3793 = vmul.f32 %v2233, %v3333
  %v3794 = vmul.f32 %v2236, %v3343
  %v3795 = vmul.f32 %v2239, %v3353
  %v3796 = vmul.f32 %v2242, %v3363
  %v3797 = vmul.f32 %v2245, %v3373
  %v3798 = vmul.f32 %v2248, %v3383
  %v3799 = vmul.f32 %v2251, %v3393
  %v3800 = vmul.f32 %v2254, %v3403
  %v3801 = vmul.f32 %v2257, %v3413
  %v3802 = vmul.f32 %v2260, %v3423
  %v3803 = vmul.f32 %v2263, %v3433
  %v3804 = vmul.f32 %v2266, %v3443
  %v3805 = vmul.f32 %v2269, %v3453
  %v3806 = vmul.f32 %v2272, %v3463
  %v3807 = vmul.f32 %v2275, %v3473
  %v3808 = vmul.f32 %v2278, %v3483
  %v3809 = vmul.f32 %v2281, %v3493
  %v3810 = vmul.f32 %v2284, %v3503
  %v3811 = vmul.f32 %v2287, %v3513
  %v3812 = vmul.f32 %v2290, %v3523
  %v3813 = vmul.f32 %v2293, %v3533
  %v3814 = vmul.f32 %v2296, %v3543
  %v3815 = vmul.f32 %v2299, %v3553
  %v3816 = vmul.f32 %v2302, %v3563
  %v3817 = vmul.f32 %v2305, %v3573
  %v3818 = vmul.f32 %v2308, %v3583
  %v3819 = vmul.f32 %v2311, %v3593
  %v3820 = vmul.f32 %v2314, %v3603
  %v3821 = vmul.f32 %v2317, %v3613
  %v3822 = vmul.f32 %v2320, %v3623
  %v3823 = vmul.f32 %v2323, %v3633
  %v3824 = vmul.f32 %v2326, %v3643
  %v3825 = vmul.f32 %v2329, %v3653
  %v3826 = vmul.f32 %v2332, %v3663
  %v3827 = vmul.f32 %v2335, %v3673
  %v3828 = vmul.f32 %v2338, %v3683
  %v3829 = vmul.f32 %v2341, %v3693
  %v3830 = vmul.f32 %v2344, %v3703
  %v3831 = vmul.f32 %v2347, %v3713
  %v3832 = vmul.f32 %v2350, %v3723
  %v3833 = vmul.f32 %v2353, %v3733
  %v3834 = vmul.f32 %v2356, %v3743
  %v3835 = vmul.f32 %v2359, %v3753
  %v3836 = vmul.f32 %v2362, %v3763
  %v3837 = vmul.f32 %v2365, %v3773
  %vm3838 = vcmask 7168
  %v3839 = vsel %vm3838, %v3774, 0.0
  %v3840 = vsel %vm3838, %v3775, 0.0
  %v3841 = vadd.f32 %v3839, %v3840
  %v3842 = vsel %vm3838, %v3776, 0.0
  %v3843 = vadd.f32 %v3841, %v3842
  %v3844 = vsel %vm3838, %v3777, 0.0
  %v3845 = vadd.f32 %v3843, %v3844
  %v3846 = vsel %vm3838, %v3778, 0.0
  %v3847 = vadd.f32 %v3845, %v3846
  %v3848 = vsel %vm3838, %v3779, 0.0
  %v3849 = vadd.f32 %v3847, %v3848
  %v3850 = vsel %vm3838, %v3780, 0.0
  %v3851 = vadd.f32 %v3849, %v3850
  %v3852 = vsel %vm3838, %v3781, 0.0
  %v3853 = vadd.f32 %v3851, %v3852
  %v3854 = vsel %vm3838, %v3782, 0.0
  %v3855 = vadd.f32 %v3853, %v3854
  %v3856 = vsel %vm3838, %v3783, 0.0
  %v3857 = vadd.f32 %v3855, %v3856
  %v3858 = vsel %vm3838, %v3784, 0.0
  %v3859 = vadd.f32 %v3857, %v3858
  %v3860 = vsel %vm3838, %v3785, 0.0
  %v3861 = vadd.f32 %v3859, %v3860
  %v3862 = vsel %vm3838, %v3786, 0.0
  %v3863 = vadd.f32 %v3861, %v3862
  %v3864 = vsel %vm3838, %v3787, 0.0
  %v3865 = vadd.f32 %v3863, %v3864
  %v3866 = vsel %vm3838, %v3788, 0.0
  %v3867 = vadd.f32 %v3865, %v3866
  %v3868 = vsel %vm3838, %v3789, 0.0
  %v3869 = vadd.f32 %v3867, %v3868
  %v3870 = vsel %vm3838, %v3790, 0.0
  %v3871 = vadd.f32 %v3869, %v3870
  %v3872 = vsel %vm3838, %v3791, 0.0
  %v3873 = vadd.f32 %v3871, %v3872
  %v3874 = vsel %vm3838, %v3792, 0.0
  %v3875 = vadd.f32 %v3873, %v3874
  %v3876 = vsel %vm3838, %v3793, 0.0
  %v3877 = vadd.f32 %v3875, %v3876
  %v3878 = vsel %vm3838, %v3794, 0.0
  %v3879 = vadd.f32 %v3877, %v3878
  %v3880 = vsel %vm3838, %v3795, 0.0
  %v3881 = vadd.f32 %v3879, %v3880
  %v3882 = vsel %vm3838, %v3796, 0.0
  %v3883 = vadd.f32 %v3881, %v3882
  %v3884 = vsel %vm3838, %v3797, 0.0
  %v3885 = vadd.f32 %v3883, %v3884
  %v3886 = vsel %vm3838, %v3798, 0.0
  %v3887 = vadd.f32 %v3885, %v3886
  %v3888 = vsel %vm3838, %v3799, 0.0
  %v3889 = vadd.f32 %v3887, %v3888
  %v3890 = vsel %vm3838, %v3800, 0.0
  %v3891 = vadd.f32 %v3889, %v3890
  %v3892 = vsel %vm3838, %v3801, 0.0
  %v3893 = vadd.f32 %v3891, %v3892
  %v3894 = vsel %vm3838, %v3802, 0.0
  %v3895 = vadd.f32 %v3893, %v3894
  %v3896 = vsel %vm3838, %v3803, 0.0
  %v3897 = vadd.f32 %v3895, %v3896
  %v3898 = vsel %vm3838, %v3804, 0.0
  %v3899 = vadd.f32 %v3897, %v3898
  %v3900 = vsel %vm3838, %v3805, 0.0
  %v3901 = vadd.f32 %v3899, %v3900
  %v3902 = vsel %vm3838, %v3806, 0.0
  %v3903 = vadd.f32 %v3901, %v3902
  %v3904 = vsel %vm3838, %v3807, 0.0
  %v3905 = vadd.f32 %v3903, %v3904
  %v3906 = vsel %vm3838, %v3808, 0.0
  %v3907 = vadd.f32 %v3905, %v3906
  %v3908 = vsel %vm3838, %v3809, 0.0
  %v3909 = vadd.f32 %v3907, %v3908
  %v3910 = vsel %vm3838, %v3810, 0.0
  %v3911 = vadd.f32 %v3909, %v3910
  %v3912 = vsel %vm3838, %v3811, 0.0
  %v3913 = vadd.f32 %v3911, %v3912
  %v3914 = vsel %vm3838, %v3812, 0.0
  %v3915 = vadd.f32 %v3913, %v3914
  %v3916 = vsel %vm3838, %v3813, 0.0
  %v3917 = vadd.f32 %v3915, %v3916
  %v3918 = vsel %vm3838, %v3814, 0.0
  %v3919 = vadd.f32 %v3917, %v3918
  %v3920 = vsel %vm3838, %v3815, 0.0
  %v3921 = vadd.f32 %v3919, %v3920
  %v3922 = vsel %vm3838, %v3816, 0.0
  %v3923 = vadd.f32 %v3921, %v3922
  %v3924 = vsel %vm3838, %v3817, 0.0
  %v3925 = vadd.f32 %v3923, %v3924
  %v3926 = vsel %vm3838, %v3818, 0.0
  %v3927 = vadd.f32 %v3925, %v3926
  %v3928 = vsel %vm3838, %v3819, 0.0
  %v3929 = vadd.f32 %v3927, %v3928
  %v3930 = vsel %vm3838, %v3820, 0.0
  %v3931 = vadd.f32 %v3929, %v3930
  %v3932 = vsel %vm3838, %v3821, 0.0
  %v3933 = vadd.f32 %v3931, %v3932
  %v3934 = vsel %vm3838, %v3822, 0.0
  %v3935 = vadd.f32 %v3933, %v3934
  %v3936 = vsel %vm3838, %v3823, 0.0
  %v3937 = vadd.f32 %v3935, %v3936
  %v3938 = vsel %vm3838, %v3824, 0.0
  %v3939 = vadd.f32 %v3937, %v3938
  %v3940 = vsel %vm3838, %v3825, 0.0
  %v3941 = vadd.f32 %v3939, %v3940
  %v3942 = vsel %vm3838, %v3826, 0.0
  %v3943 = vadd.f32 %v3941, %v3942
  %v3944 = vsel %vm3838, %v3827, 0.0
  %v3945 = vadd.f32 %v3943, %v3944
  %v3946 = vsel %vm3838, %v3828, 0.0
  %v3947 = vadd.f32 %v3945, %v3946
  %v3948 = vsel %vm3838, %v3829, 0.0
  %v3949 = vadd.f32 %v3947, %v3948
  %v3950 = vsel %vm3838, %v3830, 0.0
  %v3951 = vadd.f32 %v3949, %v3950
  %v3952 = vsel %vm3838, %v3831, 0.0
  %v3953 = vadd.f32 %v3951, %v3952
  %v3954 = vsel %vm3838, %v3832, 0.0
  %v3955 = vadd.f32 %v3953, %v3954
  %v3956 = vsel %vm3838, %v3833, 0.0
  %v3957 = vadd.f32 %v3955, %v3956
  %v3958 = vsel %vm3838, %v3834, 0.0
  %v3959 = vadd.f32 %v3957, %v3958
  %v3960 = vsel %vm3838, %v3835, 0.0
  %v3961 = vadd.f32 %v3959, %v3960
  %v3962 = vsel %vm3838, %v3836, 0.0
  %v3963 = vadd.f32 %v3961, %v3962
  %v3964 = vsel %vm3838, %v3837, 0.0
  %v3965 = vadd.f32 %v3963, %v3964
  %3966 = vadd.xlane.f32.xlu0 %v3965
  %v3967 = vpop.xlane.xlu0 %3966
  %v3968 = vrot.slane %v3967, 4
  %v3969 = vadd.f32 %v3967, %v3968
  %v3970 = vrot.slane %v3969, 2
  %v3971 = vadd.f32 %v3969, %v3970
  %v3972 = vrot.slane %v3971, 1
  %v3973 = vadd.f32 %v3971, %v3972
  %s3974 = vtos %v3973
  %v3975 = vstv %s3974
  %3976 = vst [vmem:[%s5] sm:$0xff] %v3975
  // Predicated region
  $region22: #{convmim_forward_loss.9} parent=0 // pred_check
    _
  $region23: #{convmim_forward_loss.9} parent=0 // pred_check_branch
    %3978 = sbr.rel (0) target = $region25
  $region24: #{convmim_forward_loss.9} parent=0 // pred_region
    _
  $region25: #{convmim_forward_loss.9} parent=0 // pred_fallthru
    _
  // Predicated region
  $region26: #{convmim_forward_loss.9} parent=0 // pred_check
    _
  $region27: #{convmim_forward_loss.9} parent=0 // pred_check_branch
    %3980 = sbr.rel (0) target = $region29
  $region28: #{convmim_forward_loss.9} parent=0 // pred_region
    _
  $region29: #{convmim_forward_loss.9} parent=0 // pred_fallthru
    _

</llo_original>
